<compile_context>
chip_gen: v7x
topology: tpu7x:2x2x1
jax: 0.10.0
libtpu: 0.0.40
codegen_flags: <defaults>
</compile_context>

<pallas_src>
import jax
import jax.numpy as jnp
from jax import lax
from jax.experimental import pallas as pl
from jax.experimental.pallas import tpu as pltpu

_LPAD = 8  # interior starts at sublane offset 8 in the padded scratch (aligned)


# --------------------------------------------------------------------------
# Fused ResidualGroup kernel
# --------------------------------------------------------------------------
def _conv3x3_im2col(pad_ref, w_flat_bf16, bias_f32, H, W, C):
    """3x3 'same' conv read from the padded f32 VMEM scratch.

    Reads the 9 (H, W, C) taps (interior lives at sublane offset _LPAD so the
    centre tap is fully aligned), casts them to bf16, concatenates along
    lanes into the (H*W, 9C) im2col patch and performs one bf16 MXU matmul
    with f32 accumulation.  Returns (H*W, C) float32.
    """
    taps = []
    for dh in range(3):
        for dw in range(3):
            tap = pad_ref[dh:dh + H, _LPAD - 1 + dw:_LPAD - 1 + dw + W, :]
            # (H, W, C) -> (H*W, C) is layout-free (W % 8 == 0); cast to bf16
            # so the patch and both MXU operands are half width.
            taps.append(tap.reshape(H * W, C).astype(jnp.bfloat16))
    patch = jnp.concatenate(taps, axis=1)                      # (H*W, 9C) bf16
    acc = jnp.dot(patch, w_flat_bf16, preferred_element_type=jnp.float32)
    return acc + bias_f32                                      # bias (1, C) f32


def _res_group_kernel(x_ref, w1_ref, b1_ref, w2_ref, b2_ref,
                      caw1t_ref, cab1_ref, caw2_ref, cab2_ref,
                      wf_ref, bf_ref, o_ref, pad_ref):
    # x_ref / o_ref : (1, H, W, C)   one image per grid step
    # w1/w2/wf      : im2col-flattened 3x3 conv weights, bf16
    # b1/b2/bf      : conv biases, f32
    # caw1t         : (nb, Cr, C)  = ca_w1.T   (f32)
    # cab1          : (nb, Cr, 1)              (f32)
    # caw2          : (nb, Cr, C)              (f32)
    # cab2          : (nb, 1, C)               (f32)
    # pad_ref       : VMEM scratch (H+2, W+2*_LPAD, C) f32, zero halo
    nb = w1_ref.shape[0]
    _, H, W, C = x_ref.shape
    WP = W + 2 * _LPAD

    # Zero only the halo strips (all aligned full-width stores), once per
    # image; the interior is fully rewritten before every conv.  This is
    # unconditional so it stays correct when the grid axis is sharded across
    # v7x's two TensorCores.
    pad_ref[0:1, :, :] = jnp.zeros((1, WP, C), jnp.float32)
    pad_ref[H + 1:H + 2, :, :] = jnp.zeros((1, WP, C), jnp.float32)
    pad_ref[1:H + 1, 0:_LPAD, :] = jnp.zeros((H, _LPAD, C), jnp.float32)
    pad_ref[1:H + 1, _LPAD + W:WP, :] = jnp.zeros((H, _LPAD, C), jnp.float32)

    x_flat = x_ref[0].astype(jnp.float32).reshape(H * W, C)     # (H*W, C)
    y = x_flat

    # TODO(synk): for realistic n_resblocks (10-20) switch this static unroll
    #             to lax.fori_loop with dynamic first-axis weight indexing to
    #             bound code footprint; at nb=2 the unroll is optimal.
    for blk in range(nb):
        # ---- RCAB: conv3x3 -> ReLU -----------------------------------------
        pad_ref[1:H + 1, _LPAD:_LPAD + W, :] = y.reshape(H, W, C)   # aligned
        a = _conv3x3_im2col(pad_ref, w1_ref[blk], b1_ref[blk], H, W, C)
        a = jnp.maximum(a, 0.0)

        # ---- conv3x3 ---------------------------------------------------------
        pad_ref[1:H + 1, _LPAD:_LPAD + W, :] = a.reshape(H, W, C)
        a = _conv3x3_im2col(pad_ref, w2_ref[blk], b2_ref[blk], H, W, C)

        # ---- CALayer: GAP -> 1x1 -> ReLU -> 1x1 -> sigmoid -> scale ---------
        # VPU/XLU only: broadcast-multiply + small reductions, no M=1 MXU
        # matmuls on the serial critical path.  Stays in f32.
        pooled = jnp.mean(a, axis=0, keepdims=True)                     # (1, C)
        h = jnp.sum(caw1t_ref[blk] * pooled, axis=1, keepdims=True)     # (Cr, 1)
        h = jnp.maximum(h + cab1_ref[blk], 0.0)
        s = jnp.sum(caw2_ref[blk] * h, axis=0, keepdims=True)           # (1, C)
        s = s + cab2_ref[blk]
        scale = 1.0 / (1.0 + jnp.exp(-s))                               # sigmoid

        # ---- RCAB residual ---------------------------------------------------
        y = a * scale + y

    # ---- trailing group conv + group residual -------------------------------
    pad_ref[1:H + 1, _LPAD:_LPAD + W, :] = y.reshape(H, W, C)
    out = _conv3x3_im2col(pad_ref, wf_ref[...], bf_ref[...], H, W, C) + x_flat
    o_ref[0] = out.reshape(H, W, C).astype(o_ref.dtype)


# --------------------------------------------------------------------------
# Wrapper: NCHW in / NCHW out (PyTorch convention), one pallas_call per group
# --------------------------------------------------------------------------
def residual_group_forward(x_nchw, params):
    x = jnp.transpose(x_nchw, (0, 2, 3, 1))          # NCHW -> NHWC
    N, H, W, C = x.shape
    assert W % 8 == 0, "W must be a multiple of 8 for the layout-free reshape"
    blocks = params["blocks"]
    nb = len(blocks)
    Cr = blocks[0]["ca_w1"].shape[1]

    # Host-side packing.  Conv weights -> bf16 im2col-flattened (MXU operands);
    # biases and CA squeeze/excite stay f32.  ca_w1 is pre-transposed so the
    # in-kernel CA needs no transpose.
    w1 = jnp.stack([b["w1"].reshape(9 * C, C) for b in blocks]).astype(jnp.bfloat16)
    b1 = jnp.stack([b["b1"].reshape(1, C) for b in blocks])
    w2 = jnp.stack([b["w2"].reshape(9 * C, C) for b in blocks]).astype(jnp.bfloat16)
    b2 = jnp.stack([b["b2"].reshape(1, C) for b in blocks])
    caw1t = jnp.stack([b["ca_w1"].T for b in blocks])                 # (nb, Cr, C)
    cab1 = jnp.stack([b["ca_b1"].reshape(Cr, 1) for b in blocks])     # (nb, Cr, 1)
    caw2 = jnp.stack([b["ca_w2"] for b in blocks])                    # (nb, Cr, C)
    cab2 = jnp.stack([b["ca_b2"].reshape(1, C) for b in blocks])      # (nb, 1, C)
    wf = params["wf"].reshape(9 * C, C).astype(jnp.bfloat16)
    bf = params["bf"].reshape(1, C)

    img = lambda n: (n, 0, 0, 0)
    const3 = lambda n: (0, 0, 0)
    const2 = lambda n: (0, 0)

    # grid=(N,) "parallel": with N>=2 both v7x TensorCores are used; on
    # single-TC v5e/v6e this is a serial loop (per-step overhead is small at
    # this size).
    # TODO(synk): optional N-batched im2col (one grid step, (N*H*W, 9C) patch)
    #             for single-TC chips once tile sizes are realistic.
    out = pl.pallas_call(
        _res_group_kernel,
        out_shape=jax.ShapeDtypeStruct((N, H, W, C), x.dtype),
        grid=(N,),
        in_specs=[
            pl.BlockSpec((1, H, W, C), img),
            pl.BlockSpec((nb, 9 * C, C), const3),
            pl.BlockSpec((nb, 1, C), const3),
            pl.BlockSpec((nb, 9 * C, C), const3),
            pl.BlockSpec((nb, 1, C), const3),
            pl.BlockSpec((nb, Cr, C), const3),
            pl.BlockSpec((nb, Cr, 1), const3),
            pl.BlockSpec((nb, Cr, C), const3),
            pl.BlockSpec((nb, 1, C), const3),
            pl.BlockSpec((9 * C, C), const2),
            pl.BlockSpec((1, C), const2),
        ],
        out_specs=pl.BlockSpec((1, H, W, C), img),
        scratch_shapes=[pltpu.VMEM((H + 2, W + 2 * _LPAD, C), jnp.float32)],
        compiler_params=pltpu.CompilerParams(
            dimension_semantics=("parallel",)),
    )(x, w1, b1, w2, b2, caw1t, cab1, caw2, cab2, wf, bf)

    return jnp.transpose(out, (0, 3, 1, 2))          # NHWC -> NCHW


# --------------------------------------------------------------------------
# Deterministic parameter construction (shapes from the PyTorch __init__)
# --------------------------------------------------------------------------
def make_params(key, n_feat, reduction, n_resblocks):
    Cr = n_feat // reduction
    blocks = []
    for _ in range(n_resblocks):
        keys = jax.random.split(key, 9)
        key = keys[0]
        blk = {
            "w1": 0.05 * jax.random.normal(keys[1], (3, 3, n_feat, n_feat), jnp.float32),
            "b1": 0.05 * jax.random.normal(keys[2], (n_feat,), jnp.float32),
            "w2": 0.05 * jax.random.normal(keys[3], (3, 3, n_feat, n_feat), jnp.float32),
            "b2": 0.05 * jax.random.normal(keys[4], (n_feat,), jnp.float32),
            "ca_w1": 0.2 * jax.random.normal(keys[5], (n_feat, Cr), jnp.float32),
            "ca_b1": 0.2 * jax.random.normal(keys[6], (Cr,), jnp.float32),
            "ca_w2": 0.2 * jax.random.normal(keys[7], (Cr, n_feat), jnp.float32),
            "ca_b2": 0.2 * jax.random.normal(keys[8], (n_feat,), jnp.float32),
        }
        blocks.append(blk)
    kf = jax.random.split(key, 3)
    return {
        "blocks": blocks,
        "wf": 0.05 * jax.random.normal(kf[1], (3, 3, n_feat, n_feat), jnp.float32),
        "bf": 0.05 * jax.random.normal(kf[2], (n_feat,), jnp.float32),
    }


# --------------------------------------------------------------------------
# Pure-JAX reference (mirrors the kernel's precision: bf16 conv operands,
# f32 accumulation; CA in f32) -- removes the precision mismatch flagged in
# the review.
# --------------------------------------------------------------------------
def _conv_ref(x, w_hwio, b):
    y = lax.conv_general_dilated(
        x.astype(jnp.bfloat16), w_hwio.astype(jnp.bfloat16),
        window_strides=(1, 1), padding="SAME",
        dimension_numbers=("NHWC", "HWIO", "NHWC"),
        preferred_element_type=jnp.float32)
    return y + b.reshape(1, 1, 1, -1)


def residual_group_ref(x_nchw, params):
    x = jnp.transpose(x_nchw, (0, 2, 3, 1))
    y = x
    for blk in params["blocks"]:
        r = jnp.maximum(_conv_ref(y, blk["w1"], blk["b1"]), 0.0)
        r = _conv_ref(r, blk["w2"], blk["b2"])
        s = jnp.mean(r, axis=(1, 2), keepdims=True)                      # (N,1,1,C)
        s = jnp.maximum(jnp.einsum("nijc,cd->nijd", s, blk["ca_w1"])
                        + blk["ca_b1"], 0.0)
        s = jax.nn.sigmoid(jnp.einsum("nijd,dc->nijc", s, blk["ca_w2"])
                           + blk["ca_b2"])
        y = r * s + y
    y = _conv_ref(y, params["wf"], params["bf"]) + x
    return jnp.transpose(y, (0, 3, 1, 2))


# --------------------------------------------------------------------------
if __name__ == "__main__":
    N, C, H, W = 2, 16, 16, 16      # NCHW, matching the PyTorch convention
    reduction = 4
    n_resblocks = 2

    key = jax.random.PRNGKey(0)
    k_x, k_p = jax.random.split(key)
    x = jax.random.normal(k_x, (N, C, H, W), jnp.float32)
    params = make_params(k_p, C, reduction, n_resblocks)

    fwd = jax.jit(residual_group_forward)
    out = jax.block_until_ready(fwd(x, params))

    ref = jax.block_until_ready(residual_group_ref(x, params))
    assert out.shape == (N, C, H, W)
    max_err = float(jnp.max(jnp.abs(out - ref)))
    # Both kernel and reference use bf16 conv operands with f32 accumulation;
    # remaining differences are summation-order / re-quantization effects, so
    # 1e-2 is a generous but still meaningful bound.
    assert jnp.allclose(out, ref, rtol=1e-2, atol=1e-2), max_err

    print("KERNEL_OK")
</pallas_src>

<mosaic_0001>
module attributes {stable_mosaic.version = 11 : i64} {
  func.func @_res_group_kernel(%arg0: i32, %arg1: memref<1x16x16x16xf32, #tpu.memory_space<vmem>>, %arg2: memref<2x144x16xbf16, #tpu.memory_space<vmem>>, %arg3: memref<2x1x16xf32, #tpu.memory_space<vmem>>, %arg4: memref<2x144x16xbf16, #tpu.memory_space<vmem>>, %arg5: memref<2x1x16xf32, #tpu.memory_space<vmem>>, %arg6: memref<2x4x16xf32, #tpu.memory_space<vmem>>, %arg7: memref<2x4x1xf32, #tpu.memory_space<vmem>>, %arg8: memref<2x4x16xf32, #tpu.memory_space<vmem>>, %arg9: memref<2x1x16xf32, #tpu.memory_space<vmem>>, %arg10: memref<144x16xbf16, #tpu.memory_space<vmem>>, %arg11: memref<1x16xf32, #tpu.memory_space<vmem>>, %arg12: memref<1x16x16x16xf32, #tpu.memory_space<vmem>>, %arg13: memref<18x32x16xf32, #tpu.memory_space<vmem>>) attributes {dimension_semantics = [#tpu.dimension_semantics<parallel>], iteration_bounds = array<i64: 2>, scalar_prefetch = 0 : i64, scratch_operands = 1 : i64, tpu.core_type = #tpu.core_type<tc>, window_params = [{transform_indices = @transform_0, window_bounds = array<i64: 1, 16, 16, 16>}, {pipeline_mode = #tpu.pipeline_mode<synchronous>, transform_indices = @transform_1, window_bounds = array<i64: 2, 144, 16>}, {pipeline_mode = #tpu.pipeline_mode<synchronous>, transform_indices = @transform_2, window_bounds = array<i64: 2, 1, 16>}, {pipeline_mode = #tpu.pipeline_mode<synchronous>, transform_indices = @transform_3, window_bounds = array<i64: 2, 144, 16>}, {pipeline_mode = #tpu.pipeline_mode<synchronous>, transform_indices = @transform_4, window_bounds = array<i64: 2, 1, 16>}, {pipeline_mode = #tpu.pipeline_mode<synchronous>, transform_indices = @transform_5, window_bounds = array<i64: 2, 4, 16>}, {pipeline_mode = #tpu.pipeline_mode<synchronous>, transform_indices = @transform_6, window_bounds = array<i64: 2, 4, 1>}, {pipeline_mode = #tpu.pipeline_mode<synchronous>, transform_indices = @transform_7, window_bounds = array<i64: 2, 4, 16>}, {pipeline_mode = #tpu.pipeline_mode<synchronous>, transform_indices = @transform_8, window_bounds = array<i64: 2, 1, 16>}, {pipeline_mode = #tpu.pipeline_mode<synchronous>, transform_indices = @transform_9, window_bounds = array<i64: 144, 16>}, {pipeline_mode = #tpu.pipeline_mode<synchronous>, transform_indices = @transform_10, window_bounds = array<i64: 1, 16>}, {transform_indices = @transform_11, window_bounds = array<i64: 1, 16, 16, 16>}]} {
    %cst = arith.constant 0.000000e+00 : f32
    %0 = vector.broadcast %cst : f32 to vector<1x32x16xf32>
    %c0 = arith.constant 0 : index
    %c0_0 = arith.constant 0 : index
    %c0_1 = arith.constant 0 : index
    %1 = vector.load %arg13[%c0, %c0_0, %c0_1] : memref<18x32x16xf32, #tpu.memory_space<vmem>>, vector<1x32x16xf32>
    tpu.vector_store %arg13[%c0, %c0_0, %c0_1], %0 {strides = array<i32>} : memref<18x32x16xf32, #tpu.memory_space<vmem>>, vector<1x32x16xf32>,
    %cst_2 = arith.constant 0.000000e+00 : f32
    %2 = vector.broadcast %cst_2 : f32 to vector<1x32x16xf32>
    %c17 = arith.constant 17 : index
    %c0_3 = arith.constant 0 : index
    %c0_4 = arith.constant 0 : index
    %3 = vector.load %arg13[%c17, %c0_3, %c0_4] : memref<18x32x16xf32, #tpu.memory_space<vmem>>, vector<1x32x16xf32>
    tpu.vector_store %arg13[%c17, %c0_3, %c0_4], %2 {strides = array<i32>} : memref<18x32x16xf32, #tpu.memory_space<vmem>>, vector<1x32x16xf32>,
    %cst_5 = arith.constant 0.000000e+00 : f32
    %4 = vector.broadcast %cst_5 : f32 to vector<16x8x16xf32>
    %c1 = arith.constant 1 : index
    %c0_6 = arith.constant 0 : index
    %c0_7 = arith.constant 0 : index
    %5 = vector.load %arg13[%c1, %c0_6, %c0_7] : memref<18x32x16xf32, #tpu.memory_space<vmem>>, vector<16x8x16xf32>
    tpu.vector_store %arg13[%c1, %c0_6, %c0_7], %4 {strides = array<i32>} : memref<18x32x16xf32, #tpu.memory_space<vmem>>, vector<16x8x16xf32>,
    %cst_8 = arith.constant 0.000000e+00 : f32
    %6 = vector.broadcast %cst_8 : f32 to vector<16x8x16xf32>
    %c1_9 = arith.constant 1 : index
    %c24 = arith.constant 24 : index
    %c0_10 = arith.constant 0 : index
    %7 = vector.load %arg13[%c1_9, %c24, %c0_10] : memref<18x32x16xf32, #tpu.memory_space<vmem>>, vector<16x8x16xf32>
    tpu.vector_store %arg13[%c1_9, %c24, %c0_10], %6 {strides = array<i32>} : memref<18x32x16xf32, #tpu.memory_space<vmem>>, vector<16x8x16xf32>,
    %c0_11 = arith.constant 0 : index
    %c0_12 = arith.constant 0 : index
    %c0_13 = arith.constant 0 : index
    %c0_14 = arith.constant 0 : index
    %8 = vector.load %arg1[%c0_11, %c0_12, %c0_13, %c0_14] : memref<1x16x16x16xf32, #tpu.memory_space<vmem>>, vector<1x16x16x16xf32>
    %9 = vector.shape_cast %8 : vector<1x16x16x16xf32> to vector<16x16x16xf32>
    %10 = vector.shape_cast %9 : vector<16x16x16xf32> to vector<256x16xf32>
    %11 = vector.shape_cast %10 : vector<256x16xf32> to vector<16x16x16xf32>
    %c1_15 = arith.constant 1 : index
    %c8 = arith.constant 8 : index
    %c0_16 = arith.constant 0 : index
    %12 = vector.load %arg13[%c1_15, %c8, %c0_16] : memref<18x32x16xf32, #tpu.memory_space<vmem>>, vector<16x16x16xf32>
    tpu.vector_store %arg13[%c1_15, %c8, %c0_16], %11 {strides = array<i32>} : memref<18x32x16xf32, #tpu.memory_space<vmem>>, vector<16x16x16xf32>,
    %c0_17 = arith.constant 0 : index
    %c0_18 = arith.constant 0 : index
    %c0_19 = arith.constant 0 : index
    %13 = vector.load %arg2[%c0_17, %c0_18, %c0_19] : memref<2x144x16xbf16, #tpu.memory_space<vmem>>, vector<1x144x16xbf16>
    %14 = vector.shape_cast %13 : vector<1x144x16xbf16> to vector<144x16xbf16>
    %c0_20 = arith.constant 0 : index
    %c0_21 = arith.constant 0 : index
    %c0_22 = arith.constant 0 : index
    %15 = vector.load %arg3[%c0_20, %c0_21, %c0_22] : memref<2x1x16xf32, #tpu.memory_space<vmem>>, vector<1x1x16xf32>
    %16 = vector.shape_cast %15 : vector<1x1x16xf32> to vector<1x16xf32>
    %c0_23 = arith.constant 0 : index
    %c7 = arith.constant 7 : index
    %c0_24 = arith.constant 0 : index
    %17 = vector.load %arg13[%c0_23, %c7, %c0_24] : memref<18x32x16xf32, #tpu.memory_space<vmem>>, vector<16x16x16xf32>
    %18 = vector.shape_cast %17 : vector<16x16x16xf32> to vector<256x16xf32>
    %19 = arith.truncf %18 : vector<256x16xf32> to vector<256x16xbf16>
    %c0_25 = arith.constant 0 : index
    %c8_26 = arith.constant 8 : index
    %c0_27 = arith.constant 0 : index
    %20 = vector.load %arg13[%c0_25, %c8_26, %c0_27] : memref<18x32x16xf32, #tpu.memory_space<vmem>>, vector<16x16x16xf32>
    %21 = vector.shape_cast %20 : vector<16x16x16xf32> to vector<256x16xf32>
    %22 = arith.truncf %21 : vector<256x16xf32> to vector<256x16xbf16>
    %c0_28 = arith.constant 0 : index
    %c9 = arith.constant 9 : index
    %c0_29 = arith.constant 0 : index
    %23 = vector.load %arg13[%c0_28, %c9, %c0_29] : memref<18x32x16xf32, #tpu.memory_space<vmem>>, vector<16x16x16xf32>
    %24 = vector.shape_cast %23 : vector<16x16x16xf32> to vector<256x16xf32>
    %25 = arith.truncf %24 : vector<256x16xf32> to vector<256x16xbf16>
    %c1_30 = arith.constant 1 : index
    %c7_31 = arith.constant 7 : index
    %c0_32 = arith.constant 0 : index
    %26 = vector.load %arg13[%c1_30, %c7_31, %c0_32] : memref<18x32x16xf32, #tpu.memory_space<vmem>>, vector<16x16x16xf32>
    %27 = vector.shape_cast %26 : vector<16x16x16xf32> to vector<256x16xf32>
    %28 = arith.truncf %27 : vector<256x16xf32> to vector<256x16xbf16>
    %c1_33 = arith.constant 1 : index
    %c8_34 = arith.constant 8 : index
    %c0_35 = arith.constant 0 : index
    %29 = vector.load %arg13[%c1_33, %c8_34, %c0_35] : memref<18x32x16xf32, #tpu.memory_space<vmem>>, vector<16x16x16xf32>
    %30 = vector.shape_cast %29 : vector<16x16x16xf32> to vector<256x16xf32>
    %31 = arith.truncf %30 : vector<256x16xf32> to vector<256x16xbf16>
    %c1_36 = arith.constant 1 : index
    %c9_37 = arith.constant 9 : index
    %c0_38 = arith.constant 0 : index
    %32 = vector.load %arg13[%c1_36, %c9_37, %c0_38] : memref<18x32x16xf32, #tpu.memory_space<vmem>>, vector<16x16x16xf32>
    %33 = vector.shape_cast %32 : vector<16x16x16xf32> to vector<256x16xf32>
    %34 = arith.truncf %33 : vector<256x16xf32> to vector<256x16xbf16>
    %c2 = arith.constant 2 : index
    %c7_39 = arith.constant 7 : index
    %c0_40 = arith.constant 0 : index
    %35 = vector.load %arg13[%c2, %c7_39, %c0_40] : memref<18x32x16xf32, #tpu.memory_space<vmem>>, vector<16x16x16xf32>
    %36 = vector.shape_cast %35 : vector<16x16x16xf32> to vector<256x16xf32>
    %37 = arith.truncf %36 : vector<256x16xf32> to vector<256x16xbf16>
    %c2_41 = arith.constant 2 : index
    %c8_42 = arith.constant 8 : index
    %c0_43 = arith.constant 0 : index
    %38 = vector.load %arg13[%c2_41, %c8_42, %c0_43] : memref<18x32x16xf32, #tpu.memory_space<vmem>>, vector<16x16x16xf32>
    %39 = vector.shape_cast %38 : vector<16x16x16xf32> to vector<256x16xf32>
    %40 = arith.truncf %39 : vector<256x16xf32> to vector<256x16xbf16>
    %c2_44 = arith.constant 2 : index
    %c9_45 = arith.constant 9 : index
    %c0_46 = arith.constant 0 : index
    %41 = vector.load %arg13[%c2_44, %c9_45, %c0_46] : memref<18x32x16xf32, #tpu.memory_space<vmem>>, vector<16x16x16xf32>
    %42 = vector.shape_cast %41 : vector<16x16x16xf32> to vector<256x16xf32>
    %43 = arith.truncf %42 : vector<256x16xf32> to vector<256x16xbf16>
    %44 = tpu.concatenate %19, %22, %25, %28, %31, %34, %37, %40, %43 in 1 : vector<256x16xbf16>, vector<256x16xbf16>, vector<256x16xbf16>, vector<256x16xbf16>, vector<256x16xbf16>, vector<256x16xbf16>, vector<256x16xbf16>, vector<256x16xbf16>, vector<256x16xbf16> -> vector<256x144xbf16>
    %cst_47 = arith.constant dense<0.000000e+00> : vector<256x16xf32>
    %45 = tpu.matmul %44, %14, %cst_47 {dimension_numbers = #tpu.dot_dimension_numbers<[1], [0], [0], [1], [0, 0, 1, 1], [], []>} : vector<256x144xbf16>, vector<144x16xbf16>, vector<256x16xf32> -> vector<256x16xf32>
    %46 = vector.broadcast %16 : vector<1x16xf32> to vector<256x16xf32>
    %47 = arith.addf %45, %46 : vector<256x16xf32>
    %cst_48 = arith.constant 0.000000e+00 : f32
    %48 = vector.broadcast %cst_48 : f32 to vector<256x16xf32>
    %49 = arith.maximumf %47, %48 : vector<256x16xf32>
    %50 = vector.shape_cast %49 : vector<256x16xf32> to vector<16x16x16xf32>
    %c1_49 = arith.constant 1 : index
    %c8_50 = arith.constant 8 : index
    %c0_51 = arith.constant 0 : index
    %51 = vector.load %arg13[%c1_49, %c8_50, %c0_51] : memref<18x32x16xf32, #tpu.memory_space<vmem>>, vector<16x16x16xf32>
    tpu.vector_store %arg13[%c1_49, %c8_50, %c0_51], %50 {strides = array<i32>} : memref<18x32x16xf32, #tpu.memory_space<vmem>>, vector<16x16x16xf32>,
    %c0_52 = arith.constant 0 : index
    %c0_53 = arith.constant 0 : index
    %c0_54 = arith.constant 0 : index
    %52 = vector.load %arg4[%c0_52, %c0_53, %c0_54] : memref<2x144x16xbf16, #tpu.memory_space<vmem>>, vector<1x144x16xbf16>
    %53 = vector.shape_cast %52 : vector<1x144x16xbf16> to vector<144x16xbf16>
    %c0_55 = arith.constant 0 : index
    %c0_56 = arith.constant 0 : index
    %c0_57 = arith.constant 0 : index
    %54 = vector.load %arg5[%c0_55, %c0_56, %c0_57] : memref<2x1x16xf32, #tpu.memory_space<vmem>>, vector<1x1x16xf32>
    %55 = vector.shape_cast %54 : vector<1x1x16xf32> to vector<1x16xf32>
    %c0_58 = arith.constant 0 : index
    %c7_59 = arith.constant 7 : index
    %c0_60 = arith.constant 0 : index
    %56 = vector.load %arg13[%c0_58, %c7_59, %c0_60] : memref<18x32x16xf32, #tpu.memory_space<vmem>>, vector<16x16x16xf32>
    %57 = vector.shape_cast %56 : vector<16x16x16xf32> to vector<256x16xf32>
    %58 = arith.truncf %57 : vector<256x16xf32> to vector<256x16xbf16>
    %c0_61 = arith.constant 0 : index
    %c8_62 = arith.constant 8 : index
    %c0_63 = arith.constant 0 : index
    %59 = vector.load %arg13[%c0_61, %c8_62, %c0_63] : memref<18x32x16xf32, #tpu.memory_space<vmem>>, vector<16x16x16xf32>
    %60 = vector.shape_cast %59 : vector<16x16x16xf32> to vector<256x16xf32>
    %61 = arith.truncf %60 : vector<256x16xf32> to vector<256x16xbf16>
    %c0_64 = arith.constant 0 : index
    %c9_65 = arith.constant 9 : index
    %c0_66 = arith.constant 0 : index
    %62 = vector.load %arg13[%c0_64, %c9_65, %c0_66] : memref<18x32x16xf32, #tpu.memory_space<vmem>>, vector<16x16x16xf32>
    %63 = vector.shape_cast %62 : vector<16x16x16xf32> to vector<256x16xf32>
    %64 = arith.truncf %63 : vector<256x16xf32> to vector<256x16xbf16>
    %c1_67 = arith.constant 1 : index
    %c7_68 = arith.constant 7 : index
    %c0_69 = arith.constant 0 : index
    %65 = vector.load %arg13[%c1_67, %c7_68, %c0_69] : memref<18x32x16xf32, #tpu.memory_space<vmem>>, vector<16x16x16xf32>
    %66 = vector.shape_cast %65 : vector<16x16x16xf32> to vector<256x16xf32>
    %67 = arith.truncf %66 : vector<256x16xf32> to vector<256x16xbf16>
    %c1_70 = arith.constant 1 : index
    %c8_71 = arith.constant 8 : index
    %c0_72 = arith.constant 0 : index
    %68 = vector.load %arg13[%c1_70, %c8_71, %c0_72] : memref<18x32x16xf32, #tpu.memory_space<vmem>>, vector<16x16x16xf32>
    %69 = vector.shape_cast %68 : vector<16x16x16xf32> to vector<256x16xf32>
    %70 = arith.truncf %69 : vector<256x16xf32> to vector<256x16xbf16>
    %c1_73 = arith.constant 1 : index
    %c9_74 = arith.constant 9 : index
    %c0_75 = arith.constant 0 : index
    %71 = vector.load %arg13[%c1_73, %c9_74, %c0_75] : memref<18x32x16xf32, #tpu.memory_space<vmem>>, vector<16x16x16xf32>
    %72 = vector.shape_cast %71 : vector<16x16x16xf32> to vector<256x16xf32>
    %73 = arith.truncf %72 : vector<256x16xf32> to vector<256x16xbf16>
    %c2_76 = arith.constant 2 : index
    %c7_77 = arith.constant 7 : index
    %c0_78 = arith.constant 0 : index
    %74 = vector.load %arg13[%c2_76, %c7_77, %c0_78] : memref<18x32x16xf32, #tpu.memory_space<vmem>>, vector<16x16x16xf32>
    %75 = vector.shape_cast %74 : vector<16x16x16xf32> to vector<256x16xf32>
    %76 = arith.truncf %75 : vector<256x16xf32> to vector<256x16xbf16>
    %c2_79 = arith.constant 2 : index
    %c8_80 = arith.constant 8 : index
    %c0_81 = arith.constant 0 : index
    %77 = vector.load %arg13[%c2_79, %c8_80, %c0_81] : memref<18x32x16xf32, #tpu.memory_space<vmem>>, vector<16x16x16xf32>
    %78 = vector.shape_cast %77 : vector<16x16x16xf32> to vector<256x16xf32>
    %79 = arith.truncf %78 : vector<256x16xf32> to vector<256x16xbf16>
    %c2_82 = arith.constant 2 : index
    %c9_83 = arith.constant 9 : index
    %c0_84 = arith.constant 0 : index
    %80 = vector.load %arg13[%c2_82, %c9_83, %c0_84] : memref<18x32x16xf32, #tpu.memory_space<vmem>>, vector<16x16x16xf32>
    %81 = vector.shape_cast %80 : vector<16x16x16xf32> to vector<256x16xf32>
    %82 = arith.truncf %81 : vector<256x16xf32> to vector<256x16xbf16>
    %83 = tpu.concatenate %58, %61, %64, %67, %70, %73, %76, %79, %82 in 1 : vector<256x16xbf16>, vector<256x16xbf16>, vector<256x16xbf16>, vector<256x16xbf16>, vector<256x16xbf16>, vector<256x16xbf16>, vector<256x16xbf16>, vector<256x16xbf16>, vector<256x16xbf16> -> vector<256x144xbf16>
    %cst_85 = arith.constant dense<0.000000e+00> : vector<256x16xf32>
    %84 = tpu.matmul %83, %53, %cst_85 {dimension_numbers = #tpu.dot_dimension_numbers<[1], [0], [0], [1], [0, 0, 1, 1], [], []>} : vector<256x144xbf16>, vector<144x16xbf16>, vector<256x16xf32> -> vector<256x16xf32>
    %85 = vector.broadcast %55 : vector<1x16xf32> to vector<256x16xf32>
    %86 = arith.addf %84, %85 : vector<256x16xf32>
    %cst_86 = arith.constant dense<0.000000e+00> : vector<16xf32>
    %87 = vector.multi_reduction <add>, %86, %cst_86 [0] : vector<256x16xf32> to vector<16xf32>
    %88 = vector.shape_cast %87 : vector<16xf32> to vector<1x16xf32>
    %cst_87 = arith.constant 2.560000e+02 : f32
    %89 = vector.broadcast %cst_87 : f32 to vector<1x16xf32>
    %90 = arith.divf %88, %89 : vector<1x16xf32>
    %c0_88 = arith.constant 0 : index
    %c0_89 = arith.constant 0 : index
    %c0_90 = arith.constant 0 : index
    %91 = vector.load %arg6[%c0_88, %c0_89, %c0_90] : memref<2x4x16xf32, #tpu.memory_space<vmem>>, vector<1x4x16xf32>
    %92 = vector.shape_cast %91 : vector<1x4x16xf32> to vector<4x16xf32>
    %93 = vector.broadcast %90 : vector<1x16xf32> to vector<4x16xf32>
    %94 = arith.mulf %92, %93 : vector<4x16xf32>
    %cst_91 = arith.constant dense<0.000000e+00> : vector<4xf32>
    %95 = vector.multi_reduction <add>, %94, %cst_91 [1] : vector<4x16xf32> to vector<4xf32>
    %96 = vector.shape_cast %95 : vector<4xf32> to vector<4x1xf32>
    %c0_92 = arith.constant 0 : index
    %c0_93 = arith.constant 0 : index
    %c0_94 = arith.constant 0 : index
    %97 = vector.load %arg7[%c0_92, %c0_93, %c0_94] : memref<2x4x1xf32, #tpu.memory_space<vmem>>, vector<1x4x1xf32>
    %98 = vector.shape_cast %97 : vector<1x4x1xf32> to vector<4x1xf32>
    %99 = arith.addf %96, %98 : vector<4x1xf32>
    %cst_95 = arith.constant 0.000000e+00 : f32
    %100 = vector.broadcast %cst_95 : f32 to vector<4x1xf32>
    %101 = arith.maximumf %99, %100 : vector<4x1xf32>
    %c0_96 = arith.constant 0 : index
    %c0_97 = arith.constant 0 : index
    %c0_98 = arith.constant 0 : index
    %102 = vector.load %arg8[%c0_96, %c0_97, %c0_98] : memref<2x4x16xf32, #tpu.memory_space<vmem>>, vector<1x4x16xf32>
    %103 = vector.shape_cast %102 : vector<1x4x16xf32> to vector<4x16xf32>
    %104 = vector.broadcast %101 : vector<4x1xf32> to vector<4x16xf32>
    %105 = arith.mulf %103, %104 : vector<4x16xf32>
    %cst_99 = arith.constant dense<0.000000e+00> : vector<16xf32>
    %106 = vector.multi_reduction <add>, %105, %cst_99 [0] : vector<4x16xf32> to vector<16xf32>
    %107 = vector.shape_cast %106 : vector<16xf32> to vector<1x16xf32>
    %c0_100 = arith.constant 0 : index
    %c0_101 = arith.constant 0 : index
    %c0_102 = arith.constant 0 : index
    %108 = vector.load %arg9[%c0_100, %c0_101, %c0_102] : memref<2x1x16xf32, #tpu.memory_space<vmem>>, vector<1x1x16xf32>
    %109 = vector.shape_cast %108 : vector<1x1x16xf32> to vector<1x16xf32>
    %110 = arith.addf %107, %109 : vector<1x16xf32>
    %cst_103 = arith.constant 0.000000e+00 : f32
    %111 = vector.broadcast %cst_103 : f32 to vector<1x16xf32>
    %112 = arith.subf %111, %110 : vector<1x16xf32>
    %113 = math.exp %112 : vector<1x16xf32>
    %cst_104 = arith.constant 1.000000e+00 : f32
    %114 = vector.broadcast %cst_104 : f32 to vector<1x16xf32>
    %115 = arith.addf %114, %113 : vector<1x16xf32>
    %cst_105 = arith.constant 1.000000e+00 : f32
    %116 = vector.broadcast %cst_105 : f32 to vector<1x16xf32>
    %117 = arith.divf %116, %115 : vector<1x16xf32>
    %118 = vector.broadcast %117 : vector<1x16xf32> to vector<256x16xf32>
    %119 = arith.mulf %86, %118 : vector<256x16xf32>
    %120 = arith.addf %119, %10 : vector<256x16xf32>
    %121 = vector.shape_cast %120 : vector<256x16xf32> to vector<16x16x16xf32>
    %c1_106 = arith.constant 1 : index
    %c8_107 = arith.constant 8 : index
    %c0_108 = arith.constant 0 : index
    %122 = vector.load %arg13[%c1_106, %c8_107, %c0_108] : memref<18x32x16xf32, #tpu.memory_space<vmem>>, vector<16x16x16xf32>
    tpu.vector_store %arg13[%c1_106, %c8_107, %c0_108], %121 {strides = array<i32>} : memref<18x32x16xf32, #tpu.memory_space<vmem>>, vector<16x16x16xf32>,
    %c1_109 = arith.constant 1 : index
    %c0_110 = arith.constant 0 : index
    %c0_111 = arith.constant 0 : index
    %123 = vector.load %arg2[%c1_109, %c0_110, %c0_111] : memref<2x144x16xbf16, #tpu.memory_space<vmem>>, vector<1x144x16xbf16>
    %124 = vector.shape_cast %123 : vector<1x144x16xbf16> to vector<144x16xbf16>
    %c1_112 = arith.constant 1 : index
    %c0_113 = arith.constant 0 : index
    %c0_114 = arith.constant 0 : index
    %125 = vector.load %arg3[%c1_112, %c0_113, %c0_114] : memref<2x1x16xf32, #tpu.memory_space<vmem>>, vector<1x1x16xf32>
    %126 = vector.shape_cast %125 : vector<1x1x16xf32> to vector<1x16xf32>
    %c0_115 = arith.constant 0 : index
    %c7_116 = arith.constant 7 : index
    %c0_117 = arith.constant 0 : index
    %127 = vector.load %arg13[%c0_115, %c7_116, %c0_117] : memref<18x32x16xf32, #tpu.memory_space<vmem>>, vector<16x16x16xf32>
    %128 = vector.shape_cast %127 : vector<16x16x16xf32> to vector<256x16xf32>
    %129 = arith.truncf %128 : vector<256x16xf32> to vector<256x16xbf16>
    %c0_118 = arith.constant 0 : index
    %c8_119 = arith.constant 8 : index
    %c0_120 = arith.constant 0 : index
    %130 = vector.load %arg13[%c0_118, %c8_119, %c0_120] : memref<18x32x16xf32, #tpu.memory_space<vmem>>, vector<16x16x16xf32>
    %131 = vector.shape_cast %130 : vector<16x16x16xf32> to vector<256x16xf32>
    %132 = arith.truncf %131 : vector<256x16xf32> to vector<256x16xbf16>
    %c0_121 = arith.constant 0 : index
    %c9_122 = arith.constant 9 : index
    %c0_123 = arith.constant 0 : index
    %133 = vector.load %arg13[%c0_121, %c9_122, %c0_123] : memref<18x32x16xf32, #tpu.memory_space<vmem>>, vector<16x16x16xf32>
    %134 = vector.shape_cast %133 : vector<16x16x16xf32> to vector<256x16xf32>
    %135 = arith.truncf %134 : vector<256x16xf32> to vector<256x16xbf16>
    %c1_124 = arith.constant 1 : index
    %c7_125 = arith.constant 7 : index
    %c0_126 = arith.constant 0 : index
    %136 = vector.load %arg13[%c1_124, %c7_125, %c0_126] : memref<18x32x16xf32, #tpu.memory_space<vmem>>, vector<16x16x16xf32>
    %137 = vector.shape_cast %136 : vector<16x16x16xf32> to vector<256x16xf32>
    %138 = arith.truncf %137 : vector<256x16xf32> to vector<256x16xbf16>
    %c1_127 = arith.constant 1 : index
    %c8_128 = arith.constant 8 : index
    %c0_129 = arith.constant 0 : index
    %139 = vector.load %arg13[%c1_127, %c8_128, %c0_129] : memref<18x32x16xf32, #tpu.memory_space<vmem>>, vector<16x16x16xf32>
    %140 = vector.shape_cast %139 : vector<16x16x16xf32> to vector<256x16xf32>
    %141 = arith.truncf %140 : vector<256x16xf32> to vector<256x16xbf16>
    %c1_130 = arith.constant 1 : index
    %c9_131 = arith.constant 9 : index
    %c0_132 = arith.constant 0 : index
    %142 = vector.load %arg13[%c1_130, %c9_131, %c0_132] : memref<18x32x16xf32, #tpu.memory_space<vmem>>, vector<16x16x16xf32>
    %143 = vector.shape_cast %142 : vector<16x16x16xf32> to vector<256x16xf32>
    %144 = arith.truncf %143 : vector<256x16xf32> to vector<256x16xbf16>
    %c2_133 = arith.constant 2 : index
    %c7_134 = arith.constant 7 : index
    %c0_135 = arith.constant 0 : index
    %145 = vector.load %arg13[%c2_133, %c7_134, %c0_135] : memref<18x32x16xf32, #tpu.memory_space<vmem>>, vector<16x16x16xf32>
    %146 = vector.shape_cast %145 : vector<16x16x16xf32> to vector<256x16xf32>
    %147 = arith.truncf %146 : vector<256x16xf32> to vector<256x16xbf16>
    %c2_136 = arith.constant 2 : index
    %c8_137 = arith.constant 8 : index
    %c0_138 = arith.constant 0 : index
    %148 = vector.load %arg13[%c2_136, %c8_137, %c0_138] : memref<18x32x16xf32, #tpu.memory_space<vmem>>, vector<16x16x16xf32>
    %149 = vector.shape_cast %148 : vector<16x16x16xf32> to vector<256x16xf32>
    %150 = arith.truncf %149 : vector<256x16xf32> to vector<256x16xbf16>
    %c2_139 = arith.constant 2 : index
    %c9_140 = arith.constant 9 : index
    %c0_141 = arith.constant 0 : index
    %151 = vector.load %arg13[%c2_139, %c9_140, %c0_141] : memref<18x32x16xf32, #tpu.memory_space<vmem>>, vector<16x16x16xf32>
    %152 = vector.shape_cast %151 : vector<16x16x16xf32> to vector<256x16xf32>
    %153 = arith.truncf %152 : vector<256x16xf32> to vector<256x16xbf16>
    %154 = tpu.concatenate %129, %132, %135, %138, %141, %144, %147, %150, %153 in 1 : vector<256x16xbf16>, vector<256x16xbf16>, vector<256x16xbf16>, vector<256x16xbf16>, vector<256x16xbf16>, vector<256x16xbf16>, vector<256x16xbf16>, vector<256x16xbf16>, vector<256x16xbf16> -> vector<256x144xbf16>
    %cst_142 = arith.constant dense<0.000000e+00> : vector<256x16xf32>
    %155 = tpu.matmul %154, %124, %cst_142 {dimension_numbers = #tpu.dot_dimension_numbers<[1], [0], [0], [1], [0, 0, 1, 1], [], []>} : vector<256x144xbf16>, vector<144x16xbf16>, vector<256x16xf32> -> vector<256x16xf32>
    %156 = vector.broadcast %126 : vector<1x16xf32> to vector<256x16xf32>
    %157 = arith.addf %155, %156 : vector<256x16xf32>
    %cst_143 = arith.constant 0.000000e+00 : f32
    %158 = vector.broadcast %cst_143 : f32 to vector<256x16xf32>
    %159 = arith.maximumf %157, %158 : vector<256x16xf32>
    %160 = vector.shape_cast %159 : vector<256x16xf32> to vector<16x16x16xf32>
    %c1_144 = arith.constant 1 : index
    %c8_145 = arith.constant 8 : index
    %c0_146 = arith.constant 0 : index
    %161 = vector.load %arg13[%c1_144, %c8_145, %c0_146] : memref<18x32x16xf32, #tpu.memory_space<vmem>>, vector<16x16x16xf32>
    tpu.vector_store %arg13[%c1_144, %c8_145, %c0_146], %160 {strides = array<i32>} : memref<18x32x16xf32, #tpu.memory_space<vmem>>, vector<16x16x16xf32>,
    %c1_147 = arith.constant 1 : index
    %c0_148 = arith.constant 0 : index
    %c0_149 = arith.constant 0 : index
    %162 = vector.load %arg4[%c1_147, %c0_148, %c0_149] : memref<2x144x16xbf16, #tpu.memory_space<vmem>>, vector<1x144x16xbf16>
    %163 = vector.shape_cast %162 : vector<1x144x16xbf16> to vector<144x16xbf16>
    %c1_150 = arith.constant 1 : index
    %c0_151 = arith.constant 0 : index
    %c0_152 = arith.constant 0 : index
    %164 = vector.load %arg5[%c1_150, %c0_151, %c0_152] : memref<2x1x16xf32, #tpu.memory_space<vmem>>, vector<1x1x16xf32>
    %165 = vector.shape_cast %164 : vector<1x1x16xf32> to vector<1x16xf32>
    %c0_153 = arith.constant 0 : index
    %c7_154 = arith.constant 7 : index
    %c0_155 = arith.constant 0 : index
    %166 = vector.load %arg13[%c0_153, %c7_154, %c0_155] : memref<18x32x16xf32, #tpu.memory_space<vmem>>, vector<16x16x16xf32>
    %167 = vector.shape_cast %166 : vector<16x16x16xf32> to vector<256x16xf32>
    %168 = arith.truncf %167 : vector<256x16xf32> to vector<256x16xbf16>
    %c0_156 = arith.constant 0 : index
    %c8_157 = arith.constant 8 : index
    %c0_158 = arith.constant 0 : index
    %169 = vector.load %arg13[%c0_156, %c8_157, %c0_158] : memref<18x32x16xf32, #tpu.memory_space<vmem>>, vector<16x16x16xf32>
    %170 = vector.shape_cast %169 : vector<16x16x16xf32> to vector<256x16xf32>
    %171 = arith.truncf %170 : vector<256x16xf32> to vector<256x16xbf16>
    %c0_159 = arith.constant 0 : index
    %c9_160 = arith.constant 9 : index
    %c0_161 = arith.constant 0 : index
    %172 = vector.load %arg13[%c0_159, %c9_160, %c0_161] : memref<18x32x16xf32, #tpu.memory_space<vmem>>, vector<16x16x16xf32>
    %173 = vector.shape_cast %172 : vector<16x16x16xf32> to vector<256x16xf32>
    %174 = arith.truncf %173 : vector<256x16xf32> to vector<256x16xbf16>
    %c1_162 = arith.constant 1 : index
    %c7_163 = arith.constant 7 : index
    %c0_164 = arith.constant 0 : index
    %175 = vector.load %arg13[%c1_162, %c7_163, %c0_164] : memref<18x32x16xf32, #tpu.memory_space<vmem>>, vector<16x16x16xf32>
    %176 = vector.shape_cast %175 : vector<16x16x16xf32> to vector<256x16xf32>
    %177 = arith.truncf %176 : vector<256x16xf32> to vector<256x16xbf16>
    %c1_165 = arith.constant 1 : index
    %c8_166 = arith.constant 8 : index
    %c0_167 = arith.constant 0 : index
    %178 = vector.load %arg13[%c1_165, %c8_166, %c0_167] : memref<18x32x16xf32, #tpu.memory_space<vmem>>, vector<16x16x16xf32>
    %179 = vector.shape_cast %178 : vector<16x16x16xf32> to vector<256x16xf32>
    %180 = arith.truncf %179 : vector<256x16xf32> to vector<256x16xbf16>
    %c1_168 = arith.constant 1 : index
    %c9_169 = arith.constant 9 : index
    %c0_170 = arith.constant 0 : index
    %181 = vector.load %arg13[%c1_168, %c9_169, %c0_170] : memref<18x32x16xf32, #tpu.memory_space<vmem>>, vector<16x16x16xf32>
    %182 = vector.shape_cast %181 : vector<16x16x16xf32> to vector<256x16xf32>
    %183 = arith.truncf %182 : vector<256x16xf32> to vector<256x16xbf16>
    %c2_171 = arith.constant 2 : index
    %c7_172 = arith.constant 7 : index
    %c0_173 = arith.constant 0 : index
    %184 = vector.load %arg13[%c2_171, %c7_172, %c0_173] : memref<18x32x16xf32, #tpu.memory_space<vmem>>, vector<16x16x16xf32>
    %185 = vector.shape_cast %184 : vector<16x16x16xf32> to vector<256x16xf32>
    %186 = arith.truncf %185 : vector<256x16xf32> to vector<256x16xbf16>
    %c2_174 = arith.constant 2 : index
    %c8_175 = arith.constant 8 : index
    %c0_176 = arith.constant 0 : index
    %187 = vector.load %arg13[%c2_174, %c8_175, %c0_176] : memref<18x32x16xf32, #tpu.memory_space<vmem>>, vector<16x16x16xf32>
    %188 = vector.shape_cast %187 : vector<16x16x16xf32> to vector<256x16xf32>
    %189 = arith.truncf %188 : vector<256x16xf32> to vector<256x16xbf16>
    %c2_177 = arith.constant 2 : index
    %c9_178 = arith.constant 9 : index
    %c0_179 = arith.constant 0 : index
    %190 = vector.load %arg13[%c2_177, %c9_178, %c0_179] : memref<18x32x16xf32, #tpu.memory_space<vmem>>, vector<16x16x16xf32>
    %191 = vector.shape_cast %190 : vector<16x16x16xf32> to vector<256x16xf32>
    %192 = arith.truncf %191 : vector<256x16xf32> to vector<256x16xbf16>
    %193 = tpu.concatenate %168, %171, %174, %177, %180, %183, %186, %189, %192 in 1 : vector<256x16xbf16>, vector<256x16xbf16>, vector<256x16xbf16>, vector<256x16xbf16>, vector<256x16xbf16>, vector<256x16xbf16>, vector<256x16xbf16>, vector<256x16xbf16>, vector<256x16xbf16> -> vector<256x144xbf16>
    %cst_180 = arith.constant dense<0.000000e+00> : vector<256x16xf32>
    %194 = tpu.matmul %193, %163, %cst_180 {dimension_numbers = #tpu.dot_dimension_numbers<[1], [0], [0], [1], [0, 0, 1, 1], [], []>} : vector<256x144xbf16>, vector<144x16xbf16>, vector<256x16xf32> -> vector<256x16xf32>
    %195 = vector.broadcast %165 : vector<1x16xf32> to vector<256x16xf32>
    %196 = arith.addf %194, %195 : vector<256x16xf32>
    %cst_181 = arith.constant dense<0.000000e+00> : vector<16xf32>
    %197 = vector.multi_reduction <add>, %196, %cst_181 [0] : vector<256x16xf32> to vector<16xf32>
    %198 = vector.shape_cast %197 : vector<16xf32> to vector<1x16xf32>
    %cst_182 = arith.constant 2.560000e+02 : f32
    %199 = vector.broadcast %cst_182 : f32 to vector<1x16xf32>
    %200 = arith.divf %198, %199 : vector<1x16xf32>
    %c1_183 = arith.constant 1 : index
    %c0_184 = arith.constant 0 : index
    %c0_185 = arith.constant 0 : index
    %201 = vector.load %arg6[%c1_183, %c0_184, %c0_185] : memref<2x4x16xf32, #tpu.memory_space<vmem>>, vector<1x4x16xf32>
    %202 = vector.shape_cast %201 : vector<1x4x16xf32> to vector<4x16xf32>
    %203 = vector.broadcast %200 : vector<1x16xf32> to vector<4x16xf32>
    %204 = arith.mulf %202, %203 : vector<4x16xf32>
    %cst_186 = arith.constant dense<0.000000e+00> : vector<4xf32>
    %205 = vector.multi_reduction <add>, %204, %cst_186 [1] : vector<4x16xf32> to vector<4xf32>
    %206 = vector.shape_cast %205 : vector<4xf32> to vector<4x1xf32>
    %c1_187 = arith.constant 1 : index
    %c0_188 = arith.constant 0 : index
    %c0_189 = arith.constant 0 : index
    %207 = vector.load %arg7[%c1_187, %c0_188, %c0_189] : memref<2x4x1xf32, #tpu.memory_space<vmem>>, vector<1x4x1xf32>
    %208 = vector.shape_cast %207 : vector<1x4x1xf32> to vector<4x1xf32>
    %209 = arith.addf %206, %208 : vector<4x1xf32>
    %cst_190 = arith.constant 0.000000e+00 : f32
    %210 = vector.broadcast %cst_190 : f32 to vector<4x1xf32>
    %211 = arith.maximumf %209, %210 : vector<4x1xf32>
    %c1_191 = arith.constant 1 : index
    %c0_192 = arith.constant 0 : index
    %c0_193 = arith.constant 0 : index
    %212 = vector.load %arg8[%c1_191, %c0_192, %c0_193] : memref<2x4x16xf32, #tpu.memory_space<vmem>>, vector<1x4x16xf32>
    %213 = vector.shape_cast %212 : vector<1x4x16xf32> to vector<4x16xf32>
    %214 = vector.broadcast %211 : vector<4x1xf32> to vector<4x16xf32>
    %215 = arith.mulf %213, %214 : vector<4x16xf32>
    %cst_194 = arith.constant dense<0.000000e+00> : vector<16xf32>
    %216 = vector.multi_reduction <add>, %215, %cst_194 [0] : vector<4x16xf32> to vector<16xf32>
    %217 = vector.shape_cast %216 : vector<16xf32> to vector<1x16xf32>
    %c1_195 = arith.constant 1 : index
    %c0_196 = arith.constant 0 : index
    %c0_197 = arith.constant 0 : index
    %218 = vector.load %arg9[%c1_195, %c0_196, %c0_197] : memref<2x1x16xf32, #tpu.memory_space<vmem>>, vector<1x1x16xf32>
    %219 = vector.shape_cast %218 : vector<1x1x16xf32> to vector<1x16xf32>
    %220 = arith.addf %217, %219 : vector<1x16xf32>
    %cst_198 = arith.constant 0.000000e+00 : f32
    %221 = vector.broadcast %cst_198 : f32 to vector<1x16xf32>
    %222 = arith.subf %221, %220 : vector<1x16xf32>
    %223 = math.exp %222 : vector<1x16xf32>
    %cst_199 = arith.constant 1.000000e+00 : f32
    %224 = vector.broadcast %cst_199 : f32 to vector<1x16xf32>
    %225 = arith.addf %224, %223 : vector<1x16xf32>
    %cst_200 = arith.constant 1.000000e+00 : f32
    %226 = vector.broadcast %cst_200 : f32 to vector<1x16xf32>
    %227 = arith.divf %226, %225 : vector<1x16xf32>
    %228 = vector.broadcast %227 : vector<1x16xf32> to vector<256x16xf32>
    %229 = arith.mulf %196, %228 : vector<256x16xf32>
    %230 = arith.addf %229, %120 : vector<256x16xf32>
    %231 = vector.shape_cast %230 : vector<256x16xf32> to vector<16x16x16xf32>
    %c1_201 = arith.constant 1 : index
    %c8_202 = arith.constant 8 : index
    %c0_203 = arith.constant 0 : index
    %232 = vector.load %arg13[%c1_201, %c8_202, %c0_203] : memref<18x32x16xf32, #tpu.memory_space<vmem>>, vector<16x16x16xf32>
    tpu.vector_store %arg13[%c1_201, %c8_202, %c0_203], %231 {strides = array<i32>} : memref<18x32x16xf32, #tpu.memory_space<vmem>>, vector<16x16x16xf32>,
    %c0_204 = arith.constant 0 : index
    %c0_205 = arith.constant 0 : index
    %233 = vector.load %arg10[%c0_204, %c0_205] : memref<144x16xbf16, #tpu.memory_space<vmem>>, vector<144x16xbf16>
    %c0_206 = arith.constant 0 : index
    %c0_207 = arith.constant 0 : index
    %234 = vector.load %arg11[%c0_206, %c0_207] : memref<1x16xf32, #tpu.memory_space<vmem>>, vector<1x16xf32>
    %c0_208 = arith.constant 0 : index
    %c7_209 = arith.constant 7 : index
    %c0_210 = arith.constant 0 : index
    %235 = vector.load %arg13[%c0_208, %c7_209, %c0_210] : memref<18x32x16xf32, #tpu.memory_space<vmem>>, vector<16x16x16xf32>
    %236 = vector.shape_cast %235 : vector<16x16x16xf32> to vector<256x16xf32>
    %237 = arith.truncf %236 : vector<256x16xf32> to vector<256x16xbf16>
    %c0_211 = arith.constant 0 : index
    %c8_212 = arith.constant 8 : index
    %c0_213 = arith.constant 0 : index
    %238 = vector.load %arg13[%c0_211, %c8_212, %c0_213] : memref<18x32x16xf32, #tpu.memory_space<vmem>>, vector<16x16x16xf32>
    %239 = vector.shape_cast %238 : vector<16x16x16xf32> to vector<256x16xf32>
    %240 = arith.truncf %239 : vector<256x16xf32> to vector<256x16xbf16>
    %c0_214 = arith.constant 0 : index
    %c9_215 = arith.constant 9 : index
    %c0_216 = arith.constant 0 : index
    %241 = vector.load %arg13[%c0_214, %c9_215, %c0_216] : memref<18x32x16xf32, #tpu.memory_space<vmem>>, vector<16x16x16xf32>
    %242 = vector.shape_cast %241 : vector<16x16x16xf32> to vector<256x16xf32>
    %243 = arith.truncf %242 : vector<256x16xf32> to vector<256x16xbf16>
    %c1_217 = arith.constant 1 : index
    %c7_218 = arith.constant 7 : index
    %c0_219 = arith.constant 0 : index
    %244 = vector.load %arg13[%c1_217, %c7_218, %c0_219] : memref<18x32x16xf32, #tpu.memory_space<vmem>>, vector<16x16x16xf32>
    %245 = vector.shape_cast %244 : vector<16x16x16xf32> to vector<256x16xf32>
    %246 = arith.truncf %245 : vector<256x16xf32> to vector<256x16xbf16>
    %c1_220 = arith.constant 1 : index
    %c8_221 = arith.constant 8 : index
    %c0_222 = arith.constant 0 : index
    %247 = vector.load %arg13[%c1_220, %c8_221, %c0_222] : memref<18x32x16xf32, #tpu.memory_space<vmem>>, vector<16x16x16xf32>
    %248 = vector.shape_cast %247 : vector<16x16x16xf32> to vector<256x16xf32>
    %249 = arith.truncf %248 : vector<256x16xf32> to vector<256x16xbf16>
    %c1_223 = arith.constant 1 : index
    %c9_224 = arith.constant 9 : index
    %c0_225 = arith.constant 0 : index
    %250 = vector.load %arg13[%c1_223, %c9_224, %c0_225] : memref<18x32x16xf32, #tpu.memory_space<vmem>>, vector<16x16x16xf32>
    %251 = vector.shape_cast %250 : vector<16x16x16xf32> to vector<256x16xf32>
    %252 = arith.truncf %251 : vector<256x16xf32> to vector<256x16xbf16>
    %c2_226 = arith.constant 2 : index
    %c7_227 = arith.constant 7 : index
    %c0_228 = arith.constant 0 : index
    %253 = vector.load %arg13[%c2_226, %c7_227, %c0_228] : memref<18x32x16xf32, #tpu.memory_space<vmem>>, vector<16x16x16xf32>
    %254 = vector.shape_cast %253 : vector<16x16x16xf32> to vector<256x16xf32>
    %255 = arith.truncf %254 : vector<256x16xf32> to vector<256x16xbf16>
    %c2_229 = arith.constant 2 : index
    %c8_230 = arith.constant 8 : index
    %c0_231 = arith.constant 0 : index
    %256 = vector.load %arg13[%c2_229, %c8_230, %c0_231] : memref<18x32x16xf32, #tpu.memory_space<vmem>>, vector<16x16x16xf32>
    %257 = vector.shape_cast %256 : vector<16x16x16xf32> to vector<256x16xf32>
    %258 = arith.truncf %257 : vector<256x16xf32> to vector<256x16xbf16>
    %c2_232 = arith.constant 2 : index
    %c9_233 = arith.constant 9 : index
    %c0_234 = arith.constant 0 : index
    %259 = vector.load %arg13[%c2_232, %c9_233, %c0_234] : memref<18x32x16xf32, #tpu.memory_space<vmem>>, vector<16x16x16xf32>
    %260 = vector.shape_cast %259 : vector<16x16x16xf32> to vector<256x16xf32>
    %261 = arith.truncf %260 : vector<256x16xf32> to vector<256x16xbf16>
    %262 = tpu.concatenate %237, %240, %243, %246, %249, %252, %255, %258, %261 in 1 : vector<256x16xbf16>, vector<256x16xbf16>, vector<256x16xbf16>, vector<256x16xbf16>, vector<256x16xbf16>, vector<256x16xbf16>, vector<256x16xbf16>, vector<256x16xbf16>, vector<256x16xbf16> -> vector<256x144xbf16>
    %cst_235 = arith.constant dense<0.000000e+00> : vector<256x16xf32>
    %263 = tpu.matmul %262, %233, %cst_235 {dimension_numbers = #tpu.dot_dimension_numbers<[1], [0], [0], [1], [0, 0, 1, 1], [], []>} : vector<256x144xbf16>, vector<144x16xbf16>, vector<256x16xf32> -> vector<256x16xf32>
    %264 = vector.broadcast %234 : vector<1x16xf32> to vector<256x16xf32>
    %265 = arith.addf %263, %264 : vector<256x16xf32>
    %266 = arith.addf %265, %10 : vector<256x16xf32>
    %267 = vector.shape_cast %266 : vector<256x16xf32> to vector<16x16x16xf32>
    %c0_236 = arith.constant 0 : index
    %c0_237 = arith.constant 0 : index
    %c0_238 = arith.constant 0 : index
    %c0_239 = arith.constant 0 : index
    %268 = vector.load %arg12[%c0_236, %c0_237, %c0_238, %c0_239] : memref<1x16x16x16xf32, #tpu.memory_space<vmem>>, vector<1x16x16x16xf32>
    %269 = vector.shape_cast %268 : vector<1x16x16x16xf32> to vector<16x16x16xf32>
    %270 = vector.shape_cast %267 : vector<16x16x16xf32> to vector<1x16x16x16xf32>
    tpu.vector_store %arg12[%c0_236, %c0_237, %c0_238, %c0_239], %270 {strides = array<i32>} : memref<1x16x16x16xf32, #tpu.memory_space<vmem>>, vector<1x16x16x16xf32>,
    return
  }
  func.func @transform_0(%arg0: i32) -> (i32, i32, i32, i32) {
    %c0_i32 = arith.constant 0 : i32
    %c0_i32_0 = arith.constant 0 : i32
    %c0_i32_1 = arith.constant 0 : i32
    %c0_i32_2 = arith.constant 0 : i32
    return %arg0, %c0_i32, %c0_i32_0, %c0_i32_1 : i32, i32, i32, i32
  }
  func.func @transform_1(%arg0: i32) -> (i32, i32, i32) {
    %c0_i32 = arith.constant 0 : i32
    %c0_i32_0 = arith.constant 0 : i32
    %c0_i32_1 = arith.constant 0 : i32
    %c0_i32_2 = arith.constant 0 : i32
    return %c0_i32, %c0_i32_0, %c0_i32_1 : i32, i32, i32
  }
  func.func @transform_2(%arg0: i32) -> (i32, i32, i32) {
    %c0_i32 = arith.constant 0 : i32
    %c0_i32_0 = arith.constant 0 : i32
    %c0_i32_1 = arith.constant 0 : i32
    %c0_i32_2 = arith.constant 0 : i32
    return %c0_i32, %c0_i32_0, %c0_i32_1 : i32, i32, i32
  }
  func.func @transform_3(%arg0: i32) -> (i32, i32, i32) {
    %c0_i32 = arith.constant 0 : i32
    %c0_i32_0 = arith.constant 0 : i32
    %c0_i32_1 = arith.constant 0 : i32
    %c0_i32_2 = arith.constant 0 : i32
    return %c0_i32, %c0_i32_0, %c0_i32_1 : i32, i32, i32
  }
  func.func @transform_4(%arg0: i32) -> (i32, i32, i32) {
    %c0_i32 = arith.constant 0 : i32
    %c0_i32_0 = arith.constant 0 : i32
    %c0_i32_1 = arith.constant 0 : i32
    %c0_i32_2 = arith.constant 0 : i32
    return %c0_i32, %c0_i32_0, %c0_i32_1 : i32, i32, i32
  }
  func.func @transform_5(%arg0: i32) -> (i32, i32, i32) {
    %c0_i32 = arith.constant 0 : i32
    %c0_i32_0 = arith.constant 0 : i32
    %c0_i32_1 = arith.constant 0 : i32
    %c0_i32_2 = arith.constant 0 : i32
    return %c0_i32, %c0_i32_0, %c0_i32_1 : i32, i32, i32
  }
  func.func @transform_6(%arg0: i32) -> (i32, i32, i32) {
    %c0_i32 = arith.constant 0 : i32
    %c0_i32_0 = arith.constant 0 : i32
    %c0_i32_1 = arith.constant 0 : i32
    %c0_i32_2 = arith.constant 0 : i32
    return %c0_i32, %c0_i32_0, %c0_i32_1 : i32, i32, i32
  }
  func.func @transform_7(%arg0: i32) -> (i32, i32, i32) {
    %c0_i32 = arith.constant 0 : i32
    %c0_i32_0 = arith.constant 0 : i32
    %c0_i32_1 = arith.constant 0 : i32
    %c0_i32_2 = arith.constant 0 : i32
    return %c0_i32, %c0_i32_0, %c0_i32_1 : i32, i32, i32
  }
  func.func @transform_8(%arg0: i32) -> (i32, i32, i32) {
    %c0_i32 = arith.constant 0 : i32
    %c0_i32_0 = arith.constant 0 : i32
    %c0_i32_1 = arith.constant 0 : i32
    %c0_i32_2 = arith.constant 0 : i32
    return %c0_i32, %c0_i32_0, %c0_i32_1 : i32, i32, i32
  }
  func.func @transform_9(%arg0: i32) -> (i32, i32) {
    %c0_i32 = arith.constant 0 : i32
    %c0_i32_0 = arith.constant 0 : i32
    %c0_i32_1 = arith.constant 0 : i32
    return %c0_i32, %c0_i32_0 : i32, i32
  }
  func.func @transform_10(%arg0: i32) -> (i32, i32) {
    %c0_i32 = arith.constant 0 : i32
    %c0_i32_0 = arith.constant 0 : i32
    %c0_i32_1 = arith.constant 0 : i32
    return %c0_i32, %c0_i32_0 : i32, i32
  }
  func.func @transform_11(%arg0: i32) -> (i32, i32, i32, i32) {
    %c0_i32 = arith.constant 0 : i32
    %c0_i32_0 = arith.constant 0 : i32
    %c0_i32_1 = arith.constant 0 : i32
    %c0_i32_2 = arith.constant 0 : i32
    return %arg0, %c0_i32, %c0_i32_0, %c0_i32_1 : i32, i32, i32, i32
  }
}

</mosaic_0001>

<llo_original>
// kernel: residual_group_forward.1
$region0: #{residual_group_forward.1}
  #allocation0 [shape = 'u32[]', space=smem, size = 0x4, offset = 0x4, fixed_abs, tag = 'smem constant byte address 0x4 - core index']
  #allocation1 [shape = 'u32[144,128]{1,0:T(1,128)}', space=vmem, size = 0x12000, scoped, tag = 'internal scratch']
  #allocation2 [shape = 'f32[18,32,16]{2,1,0:T(8,128)}', space=vmem, size = 0x48000, scoped, tag = 'scratch operand']
  %s0 = inlined_call_operand.vmem [shape: f32[2,16,16,16], index: 0, kind: input, shape index: {}]
  %s1 = inlined_call_operand.vmem [shape: bf16[2,144,16], index: 1, kind: input, shape index: {}]
  %s2 = inlined_call_operand.vmem [shape: f32[2,1,16], index: 2, kind: input, shape index: {}]
  %s3 = inlined_call_operand.vmem [shape: bf16[2,144,16], index: 3, kind: input, shape index: {}]
  %s4 = inlined_call_operand.vmem [shape: f32[2,1,16], index: 4, kind: input, shape index: {}]
  %s5 = inlined_call_operand.vmem [shape: f32[2,4,16], index: 5, kind: input, shape index: {}]
  %s6 = inlined_call_operand.vmem [shape: f32[2,4,1], index: 6, kind: input, shape index: {}]
  %s7 = inlined_call_operand.vmem [shape: f32[2,4,16], index: 7, kind: input, shape index: {}]
  %s8 = inlined_call_operand.vmem [shape: f32[2,1,16], index: 8, kind: input, shape index: {}]
  %s9 = inlined_call_operand.vmem [shape: bf16[144,16], index: 9, kind: input, shape index: {}]
  %s10 = inlined_call_operand.vmem [shape: f32[1,16], index: 10, kind: input, shape index: {}]
  %s11 = inlined_call_operand.vmem [shape: f32[2,16,16,16], index: 11, kind: output, shape index: {}]
  %s12 = sld [smem:[#allocation0]]
  $region77: #{residual_group_forward.1} parent=0
    _
  %s14 = ssub.s32 1, %s12
  %s15 = scalar_select 0, %s14, %s12
  loop: start=0, step=1, limit=4
  $region2: #{residual_group_forward.1} parent=0 // loop_pre_header
    _
  $region3: #{residual_group_forward.1} parent=0 // loop_header
    %s17 = sphi 0, %s21
    %p18 = scmp.ge.s32.totalorder %s17, 4
    %s27 = sphi 0, %s29
    %s30 = sphi 0, %s27
    %s31 = sphi 0, %s30
    %s47 = sphi 0, %s31
    %s51 = sphi 0, %s51
    %s53 = sphi 0, %s51
    %s54 = sphi 0, %s53
    %s68 = sphi 0, %s54
    %s72 = sphi 0, %s72
    %s74 = sphi 0, %s72
    %s75 = sphi 0, %s74
    %s89 = sphi 0, %s75
    %s93 = sphi 0, %s93
    %s95 = sphi 0, %s93
    %s96 = sphi 0, %s95
    %s110 = sphi 0, %s96
    %s114 = sphi 0, %s114
    %s116 = sphi 0, %s114
    %s117 = sphi 0, %s116
    %s131 = sphi 0, %s117
    %s135 = sphi 0, %s135
    %s137 = sphi 0, %s135
    %s138 = sphi 0, %s137
    %s152 = sphi 0, %s138
    %s156 = sphi 0, %s156
    %s158 = sphi 0, %s156
    %s159 = sphi 0, %s158
    %s173 = sphi 0, %s159
    %s177 = sphi 0, %s177
    %s179 = sphi 0, %s177
    %s180 = sphi 0, %s179
    %s194 = sphi 0, %s180
    %s198 = sphi 0, %s198
    %s200 = sphi 0, %s198
    %s201 = sphi 0, %s200
    %s215 = sphi 0, %s201
    %s219 = sphi 0, %s219
    %s221 = sphi 0, %s219
    %s222 = sphi 0, %s221
    %s236 = sphi 0, %s222
    %s240 = sphi 0, %s240
    %s242 = sphi 0, %s240
    %s243 = sphi 0, %s242
    %s257 = sphi 0, %s243
    %s263 = sphi 0, %s265
    %s266 = sphi 0, %s263
    %s267 = sphi 0, %s266
    %s283 = sphi 0, %s267
  $region4: #{residual_group_forward.1} parent=0 // loop_header_branch
    %20 = sbr.rel (%p18) target = $region8
  $region5: #{residual_group_forward.1} parent=0 // loop_body
    %s22 = ssub.s32 %s17, 1
    %s23 = ssub.s32 %s17, 2
    %s24 = sadd.s32 %s17, 1
    %s25 = ssub.s32 %s17, %s24
    %p26 = scmp.eq.s32.totalorder %s25, 0
    %s28 = sadd.s32 %s27, 1
    %s29 = scalar_select %p26, %s27, %s28
    %p32 = pneg %p26
    %p33 = scmp.eq.s32.totalorder %s17, 1
    %p34 = por %p32, %p33
    %p35 = scmp.ne.s32.totalorder %s27, %s30
    %p36 = scmp.eq.s32.totalorder %s17, 0
    %p37 = por %p35, %p36
    %p38 = scmp.ne.s32.totalorder %s27, %s30
    %p39 = scmp.eq.s32.totalorder %s22, 1
    %p40 = por %p38, %p39
    %p41 = scmp.ne.s32.totalorder %s30, %s31
    %p42 = scmp.eq.s32.totalorder %s22, 0
    %p43 = por %p41, %p42
    %p44 = scmp.ne.s32.totalorder %s30, %s31
    %p45 = scmp.eq.s32.totalorder %s23, 1
    %p46 = por %p44, %p45
    %p48 = scmp.ne.s32.totalorder %s31, %s47
    %p49 = scmp.eq.s32.totalorder %s23, 0
    %p50 = por %p48, %p49
    %s52 = sadd.s32 %s51, 1
    %p55 = scmp.eq.s32.totalorder %s17, 1
    %p56 = scmp.ne.s32.totalorder %s51, %s53
    %p57 = scmp.eq.s32.totalorder %s17, 0
    %p58 = por %p56, %p57
    %p59 = scmp.ne.s32.totalorder %s51, %s53
    %p60 = scmp.eq.s32.totalorder %s22, 1
    %p61 = por %p59, %p60
    %p62 = scmp.ne.s32.totalorder %s53, %s54
    %p63 = scmp.eq.s32.totalorder %s22, 0
    %p64 = por %p62, %p63
    %p65 = scmp.ne.s32.totalorder %s53, %s54
    %p66 = scmp.eq.s32.totalorder %s23, 1
    %p67 = por %p65, %p66
    %p69 = scmp.ne.s32.totalorder %s54, %s68
    %p70 = scmp.eq.s32.totalorder %s23, 0
    %p71 = por %p69, %p70
    %s73 = sadd.s32 %s72, 1
    %p76 = scmp.eq.s32.totalorder %s17, 1
    %p77 = scmp.ne.s32.totalorder %s72, %s74
    %p78 = scmp.eq.s32.totalorder %s17, 0
    %p79 = por %p77, %p78
    %p80 = scmp.ne.s32.totalorder %s72, %s74
    %p81 = scmp.eq.s32.totalorder %s22, 1
    %p82 = por %p80, %p81
    %p83 = scmp.ne.s32.totalorder %s74, %s75
    %p84 = scmp.eq.s32.totalorder %s22, 0
    %p85 = por %p83, %p84
    %p86 = scmp.ne.s32.totalorder %s74, %s75
    %p87 = scmp.eq.s32.totalorder %s23, 1
    %p88 = por %p86, %p87
    %p90 = scmp.ne.s32.totalorder %s75, %s89
    %p91 = scmp.eq.s32.totalorder %s23, 0
    %p92 = por %p90, %p91
    %s94 = sadd.s32 %s93, 1
    %p97 = scmp.eq.s32.totalorder %s17, 1
    %p98 = scmp.ne.s32.totalorder %s93, %s95
    %p99 = scmp.eq.s32.totalorder %s17, 0
    %p100 = por %p98, %p99
    %p101 = scmp.ne.s32.totalorder %s93, %s95
    %p102 = scmp.eq.s32.totalorder %s22, 1
    %p103 = por %p101, %p102
    %p104 = scmp.ne.s32.totalorder %s95, %s96
    %p105 = scmp.eq.s32.totalorder %s22, 0
    %p106 = por %p104, %p105
    %p107 = scmp.ne.s32.totalorder %s95, %s96
    %p108 = scmp.eq.s32.totalorder %s23, 1
    %p109 = por %p107, %p108
    %p111 = scmp.ne.s32.totalorder %s96, %s110
    %p112 = scmp.eq.s32.totalorder %s23, 0
    %p113 = por %p111, %p112
    %s115 = sadd.s32 %s114, 1
    %p118 = scmp.eq.s32.totalorder %s17, 1
    %p119 = scmp.ne.s32.totalorder %s114, %s116
    %p120 = scmp.eq.s32.totalorder %s17, 0
    %p121 = por %p119, %p120
    %p122 = scmp.ne.s32.totalorder %s114, %s116
    %p123 = scmp.eq.s32.totalorder %s22, 1
    %p124 = por %p122, %p123
    %p125 = scmp.ne.s32.totalorder %s116, %s117
    %p126 = scmp.eq.s32.totalorder %s22, 0
    %p127 = por %p125, %p126
    %p128 = scmp.ne.s32.totalorder %s116, %s117
    %p129 = scmp.eq.s32.totalorder %s23, 1
    %p130 = por %p128, %p129
    %p132 = scmp.ne.s32.totalorder %s117, %s131
    %p133 = scmp.eq.s32.totalorder %s23, 0
    %p134 = por %p132, %p133
    %s136 = sadd.s32 %s135, 1
    %p139 = scmp.eq.s32.totalorder %s17, 1
    %p140 = scmp.ne.s32.totalorder %s135, %s137
    %p141 = scmp.eq.s32.totalorder %s17, 0
    %p142 = por %p140, %p141
    %p143 = scmp.ne.s32.totalorder %s135, %s137
    %p144 = scmp.eq.s32.totalorder %s22, 1
    %p145 = por %p143, %p144
    %p146 = scmp.ne.s32.totalorder %s137, %s138
    %p147 = scmp.eq.s32.totalorder %s22, 0
    %p148 = por %p146, %p147
    %p149 = scmp.ne.s32.totalorder %s137, %s138
    %p150 = scmp.eq.s32.totalorder %s23, 1
    %p151 = por %p149, %p150
    %p153 = scmp.ne.s32.totalorder %s138, %s152
    %p154 = scmp.eq.s32.totalorder %s23, 0
    %p155 = por %p153, %p154
    %s157 = sadd.s32 %s156, 1
    %p160 = scmp.eq.s32.totalorder %s17, 1
    %p161 = scmp.ne.s32.totalorder %s156, %s158
    %p162 = scmp.eq.s32.totalorder %s17, 0
    %p163 = por %p161, %p162
    %p164 = scmp.ne.s32.totalorder %s156, %s158
    %p165 = scmp.eq.s32.totalorder %s22, 1
    %p166 = por %p164, %p165
    %p167 = scmp.ne.s32.totalorder %s158, %s159
    %p168 = scmp.eq.s32.totalorder %s22, 0
    %p169 = por %p167, %p168
    %p170 = scmp.ne.s32.totalorder %s158, %s159
    %p171 = scmp.eq.s32.totalorder %s23, 1
    %p172 = por %p170, %p171
    %p174 = scmp.ne.s32.totalorder %s159, %s173
    %p175 = scmp.eq.s32.totalorder %s23, 0
    %p176 = por %p174, %p175
    %s178 = sadd.s32 %s177, 1
    %p181 = scmp.eq.s32.totalorder %s17, 1
    %p182 = scmp.ne.s32.totalorder %s177, %s179
    %p183 = scmp.eq.s32.totalorder %s17, 0
    %p184 = por %p182, %p183
    %p185 = scmp.ne.s32.totalorder %s177, %s179
    %p186 = scmp.eq.s32.totalorder %s22, 1
    %p187 = por %p185, %p186
    %p188 = scmp.ne.s32.totalorder %s179, %s180
    %p189 = scmp.eq.s32.totalorder %s22, 0
    %p190 = por %p188, %p189
    %p191 = scmp.ne.s32.totalorder %s179, %s180
    %p192 = scmp.eq.s32.totalorder %s23, 1
    %p193 = por %p191, %p192
    %p195 = scmp.ne.s32.totalorder %s180, %s194
    %p196 = scmp.eq.s32.totalorder %s23, 0
    %p197 = por %p195, %p196
    %s199 = sadd.s32 %s198, 1
    %p202 = scmp.eq.s32.totalorder %s17, 1
    %p203 = scmp.ne.s32.totalorder %s198, %s200
    %p204 = scmp.eq.s32.totalorder %s17, 0
    %p205 = por %p203, %p204
    %p206 = scmp.ne.s32.totalorder %s198, %s200
    %p207 = scmp.eq.s32.totalorder %s22, 1
    %p208 = por %p206, %p207
    %p209 = scmp.ne.s32.totalorder %s200, %s201
    %p210 = scmp.eq.s32.totalorder %s22, 0
    %p211 = por %p209, %p210
    %p212 = scmp.ne.s32.totalorder %s200, %s201
    %p213 = scmp.eq.s32.totalorder %s23, 1
    %p214 = por %p212, %p213
    %p216 = scmp.ne.s32.totalorder %s201, %s215
    %p217 = scmp.eq.s32.totalorder %s23, 0
    %p218 = por %p216, %p217
    %s220 = sadd.s32 %s219, 1
    %p223 = scmp.eq.s32.totalorder %s17, 1
    %p224 = scmp.ne.s32.totalorder %s219, %s221
    %p225 = scmp.eq.s32.totalorder %s17, 0
    %p226 = por %p224, %p225
    %p227 = scmp.ne.s32.totalorder %s219, %s221
    %p228 = scmp.eq.s32.totalorder %s22, 1
    %p229 = por %p227, %p228
    %p230 = scmp.ne.s32.totalorder %s221, %s222
    %p231 = scmp.eq.s32.totalorder %s22, 0
    %p232 = por %p230, %p231
    %p233 = scmp.ne.s32.totalorder %s221, %s222
    %p234 = scmp.eq.s32.totalorder %s23, 1
    %p235 = por %p233, %p234
    %p237 = scmp.ne.s32.totalorder %s222, %s236
    %p238 = scmp.eq.s32.totalorder %s23, 0
    %p239 = por %p237, %p238
    %s241 = sadd.s32 %s240, 1
    %p244 = scmp.eq.s32.totalorder %s17, 1
    %p245 = scmp.ne.s32.totalorder %s240, %s242
    %p246 = scmp.eq.s32.totalorder %s17, 0
    %p247 = por %p245, %p246
    %p248 = scmp.ne.s32.totalorder %s240, %s242
    %p249 = scmp.eq.s32.totalorder %s22, 1
    %p250 = por %p248, %p249
    %p251 = scmp.ne.s32.totalorder %s242, %s243
    %p252 = scmp.eq.s32.totalorder %s22, 0
    %p253 = por %p251, %p252
    %p254 = scmp.ne.s32.totalorder %s242, %s243
    %p255 = scmp.eq.s32.totalorder %s23, 1
    %p256 = por %p254, %p255
    %p258 = scmp.ne.s32.totalorder %s243, %s257
    %p259 = scmp.eq.s32.totalorder %s23, 0
    %p260 = por %p258, %p259
    %s261 = ssub.s32 %s17, %s24
    %p262 = scmp.eq.s32.totalorder %s261, 0
    %s264 = sadd.s32 %s263, 1
    %s265 = scalar_select %p262, %s263, %s264
    %p268 = pneg %p262
    %p269 = scmp.eq.s32.totalorder %s17, 1
    %p270 = por %p268, %p269
    %p271 = scmp.ne.s32.totalorder %s263, %s266
    %p272 = scmp.eq.s32.totalorder %s17, 0
    %p273 = por %p271, %p272
    %p274 = scmp.ne.s32.totalorder %s263, %s266
    %p275 = scmp.eq.s32.totalorder %s22, 1
    %p276 = por %p274, %p275
    %p277 = scmp.ne.s32.totalorder %s266, %s267
    %p278 = scmp.eq.s32.totalorder %s22, 0
    %p279 = por %p277, %p278
    %p280 = scmp.ne.s32.totalorder %s266, %s267
    %p281 = scmp.eq.s32.totalorder %s23, 1
    %p282 = por %p280, %p281
    %p284 = scmp.ne.s32.totalorder %s267, %s283
    %p285 = scmp.eq.s32.totalorder %s23, 0
    %p286 = por %p284, %p285
    %p287 = scmp.le.s32.totalorder 1, %s17
    %p288 = scmp.lt.s32.totalorder %s17, 3
    %p289 = pnand %p287, %p288
    %p290 = pneg %p289
    // Predicated region
    $region9: #{residual_group_forward.1} parent=5 // pred_check
      _
    $region10: #{residual_group_forward.1} parent=5 // pred_check_branch
      %292 = sbr.rel (%p289) target = $region12
    $region11: #{residual_group_forward.1} parent=5 // pred_region
      %s293 = ssub.s32 %s17, 1
      // Predicated region
      $region13: #{residual_group_forward.1} parent=11 // pred_check
        %p294 = pneg %p64
      $region14: #{residual_group_forward.1} parent=11 // pred_check_branch
        %296 = sbr.rel (%p294) target = $region16
      $region15: #{residual_group_forward.1} parent=11 // pred_region
        _
      $region16: #{residual_group_forward.1} parent=11 // pred_fallthru
        _
      // Predicated region
      $region17: #{residual_group_forward.1} parent=11 // pred_check
        %p297 = pneg %p85
      $region18: #{residual_group_forward.1} parent=11 // pred_check_branch
        %299 = sbr.rel (%p297) target = $region20
      $region19: #{residual_group_forward.1} parent=11 // pred_region
        _
      $region20: #{residual_group_forward.1} parent=11 // pred_fallthru
        _
      // Predicated region
      $region21: #{residual_group_forward.1} parent=11 // pred_check
        %p300 = pneg %p106
      $region22: #{residual_group_forward.1} parent=11 // pred_check_branch
        %302 = sbr.rel (%p300) target = $region24
      $region23: #{residual_group_forward.1} parent=11 // pred_region
        _
      $region24: #{residual_group_forward.1} parent=11 // pred_fallthru
        _
      // Predicated region
      $region25: #{residual_group_forward.1} parent=11 // pred_check
        %p303 = pneg %p127
      $region26: #{residual_group_forward.1} parent=11 // pred_check_branch
        %305 = sbr.rel (%p303) target = $region28
      $region27: #{residual_group_forward.1} parent=11 // pred_region
        _
      $region28: #{residual_group_forward.1} parent=11 // pred_fallthru
        _
      // Predicated region
      $region29: #{residual_group_forward.1} parent=11 // pred_check
        %p306 = pneg %p148
      $region30: #{residual_group_forward.1} parent=11 // pred_check_branch
        %308 = sbr.rel (%p306) target = $region32
      $region31: #{residual_group_forward.1} parent=11 // pred_region
        _
      $region32: #{residual_group_forward.1} parent=11 // pred_fallthru
        _
      // Predicated region
      $region33: #{residual_group_forward.1} parent=11 // pred_check
        %p309 = pneg %p169
      $region34: #{residual_group_forward.1} parent=11 // pred_check_branch
        %311 = sbr.rel (%p309) target = $region36
      $region35: #{residual_group_forward.1} parent=11 // pred_region
        _
      $region36: #{residual_group_forward.1} parent=11 // pred_fallthru
        _
      // Predicated region
      $region37: #{residual_group_forward.1} parent=11 // pred_check
        %p312 = pneg %p190
      $region38: #{residual_group_forward.1} parent=11 // pred_check_branch
        %314 = sbr.rel (%p312) target = $region40
      $region39: #{residual_group_forward.1} parent=11 // pred_region
        _
      $region40: #{residual_group_forward.1} parent=11 // pred_fallthru
        _
      // Predicated region
      $region41: #{residual_group_forward.1} parent=11 // pred_check
        %p315 = pneg %p211
      $region42: #{residual_group_forward.1} parent=11 // pred_check_branch
        %317 = sbr.rel (%p315) target = $region44
      $region43: #{residual_group_forward.1} parent=11 // pred_region
        _
      $region44: #{residual_group_forward.1} parent=11 // pred_fallthru
        _
      // Predicated region
      $region45: #{residual_group_forward.1} parent=11 // pred_check
        %p318 = pneg %p232
      $region46: #{residual_group_forward.1} parent=11 // pred_check_branch
        %320 = sbr.rel (%p318) target = $region48
      $region47: #{residual_group_forward.1} parent=11 // pred_region
        _
      $region48: #{residual_group_forward.1} parent=11 // pred_fallthru
        _
      // Predicated region
      $region49: #{residual_group_forward.1} parent=11 // pred_check
        %p321 = pneg %p253
      $region50: #{residual_group_forward.1} parent=11 // pred_check_branch
        %323 = sbr.rel (%p321) target = $region52
      $region51: #{residual_group_forward.1} parent=11 // pred_region
        _
      $region52: #{residual_group_forward.1} parent=11 // pred_fallthru
        _
    $region12: #{residual_group_forward.1} parent=5 // pred_fallthru
      _
    %p324 = scmp.lt.s32.totalorder %s17, 2
    // Predicated region
    $region53: #{residual_group_forward.1} parent=5 // pred_check
      %p325 = pneg %p324
    $region54: #{residual_group_forward.1} parent=5 // pred_check_branch
      %327 = sbr.rel (%p325) target = $region56
    $region55: #{residual_group_forward.1} parent=5 // pred_region
      // Predicated region
      $region57: #{residual_group_forward.1} parent=55 // pred_check
        %p328 = pneg %p37
      $region58: #{residual_group_forward.1} parent=55 // pred_check_branch
        %330 = sbr.rel (%p328) target = $region60
      $region59: #{residual_group_forward.1} parent=55 // pred_region
        %p331 = scmp.lt.s32.totalorder %s17, 1
        %s332 = scalar_select %p331, %s17, 1
        %s333 = smul.addr %s332, 32
        %s334 = smul.addr %s333, 8
        %s335 = scalar_lea.vmem %s0, %s334
      $region60: #{residual_group_forward.1} parent=55 // pred_fallthru
        _
    $region56: #{residual_group_forward.1} parent=5 // pred_fallthru
      _
    %p336 = scmp.le.s32.totalorder 1, %s17
    %p337 = scmp.lt.s32.totalorder %s17, 3
    %p338 = pnand %p336, %p337
    %p339 = pneg %p338
    // Predicated region
    $region61: #{residual_group_forward.1} parent=5 // pred_check
      _
    $region62: #{residual_group_forward.1} parent=5 // pred_check_branch
      %341 = sbr.rel (%p338) target = $region64
    $region63: #{residual_group_forward.1} parent=5 // pred_region
      %s342 = ssub.s32 %s17, 1
      %p343 = scmp.lt.s32.totalorder %s22, 1
      %s344 = scalar_select %p343, %s22, 1
      %s345 = smul.addr %s344, 32
      %s346 = smul.addr %s345, 8
      %s347 = scalar_lea.vmem %s0, %s346
      %p348 = pneg %p43
      %p349 = pneg %p40
      %p350 = pneg %p64
      %p351 = pneg %p61
      %p352 = pneg %p85
      %p353 = pneg %p82
      %p354 = pneg %p106
      %p355 = pneg %p103
      %p356 = pneg %p127
      %p357 = pneg %p124
      %p358 = pneg %p148
      %p359 = pneg %p145
      %p360 = pneg %p169
      %p361 = pneg %p166
      %p362 = pneg %p190
      %p363 = pneg %p187
      %p364 = pneg %p211
      %p365 = pneg %p208
      %p366 = pneg %p232
      %p367 = pneg %p229
      %p368 = pneg %p253
      %p369 = pneg %p250
      %p370 = pneg %p279
      %p371 = pneg %p276
      %p372 = scmp.lt.s32.totalorder %s22, 1
      %s373 = scalar_select %p372, %s22, 1
      %s374 = smul.addr %s373, 32
      %s375 = smul.addr %s374, 8
      %s376 = scalar_lea.vmem %s11, %s375
      %p377 = scmp.lt.s32.totalorder %s22, 1
      %s378 = scalar_select %p377, %s22, 1
      %s379 = smul.addr %s378, 32
      %s380 = smul.addr %s379, 8
      %s381 = scalar_lea.vmem %s0, %s380
      %p382 = scmp.lt.s32.totalorder %s22, 1
      %s383 = scalar_select %p382, %s22, 1
      %s384 = smul.addr %s383, 32
      %s385 = smul.addr %s384, 8
      %s386 = scalar_lea.vmem %s11, %s385
      %vm388 = vcmask 130048
      %389 = vst.msk [vmem:[#allocation2] sm:$0xff] %vm388, 0.0
      %390 = vst.msk [vmem:[#allocation2 + $0x8] sm:$0xff] %vm388, 0.0
      %391 = vst.msk [vmem:[#allocation2 + $0x10] sm:$0xff] %vm388, 0.0
      %392 = vst.msk [vmem:[#allocation2 + $0x18] sm:$0xff] %vm388, 0.0
      %s393 = scalar_lea.vmem [#allocation2], 544
      %394 = vst.msk [vmem:[%s393] sm:$0xff] %vm388, 0.0
      %395 = vst.msk [vmem:[%s393 + $0x8] sm:$0xff] %vm388, 0.0
      %396 = vst.msk [vmem:[%s393 + $0x10] sm:$0xff] %vm388, 0.0
      %397 = vst.msk [vmem:[%s393 + $0x18] sm:$0xff] %vm388, 0.0
      %s398 = scalar_lea.vmem [#allocation2], 32
      %399 = vst.msk [vmem:[%s398] sm:$0xff] %vm388, 0.0
      %400 = vst.msk [vmem:[%s398 + $0x20] sm:$0xff] %vm388, 0.0
      %401 = vst.msk [vmem:[%s398 + $0x40] sm:$0xff] %vm388, 0.0
      %402 = vst.msk [vmem:[%s398 + $0x60] sm:$0xff] %vm388, 0.0
      %403 = vst.msk [vmem:[%s398 + $0x80] sm:$0xff] %vm388, 0.0
      %404 = vst.msk [vmem:[%s398 + $0xa0] sm:$0xff] %vm388, 0.0
      %405 = vst.msk [vmem:[%s398 + $0xc0] sm:$0xff] %vm388, 0.0
      %406 = vst.msk [vmem:[%s398 + $0xe0] sm:$0xff] %vm388, 0.0
      %407 = vst.msk [vmem:[%s398 + $0x100] sm:$0xff] %vm388, 0.0
      %408 = vst.msk [vmem:[%s398 + $0x120] sm:$0xff] %vm388, 0.0
      %409 = vst.msk [vmem:[%s398 + $0x140] sm:$0xff] %vm388, 0.0
      %410 = vst.msk [vmem:[%s398 + $0x160] sm:$0xff] %vm388, 0.0
      %411 = vst.msk [vmem:[%s398 + $0x180] sm:$0xff] %vm388, 0.0
      %412 = vst.msk [vmem:[%s398 + $0x1a0] sm:$0xff] %vm388, 0.0
      %413 = vst.msk [vmem:[%s398 + $0x1c0] sm:$0xff] %vm388, 0.0
      %414 = vst.msk [vmem:[%s398 + $0x1e0] sm:$0xff] %vm388, 0.0
      %415 = vst.msk [vmem:[%s398 + $0x18] sm:$0xff] %vm388, 0.0
      %416 = vst.msk [vmem:[%s398 + $0x38] sm:$0xff] %vm388, 0.0
      %417 = vst.msk [vmem:[%s398 + $0x58] sm:$0xff] %vm388, 0.0
      %418 = vst.msk [vmem:[%s398 + $0x78] sm:$0xff] %vm388, 0.0
      %419 = vst.msk [vmem:[%s398 + $0x98] sm:$0xff] %vm388, 0.0
      %420 = vst.msk [vmem:[%s398 + $0xb8] sm:$0xff] %vm388, 0.0
      %421 = vst.msk [vmem:[%s398 + $0xd8] sm:$0xff] %vm388, 0.0
      %422 = vst.msk [vmem:[%s398 + $0xf8] sm:$0xff] %vm388, 0.0
      %423 = vst.msk [vmem:[%s398 + $0x118] sm:$0xff] %vm388, 0.0
      %424 = vst.msk [vmem:[%s398 + $0x138] sm:$0xff] %vm388, 0.0
      %425 = vst.msk [vmem:[%s398 + $0x158] sm:$0xff] %vm388, 0.0
      %426 = vst.msk [vmem:[%s398 + $0x178] sm:$0xff] %vm388, 0.0
      %427 = vst.msk [vmem:[%s398 + $0x198] sm:$0xff] %vm388, 0.0
      %428 = vst.msk [vmem:[%s398 + $0x1b8] sm:$0xff] %vm388, 0.0
      %429 = vst.msk [vmem:[%s398 + $0x1d8] sm:$0xff] %vm388, 0.0
      %430 = vst.msk [vmem:[%s398 + $0x1f8] sm:$0xff] %vm388, 0.0
      %v431 = vld [vmem:[%s381] sm:$0xff]
      %v432 = vld [vmem:[%s381 + $0x8] sm:$0xff]
      %v433 = vld [vmem:[%s381 + $0x10] sm:$0xff]
      %v434 = vld [vmem:[%s381 + $0x18] sm:$0xff]
      %v435 = vld [vmem:[%s381 + $0x20] sm:$0xff]
      %v436 = vld [vmem:[%s381 + $0x28] sm:$0xff]
      %v437 = vld [vmem:[%s381 + $0x30] sm:$0xff]
      %v438 = vld [vmem:[%s381 + $0x38] sm:$0xff]
      %v439 = vld [vmem:[%s381 + $0x40] sm:$0xff]
      %v440 = vld [vmem:[%s381 + $0x48] sm:$0xff]
      %v441 = vld [vmem:[%s381 + $0x50] sm:$0xff]
      %v442 = vld [vmem:[%s381 + $0x58] sm:$0xff]
      %v443 = vld [vmem:[%s381 + $0x60] sm:$0xff]
      %v444 = vld [vmem:[%s381 + $0x68] sm:$0xff]
      %v445 = vld [vmem:[%s381 + $0x70] sm:$0xff]
      %v446 = vld [vmem:[%s381 + $0x78] sm:$0xff]
      %v447 = vld [vmem:[%s381 + $0x80] sm:$0xff]
      %v448 = vld [vmem:[%s381 + $0x88] sm:$0xff]
      %v449 = vld [vmem:[%s381 + $0x90] sm:$0xff]
      %v450 = vld [vmem:[%s381 + $0x98] sm:$0xff]
      %v451 = vld [vmem:[%s381 + $0xa0] sm:$0xff]
      %v452 = vld [vmem:[%s381 + $0xa8] sm:$0xff]
      %v453 = vld [vmem:[%s381 + $0xb0] sm:$0xff]
      %v454 = vld [vmem:[%s381 + $0xb8] sm:$0xff]
      %v455 = vld [vmem:[%s381 + $0xc0] sm:$0xff]
      %v456 = vld [vmem:[%s381 + $0xc8] sm:$0xff]
      %v457 = vld [vmem:[%s381 + $0xd0] sm:$0xff]
      %v458 = vld [vmem:[%s381 + $0xd8] sm:$0xff]
      %v459 = vld [vmem:[%s381 + $0xe0] sm:$0xff]
      %v460 = vld [vmem:[%s381 + $0xe8] sm:$0xff]
      %v461 = vld [vmem:[%s381 + $0xf0] sm:$0xff]
      %v462 = vld [vmem:[%s381 + $0xf8] sm:$0xff]
      %463 = vst.msk [vmem:[%s398 + $0x8] sm:$0xff] %vm388, %v431
      %464 = vst.msk [vmem:[%s398 + $0x10] sm:$0xff] %vm388, %v432
      %465 = vst.msk [vmem:[%s398 + $0x28] sm:$0xff] %vm388, %v433
      %466 = vst.msk [vmem:[%s398 + $0x30] sm:$0xff] %vm388, %v434
      %467 = vst.msk [vmem:[%s398 + $0x48] sm:$0xff] %vm388, %v435
      %468 = vst.msk [vmem:[%s398 + $0x50] sm:$0xff] %vm388, %v436
      %469 = vst.msk [vmem:[%s398 + $0x68] sm:$0xff] %vm388, %v437
      %470 = vst.msk [vmem:[%s398 + $0x70] sm:$0xff] %vm388, %v438
      %471 = vst.msk [vmem:[%s398 + $0x88] sm:$0xff] %vm388, %v439
      %472 = vst.msk [vmem:[%s398 + $0x90] sm:$0xff] %vm388, %v440
      %473 = vst.msk [vmem:[%s398 + $0xa8] sm:$0xff] %vm388, %v441
      %474 = vst.msk [vmem:[%s398 + $0xb0] sm:$0xff] %vm388, %v442
      %475 = vst.msk [vmem:[%s398 + $0xc8] sm:$0xff] %vm388, %v443
      %476 = vst.msk [vmem:[%s398 + $0xd0] sm:$0xff] %vm388, %v444
      %477 = vst.msk [vmem:[%s398 + $0xe8] sm:$0xff] %vm388, %v445
      %478 = vst.msk [vmem:[%s398 + $0xf0] sm:$0xff] %vm388, %v446
      %479 = vst.msk [vmem:[%s398 + $0x108] sm:$0xff] %vm388, %v447
      %480 = vst.msk [vmem:[%s398 + $0x110] sm:$0xff] %vm388, %v448
      %481 = vst.msk [vmem:[%s398 + $0x128] sm:$0xff] %vm388, %v449
      %482 = vst.msk [vmem:[%s398 + $0x130] sm:$0xff] %vm388, %v450
      %483 = vst.msk [vmem:[%s398 + $0x148] sm:$0xff] %vm388, %v451
      %484 = vst.msk [vmem:[%s398 + $0x150] sm:$0xff] %vm388, %v452
      %485 = vst.msk [vmem:[%s398 + $0x168] sm:$0xff] %vm388, %v453
      %486 = vst.msk [vmem:[%s398 + $0x170] sm:$0xff] %vm388, %v454
      %487 = vst.msk [vmem:[%s398 + $0x188] sm:$0xff] %vm388, %v455
      %488 = vst.msk [vmem:[%s398 + $0x190] sm:$0xff] %vm388, %v456
      %489 = vst.msk [vmem:[%s398 + $0x1a8] sm:$0xff] %vm388, %v457
      %490 = vst.msk [vmem:[%s398 + $0x1b0] sm:$0xff] %vm388, %v458
      %491 = vst.msk [vmem:[%s398 + $0x1c8] sm:$0xff] %vm388, %v459
      %492 = vst.msk [vmem:[%s398 + $0x1d0] sm:$0xff] %vm388, %v460
      %493 = vst.msk [vmem:[%s398 + $0x1e8] sm:$0xff] %vm388, %v461
      %494 = vst.msk [vmem:[%s398 + $0x1f0] sm:$0xff] %vm388, %v462
      %v495 = vld [vmem:[%s1] sm:$0xf]
      %v496 = vld [vmem:[%s1 + $0x4] sm:$0xf]
      %v497 = vld [vmem:[%s1 + $0x8] sm:$0xf]
      %v498 = vld [vmem:[%s1 + $0xc] sm:$0xf]
      %v499 = vld [vmem:[%s1 + $0x10] sm:$0xf]
      %v500 = vld [vmem:[%s1 + $0x14] sm:$0xf]
      %v501 = vld [vmem:[%s1 + $0x18] sm:$0xf]
      %v502 = vld [vmem:[%s1 + $0x1c] sm:$0xf]
      %v503 = vld [vmem:[%s1 + $0x20] sm:$0xf]
      %v504 = vld [vmem:[%s1 + $0x24] sm:$0xf]
      %v505 = vld [vmem:[%s1 + $0x28] sm:$0xf]
      %v506 = vld [vmem:[%s1 + $0x2c] sm:$0xf]
      %v507 = vld [vmem:[%s1 + $0x30] sm:$0xf]
      %v508 = vld [vmem:[%s1 + $0x34] sm:$0xf]
      %v509 = vld [vmem:[%s1 + $0x38] sm:$0xf]
      %v510 = vld [vmem:[%s1 + $0x3c] sm:$0xf]
      %v511 = vld [vmem:[%s1 + $0x40] sm:$0xf]
      %v512 = vld [vmem:[%s1 + $0x44] sm:$0xf]
      %v513 = vld [vmem:[%s2] sm:$0x1]
      %v514 = vld [vmem:[#allocation2 + $0x7] sm:$0xff]
      %v515 = vld [vmem:[#allocation2 + $0xf] sm:$0xff]
      %v516 = vld [vmem:[#allocation2 + $0x27] sm:$0xff]
      %v517 = vld [vmem:[#allocation2 + $0x2f] sm:$0xff]
      %v518 = vld [vmem:[#allocation2 + $0x47] sm:$0xff]
      %v519 = vld [vmem:[#allocation2 + $0x4f] sm:$0xff]
      %v520 = vld [vmem:[#allocation2 + $0x67] sm:$0xff]
      %v521 = vld [vmem:[#allocation2 + $0x6f] sm:$0xff]
      %v522 = vld [vmem:[#allocation2 + $0x87] sm:$0xff]
      %v523 = vld [vmem:[#allocation2 + $0x8f] sm:$0xff]
      %v524 = vld [vmem:[#allocation2 + $0xa7] sm:$0xff]
      %v525 = vld [vmem:[#allocation2 + $0xaf] sm:$0xff]
      %v526 = vld [vmem:[#allocation2 + $0xc7] sm:$0xff]
      %v527 = vld [vmem:[#allocation2 + $0xcf] sm:$0xff]
      %v528 = vld [vmem:[#allocation2 + $0xe7] sm:$0xff]
      %v529 = vld [vmem:[#allocation2 + $0xef] sm:$0xff]
      %v530 = vld [vmem:[#allocation2 + $0x107] sm:$0xff]
      %v531 = vld [vmem:[#allocation2 + $0x10f] sm:$0xff]
      %v532 = vld [vmem:[#allocation2 + $0x127] sm:$0xff]
      %v533 = vld [vmem:[#allocation2 + $0x12f] sm:$0xff]
      %v534 = vld [vmem:[#allocation2 + $0x147] sm:$0xff]
      %v535 = vld [vmem:[#allocation2 + $0x14f] sm:$0xff]
      %v536 = vld [vmem:[#allocation2 + $0x167] sm:$0xff]
      %v537 = vld [vmem:[#allocation2 + $0x16f] sm:$0xff]
      %v538 = vld [vmem:[#allocation2 + $0x187] sm:$0xff]
      %v539 = vld [vmem:[#allocation2 + $0x18f] sm:$0xff]
      %v540 = vld [vmem:[#allocation2 + $0x1a7] sm:$0xff]
      %v541 = vld [vmem:[#allocation2 + $0x1af] sm:$0xff]
      %v542 = vld [vmem:[#allocation2 + $0x1c7] sm:$0xff]
      %v543 = vld [vmem:[#allocation2 + $0x1cf] sm:$0xff]
      %v544 = vld [vmem:[#allocation2 + $0x1e7] sm:$0xff]
      %v545 = vld [vmem:[#allocation2 + $0x1ef] sm:$0xff]
      %v546 = vpack.c.bf16 %v515, %v514
      %v547 = vpack.c.bf16 %v517, %v516
      %v548 = vpack.c.bf16 %v519, %v518
      %v549 = vpack.c.bf16 %v521, %v520
      %v550 = vpack.c.bf16 %v523, %v522
      %v551 = vpack.c.bf16 %v525, %v524
      %v552 = vpack.c.bf16 %v527, %v526
      %v553 = vpack.c.bf16 %v529, %v528
      %v554 = vpack.c.bf16 %v531, %v530
      %v555 = vpack.c.bf16 %v533, %v532
      %v556 = vpack.c.bf16 %v535, %v534
      %v557 = vpack.c.bf16 %v537, %v536
      %v558 = vpack.c.bf16 %v539, %v538
      %v559 = vpack.c.bf16 %v541, %v540
      %v560 = vpack.c.bf16 %v543, %v542
      %v561 = vpack.c.bf16 %v545, %v544
      %v562 = vld [vmem:[#allocation2 + $0x8] sm:$0xff]
      %v563 = vld [vmem:[#allocation2 + $0x10] sm:$0xff]
      %v564 = vld [vmem:[#allocation2 + $0x28] sm:$0xff]
      %v565 = vld [vmem:[#allocation2 + $0x30] sm:$0xff]
      %v566 = vld [vmem:[#allocation2 + $0x48] sm:$0xff]
      %v567 = vld [vmem:[#allocation2 + $0x50] sm:$0xff]
      %v568 = vld [vmem:[#allocation2 + $0x68] sm:$0xff]
      %v569 = vld [vmem:[#allocation2 + $0x70] sm:$0xff]
      %v570 = vld [vmem:[#allocation2 + $0x88] sm:$0xff]
      %v571 = vld [vmem:[#allocation2 + $0x90] sm:$0xff]
      %v572 = vld [vmem:[#allocation2 + $0xa8] sm:$0xff]
      %v573 = vld [vmem:[#allocation2 + $0xb0] sm:$0xff]
      %v574 = vld [vmem:[#allocation2 + $0xc8] sm:$0xff]
      %v575 = vld [vmem:[#allocation2 + $0xd0] sm:$0xff]
      %v576 = vld [vmem:[#allocation2 + $0xe8] sm:$0xff]
      %v577 = vld [vmem:[#allocation2 + $0xf0] sm:$0xff]
      %v578 = vld [vmem:[#allocation2 + $0x108] sm:$0xff]
      %v579 = vld [vmem:[#allocation2 + $0x110] sm:$0xff]
      %v580 = vld [vmem:[#allocation2 + $0x128] sm:$0xff]
      %v581 = vld [vmem:[#allocation2 + $0x130] sm:$0xff]
      %v582 = vld [vmem:[#allocation2 + $0x148] sm:$0xff]
      %v583 = vld [vmem:[#allocation2 + $0x150] sm:$0xff]
      %v584 = vld [vmem:[#allocation2 + $0x168] sm:$0xff]
      %v585 = vld [vmem:[#allocation2 + $0x170] sm:$0xff]
      %v586 = vld [vmem:[#allocation2 + $0x188] sm:$0xff]
      %v587 = vld [vmem:[#allocation2 + $0x190] sm:$0xff]
      %v588 = vld [vmem:[#allocation2 + $0x1a8] sm:$0xff]
      %v589 = vld [vmem:[#allocation2 + $0x1b0] sm:$0xff]
      %v590 = vld [vmem:[#allocation2 + $0x1c8] sm:$0xff]
      %v591 = vld [vmem:[#allocation2 + $0x1d0] sm:$0xff]
      %v592 = vld [vmem:[#allocation2 + $0x1e8] sm:$0xff]
      %v593 = vld [vmem:[#allocation2 + $0x1f0] sm:$0xff]
      %v594 = vpack.c.bf16 %v563, %v562
      %v595 = vpack.c.bf16 %v565, %v564
      %v596 = vpack.c.bf16 %v567, %v566
      %v597 = vpack.c.bf16 %v569, %v568
      %v598 = vpack.c.bf16 %v571, %v570
      %v599 = vpack.c.bf16 %v573, %v572
      %v600 = vpack.c.bf16 %v575, %v574
      %v601 = vpack.c.bf16 %v577, %v576
      %v602 = vpack.c.bf16 %v579, %v578
      %v603 = vpack.c.bf16 %v581, %v580
      %v604 = vpack.c.bf16 %v583, %v582
      %v605 = vpack.c.bf16 %v585, %v584
      %v606 = vpack.c.bf16 %v587, %v586
      %v607 = vpack.c.bf16 %v589, %v588
      %v608 = vpack.c.bf16 %v591, %v590
      %v609 = vpack.c.bf16 %v593, %v592
      %v610 = vld [vmem:[#allocation2 + $0x9] sm:$0xff]
      %v611 = vld [vmem:[#allocation2 + $0x11] sm:$0xff]
      %v612 = vld [vmem:[#allocation2 + $0x29] sm:$0xff]
      %v613 = vld [vmem:[#allocation2 + $0x31] sm:$0xff]
      %v614 = vld [vmem:[#allocation2 + $0x49] sm:$0xff]
      %v615 = vld [vmem:[#allocation2 + $0x51] sm:$0xff]
      %v616 = vld [vmem:[#allocation2 + $0x69] sm:$0xff]
      %v617 = vld [vmem:[#allocation2 + $0x71] sm:$0xff]
      %v618 = vld [vmem:[#allocation2 + $0x89] sm:$0xff]
      %v619 = vld [vmem:[#allocation2 + $0x91] sm:$0xff]
      %v620 = vld [vmem:[#allocation2 + $0xa9] sm:$0xff]
      %v621 = vld [vmem:[#allocation2 + $0xb1] sm:$0xff]
      %v622 = vld [vmem:[#allocation2 + $0xc9] sm:$0xff]
      %v623 = vld [vmem:[#allocation2 + $0xd1] sm:$0xff]
      %v624 = vld [vmem:[#allocation2 + $0xe9] sm:$0xff]
      %v625 = vld [vmem:[#allocation2 + $0xf1] sm:$0xff]
      %v626 = vld [vmem:[#allocation2 + $0x109] sm:$0xff]
      %v627 = vld [vmem:[#allocation2 + $0x111] sm:$0xff]
      %v628 = vld [vmem:[#allocation2 + $0x129] sm:$0xff]
      %v629 = vld [vmem:[#allocation2 + $0x131] sm:$0xff]
      %v630 = vld [vmem:[#allocation2 + $0x149] sm:$0xff]
      %v631 = vld [vmem:[#allocation2 + $0x151] sm:$0xff]
      %v632 = vld [vmem:[#allocation2 + $0x169] sm:$0xff]
      %v633 = vld [vmem:[#allocation2 + $0x171] sm:$0xff]
      %v634 = vld [vmem:[#allocation2 + $0x189] sm:$0xff]
      %v635 = vld [vmem:[#allocation2 + $0x191] sm:$0xff]
      %v636 = vld [vmem:[#allocation2 + $0x1a9] sm:$0xff]
      %v637 = vld [vmem:[#allocation2 + $0x1b1] sm:$0xff]
      %v638 = vld [vmem:[#allocation2 + $0x1c9] sm:$0xff]
      %v639 = vld [vmem:[#allocation2 + $0x1d1] sm:$0xff]
      %v640 = vld [vmem:[#allocation2 + $0x1e9] sm:$0xff]
      %v641 = vld [vmem:[#allocation2 + $0x1f1] sm:$0xff]
      %v642 = vpack.c.bf16 %v611, %v610
      %v643 = vpack.c.bf16 %v613, %v612
      %v644 = vpack.c.bf16 %v615, %v614
      %v645 = vpack.c.bf16 %v617, %v616
      %v646 = vpack.c.bf16 %v619, %v618
      %v647 = vpack.c.bf16 %v621, %v620
      %v648 = vpack.c.bf16 %v623, %v622
      %v649 = vpack.c.bf16 %v625, %v624
      %v650 = vpack.c.bf16 %v627, %v626
      %v651 = vpack.c.bf16 %v629, %v628
      %v652 = vpack.c.bf16 %v631, %v630
      %v653 = vpack.c.bf16 %v633, %v632
      %v654 = vpack.c.bf16 %v635, %v634
      %v655 = vpack.c.bf16 %v637, %v636
      %v656 = vpack.c.bf16 %v639, %v638
      %v657 = vpack.c.bf16 %v641, %v640
      %v658 = vld [vmem:[%s398 + $0x7] sm:$0xff]
      %v659 = vld [vmem:[%s398 + $0xf] sm:$0xff]
      %v660 = vld [vmem:[%s398 + $0x27] sm:$0xff]
      %v661 = vld [vmem:[%s398 + $0x2f] sm:$0xff]
      %v662 = vld [vmem:[%s398 + $0x47] sm:$0xff]
      %v663 = vld [vmem:[%s398 + $0x4f] sm:$0xff]
      %v664 = vld [vmem:[%s398 + $0x67] sm:$0xff]
      %v665 = vld [vmem:[%s398 + $0x6f] sm:$0xff]
      %v666 = vld [vmem:[%s398 + $0x87] sm:$0xff]
      %v667 = vld [vmem:[%s398 + $0x8f] sm:$0xff]
      %v668 = vld [vmem:[%s398 + $0xa7] sm:$0xff]
      %v669 = vld [vmem:[%s398 + $0xaf] sm:$0xff]
      %v670 = vld [vmem:[%s398 + $0xc7] sm:$0xff]
      %v671 = vld [vmem:[%s398 + $0xcf] sm:$0xff]
      %v672 = vld [vmem:[%s398 + $0xe7] sm:$0xff]
      %v673 = vld [vmem:[%s398 + $0xef] sm:$0xff]
      %v674 = vld [vmem:[%s398 + $0x107] sm:$0xff]
      %v675 = vld [vmem:[%s398 + $0x10f] sm:$0xff]
      %v676 = vld [vmem:[%s398 + $0x127] sm:$0xff]
      %v677 = vld [vmem:[%s398 + $0x12f] sm:$0xff]
      %v678 = vld [vmem:[%s398 + $0x147] sm:$0xff]
      %v679 = vld [vmem:[%s398 + $0x14f] sm:$0xff]
      %v680 = vld [vmem:[%s398 + $0x167] sm:$0xff]
      %v681 = vld [vmem:[%s398 + $0x16f] sm:$0xff]
      %v682 = vld [vmem:[%s398 + $0x187] sm:$0xff]
      %v683 = vld [vmem:[%s398 + $0x18f] sm:$0xff]
      %v684 = vld [vmem:[%s398 + $0x1a7] sm:$0xff]
      %v685 = vld [vmem:[%s398 + $0x1af] sm:$0xff]
      %v686 = vld [vmem:[%s398 + $0x1c7] sm:$0xff]
      %v687 = vld [vmem:[%s398 + $0x1cf] sm:$0xff]
      %v688 = vld [vmem:[%s398 + $0x1e7] sm:$0xff]
      %v689 = vld [vmem:[%s398 + $0x1ef] sm:$0xff]
      %v690 = vpack.c.bf16 %v659, %v658
      %v691 = vpack.c.bf16 %v661, %v660
      %v692 = vpack.c.bf16 %v663, %v662
      %v693 = vpack.c.bf16 %v665, %v664
      %v694 = vpack.c.bf16 %v667, %v666
      %v695 = vpack.c.bf16 %v669, %v668
      %v696 = vpack.c.bf16 %v671, %v670
      %v697 = vpack.c.bf16 %v673, %v672
      %v698 = vpack.c.bf16 %v675, %v674
      %v699 = vpack.c.bf16 %v677, %v676
      %v700 = vpack.c.bf16 %v679, %v678
      %v701 = vpack.c.bf16 %v681, %v680
      %v702 = vpack.c.bf16 %v683, %v682
      %v703 = vpack.c.bf16 %v685, %v684
      %v704 = vpack.c.bf16 %v687, %v686
      %v705 = vpack.c.bf16 %v689, %v688
      %v706 = vld [vmem:[%s398 + $0x8] sm:$0xff]
      %v707 = vld [vmem:[%s398 + $0x10] sm:$0xff]
      %v708 = vld [vmem:[%s398 + $0x28] sm:$0xff]
      %v709 = vld [vmem:[%s398 + $0x30] sm:$0xff]
      %v710 = vld [vmem:[%s398 + $0x48] sm:$0xff]
      %v711 = vld [vmem:[%s398 + $0x50] sm:$0xff]
      %v712 = vld [vmem:[%s398 + $0x68] sm:$0xff]
      %v713 = vld [vmem:[%s398 + $0x70] sm:$0xff]
      %v714 = vld [vmem:[%s398 + $0x88] sm:$0xff]
      %v715 = vld [vmem:[%s398 + $0x90] sm:$0xff]
      %v716 = vld [vmem:[%s398 + $0xa8] sm:$0xff]
      %v717 = vld [vmem:[%s398 + $0xb0] sm:$0xff]
      %v718 = vld [vmem:[%s398 + $0xc8] sm:$0xff]
      %v719 = vld [vmem:[%s398 + $0xd0] sm:$0xff]
      %v720 = vld [vmem:[%s398 + $0xe8] sm:$0xff]
      %v721 = vld [vmem:[%s398 + $0xf0] sm:$0xff]
      %v722 = vld [vmem:[%s398 + $0x108] sm:$0xff]
      %v723 = vld [vmem:[%s398 + $0x110] sm:$0xff]
      %v724 = vld [vmem:[%s398 + $0x128] sm:$0xff]
      %v725 = vld [vmem:[%s398 + $0x130] sm:$0xff]
      %v726 = vld [vmem:[%s398 + $0x148] sm:$0xff]
      %v727 = vld [vmem:[%s398 + $0x150] sm:$0xff]
      %v728 = vld [vmem:[%s398 + $0x168] sm:$0xff]
      %v729 = vld [vmem:[%s398 + $0x170] sm:$0xff]
      %v730 = vld [vmem:[%s398 + $0x188] sm:$0xff]
      %v731 = vld [vmem:[%s398 + $0x190] sm:$0xff]
      %v732 = vld [vmem:[%s398 + $0x1a8] sm:$0xff]
      %v733 = vld [vmem:[%s398 + $0x1b0] sm:$0xff]
      %v734 = vld [vmem:[%s398 + $0x1c8] sm:$0xff]
      %v735 = vld [vmem:[%s398 + $0x1d0] sm:$0xff]
      %v736 = vld [vmem:[%s398 + $0x1e8] sm:$0xff]
      %v737 = vld [vmem:[%s398 + $0x1f0] sm:$0xff]
      %v738 = vpack.c.bf16 %v707, %v706
      %v739 = vpack.c.bf16 %v709, %v708
      %v740 = vpack.c.bf16 %v711, %v710
      %v741 = vpack.c.bf16 %v713, %v712
      %v742 = vpack.c.bf16 %v715, %v714
      %v743 = vpack.c.bf16 %v717, %v716
      %v744 = vpack.c.bf16 %v719, %v718
      %v745 = vpack.c.bf16 %v721, %v720
      %v746 = vpack.c.bf16 %v723, %v722
      %v747 = vpack.c.bf16 %v725, %v724
      %v748 = vpack.c.bf16 %v727, %v726
      %v749 = vpack.c.bf16 %v729, %v728
      %v750 = vpack.c.bf16 %v731, %v730
      %v751 = vpack.c.bf16 %v733, %v732
      %v752 = vpack.c.bf16 %v735, %v734
      %v753 = vpack.c.bf16 %v737, %v736
      %v754 = vld [vmem:[%s398 + $0x9] sm:$0xff]
      %v755 = vld [vmem:[%s398 + $0x11] sm:$0xff]
      %v756 = vld [vmem:[%s398 + $0x29] sm:$0xff]
      %v757 = vld [vmem:[%s398 + $0x31] sm:$0xff]
      %v758 = vld [vmem:[%s398 + $0x49] sm:$0xff]
      %v759 = vld [vmem:[%s398 + $0x51] sm:$0xff]
      %v760 = vld [vmem:[%s398 + $0x69] sm:$0xff]
      %v761 = vld [vmem:[%s398 + $0x71] sm:$0xff]
      %v762 = vld [vmem:[%s398 + $0x89] sm:$0xff]
      %v763 = vld [vmem:[%s398 + $0x91] sm:$0xff]
      %v764 = vld [vmem:[%s398 + $0xa9] sm:$0xff]
      %v765 = vld [vmem:[%s398 + $0xb1] sm:$0xff]
      %v766 = vld [vmem:[%s398 + $0xc9] sm:$0xff]
      %v767 = vld [vmem:[%s398 + $0xd1] sm:$0xff]
      %v768 = vld [vmem:[%s398 + $0xe9] sm:$0xff]
      %v769 = vld [vmem:[%s398 + $0xf1] sm:$0xff]
      %v770 = vld [vmem:[%s398 + $0x109] sm:$0xff]
      %v771 = vld [vmem:[%s398 + $0x111] sm:$0xff]
      %v772 = vld [vmem:[%s398 + $0x129] sm:$0xff]
      %v773 = vld [vmem:[%s398 + $0x131] sm:$0xff]
      %v774 = vld [vmem:[%s398 + $0x149] sm:$0xff]
      %v775 = vld [vmem:[%s398 + $0x151] sm:$0xff]
      %v776 = vld [vmem:[%s398 + $0x169] sm:$0xff]
      %v777 = vld [vmem:[%s398 + $0x171] sm:$0xff]
      %v778 = vld [vmem:[%s398 + $0x189] sm:$0xff]
      %v779 = vld [vmem:[%s398 + $0x191] sm:$0xff]
      %v780 = vld [vmem:[%s398 + $0x1a9] sm:$0xff]
      %v781 = vld [vmem:[%s398 + $0x1b1] sm:$0xff]
      %v782 = vld [vmem:[%s398 + $0x1c9] sm:$0xff]
      %v783 = vld [vmem:[%s398 + $0x1d1] sm:$0xff]
      %v784 = vld [vmem:[%s398 + $0x1e9] sm:$0xff]
      %v785 = vld [vmem:[%s398 + $0x1f1] sm:$0xff]
      %v786 = vpack.c.bf16 %v755, %v754
      %v787 = vpack.c.bf16 %v757, %v756
      %v788 = vpack.c.bf16 %v759, %v758
      %v789 = vpack.c.bf16 %v761, %v760
      %v790 = vpack.c.bf16 %v763, %v762
      %v791 = vpack.c.bf16 %v765, %v764
      %v792 = vpack.c.bf16 %v767, %v766
      %v793 = vpack.c.bf16 %v769, %v768
      %v794 = vpack.c.bf16 %v771, %v770
      %v795 = vpack.c.bf16 %v773, %v772
      %v796 = vpack.c.bf16 %v775, %v774
      %v797 = vpack.c.bf16 %v777, %v776
      %v798 = vpack.c.bf16 %v779, %v778
      %v799 = vpack.c.bf16 %v781, %v780
      %v800 = vpack.c.bf16 %v783, %v782
      %v801 = vpack.c.bf16 %v785, %v784
      %s802 = scalar_lea.vmem [#allocation2], 64
      %v803 = vld [vmem:[%s802 + $0x7] sm:$0xff]
      %v804 = vld [vmem:[%s802 + $0xf] sm:$0xff]
      %v805 = vld [vmem:[%s802 + $0x27] sm:$0xff]
      %v806 = vld [vmem:[%s802 + $0x2f] sm:$0xff]
      %v807 = vld [vmem:[%s802 + $0x47] sm:$0xff]
      %v808 = vld [vmem:[%s802 + $0x4f] sm:$0xff]
      %v809 = vld [vmem:[%s802 + $0x67] sm:$0xff]
      %v810 = vld [vmem:[%s802 + $0x6f] sm:$0xff]
      %v811 = vld [vmem:[%s802 + $0x87] sm:$0xff]
      %v812 = vld [vmem:[%s802 + $0x8f] sm:$0xff]
      %v813 = vld [vmem:[%s802 + $0xa7] sm:$0xff]
      %v814 = vld [vmem:[%s802 + $0xaf] sm:$0xff]
      %v815 = vld [vmem:[%s802 + $0xc7] sm:$0xff]
      %v816 = vld [vmem:[%s802 + $0xcf] sm:$0xff]
      %v817 = vld [vmem:[%s802 + $0xe7] sm:$0xff]
      %v818 = vld [vmem:[%s802 + $0xef] sm:$0xff]
      %v819 = vld [vmem:[%s802 + $0x107] sm:$0xff]
      %v820 = vld [vmem:[%s802 + $0x10f] sm:$0xff]
      %v821 = vld [vmem:[%s802 + $0x127] sm:$0xff]
      %v822 = vld [vmem:[%s802 + $0x12f] sm:$0xff]
      %v823 = vld [vmem:[%s802 + $0x147] sm:$0xff]
      %v824 = vld [vmem:[%s802 + $0x14f] sm:$0xff]
      %v825 = vld [vmem:[%s802 + $0x167] sm:$0xff]
      %v826 = vld [vmem:[%s802 + $0x16f] sm:$0xff]
      %v827 = vld [vmem:[%s802 + $0x187] sm:$0xff]
      %v828 = vld [vmem:[%s802 + $0x18f] sm:$0xff]
      %v829 = vld [vmem:[%s802 + $0x1a7] sm:$0xff]
      %v830 = vld [vmem:[%s802 + $0x1af] sm:$0xff]
      %v831 = vld [vmem:[%s802 + $0x1c7] sm:$0xff]
      %v832 = vld [vmem:[%s802 + $0x1cf] sm:$0xff]
      %v833 = vld [vmem:[%s802 + $0x1e7] sm:$0xff]
      %v834 = vld [vmem:[%s802 + $0x1ef] sm:$0xff]
      %v835 = vpack.c.bf16 %v804, %v803
      %v836 = vpack.c.bf16 %v806, %v805
      %v837 = vpack.c.bf16 %v808, %v807
      %v838 = vpack.c.bf16 %v810, %v809
      %v839 = vpack.c.bf16 %v812, %v811
      %v840 = vpack.c.bf16 %v814, %v813
      %v841 = vpack.c.bf16 %v816, %v815
      %v842 = vpack.c.bf16 %v818, %v817
      %v843 = vpack.c.bf16 %v820, %v819
      %v844 = vpack.c.bf16 %v822, %v821
      %v845 = vpack.c.bf16 %v824, %v823
      %v846 = vpack.c.bf16 %v826, %v825
      %v847 = vpack.c.bf16 %v828, %v827
      %v848 = vpack.c.bf16 %v830, %v829
      %v849 = vpack.c.bf16 %v832, %v831
      %v850 = vpack.c.bf16 %v834, %v833
      %v851 = vld [vmem:[%s802 + $0x8] sm:$0xff]
      %v852 = vld [vmem:[%s802 + $0x10] sm:$0xff]
      %v853 = vld [vmem:[%s802 + $0x28] sm:$0xff]
      %v854 = vld [vmem:[%s802 + $0x30] sm:$0xff]
      %v855 = vld [vmem:[%s802 + $0x48] sm:$0xff]
      %v856 = vld [vmem:[%s802 + $0x50] sm:$0xff]
      %v857 = vld [vmem:[%s802 + $0x68] sm:$0xff]
      %v858 = vld [vmem:[%s802 + $0x70] sm:$0xff]
      %v859 = vld [vmem:[%s802 + $0x88] sm:$0xff]
      %v860 = vld [vmem:[%s802 + $0x90] sm:$0xff]
      %v861 = vld [vmem:[%s802 + $0xa8] sm:$0xff]
      %v862 = vld [vmem:[%s802 + $0xb0] sm:$0xff]
      %v863 = vld [vmem:[%s802 + $0xc8] sm:$0xff]
      %v864 = vld [vmem:[%s802 + $0xd0] sm:$0xff]
      %v865 = vld [vmem:[%s802 + $0xe8] sm:$0xff]
      %v866 = vld [vmem:[%s802 + $0xf0] sm:$0xff]
      %v867 = vld [vmem:[%s802 + $0x108] sm:$0xff]
      %v868 = vld [vmem:[%s802 + $0x110] sm:$0xff]
      %v869 = vld [vmem:[%s802 + $0x128] sm:$0xff]
      %v870 = vld [vmem:[%s802 + $0x130] sm:$0xff]
      %v871 = vld [vmem:[%s802 + $0x148] sm:$0xff]
      %v872 = vld [vmem:[%s802 + $0x150] sm:$0xff]
      %v873 = vld [vmem:[%s802 + $0x168] sm:$0xff]
      %v874 = vld [vmem:[%s802 + $0x170] sm:$0xff]
      %v875 = vld [vmem:[%s802 + $0x188] sm:$0xff]
      %v876 = vld [vmem:[%s802 + $0x190] sm:$0xff]
      %v877 = vld [vmem:[%s802 + $0x1a8] sm:$0xff]
      %v878 = vld [vmem:[%s802 + $0x1b0] sm:$0xff]
      %v879 = vld [vmem:[%s802 + $0x1c8] sm:$0xff]
      %v880 = vld [vmem:[%s802 + $0x1d0] sm:$0xff]
      %v881 = vld [vmem:[%s802 + $0x1e8] sm:$0xff]
      %v882 = vld [vmem:[%s802 + $0x1f0] sm:$0xff]
      %v883 = vpack.c.bf16 %v852, %v851
      %v884 = vpack.c.bf16 %v854, %v853
      %v885 = vpack.c.bf16 %v856, %v855
      %v886 = vpack.c.bf16 %v858, %v857
      %v887 = vpack.c.bf16 %v860, %v859
      %v888 = vpack.c.bf16 %v862, %v861
      %v889 = vpack.c.bf16 %v864, %v863
      %v890 = vpack.c.bf16 %v866, %v865
      %v891 = vpack.c.bf16 %v868, %v867
      %v892 = vpack.c.bf16 %v870, %v869
      %v893 = vpack.c.bf16 %v872, %v871
      %v894 = vpack.c.bf16 %v874, %v873
      %v895 = vpack.c.bf16 %v876, %v875
      %v896 = vpack.c.bf16 %v878, %v877
      %v897 = vpack.c.bf16 %v880, %v879
      %v898 = vpack.c.bf16 %v882, %v881
      %v899 = vld [vmem:[%s802 + $0x9] sm:$0xff]
      %v900 = vld [vmem:[%s802 + $0x11] sm:$0xff]
      %v901 = vld [vmem:[%s802 + $0x29] sm:$0xff]
      %v902 = vld [vmem:[%s802 + $0x31] sm:$0xff]
      %v903 = vld [vmem:[%s802 + $0x49] sm:$0xff]
      %v904 = vld [vmem:[%s802 + $0x51] sm:$0xff]
      %v905 = vld [vmem:[%s802 + $0x69] sm:$0xff]
      %v906 = vld [vmem:[%s802 + $0x71] sm:$0xff]
      %v907 = vld [vmem:[%s802 + $0x89] sm:$0xff]
      %v908 = vld [vmem:[%s802 + $0x91] sm:$0xff]
      %v909 = vld [vmem:[%s802 + $0xa9] sm:$0xff]
      %v910 = vld [vmem:[%s802 + $0xb1] sm:$0xff]
      %v911 = vld [vmem:[%s802 + $0xc9] sm:$0xff]
      %v912 = vld [vmem:[%s802 + $0xd1] sm:$0xff]
      %v913 = vld [vmem:[%s802 + $0xe9] sm:$0xff]
      %v914 = vld [vmem:[%s802 + $0xf1] sm:$0xff]
      %v915 = vld [vmem:[%s802 + $0x109] sm:$0xff]
      %v916 = vld [vmem:[%s802 + $0x111] sm:$0xff]
      %v917 = vld [vmem:[%s802 + $0x129] sm:$0xff]
      %v918 = vld [vmem:[%s802 + $0x131] sm:$0xff]
      %v919 = vld [vmem:[%s802 + $0x149] sm:$0xff]
      %v920 = vld [vmem:[%s802 + $0x151] sm:$0xff]
      %v921 = vld [vmem:[%s802 + $0x169] sm:$0xff]
      %v922 = vld [vmem:[%s802 + $0x171] sm:$0xff]
      %v923 = vld [vmem:[%s802 + $0x189] sm:$0xff]
      %v924 = vld [vmem:[%s802 + $0x191] sm:$0xff]
      %v925 = vld [vmem:[%s802 + $0x1a9] sm:$0xff]
      %v926 = vld [vmem:[%s802 + $0x1b1] sm:$0xff]
      %v927 = vld [vmem:[%s802 + $0x1c9] sm:$0xff]
      %v928 = vld [vmem:[%s802 + $0x1d1] sm:$0xff]
      %v929 = vld [vmem:[%s802 + $0x1e9] sm:$0xff]
      %v930 = vld [vmem:[%s802 + $0x1f1] sm:$0xff]
      %v931 = vpack.c.bf16 %v900, %v899
      %v932 = vpack.c.bf16 %v902, %v901
      %v933 = vpack.c.bf16 %v904, %v903
      %v934 = vpack.c.bf16 %v906, %v905
      %v935 = vpack.c.bf16 %v908, %v907
      %v936 = vpack.c.bf16 %v910, %v909
      %v937 = vpack.c.bf16 %v912, %v911
      %v938 = vpack.c.bf16 %v914, %v913
      %v939 = vpack.c.bf16 %v916, %v915
      %v940 = vpack.c.bf16 %v918, %v917
      %v941 = vpack.c.bf16 %v920, %v919
      %v942 = vpack.c.bf16 %v922, %v921
      %v943 = vpack.c.bf16 %v924, %v923
      %v944 = vpack.c.bf16 %v926, %v925
      %v945 = vpack.c.bf16 %v928, %v927
      %v946 = vpack.c.bf16 %v930, %v929
      %963 = vrot.lane.b32.xlu0 %v594, 16
      %v964 = vpop.permute.xlu0 %963
      %965 = vrot.lane.b32.xlu0 %v595, 16
      %v966 = vpop.permute.xlu0 %965
      %967 = vrot.lane.b32.xlu0 %v596, 16
      %v968 = vpop.permute.xlu0 %967
      %969 = vrot.lane.b32.xlu0 %v597, 16
      %v970 = vpop.permute.xlu0 %969
      %971 = vrot.lane.b32.xlu0 %v598, 16
      %v972 = vpop.permute.xlu0 %971
      %973 = vrot.lane.b32.xlu0 %v599, 16
      %v974 = vpop.permute.xlu0 %973
      %975 = vrot.lane.b32.xlu0 %v600, 16
      %v976 = vpop.permute.xlu0 %975
      %977 = vrot.lane.b32.xlu0 %v601, 16
      %v978 = vpop.permute.xlu0 %977
      %979 = vrot.lane.b32.xlu0 %v602, 16
      %v980 = vpop.permute.xlu0 %979
      %981 = vrot.lane.b32.xlu0 %v603, 16
      %v982 = vpop.permute.xlu0 %981
      %983 = vrot.lane.b32.xlu0 %v604, 16
      %v984 = vpop.permute.xlu0 %983
      %985 = vrot.lane.b32.xlu0 %v605, 16
      %v986 = vpop.permute.xlu0 %985
      %987 = vrot.lane.b32.xlu0 %v606, 16
      %v988 = vpop.permute.xlu0 %987
      %989 = vrot.lane.b32.xlu0 %v607, 16
      %v990 = vpop.permute.xlu0 %989
      %991 = vrot.lane.b32.xlu0 %v608, 16
      %v992 = vpop.permute.xlu0 %991
      %993 = vrot.lane.b32.xlu0 %v609, 16
      %v994 = vpop.permute.xlu0 %993
      %1011 = vrot.lane.b32.xlu0 %v642, 32
      %v1012 = vpop.permute.xlu0 %1011
      %1013 = vrot.lane.b32.xlu0 %v643, 32
      %v1014 = vpop.permute.xlu0 %1013
      %1015 = vrot.lane.b32.xlu0 %v644, 32
      %v1016 = vpop.permute.xlu0 %1015
      %1017 = vrot.lane.b32.xlu0 %v645, 32
      %v1018 = vpop.permute.xlu0 %1017
      %1019 = vrot.lane.b32.xlu0 %v646, 32
      %v1020 = vpop.permute.xlu0 %1019
      %1021 = vrot.lane.b32.xlu0 %v647, 32
      %v1022 = vpop.permute.xlu0 %1021
      %1023 = vrot.lane.b32.xlu0 %v648, 32
      %v1024 = vpop.permute.xlu0 %1023
      %1025 = vrot.lane.b32.xlu0 %v649, 32
      %v1026 = vpop.permute.xlu0 %1025
      %1027 = vrot.lane.b32.xlu0 %v650, 32
      %v1028 = vpop.permute.xlu0 %1027
      %1029 = vrot.lane.b32.xlu0 %v651, 32
      %v1030 = vpop.permute.xlu0 %1029
      %1031 = vrot.lane.b32.xlu0 %v652, 32
      %v1032 = vpop.permute.xlu0 %1031
      %1033 = vrot.lane.b32.xlu0 %v653, 32
      %v1034 = vpop.permute.xlu0 %1033
      %1035 = vrot.lane.b32.xlu0 %v654, 32
      %v1036 = vpop.permute.xlu0 %1035
      %1037 = vrot.lane.b32.xlu0 %v655, 32
      %v1038 = vpop.permute.xlu0 %1037
      %1039 = vrot.lane.b32.xlu0 %v656, 32
      %v1040 = vpop.permute.xlu0 %1039
      %1041 = vrot.lane.b32.xlu0 %v657, 32
      %v1042 = vpop.permute.xlu0 %1041
      %1059 = vrot.lane.b32.xlu0 %v690, 48
      %v1060 = vpop.permute.xlu0 %1059
      %1061 = vrot.lane.b32.xlu0 %v691, 48
      %v1062 = vpop.permute.xlu0 %1061
      %1063 = vrot.lane.b32.xlu0 %v692, 48
      %v1064 = vpop.permute.xlu0 %1063
      %1065 = vrot.lane.b32.xlu0 %v693, 48
      %v1066 = vpop.permute.xlu0 %1065
      %1067 = vrot.lane.b32.xlu0 %v694, 48
      %v1068 = vpop.permute.xlu0 %1067
      %1069 = vrot.lane.b32.xlu0 %v695, 48
      %v1070 = vpop.permute.xlu0 %1069
      %1071 = vrot.lane.b32.xlu0 %v696, 48
      %v1072 = vpop.permute.xlu0 %1071
      %1073 = vrot.lane.b32.xlu0 %v697, 48
      %v1074 = vpop.permute.xlu0 %1073
      %1075 = vrot.lane.b32.xlu0 %v698, 48
      %v1076 = vpop.permute.xlu0 %1075
      %1077 = vrot.lane.b32.xlu0 %v699, 48
      %v1078 = vpop.permute.xlu0 %1077
      %1079 = vrot.lane.b32.xlu0 %v700, 48
      %v1080 = vpop.permute.xlu0 %1079
      %1081 = vrot.lane.b32.xlu0 %v701, 48
      %v1082 = vpop.permute.xlu0 %1081
      %1083 = vrot.lane.b32.xlu0 %v702, 48
      %v1084 = vpop.permute.xlu0 %1083
      %1085 = vrot.lane.b32.xlu0 %v703, 48
      %v1086 = vpop.permute.xlu0 %1085
      %1087 = vrot.lane.b32.xlu0 %v704, 48
      %v1088 = vpop.permute.xlu0 %1087
      %1089 = vrot.lane.b32.xlu0 %v705, 48
      %v1090 = vpop.permute.xlu0 %1089
      %1107 = vrot.lane.b32.xlu0 %v738, 64
      %v1108 = vpop.permute.xlu0 %1107
      %1109 = vrot.lane.b32.xlu0 %v739, 64
      %v1110 = vpop.permute.xlu0 %1109
      %1111 = vrot.lane.b32.xlu0 %v740, 64
      %v1112 = vpop.permute.xlu0 %1111
      %1113 = vrot.lane.b32.xlu0 %v741, 64
      %v1114 = vpop.permute.xlu0 %1113
      %1115 = vrot.lane.b32.xlu0 %v742, 64
      %v1116 = vpop.permute.xlu0 %1115
      %1117 = vrot.lane.b32.xlu0 %v743, 64
      %v1118 = vpop.permute.xlu0 %1117
      %1119 = vrot.lane.b32.xlu0 %v744, 64
      %v1120 = vpop.permute.xlu0 %1119
      %1121 = vrot.lane.b32.xlu0 %v745, 64
      %v1122 = vpop.permute.xlu0 %1121
      %1123 = vrot.lane.b32.xlu0 %v746, 64
      %v1124 = vpop.permute.xlu0 %1123
      %1125 = vrot.lane.b32.xlu0 %v747, 64
      %v1126 = vpop.permute.xlu0 %1125
      %1127 = vrot.lane.b32.xlu0 %v748, 64
      %v1128 = vpop.permute.xlu0 %1127
      %1129 = vrot.lane.b32.xlu0 %v749, 64
      %v1130 = vpop.permute.xlu0 %1129
      %1131 = vrot.lane.b32.xlu0 %v750, 64
      %v1132 = vpop.permute.xlu0 %1131
      %1133 = vrot.lane.b32.xlu0 %v751, 64
      %v1134 = vpop.permute.xlu0 %1133
      %1135 = vrot.lane.b32.xlu0 %v752, 64
      %v1136 = vpop.permute.xlu0 %1135
      %1137 = vrot.lane.b32.xlu0 %v753, 64
      %v1138 = vpop.permute.xlu0 %1137
      %1155 = vrot.lane.b32.xlu0 %v786, 80
      %v1156 = vpop.permute.xlu0 %1155
      %1157 = vrot.lane.b32.xlu0 %v787, 80
      %v1158 = vpop.permute.xlu0 %1157
      %1159 = vrot.lane.b32.xlu0 %v788, 80
      %v1160 = vpop.permute.xlu0 %1159
      %1161 = vrot.lane.b32.xlu0 %v789, 80
      %v1162 = vpop.permute.xlu0 %1161
      %1163 = vrot.lane.b32.xlu0 %v790, 80
      %v1164 = vpop.permute.xlu0 %1163
      %1165 = vrot.lane.b32.xlu0 %v791, 80
      %v1166 = vpop.permute.xlu0 %1165
      %1167 = vrot.lane.b32.xlu0 %v792, 80
      %v1168 = vpop.permute.xlu0 %1167
      %1169 = vrot.lane.b32.xlu0 %v793, 80
      %v1170 = vpop.permute.xlu0 %1169
      %1171 = vrot.lane.b32.xlu0 %v794, 80
      %v1172 = vpop.permute.xlu0 %1171
      %1173 = vrot.lane.b32.xlu0 %v795, 80
      %v1174 = vpop.permute.xlu0 %1173
      %1175 = vrot.lane.b32.xlu0 %v796, 80
      %v1176 = vpop.permute.xlu0 %1175
      %1177 = vrot.lane.b32.xlu0 %v797, 80
      %v1178 = vpop.permute.xlu0 %1177
      %1179 = vrot.lane.b32.xlu0 %v798, 80
      %v1180 = vpop.permute.xlu0 %1179
      %1181 = vrot.lane.b32.xlu0 %v799, 80
      %v1182 = vpop.permute.xlu0 %1181
      %1183 = vrot.lane.b32.xlu0 %v800, 80
      %v1184 = vpop.permute.xlu0 %1183
      %1185 = vrot.lane.b32.xlu0 %v801, 80
      %v1186 = vpop.permute.xlu0 %1185
      %1203 = vrot.lane.b32.xlu0 %v835, 96
      %v1204 = vpop.permute.xlu0 %1203
      %1205 = vrot.lane.b32.xlu0 %v836, 96
      %v1206 = vpop.permute.xlu0 %1205
      %1207 = vrot.lane.b32.xlu0 %v837, 96
      %v1208 = vpop.permute.xlu0 %1207
      %1209 = vrot.lane.b32.xlu0 %v838, 96
      %v1210 = vpop.permute.xlu0 %1209
      %1211 = vrot.lane.b32.xlu0 %v839, 96
      %v1212 = vpop.permute.xlu0 %1211
      %1213 = vrot.lane.b32.xlu0 %v840, 96
      %v1214 = vpop.permute.xlu0 %1213
      %1215 = vrot.lane.b32.xlu0 %v841, 96
      %v1216 = vpop.permute.xlu0 %1215
      %1217 = vrot.lane.b32.xlu0 %v842, 96
      %v1218 = vpop.permute.xlu0 %1217
      %1219 = vrot.lane.b32.xlu0 %v843, 96
      %v1220 = vpop.permute.xlu0 %1219
      %1221 = vrot.lane.b32.xlu0 %v844, 96
      %v1222 = vpop.permute.xlu0 %1221
      %1223 = vrot.lane.b32.xlu0 %v845, 96
      %v1224 = vpop.permute.xlu0 %1223
      %1225 = vrot.lane.b32.xlu0 %v846, 96
      %v1226 = vpop.permute.xlu0 %1225
      %1227 = vrot.lane.b32.xlu0 %v847, 96
      %v1228 = vpop.permute.xlu0 %1227
      %1229 = vrot.lane.b32.xlu0 %v848, 96
      %v1230 = vpop.permute.xlu0 %1229
      %1231 = vrot.lane.b32.xlu0 %v849, 96
      %v1232 = vpop.permute.xlu0 %1231
      %1233 = vrot.lane.b32.xlu0 %v850, 96
      %v1234 = vpop.permute.xlu0 %1233
      %1251 = vrot.lane.b32.xlu0 %v883, 112
      %v1252 = vpop.permute.xlu0 %1251
      %1253 = vrot.lane.b32.xlu0 %v884, 112
      %v1254 = vpop.permute.xlu0 %1253
      %1255 = vrot.lane.b32.xlu0 %v885, 112
      %v1256 = vpop.permute.xlu0 %1255
      %1257 = vrot.lane.b32.xlu0 %v886, 112
      %v1258 = vpop.permute.xlu0 %1257
      %1259 = vrot.lane.b32.xlu0 %v887, 112
      %v1260 = vpop.permute.xlu0 %1259
      %1261 = vrot.lane.b32.xlu0 %v888, 112
      %v1262 = vpop.permute.xlu0 %1261
      %1263 = vrot.lane.b32.xlu0 %v889, 112
      %v1264 = vpop.permute.xlu0 %1263
      %1265 = vrot.lane.b32.xlu0 %v890, 112
      %v1266 = vpop.permute.xlu0 %1265
      %1267 = vrot.lane.b32.xlu0 %v891, 112
      %v1268 = vpop.permute.xlu0 %1267
      %1269 = vrot.lane.b32.xlu0 %v892, 112
      %v1270 = vpop.permute.xlu0 %1269
      %1271 = vrot.lane.b32.xlu0 %v893, 112
      %v1272 = vpop.permute.xlu0 %1271
      %1273 = vrot.lane.b32.xlu0 %v894, 112
      %v1274 = vpop.permute.xlu0 %1273
      %1275 = vrot.lane.b32.xlu0 %v895, 112
      %v1276 = vpop.permute.xlu0 %1275
      %1277 = vrot.lane.b32.xlu0 %v896, 112
      %v1278 = vpop.permute.xlu0 %1277
      %1279 = vrot.lane.b32.xlu0 %v897, 112
      %v1280 = vpop.permute.xlu0 %1279
      %1281 = vrot.lane.b32.xlu0 %v898, 112
      %v1282 = vpop.permute.xlu0 %1281
      %v1285 = vsel %vm388, %v546, %v964
      %v1288 = vsel %vm388, %v547, %v966
      %v1291 = vsel %vm388, %v548, %v968
      %v1294 = vsel %vm388, %v549, %v970
      %v1297 = vsel %vm388, %v550, %v972
      %v1300 = vsel %vm388, %v551, %v974
      %v1303 = vsel %vm388, %v552, %v976
      %v1306 = vsel %vm388, %v553, %v978
      %v1309 = vsel %vm388, %v554, %v980
      %v1312 = vsel %vm388, %v555, %v982
      %v1315 = vsel %vm388, %v556, %v984
      %v1318 = vsel %vm388, %v557, %v986
      %v1321 = vsel %vm388, %v558, %v988
      %v1324 = vsel %vm388, %v559, %v990
      %v1327 = vsel %vm388, %v560, %v992
      %v1330 = vsel %vm388, %v561, %v994
      %vm1331 = vcmask 261120
      %v1333 = vsel %vm1331, %v1285, %v1012
      %v1335 = vsel %vm1331, %v1288, %v1014
      %v1337 = vsel %vm1331, %v1291, %v1016
      %v1339 = vsel %vm1331, %v1294, %v1018
      %v1341 = vsel %vm1331, %v1297, %v1020
      %v1343 = vsel %vm1331, %v1300, %v1022
      %v1345 = vsel %vm1331, %v1303, %v1024
      %v1347 = vsel %vm1331, %v1306, %v1026
      %v1349 = vsel %vm1331, %v1309, %v1028
      %v1351 = vsel %vm1331, %v1312, %v1030
      %v1353 = vsel %vm1331, %v1315, %v1032
      %v1355 = vsel %vm1331, %v1318, %v1034
      %v1357 = vsel %vm1331, %v1321, %v1036
      %v1359 = vsel %vm1331, %v1324, %v1038
      %v1361 = vsel %vm1331, %v1327, %v1040
      %v1363 = vsel %vm1331, %v1330, %v1042
      %vm1364 = vcmask 392192
      %v1366 = vsel %vm1364, %v1333, %v1060
      %v1368 = vsel %vm1364, %v1335, %v1062
      %v1370 = vsel %vm1364, %v1337, %v1064
      %v1372 = vsel %vm1364, %v1339, %v1066
      %v1374 = vsel %vm1364, %v1341, %v1068
      %v1376 = vsel %vm1364, %v1343, %v1070
      %v1378 = vsel %vm1364, %v1345, %v1072
      %v1380 = vsel %vm1364, %v1347, %v1074
      %v1382 = vsel %vm1364, %v1349, %v1076
      %v1384 = vsel %vm1364, %v1351, %v1078
      %v1386 = vsel %vm1364, %v1353, %v1080
      %v1388 = vsel %vm1364, %v1355, %v1082
      %v1390 = vsel %vm1364, %v1357, %v1084
      %v1392 = vsel %vm1364, %v1359, %v1086
      %v1394 = vsel %vm1364, %v1361, %v1088
      %v1396 = vsel %vm1364, %v1363, %v1090
      %vm1397 = vcmask 523264
      %v1399 = vsel %vm1397, %v1366, %v1108
      %v1401 = vsel %vm1397, %v1368, %v1110
      %v1403 = vsel %vm1397, %v1370, %v1112
      %v1405 = vsel %vm1397, %v1372, %v1114
      %v1407 = vsel %vm1397, %v1374, %v1116
      %v1409 = vsel %vm1397, %v1376, %v1118
      %v1411 = vsel %vm1397, %v1378, %v1120
      %v1413 = vsel %vm1397, %v1380, %v1122
      %v1415 = vsel %vm1397, %v1382, %v1124
      %v1417 = vsel %vm1397, %v1384, %v1126
      %v1419 = vsel %vm1397, %v1386, %v1128
      %v1421 = vsel %vm1397, %v1388, %v1130
      %v1423 = vsel %vm1397, %v1390, %v1132
      %v1425 = vsel %vm1397, %v1392, %v1134
      %v1427 = vsel %vm1397, %v1394, %v1136
      %v1429 = vsel %vm1397, %v1396, %v1138
      %vm1430 = vcmask 654336
      %v1432 = vsel %vm1430, %v1399, %v1156
      %v1434 = vsel %vm1430, %v1401, %v1158
      %v1436 = vsel %vm1430, %v1403, %v1160
      %v1438 = vsel %vm1430, %v1405, %v1162
      %v1440 = vsel %vm1430, %v1407, %v1164
      %v1442 = vsel %vm1430, %v1409, %v1166
      %v1444 = vsel %vm1430, %v1411, %v1168
      %v1446 = vsel %vm1430, %v1413, %v1170
      %v1448 = vsel %vm1430, %v1415, %v1172
      %v1450 = vsel %vm1430, %v1417, %v1174
      %v1452 = vsel %vm1430, %v1419, %v1176
      %v1454 = vsel %vm1430, %v1421, %v1178
      %v1456 = vsel %vm1430, %v1423, %v1180
      %v1458 = vsel %vm1430, %v1425, %v1182
      %v1460 = vsel %vm1430, %v1427, %v1184
      %v1462 = vsel %vm1430, %v1429, %v1186
      %vm1463 = vcmask 785408
      %v1465 = vsel %vm1463, %v1432, %v1204
      %v1467 = vsel %vm1463, %v1434, %v1206
      %v1469 = vsel %vm1463, %v1436, %v1208
      %v1471 = vsel %vm1463, %v1438, %v1210
      %v1473 = vsel %vm1463, %v1440, %v1212
      %v1475 = vsel %vm1463, %v1442, %v1214
      %v1477 = vsel %vm1463, %v1444, %v1216
      %v1479 = vsel %vm1463, %v1446, %v1218
      %v1481 = vsel %vm1463, %v1448, %v1220
      %v1483 = vsel %vm1463, %v1450, %v1222
      %v1485 = vsel %vm1463, %v1452, %v1224
      %v1487 = vsel %vm1463, %v1454, %v1226
      %v1489 = vsel %vm1463, %v1456, %v1228
      %v1491 = vsel %vm1463, %v1458, %v1230
      %v1493 = vsel %vm1463, %v1460, %v1232
      %v1495 = vsel %vm1463, %v1462, %v1234
      %vm1496 = vcmask 916480
      %v1498 = vsel %vm1496, %v1465, %v1252
      %v1501 = vsel %vm1496, %v1467, %v1254
      %v1504 = vsel %vm1496, %v1469, %v1256
      %v1507 = vsel %vm1496, %v1471, %v1258
      %v1510 = vsel %vm1496, %v1473, %v1260
      %v1513 = vsel %vm1496, %v1475, %v1262
      %v1516 = vsel %vm1496, %v1477, %v1264
      %v1519 = vsel %vm1496, %v1479, %v1266
      %v1522 = vsel %vm1496, %v1481, %v1268
      %v1525 = vsel %vm1496, %v1483, %v1270
      %v1528 = vsel %vm1496, %v1485, %v1272
      %v1531 = vsel %vm1496, %v1487, %v1274
      %v1534 = vsel %vm1496, %v1489, %v1276
      %v1537 = vsel %vm1496, %v1491, %v1278
      %v1540 = vsel %vm1496, %v1493, %v1280
      %v1543 = vsel %vm1496, %v1495, %v1282
      %v1546 = vlaneseq
      %v1547 = vshrl.u32 %v1546, 7
      %v1548 = vsub.s32 0, %v1547
      %v1549 = vrot.slane %v513, %v1548
      %v1569 = vunpack.c.l.b16 %v495
      %v1570 = vunpack.c.l.b16 %v496
      %v1571 = vunpack.c.l.b16 %v497
      %v1572 = vunpack.c.l.b16 %v498
      %v1573 = vunpack.c.l.b16 %v499
      %v1574 = vunpack.c.l.b16 %v500
      %v1575 = vunpack.c.l.b16 %v501
      %v1576 = vunpack.c.l.b16 %v502
      %v1577 = vunpack.c.l.b16 %v503
      %v1578 = vunpack.c.l.b16 %v504
      %v1579 = vunpack.c.l.b16 %v505
      %v1580 = vunpack.c.l.b16 %v506
      %v1581 = vunpack.c.l.b16 %v507
      %v1582 = vunpack.c.l.b16 %v508
      %v1583 = vunpack.c.l.b16 %v509
      %v1584 = vunpack.c.l.b16 %v510
      %v1585 = vunpack.c.l.b16 %v511
      %v1586 = vunpack.c.l.b16 %v512
      %v1587 = vpack.c.b16 %v1570, %v1569
      %v1588 = vpack.c.b16 %v1572, %v1571
      %v1589 = vpack.c.b16 %v1574, %v1573
      %v1590 = vpack.c.b16 %v1576, %v1575
      %v1591 = vpack.c.b16 %v1578, %v1577
      %v1592 = vpack.c.b16 %v1580, %v1579
      %v1593 = vpack.c.b16 %v1582, %v1581
      %v1594 = vpack.c.b16 %v1584, %v1583
      %v1595 = vpack.c.b16 %v1586, %v1585
      %v1606 = vsel %vm388, %v931, 0
      %v1609 = vsel %vm388, %v932, 0
      %v1612 = vsel %vm388, %v933, 0
      %v1615 = vsel %vm388, %v934, 0
      %v1618 = vsel %vm388, %v935, 0
      %v1621 = vsel %vm388, %v936, 0
      %v1624 = vsel %vm388, %v937, 0
      %v1627 = vsel %vm388, %v938, 0
      %v1630 = vsel %vm388, %v939, 0
      %v1633 = vsel %vm388, %v940, 0
      %v1636 = vsel %vm388, %v941, 0
      %v1639 = vsel %vm388, %v942, 0
      %v1642 = vsel %vm388, %v943, 0
      %v1645 = vsel %vm388, %v944, 0
      %v1648 = vsel %vm388, %v945, 0
      %v1651 = vsel %vm388, %v946, 0
      %1653 = vmatprep.subr.bf16.mxu0 0
      %1654 = vmatpush1.bf16.msra.mxu0 %v1587
      %1655 = vmatprep.subr.bf16.mxu0 0
      %1656 = vmatpush1.bf16.msra.mxu0 %v1588
      %1657 = vmatprep.subr.bf16.mxu0 0
      %1658 = vmatpush1.bf16.msra.mxu0 %v1589
      %1659 = vmatprep.subr.bf16.mxu0 0
      %1660 = vmatpush1.bf16.msra.mxu0 %v1590
      %1661 = vmatprep.subr.bf16.mxu0 0
      %1662 = vmatpush1.bf16.msra.mxu0 %v1591
      %1663 = vmatprep.subr.bf16.mxu0 0
      %1664 = vmatpush1.bf16.msra.mxu0 %v1592
      %1665 = vmatprep.subr.bf16.mxu0 0
      %1666 = vmatpush1.bf16.msra.mxu0 %v1593
      %1667 = vmatprep.subr.bf16.mxu0 0
      %1668 = vmatpush1.bf16.msra.mxu0 %v1594
      %1669 = vmatprep.subr.bf16.mxu0 0
      %1670 = vmatpush1.bf16.msra.mxu0 %v1595
      %1671 = vmatprep.subr.bf16.mxu0 0
      %1672 = vmatpush1.bf16.msra.mxu0 0
      %1673 = vmatprep.subr.bf16.mxu0 0
      %1674 = vmatpush1.bf16.msra.mxu0 0
      %1675 = vmatprep.subr.bf16.mxu0 0
      %1676 = vmatpush1.bf16.msra.mxu0 0
      %1677 = vmatprep.subr.bf16.mxu0 0
      %1678 = vmatpush1.bf16.msra.mxu0 0
      %1679 = vmatprep.subr.bf16.mxu0 0
      %1680 = vmatpush1.bf16.msra.mxu0 0
      %1681 = vmatprep.subr.bf16.mxu0 0
      %1682 = vmatpush1.bf16.msra.mxu0 0
      %1683 = vmatprep.subr.bf16.mxu0 0
      %1684 = vmatpush1.bf16.msra.mxu0 0
      %1685 = vmatprep.mubr.bf16.mxu0 %v1606
      %1686 = vmatmul.mubr.bf16.gmra.mrb[0].mxu0 %v1498
      %v1687 = vpop.f32.mrb[0].mxu0
      %v1688 = vadd.f32 %v1549, %v1687
      %v1689 = vpop.f32.mrb[0].mxu0
      %v1690 = vpop.f32.mrb[0].mxu0
      %v1691 = vadd.f32 %v1549, %v1690
      %v1692 = vpop.f32.mrb[0].mxu0
      %1693 = vmatprep.mubr.bf16.mxu0 %v1609
      %1694 = vmatmul.mubr.bf16.gmra.mrb[0].mxu0 %v1501
      %v1695 = vpop.f32.mrb[0].mxu0
      %v1696 = vadd.f32 %v1549, %v1695
      %v1697 = vpop.f32.mrb[0].mxu0
      %v1698 = vpop.f32.mrb[0].mxu0
      %v1699 = vadd.f32 %v1549, %v1698
      %v1700 = vpop.f32.mrb[0].mxu0
      %1701 = vmatprep.mubr.bf16.mxu0 %v1612
      %1702 = vmatmul.mubr.bf16.gmra.mrb[0].mxu0 %v1504
      %v1703 = vpop.f32.mrb[0].mxu0
      %v1704 = vadd.f32 %v1549, %v1703
      %v1705 = vpop.f32.mrb[0].mxu0
      %v1706 = vpop.f32.mrb[0].mxu0
      %v1707 = vadd.f32 %v1549, %v1706
      %v1708 = vpop.f32.mrb[0].mxu0
      %1709 = vmatprep.mubr.bf16.mxu0 %v1615
      %1710 = vmatmul.mubr.bf16.gmra.mrb[0].mxu0 %v1507
      %v1711 = vpop.f32.mrb[0].mxu0
      %v1712 = vadd.f32 %v1549, %v1711
      %v1713 = vpop.f32.mrb[0].mxu0
      %v1714 = vpop.f32.mrb[0].mxu0
      %v1715 = vadd.f32 %v1549, %v1714
      %v1716 = vpop.f32.mrb[0].mxu0
      %1717 = vmatprep.mubr.bf16.mxu0 %v1618
      %1718 = vmatmul.mubr.bf16.gmra.mrb[0].mxu0 %v1510
      %v1719 = vpop.f32.mrb[0].mxu0
      %v1720 = vadd.f32 %v1549, %v1719
      %v1721 = vpop.f32.mrb[0].mxu0
      %v1722 = vpop.f32.mrb[0].mxu0
      %v1723 = vadd.f32 %v1549, %v1722
      %v1724 = vpop.f32.mrb[0].mxu0
      %1725 = vmatprep.mubr.bf16.mxu0 %v1621
      %1726 = vmatmul.mubr.bf16.gmra.mrb[0].mxu0 %v1513
      %v1727 = vpop.f32.mrb[0].mxu0
      %v1728 = vadd.f32 %v1549, %v1727
      %v1729 = vpop.f32.mrb[0].mxu0
      %v1730 = vpop.f32.mrb[0].mxu0
      %v1731 = vadd.f32 %v1549, %v1730
      %v1732 = vpop.f32.mrb[0].mxu0
      %1733 = vmatprep.mubr.bf16.mxu0 %v1624
      %1734 = vmatmul.mubr.bf16.gmra.mrb[0].mxu0 %v1516
      %v1735 = vpop.f32.mrb[0].mxu0
      %v1736 = vadd.f32 %v1549, %v1735
      %v1737 = vpop.f32.mrb[0].mxu0
      %v1738 = vpop.f32.mrb[0].mxu0
      %v1739 = vadd.f32 %v1549, %v1738
      %v1740 = vpop.f32.mrb[0].mxu0
      %1741 = vmatprep.mubr.bf16.mxu0 %v1627
      %1742 = vmatmul.mubr.bf16.gmra.mrb[0].mxu0 %v1519
      %v1743 = vpop.f32.mrb[0].mxu0
      %v1744 = vadd.f32 %v1549, %v1743
      %v1745 = vpop.f32.mrb[0].mxu0
      %v1746 = vpop.f32.mrb[0].mxu0
      %v1747 = vadd.f32 %v1549, %v1746
      %v1748 = vpop.f32.mrb[0].mxu0
      %1749 = vmatprep.mubr.bf16.mxu0 %v1630
      %1750 = vmatmul.mubr.bf16.gmra.mrb[0].mxu0 %v1522
      %v1751 = vpop.f32.mrb[0].mxu0
      %v1752 = vadd.f32 %v1549, %v1751
      %v1753 = vpop.f32.mrb[0].mxu0
      %v1754 = vpop.f32.mrb[0].mxu0
      %v1755 = vadd.f32 %v1549, %v1754
      %v1756 = vpop.f32.mrb[0].mxu0
      %1757 = vmatprep.mubr.bf16.mxu0 %v1633
      %1758 = vmatmul.mubr.bf16.gmra.mrb[0].mxu0 %v1525
      %v1759 = vpop.f32.mrb[0].mxu0
      %v1760 = vadd.f32 %v1549, %v1759
      %v1761 = vpop.f32.mrb[0].mxu0
      %v1762 = vpop.f32.mrb[0].mxu0
      %v1763 = vadd.f32 %v1549, %v1762
      %v1764 = vpop.f32.mrb[0].mxu0
      %1765 = vmatprep.mubr.bf16.mxu0 %v1636
      %1766 = vmatmul.mubr.bf16.gmra.mrb[0].mxu0 %v1528
      %v1767 = vpop.f32.mrb[0].mxu0
      %v1768 = vadd.f32 %v1549, %v1767
      %v1769 = vpop.f32.mrb[0].mxu0
      %v1770 = vpop.f32.mrb[0].mxu0
      %v1771 = vadd.f32 %v1549, %v1770
      %v1772 = vpop.f32.mrb[0].mxu0
      %1773 = vmatprep.mubr.bf16.mxu0 %v1639
      %1774 = vmatmul.mubr.bf16.gmra.mrb[0].mxu0 %v1531
      %v1775 = vpop.f32.mrb[0].mxu0
      %v1776 = vadd.f32 %v1549, %v1775
      %v1777 = vpop.f32.mrb[0].mxu0
      %v1778 = vpop.f32.mrb[0].mxu0
      %v1779 = vadd.f32 %v1549, %v1778
      %v1780 = vpop.f32.mrb[0].mxu0
      %1781 = vmatprep.mubr.bf16.mxu0 %v1642
      %1782 = vmatmul.mubr.bf16.gmra.mrb[0].mxu0 %v1534
      %v1783 = vpop.f32.mrb[0].mxu0
      %v1784 = vadd.f32 %v1549, %v1783
      %v1785 = vpop.f32.mrb[0].mxu0
      %v1786 = vpop.f32.mrb[0].mxu0
      %v1787 = vadd.f32 %v1549, %v1786
      %v1788 = vpop.f32.mrb[0].mxu0
      %1789 = vmatprep.mubr.bf16.mxu0 %v1645
      %1790 = vmatmul.mubr.bf16.gmra.mrb[0].mxu0 %v1537
      %v1791 = vpop.f32.mrb[0].mxu0
      %v1792 = vadd.f32 %v1549, %v1791
      %v1793 = vpop.f32.mrb[0].mxu0
      %v1794 = vpop.f32.mrb[0].mxu0
      %v1795 = vadd.f32 %v1549, %v1794
      %v1796 = vpop.f32.mrb[0].mxu0
      %1797 = vmatprep.mubr.bf16.mxu0 %v1648
      %1798 = vmatmul.mubr.bf16.gmra.mrb[0].mxu0 %v1540
      %v1799 = vpop.f32.mrb[0].mxu0
      %v1800 = vadd.f32 %v1549, %v1799
      %v1801 = vpop.f32.mrb[0].mxu0
      %v1802 = vpop.f32.mrb[0].mxu0
      %v1803 = vadd.f32 %v1549, %v1802
      %v1804 = vpop.f32.mrb[0].mxu0
      %1805 = vmatprep.mubr.bf16.mxu0 %v1651
      %1806 = vmatmul.mubr.bf16.gmra.mrb[0].mxu0 %v1543
      %v1807 = vpop.f32.mrb[0].mxu0
      %v1808 = vadd.f32 %v1549, %v1807
      %v1809 = vpop.f32.mrb[0].mxu0
      %v1810 = vpop.f32.mrb[0].mxu0
      %v1811 = vadd.f32 %v1549, %v1810
      %v1812 = vpop.f32.mrb[0].mxu0
      %1813 = vdwg.mxu0
      %v1814 = vmax.f32 %v1688, 0.0
      %v1815 = vmax.f32 %v1691, 0.0
      %v1816 = vmax.f32 %v1696, 0.0
      %v1817 = vmax.f32 %v1699, 0.0
      %v1818 = vmax.f32 %v1704, 0.0
      %v1819 = vmax.f32 %v1707, 0.0
      %v1820 = vmax.f32 %v1712, 0.0
      %v1821 = vmax.f32 %v1715, 0.0
      %v1822 = vmax.f32 %v1720, 0.0
      %v1823 = vmax.f32 %v1723, 0.0
      %v1824 = vmax.f32 %v1728, 0.0
      %v1825 = vmax.f32 %v1731, 0.0
      %v1826 = vmax.f32 %v1736, 0.0
      %v1827 = vmax.f32 %v1739, 0.0
      %v1828 = vmax.f32 %v1744, 0.0
      %v1829 = vmax.f32 %v1747, 0.0
      %v1830 = vmax.f32 %v1752, 0.0
      %v1831 = vmax.f32 %v1755, 0.0
      %v1832 = vmax.f32 %v1760, 0.0
      %v1833 = vmax.f32 %v1763, 0.0
      %v1834 = vmax.f32 %v1768, 0.0
      %v1835 = vmax.f32 %v1771, 0.0
      %v1836 = vmax.f32 %v1776, 0.0
      %v1837 = vmax.f32 %v1779, 0.0
      %v1838 = vmax.f32 %v1784, 0.0
      %v1839 = vmax.f32 %v1787, 0.0
      %v1840 = vmax.f32 %v1792, 0.0
      %v1841 = vmax.f32 %v1795, 0.0
      %v1842 = vmax.f32 %v1800, 0.0
      %v1843 = vmax.f32 %v1803, 0.0
      %v1844 = vmax.f32 %v1808, 0.0
      %v1845 = vmax.f32 %v1811, 0.0
      %1846 = vst.msk [vmem:[%s398 + $0x8] sm:$0xff] %vm388, %v1814
      %1847 = vst.msk [vmem:[%s398 + $0x10] sm:$0xff] %vm388, %v1815
      %1848 = vst.msk [vmem:[%s398 + $0x28] sm:$0xff] %vm388, %v1816
      %1849 = vst.msk [vmem:[%s398 + $0x30] sm:$0xff] %vm388, %v1817
      %1850 = vst.msk [vmem:[%s398 + $0x48] sm:$0xff] %vm388, %v1818
      %1851 = vst.msk [vmem:[%s398 + $0x50] sm:$0xff] %vm388, %v1819
      %1852 = vst.msk [vmem:[%s398 + $0x68] sm:$0xff] %vm388, %v1820
      %1853 = vst.msk [vmem:[%s398 + $0x70] sm:$0xff] %vm388, %v1821
      %1854 = vst.msk [vmem:[%s398 + $0x88] sm:$0xff] %vm388, %v1822
      %1855 = vst.msk [vmem:[%s398 + $0x90] sm:$0xff] %vm388, %v1823
      %1856 = vst.msk [vmem:[%s398 + $0xa8] sm:$0xff] %vm388, %v1824
      %1857 = vst.msk [vmem:[%s398 + $0xb0] sm:$0xff] %vm388, %v1825
      %1858 = vst.msk [vmem:[%s398 + $0xc8] sm:$0xff] %vm388, %v1826
      %1859 = vst.msk [vmem:[%s398 + $0xd0] sm:$0xff] %vm388, %v1827
      %1860 = vst.msk [vmem:[%s398 + $0xe8] sm:$0xff] %vm388, %v1828
      %1861 = vst.msk [vmem:[%s398 + $0xf0] sm:$0xff] %vm388, %v1829
      %1862 = vst.msk [vmem:[%s398 + $0x108] sm:$0xff] %vm388, %v1830
      %1863 = vst.msk [vmem:[%s398 + $0x110] sm:$0xff] %vm388, %v1831
      %1864 = vst.msk [vmem:[%s398 + $0x128] sm:$0xff] %vm388, %v1832
      %1865 = vst.msk [vmem:[%s398 + $0x130] sm:$0xff] %vm388, %v1833
      %1866 = vst.msk [vmem:[%s398 + $0x148] sm:$0xff] %vm388, %v1834
      %1867 = vst.msk [vmem:[%s398 + $0x150] sm:$0xff] %vm388, %v1835
      %1868 = vst.msk [vmem:[%s398 + $0x168] sm:$0xff] %vm388, %v1836
      %1869 = vst.msk [vmem:[%s398 + $0x170] sm:$0xff] %vm388, %v1837
      %1870 = vst.msk [vmem:[%s398 + $0x188] sm:$0xff] %vm388, %v1838
      %1871 = vst.msk [vmem:[%s398 + $0x190] sm:$0xff] %vm388, %v1839
      %1872 = vst.msk [vmem:[%s398 + $0x1a8] sm:$0xff] %vm388, %v1840
      %1873 = vst.msk [vmem:[%s398 + $0x1b0] sm:$0xff] %vm388, %v1841
      %1874 = vst.msk [vmem:[%s398 + $0x1c8] sm:$0xff] %vm388, %v1842
      %1875 = vst.msk [vmem:[%s398 + $0x1d0] sm:$0xff] %vm388, %v1843
      %1876 = vst.msk [vmem:[%s398 + $0x1e8] sm:$0xff] %vm388, %v1844
      %1877 = vst.msk [vmem:[%s398 + $0x1f0] sm:$0xff] %vm388, %v1845
      %v1878 = vld [vmem:[%s3] sm:$0xf]
      %v1879 = vld [vmem:[%s3 + $0x4] sm:$0xf]
      %v1880 = vld [vmem:[%s3 + $0x8] sm:$0xf]
      %v1881 = vld [vmem:[%s3 + $0xc] sm:$0xf]
      %v1882 = vld [vmem:[%s3 + $0x10] sm:$0xf]
      %v1883 = vld [vmem:[%s3 + $0x14] sm:$0xf]
      %v1884 = vld [vmem:[%s3 + $0x18] sm:$0xf]
      %v1885 = vld [vmem:[%s3 + $0x1c] sm:$0xf]
      %v1886 = vld [vmem:[%s3 + $0x20] sm:$0xf]
      %v1887 = vld [vmem:[%s3 + $0x24] sm:$0xf]
      %v1888 = vld [vmem:[%s3 + $0x28] sm:$0xf]
      %v1889 = vld [vmem:[%s3 + $0x2c] sm:$0xf]
      %v1890 = vld [vmem:[%s3 + $0x30] sm:$0xf]
      %v1891 = vld [vmem:[%s3 + $0x34] sm:$0xf]
      %v1892 = vld [vmem:[%s3 + $0x38] sm:$0xf]
      %v1893 = vld [vmem:[%s3 + $0x3c] sm:$0xf]
      %v1894 = vld [vmem:[%s3 + $0x40] sm:$0xf]
      %v1895 = vld [vmem:[%s3 + $0x44] sm:$0xf]
      %v1896 = vld [vmem:[%s4] sm:$0x1]
      %v1897 = vld [vmem:[#allocation2 + $0x7] sm:$0xff]
      %v1898 = vld [vmem:[#allocation2 + $0xf] sm:$0xff]
      %v1899 = vld [vmem:[#allocation2 + $0x27] sm:$0xff]
      %v1900 = vld [vmem:[#allocation2 + $0x2f] sm:$0xff]
      %v1901 = vld [vmem:[#allocation2 + $0x47] sm:$0xff]
      %v1902 = vld [vmem:[#allocation2 + $0x4f] sm:$0xff]
      %v1903 = vld [vmem:[#allocation2 + $0x67] sm:$0xff]
      %v1904 = vld [vmem:[#allocation2 + $0x6f] sm:$0xff]
      %v1905 = vld [vmem:[#allocation2 + $0x87] sm:$0xff]
      %v1906 = vld [vmem:[#allocation2 + $0x8f] sm:$0xff]
      %v1907 = vld [vmem:[#allocation2 + $0xa7] sm:$0xff]
      %v1908 = vld [vmem:[#allocation2 + $0xaf] sm:$0xff]
      %v1909 = vld [vmem:[#allocation2 + $0xc7] sm:$0xff]
      %v1910 = vld [vmem:[#allocation2 + $0xcf] sm:$0xff]
      %v1911 = vld [vmem:[#allocation2 + $0xe7] sm:$0xff]
      %v1912 = vld [vmem:[#allocation2 + $0xef] sm:$0xff]
      %v1913 = vld [vmem:[#allocation2 + $0x107] sm:$0xff]
      %v1914 = vld [vmem:[#allocation2 + $0x10f] sm:$0xff]
      %v1915 = vld [vmem:[#allocation2 + $0x127] sm:$0xff]
      %v1916 = vld [vmem:[#allocation2 + $0x12f] sm:$0xff]
      %v1917 = vld [vmem:[#allocation2 + $0x147] sm:$0xff]
      %v1918 = vld [vmem:[#allocation2 + $0x14f] sm:$0xff]
      %v1919 = vld [vmem:[#allocation2 + $0x167] sm:$0xff]
      %v1920 = vld [vmem:[#allocation2 + $0x16f] sm:$0xff]
      %v1921 = vld [vmem:[#allocation2 + $0x187] sm:$0xff]
      %v1922 = vld [vmem:[#allocation2 + $0x18f] sm:$0xff]
      %v1923 = vld [vmem:[#allocation2 + $0x1a7] sm:$0xff]
      %v1924 = vld [vmem:[#allocation2 + $0x1af] sm:$0xff]
      %v1925 = vld [vmem:[#allocation2 + $0x1c7] sm:$0xff]
      %v1926 = vld [vmem:[#allocation2 + $0x1cf] sm:$0xff]
      %v1927 = vld [vmem:[#allocation2 + $0x1e7] sm:$0xff]
      %v1928 = vld [vmem:[#allocation2 + $0x1ef] sm:$0xff]
      %v1929 = vpack.c.bf16 %v1898, %v1897
      %v1930 = vpack.c.bf16 %v1900, %v1899
      %v1931 = vpack.c.bf16 %v1902, %v1901
      %v1932 = vpack.c.bf16 %v1904, %v1903
      %v1933 = vpack.c.bf16 %v1906, %v1905
      %v1934 = vpack.c.bf16 %v1908, %v1907
      %v1935 = vpack.c.bf16 %v1910, %v1909
      %v1936 = vpack.c.bf16 %v1912, %v1911
      %v1937 = vpack.c.bf16 %v1914, %v1913
      %v1938 = vpack.c.bf16 %v1916, %v1915
      %v1939 = vpack.c.bf16 %v1918, %v1917
      %v1940 = vpack.c.bf16 %v1920, %v1919
      %v1941 = vpack.c.bf16 %v1922, %v1921
      %v1942 = vpack.c.bf16 %v1924, %v1923
      %v1943 = vpack.c.bf16 %v1926, %v1925
      %v1944 = vpack.c.bf16 %v1928, %v1927
      %v1945 = vld [vmem:[#allocation2 + $0x8] sm:$0xff]
      %v1946 = vld [vmem:[#allocation2 + $0x10] sm:$0xff]
      %v1947 = vld [vmem:[#allocation2 + $0x28] sm:$0xff]
      %v1948 = vld [vmem:[#allocation2 + $0x30] sm:$0xff]
      %v1949 = vld [vmem:[#allocation2 + $0x48] sm:$0xff]
      %v1950 = vld [vmem:[#allocation2 + $0x50] sm:$0xff]
      %v1951 = vld [vmem:[#allocation2 + $0x68] sm:$0xff]
      %v1952 = vld [vmem:[#allocation2 + $0x70] sm:$0xff]
      %v1953 = vld [vmem:[#allocation2 + $0x88] sm:$0xff]
      %v1954 = vld [vmem:[#allocation2 + $0x90] sm:$0xff]
      %v1955 = vld [vmem:[#allocation2 + $0xa8] sm:$0xff]
      %v1956 = vld [vmem:[#allocation2 + $0xb0] sm:$0xff]
      %v1957 = vld [vmem:[#allocation2 + $0xc8] sm:$0xff]
      %v1958 = vld [vmem:[#allocation2 + $0xd0] sm:$0xff]
      %v1959 = vld [vmem:[#allocation2 + $0xe8] sm:$0xff]
      %v1960 = vld [vmem:[#allocation2 + $0xf0] sm:$0xff]
      %v1961 = vld [vmem:[#allocation2 + $0x108] sm:$0xff]
      %v1962 = vld [vmem:[#allocation2 + $0x110] sm:$0xff]
      %v1963 = vld [vmem:[#allocation2 + $0x128] sm:$0xff]
      %v1964 = vld [vmem:[#allocation2 + $0x130] sm:$0xff]
      %v1965 = vld [vmem:[#allocation2 + $0x148] sm:$0xff]
      %v1966 = vld [vmem:[#allocation2 + $0x150] sm:$0xff]
      %v1967 = vld [vmem:[#allocation2 + $0x168] sm:$0xff]
      %v1968 = vld [vmem:[#allocation2 + $0x170] sm:$0xff]
      %v1969 = vld [vmem:[#allocation2 + $0x188] sm:$0xff]
      %v1970 = vld [vmem:[#allocation2 + $0x190] sm:$0xff]
      %v1971 = vld [vmem:[#allocation2 + $0x1a8] sm:$0xff]
      %v1972 = vld [vmem:[#allocation2 + $0x1b0] sm:$0xff]
      %v1973 = vld [vmem:[#allocation2 + $0x1c8] sm:$0xff]
      %v1974 = vld [vmem:[#allocation2 + $0x1d0] sm:$0xff]
      %v1975 = vld [vmem:[#allocation2 + $0x1e8] sm:$0xff]
      %v1976 = vld [vmem:[#allocation2 + $0x1f0] sm:$0xff]
      %v1977 = vpack.c.bf16 %v1946, %v1945
      %v1978 = vpack.c.bf16 %v1948, %v1947
      %v1979 = vpack.c.bf16 %v1950, %v1949
      %v1980 = vpack.c.bf16 %v1952, %v1951
      %v1981 = vpack.c.bf16 %v1954, %v1953
      %v1982 = vpack.c.bf16 %v1956, %v1955
      %v1983 = vpack.c.bf16 %v1958, %v1957
      %v1984 = vpack.c.bf16 %v1960, %v1959
      %v1985 = vpack.c.bf16 %v1962, %v1961
      %v1986 = vpack.c.bf16 %v1964, %v1963
      %v1987 = vpack.c.bf16 %v1966, %v1965
      %v1988 = vpack.c.bf16 %v1968, %v1967
      %v1989 = vpack.c.bf16 %v1970, %v1969
      %v1990 = vpack.c.bf16 %v1972, %v1971
      %v1991 = vpack.c.bf16 %v1974, %v1973
      %v1992 = vpack.c.bf16 %v1976, %v1975
      %v1993 = vld [vmem:[#allocation2 + $0x9] sm:$0xff]
      %v1994 = vld [vmem:[#allocation2 + $0x11] sm:$0xff]
      %v1995 = vld [vmem:[#allocation2 + $0x29] sm:$0xff]
      %v1996 = vld [vmem:[#allocation2 + $0x31] sm:$0xff]
      %v1997 = vld [vmem:[#allocation2 + $0x49] sm:$0xff]
      %v1998 = vld [vmem:[#allocation2 + $0x51] sm:$0xff]
      %v1999 = vld [vmem:[#allocation2 + $0x69] sm:$0xff]
      %v2000 = vld [vmem:[#allocation2 + $0x71] sm:$0xff]
      %v2001 = vld [vmem:[#allocation2 + $0x89] sm:$0xff]
      %v2002 = vld [vmem:[#allocation2 + $0x91] sm:$0xff]
      %v2003 = vld [vmem:[#allocation2 + $0xa9] sm:$0xff]
      %v2004 = vld [vmem:[#allocation2 + $0xb1] sm:$0xff]
      %v2005 = vld [vmem:[#allocation2 + $0xc9] sm:$0xff]
      %v2006 = vld [vmem:[#allocation2 + $0xd1] sm:$0xff]
      %v2007 = vld [vmem:[#allocation2 + $0xe9] sm:$0xff]
      %v2008 = vld [vmem:[#allocation2 + $0xf1] sm:$0xff]
      %v2009 = vld [vmem:[#allocation2 + $0x109] sm:$0xff]
      %v2010 = vld [vmem:[#allocation2 + $0x111] sm:$0xff]
      %v2011 = vld [vmem:[#allocation2 + $0x129] sm:$0xff]
      %v2012 = vld [vmem:[#allocation2 + $0x131] sm:$0xff]
      %v2013 = vld [vmem:[#allocation2 + $0x149] sm:$0xff]
      %v2014 = vld [vmem:[#allocation2 + $0x151] sm:$0xff]
      %v2015 = vld [vmem:[#allocation2 + $0x169] sm:$0xff]
      %v2016 = vld [vmem:[#allocation2 + $0x171] sm:$0xff]
      %v2017 = vld [vmem:[#allocation2 + $0x189] sm:$0xff]
      %v2018 = vld [vmem:[#allocation2 + $0x191] sm:$0xff]
      %v2019 = vld [vmem:[#allocation2 + $0x1a9] sm:$0xff]
      %v2020 = vld [vmem:[#allocation2 + $0x1b1] sm:$0xff]
      %v2021 = vld [vmem:[#allocation2 + $0x1c9] sm:$0xff]
      %v2022 = vld [vmem:[#allocation2 + $0x1d1] sm:$0xff]
      %v2023 = vld [vmem:[#allocation2 + $0x1e9] sm:$0xff]
      %v2024 = vld [vmem:[#allocation2 + $0x1f1] sm:$0xff]
      %v2025 = vpack.c.bf16 %v1994, %v1993
      %v2026 = vpack.c.bf16 %v1996, %v1995
      %v2027 = vpack.c.bf16 %v1998, %v1997
      %v2028 = vpack.c.bf16 %v2000, %v1999
      %v2029 = vpack.c.bf16 %v2002, %v2001
      %v2030 = vpack.c.bf16 %v2004, %v2003
      %v2031 = vpack.c.bf16 %v2006, %v2005
      %v2032 = vpack.c.bf16 %v2008, %v2007
      %v2033 = vpack.c.bf16 %v2010, %v2009
      %v2034 = vpack.c.bf16 %v2012, %v2011
      %v2035 = vpack.c.bf16 %v2014, %v2013
      %v2036 = vpack.c.bf16 %v2016, %v2015
      %v2037 = vpack.c.bf16 %v2018, %v2017
      %v2038 = vpack.c.bf16 %v2020, %v2019
      %v2039 = vpack.c.bf16 %v2022, %v2021
      %v2040 = vpack.c.bf16 %v2024, %v2023
      %v2041 = vld [vmem:[%s398 + $0x7] sm:$0xff]
      %v2042 = vld [vmem:[%s398 + $0xf] sm:$0xff]
      %v2043 = vld [vmem:[%s398 + $0x27] sm:$0xff]
      %v2044 = vld [vmem:[%s398 + $0x2f] sm:$0xff]
      %v2045 = vld [vmem:[%s398 + $0x47] sm:$0xff]
      %v2046 = vld [vmem:[%s398 + $0x4f] sm:$0xff]
      %v2047 = vld [vmem:[%s398 + $0x67] sm:$0xff]
      %v2048 = vld [vmem:[%s398 + $0x6f] sm:$0xff]
      %v2049 = vld [vmem:[%s398 + $0x87] sm:$0xff]
      %v2050 = vld [vmem:[%s398 + $0x8f] sm:$0xff]
      %v2051 = vld [vmem:[%s398 + $0xa7] sm:$0xff]
      %v2052 = vld [vmem:[%s398 + $0xaf] sm:$0xff]
      %v2053 = vld [vmem:[%s398 + $0xc7] sm:$0xff]
      %v2054 = vld [vmem:[%s398 + $0xcf] sm:$0xff]
      %v2055 = vld [vmem:[%s398 + $0xe7] sm:$0xff]
      %v2056 = vld [vmem:[%s398 + $0xef] sm:$0xff]
      %v2057 = vld [vmem:[%s398 + $0x107] sm:$0xff]
      %v2058 = vld [vmem:[%s398 + $0x10f] sm:$0xff]
      %v2059 = vld [vmem:[%s398 + $0x127] sm:$0xff]
      %v2060 = vld [vmem:[%s398 + $0x12f] sm:$0xff]
      %v2061 = vld [vmem:[%s398 + $0x147] sm:$0xff]
      %v2062 = vld [vmem:[%s398 + $0x14f] sm:$0xff]
      %v2063 = vld [vmem:[%s398 + $0x167] sm:$0xff]
      %v2064 = vld [vmem:[%s398 + $0x16f] sm:$0xff]
      %v2065 = vld [vmem:[%s398 + $0x187] sm:$0xff]
      %v2066 = vld [vmem:[%s398 + $0x18f] sm:$0xff]
      %v2067 = vld [vmem:[%s398 + $0x1a7] sm:$0xff]
      %v2068 = vld [vmem:[%s398 + $0x1af] sm:$0xff]
      %v2069 = vld [vmem:[%s398 + $0x1c7] sm:$0xff]
      %v2070 = vld [vmem:[%s398 + $0x1cf] sm:$0xff]
      %v2071 = vld [vmem:[%s398 + $0x1e7] sm:$0xff]
      %v2072 = vld [vmem:[%s398 + $0x1ef] sm:$0xff]
      %v2073 = vpack.c.bf16 %v2042, %v2041
      %v2074 = vpack.c.bf16 %v2044, %v2043
      %v2075 = vpack.c.bf16 %v2046, %v2045
      %v2076 = vpack.c.bf16 %v2048, %v2047
      %v2077 = vpack.c.bf16 %v2050, %v2049
      %v2078 = vpack.c.bf16 %v2052, %v2051
      %v2079 = vpack.c.bf16 %v2054, %v2053
      %v2080 = vpack.c.bf16 %v2056, %v2055
      %v2081 = vpack.c.bf16 %v2058, %v2057
      %v2082 = vpack.c.bf16 %v2060, %v2059
      %v2083 = vpack.c.bf16 %v2062, %v2061
      %v2084 = vpack.c.bf16 %v2064, %v2063
      %v2085 = vpack.c.bf16 %v2066, %v2065
      %v2086 = vpack.c.bf16 %v2068, %v2067
      %v2087 = vpack.c.bf16 %v2070, %v2069
      %v2088 = vpack.c.bf16 %v2072, %v2071
      %v2089 = vld [vmem:[%s398 + $0x8] sm:$0xff]
      %v2090 = vld [vmem:[%s398 + $0x10] sm:$0xff]
      %v2091 = vld [vmem:[%s398 + $0x28] sm:$0xff]
      %v2092 = vld [vmem:[%s398 + $0x30] sm:$0xff]
      %v2093 = vld [vmem:[%s398 + $0x48] sm:$0xff]
      %v2094 = vld [vmem:[%s398 + $0x50] sm:$0xff]
      %v2095 = vld [vmem:[%s398 + $0x68] sm:$0xff]
      %v2096 = vld [vmem:[%s398 + $0x70] sm:$0xff]
      %v2097 = vld [vmem:[%s398 + $0x88] sm:$0xff]
      %v2098 = vld [vmem:[%s398 + $0x90] sm:$0xff]
      %v2099 = vld [vmem:[%s398 + $0xa8] sm:$0xff]
      %v2100 = vld [vmem:[%s398 + $0xb0] sm:$0xff]
      %v2101 = vld [vmem:[%s398 + $0xc8] sm:$0xff]
      %v2102 = vld [vmem:[%s398 + $0xd0] sm:$0xff]
      %v2103 = vld [vmem:[%s398 + $0xe8] sm:$0xff]
      %v2104 = vld [vmem:[%s398 + $0xf0] sm:$0xff]
      %v2105 = vld [vmem:[%s398 + $0x108] sm:$0xff]
      %v2106 = vld [vmem:[%s398 + $0x110] sm:$0xff]
      %v2107 = vld [vmem:[%s398 + $0x128] sm:$0xff]
      %v2108 = vld [vmem:[%s398 + $0x130] sm:$0xff]
      %v2109 = vld [vmem:[%s398 + $0x148] sm:$0xff]
      %v2110 = vld [vmem:[%s398 + $0x150] sm:$0xff]
      %v2111 = vld [vmem:[%s398 + $0x168] sm:$0xff]
      %v2112 = vld [vmem:[%s398 + $0x170] sm:$0xff]
      %v2113 = vld [vmem:[%s398 + $0x188] sm:$0xff]
      %v2114 = vld [vmem:[%s398 + $0x190] sm:$0xff]
      %v2115 = vld [vmem:[%s398 + $0x1a8] sm:$0xff]
      %v2116 = vld [vmem:[%s398 + $0x1b0] sm:$0xff]
      %v2117 = vld [vmem:[%s398 + $0x1c8] sm:$0xff]
      %v2118 = vld [vmem:[%s398 + $0x1d0] sm:$0xff]
      %v2119 = vld [vmem:[%s398 + $0x1e8] sm:$0xff]
      %v2120 = vld [vmem:[%s398 + $0x1f0] sm:$0xff]
      %v2121 = vpack.c.bf16 %v2090, %v2089
      %v2122 = vpack.c.bf16 %v2092, %v2091
      %v2123 = vpack.c.bf16 %v2094, %v2093
      %v2124 = vpack.c.bf16 %v2096, %v2095
      %v2125 = vpack.c.bf16 %v2098, %v2097
      %v2126 = vpack.c.bf16 %v2100, %v2099
      %v2127 = vpack.c.bf16 %v2102, %v2101
      %v2128 = vpack.c.bf16 %v2104, %v2103
      %v2129 = vpack.c.bf16 %v2106, %v2105
      %v2130 = vpack.c.bf16 %v2108, %v2107
      %v2131 = vpack.c.bf16 %v2110, %v2109
      %v2132 = vpack.c.bf16 %v2112, %v2111
      %v2133 = vpack.c.bf16 %v2114, %v2113
      %v2134 = vpack.c.bf16 %v2116, %v2115
      %v2135 = vpack.c.bf16 %v2118, %v2117
      %v2136 = vpack.c.bf16 %v2120, %v2119
      %v2137 = vld [vmem:[%s398 + $0x9] sm:$0xff]
      %v2138 = vld [vmem:[%s398 + $0x11] sm:$0xff]
      %v2139 = vld [vmem:[%s398 + $0x29] sm:$0xff]
      %v2140 = vld [vmem:[%s398 + $0x31] sm:$0xff]
      %v2141 = vld [vmem:[%s398 + $0x49] sm:$0xff]
      %v2142 = vld [vmem:[%s398 + $0x51] sm:$0xff]
      %v2143 = vld [vmem:[%s398 + $0x69] sm:$0xff]
      %v2144 = vld [vmem:[%s398 + $0x71] sm:$0xff]
      %v2145 = vld [vmem:[%s398 + $0x89] sm:$0xff]
      %v2146 = vld [vmem:[%s398 + $0x91] sm:$0xff]
      %v2147 = vld [vmem:[%s398 + $0xa9] sm:$0xff]
      %v2148 = vld [vmem:[%s398 + $0xb1] sm:$0xff]
      %v2149 = vld [vmem:[%s398 + $0xc9] sm:$0xff]
      %v2150 = vld [vmem:[%s398 + $0xd1] sm:$0xff]
      %v2151 = vld [vmem:[%s398 + $0xe9] sm:$0xff]
      %v2152 = vld [vmem:[%s398 + $0xf1] sm:$0xff]
      %v2153 = vld [vmem:[%s398 + $0x109] sm:$0xff]
      %v2154 = vld [vmem:[%s398 + $0x111] sm:$0xff]
      %v2155 = vld [vmem:[%s398 + $0x129] sm:$0xff]
      %v2156 = vld [vmem:[%s398 + $0x131] sm:$0xff]
      %v2157 = vld [vmem:[%s398 + $0x149] sm:$0xff]
      %v2158 = vld [vmem:[%s398 + $0x151] sm:$0xff]
      %v2159 = vld [vmem:[%s398 + $0x169] sm:$0xff]
      %v2160 = vld [vmem:[%s398 + $0x171] sm:$0xff]
      %v2161 = vld [vmem:[%s398 + $0x189] sm:$0xff]
      %v2162 = vld [vmem:[%s398 + $0x191] sm:$0xff]
      %v2163 = vld [vmem:[%s398 + $0x1a9] sm:$0xff]
      %v2164 = vld [vmem:[%s398 + $0x1b1] sm:$0xff]
      %v2165 = vld [vmem:[%s398 + $0x1c9] sm:$0xff]
      %v2166 = vld [vmem:[%s398 + $0x1d1] sm:$0xff]
      %v2167 = vld [vmem:[%s398 + $0x1e9] sm:$0xff]
      %v2168 = vld [vmem:[%s398 + $0x1f1] sm:$0xff]
      %v2169 = vpack.c.bf16 %v2138, %v2137
      %v2170 = vpack.c.bf16 %v2140, %v2139
      %v2171 = vpack.c.bf16 %v2142, %v2141
      %v2172 = vpack.c.bf16 %v2144, %v2143
      %v2173 = vpack.c.bf16 %v2146, %v2145
      %v2174 = vpack.c.bf16 %v2148, %v2147
      %v2175 = vpack.c.bf16 %v2150, %v2149
      %v2176 = vpack.c.bf16 %v2152, %v2151
      %v2177 = vpack.c.bf16 %v2154, %v2153
      %v2178 = vpack.c.bf16 %v2156, %v2155
      %v2179 = vpack.c.bf16 %v2158, %v2157
      %v2180 = vpack.c.bf16 %v2160, %v2159
      %v2181 = vpack.c.bf16 %v2162, %v2161
      %v2182 = vpack.c.bf16 %v2164, %v2163
      %v2183 = vpack.c.bf16 %v2166, %v2165
      %v2184 = vpack.c.bf16 %v2168, %v2167
      %v2185 = vld [vmem:[%s802 + $0x7] sm:$0xff]
      %v2186 = vld [vmem:[%s802 + $0xf] sm:$0xff]
      %v2187 = vld [vmem:[%s802 + $0x27] sm:$0xff]
      %v2188 = vld [vmem:[%s802 + $0x2f] sm:$0xff]
      %v2189 = vld [vmem:[%s802 + $0x47] sm:$0xff]
      %v2190 = vld [vmem:[%s802 + $0x4f] sm:$0xff]
      %v2191 = vld [vmem:[%s802 + $0x67] sm:$0xff]
      %v2192 = vld [vmem:[%s802 + $0x6f] sm:$0xff]
      %v2193 = vld [vmem:[%s802 + $0x87] sm:$0xff]
      %v2194 = vld [vmem:[%s802 + $0x8f] sm:$0xff]
      %v2195 = vld [vmem:[%s802 + $0xa7] sm:$0xff]
      %v2196 = vld [vmem:[%s802 + $0xaf] sm:$0xff]
      %v2197 = vld [vmem:[%s802 + $0xc7] sm:$0xff]
      %v2198 = vld [vmem:[%s802 + $0xcf] sm:$0xff]
      %v2199 = vld [vmem:[%s802 + $0xe7] sm:$0xff]
      %v2200 = vld [vmem:[%s802 + $0xef] sm:$0xff]
      %v2201 = vld [vmem:[%s802 + $0x107] sm:$0xff]
      %v2202 = vld [vmem:[%s802 + $0x10f] sm:$0xff]
      %v2203 = vld [vmem:[%s802 + $0x127] sm:$0xff]
      %v2204 = vld [vmem:[%s802 + $0x12f] sm:$0xff]
      %v2205 = vld [vmem:[%s802 + $0x147] sm:$0xff]
      %v2206 = vld [vmem:[%s802 + $0x14f] sm:$0xff]
      %v2207 = vld [vmem:[%s802 + $0x167] sm:$0xff]
      %v2208 = vld [vmem:[%s802 + $0x16f] sm:$0xff]
      %v2209 = vld [vmem:[%s802 + $0x187] sm:$0xff]
      %v2210 = vld [vmem:[%s802 + $0x18f] sm:$0xff]
      %v2211 = vld [vmem:[%s802 + $0x1a7] sm:$0xff]
      %v2212 = vld [vmem:[%s802 + $0x1af] sm:$0xff]
      %v2213 = vld [vmem:[%s802 + $0x1c7] sm:$0xff]
      %v2214 = vld [vmem:[%s802 + $0x1cf] sm:$0xff]
      %v2215 = vld [vmem:[%s802 + $0x1e7] sm:$0xff]
      %v2216 = vld [vmem:[%s802 + $0x1ef] sm:$0xff]
      %v2217 = vpack.c.bf16 %v2186, %v2185
      %v2218 = vpack.c.bf16 %v2188, %v2187
      %v2219 = vpack.c.bf16 %v2190, %v2189
      %v2220 = vpack.c.bf16 %v2192, %v2191
      %v2221 = vpack.c.bf16 %v2194, %v2193
      %v2222 = vpack.c.bf16 %v2196, %v2195
      %v2223 = vpack.c.bf16 %v2198, %v2197
      %v2224 = vpack.c.bf16 %v2200, %v2199
      %v2225 = vpack.c.bf16 %v2202, %v2201
      %v2226 = vpack.c.bf16 %v2204, %v2203
      %v2227 = vpack.c.bf16 %v2206, %v2205
      %v2228 = vpack.c.bf16 %v2208, %v2207
      %v2229 = vpack.c.bf16 %v2210, %v2209
      %v2230 = vpack.c.bf16 %v2212, %v2211
      %v2231 = vpack.c.bf16 %v2214, %v2213
      %v2232 = vpack.c.bf16 %v2216, %v2215
      %v2233 = vld [vmem:[%s802 + $0x8] sm:$0xff]
      %v2234 = vld [vmem:[%s802 + $0x10] sm:$0xff]
      %v2235 = vld [vmem:[%s802 + $0x28] sm:$0xff]
      %v2236 = vld [vmem:[%s802 + $0x30] sm:$0xff]
      %v2237 = vld [vmem:[%s802 + $0x48] sm:$0xff]
      %v2238 = vld [vmem:[%s802 + $0x50] sm:$0xff]
      %v2239 = vld [vmem:[%s802 + $0x68] sm:$0xff]
      %v2240 = vld [vmem:[%s802 + $0x70] sm:$0xff]
      %v2241 = vld [vmem:[%s802 + $0x88] sm:$0xff]
      %v2242 = vld [vmem:[%s802 + $0x90] sm:$0xff]
      %v2243 = vld [vmem:[%s802 + $0xa8] sm:$0xff]
      %v2244 = vld [vmem:[%s802 + $0xb0] sm:$0xff]
      %v2245 = vld [vmem:[%s802 + $0xc8] sm:$0xff]
      %v2246 = vld [vmem:[%s802 + $0xd0] sm:$0xff]
      %v2247 = vld [vmem:[%s802 + $0xe8] sm:$0xff]
      %v2248 = vld [vmem:[%s802 + $0xf0] sm:$0xff]
      %v2249 = vld [vmem:[%s802 + $0x108] sm:$0xff]
      %v2250 = vld [vmem:[%s802 + $0x110] sm:$0xff]
      %v2251 = vld [vmem:[%s802 + $0x128] sm:$0xff]
      %v2252 = vld [vmem:[%s802 + $0x130] sm:$0xff]
      %v2253 = vld [vmem:[%s802 + $0x148] sm:$0xff]
      %v2254 = vld [vmem:[%s802 + $0x150] sm:$0xff]
      %v2255 = vld [vmem:[%s802 + $0x168] sm:$0xff]
      %v2256 = vld [vmem:[%s802 + $0x170] sm:$0xff]
      %v2257 = vld [vmem:[%s802 + $0x188] sm:$0xff]
      %v2258 = vld [vmem:[%s802 + $0x190] sm:$0xff]
      %v2259 = vld [vmem:[%s802 + $0x1a8] sm:$0xff]
      %v2260 = vld [vmem:[%s802 + $0x1b0] sm:$0xff]
      %v2261 = vld [vmem:[%s802 + $0x1c8] sm:$0xff]
      %v2262 = vld [vmem:[%s802 + $0x1d0] sm:$0xff]
      %v2263 = vld [vmem:[%s802 + $0x1e8] sm:$0xff]
      %v2264 = vld [vmem:[%s802 + $0x1f0] sm:$0xff]
      %v2265 = vpack.c.bf16 %v2234, %v2233
      %v2266 = vpack.c.bf16 %v2236, %v2235
      %v2267 = vpack.c.bf16 %v2238, %v2237
      %v2268 = vpack.c.bf16 %v2240, %v2239
      %v2269 = vpack.c.bf16 %v2242, %v2241
      %v2270 = vpack.c.bf16 %v2244, %v2243
      %v2271 = vpack.c.bf16 %v2246, %v2245
      %v2272 = vpack.c.bf16 %v2248, %v2247
      %v2273 = vpack.c.bf16 %v2250, %v2249
      %v2274 = vpack.c.bf16 %v2252, %v2251
      %v2275 = vpack.c.bf16 %v2254, %v2253
      %v2276 = vpack.c.bf16 %v2256, %v2255
      %v2277 = vpack.c.bf16 %v2258, %v2257
      %v2278 = vpack.c.bf16 %v2260, %v2259
      %v2279 = vpack.c.bf16 %v2262, %v2261
      %v2280 = vpack.c.bf16 %v2264, %v2263
      %v2281 = vld [vmem:[%s802 + $0x9] sm:$0xff]
      %v2282 = vld [vmem:[%s802 + $0x11] sm:$0xff]
      %v2283 = vld [vmem:[%s802 + $0x29] sm:$0xff]
      %v2284 = vld [vmem:[%s802 + $0x31] sm:$0xff]
      %v2285 = vld [vmem:[%s802 + $0x49] sm:$0xff]
      %v2286 = vld [vmem:[%s802 + $0x51] sm:$0xff]
      %v2287 = vld [vmem:[%s802 + $0x69] sm:$0xff]
      %v2288 = vld [vmem:[%s802 + $0x71] sm:$0xff]
      %v2289 = vld [vmem:[%s802 + $0x89] sm:$0xff]
      %v2290 = vld [vmem:[%s802 + $0x91] sm:$0xff]
      %v2291 = vld [vmem:[%s802 + $0xa9] sm:$0xff]
      %v2292 = vld [vmem:[%s802 + $0xb1] sm:$0xff]
      %v2293 = vld [vmem:[%s802 + $0xc9] sm:$0xff]
      %v2294 = vld [vmem:[%s802 + $0xd1] sm:$0xff]
      %v2295 = vld [vmem:[%s802 + $0xe9] sm:$0xff]
      %v2296 = vld [vmem:[%s802 + $0xf1] sm:$0xff]
      %v2297 = vld [vmem:[%s802 + $0x109] sm:$0xff]
      %v2298 = vld [vmem:[%s802 + $0x111] sm:$0xff]
      %v2299 = vld [vmem:[%s802 + $0x129] sm:$0xff]
      %v2300 = vld [vmem:[%s802 + $0x131] sm:$0xff]
      %v2301 = vld [vmem:[%s802 + $0x149] sm:$0xff]
      %v2302 = vld [vmem:[%s802 + $0x151] sm:$0xff]
      %v2303 = vld [vmem:[%s802 + $0x169] sm:$0xff]
      %v2304 = vld [vmem:[%s802 + $0x171] sm:$0xff]
      %v2305 = vld [vmem:[%s802 + $0x189] sm:$0xff]
      %v2306 = vld [vmem:[%s802 + $0x191] sm:$0xff]
      %v2307 = vld [vmem:[%s802 + $0x1a9] sm:$0xff]
      %v2308 = vld [vmem:[%s802 + $0x1b1] sm:$0xff]
      %v2309 = vld [vmem:[%s802 + $0x1c9] sm:$0xff]
      %v2310 = vld [vmem:[%s802 + $0x1d1] sm:$0xff]
      %v2311 = vld [vmem:[%s802 + $0x1e9] sm:$0xff]
      %v2312 = vld [vmem:[%s802 + $0x1f1] sm:$0xff]
      %v2313 = vpack.c.bf16 %v2282, %v2281
      %v2314 = vpack.c.bf16 %v2284, %v2283
      %v2315 = vpack.c.bf16 %v2286, %v2285
      %v2316 = vpack.c.bf16 %v2288, %v2287
      %v2317 = vpack.c.bf16 %v2290, %v2289
      %v2318 = vpack.c.bf16 %v2292, %v2291
      %v2319 = vpack.c.bf16 %v2294, %v2293
      %v2320 = vpack.c.bf16 %v2296, %v2295
      %v2321 = vpack.c.bf16 %v2298, %v2297
      %v2322 = vpack.c.bf16 %v2300, %v2299
      %v2323 = vpack.c.bf16 %v2302, %v2301
      %v2324 = vpack.c.bf16 %v2304, %v2303
      %v2325 = vpack.c.bf16 %v2306, %v2305
      %v2326 = vpack.c.bf16 %v2308, %v2307
      %v2327 = vpack.c.bf16 %v2310, %v2309
      %v2328 = vpack.c.bf16 %v2312, %v2311
      %2345 = vrot.lane.b32.xlu0 %v1977, 16
      %v2346 = vpop.permute.xlu0 %2345
      %2347 = vrot.lane.b32.xlu0 %v1978, 16
      %v2348 = vpop.permute.xlu0 %2347
      %2349 = vrot.lane.b32.xlu0 %v1979, 16
      %v2350 = vpop.permute.xlu0 %2349
      %2351 = vrot.lane.b32.xlu0 %v1980, 16
      %v2352 = vpop.permute.xlu0 %2351
      %2353 = vrot.lane.b32.xlu0 %v1981, 16
      %v2354 = vpop.permute.xlu0 %2353
      %2355 = vrot.lane.b32.xlu0 %v1982, 16
      %v2356 = vpop.permute.xlu0 %2355
      %2357 = vrot.lane.b32.xlu0 %v1983, 16
      %v2358 = vpop.permute.xlu0 %2357
      %2359 = vrot.lane.b32.xlu0 %v1984, 16
      %v2360 = vpop.permute.xlu0 %2359
      %2361 = vrot.lane.b32.xlu0 %v1985, 16
      %v2362 = vpop.permute.xlu0 %2361
      %2363 = vrot.lane.b32.xlu0 %v1986, 16
      %v2364 = vpop.permute.xlu0 %2363
      %2365 = vrot.lane.b32.xlu0 %v1987, 16
      %v2366 = vpop.permute.xlu0 %2365
      %2367 = vrot.lane.b32.xlu0 %v1988, 16
      %v2368 = vpop.permute.xlu0 %2367
      %2369 = vrot.lane.b32.xlu0 %v1989, 16
      %v2370 = vpop.permute.xlu0 %2369
      %2371 = vrot.lane.b32.xlu0 %v1990, 16
      %v2372 = vpop.permute.xlu0 %2371
      %2373 = vrot.lane.b32.xlu0 %v1991, 16
      %v2374 = vpop.permute.xlu0 %2373
      %2375 = vrot.lane.b32.xlu0 %v1992, 16
      %v2376 = vpop.permute.xlu0 %2375
      %2393 = vrot.lane.b32.xlu0 %v2025, 32
      %v2394 = vpop.permute.xlu0 %2393
      %2395 = vrot.lane.b32.xlu0 %v2026, 32
      %v2396 = vpop.permute.xlu0 %2395
      %2397 = vrot.lane.b32.xlu0 %v2027, 32
      %v2398 = vpop.permute.xlu0 %2397
      %2399 = vrot.lane.b32.xlu0 %v2028, 32
      %v2400 = vpop.permute.xlu0 %2399
      %2401 = vrot.lane.b32.xlu0 %v2029, 32
      %v2402 = vpop.permute.xlu0 %2401
      %2403 = vrot.lane.b32.xlu0 %v2030, 32
      %v2404 = vpop.permute.xlu0 %2403
      %2405 = vrot.lane.b32.xlu0 %v2031, 32
      %v2406 = vpop.permute.xlu0 %2405
      %2407 = vrot.lane.b32.xlu0 %v2032, 32
      %v2408 = vpop.permute.xlu0 %2407
      %2409 = vrot.lane.b32.xlu0 %v2033, 32
      %v2410 = vpop.permute.xlu0 %2409
      %2411 = vrot.lane.b32.xlu0 %v2034, 32
      %v2412 = vpop.permute.xlu0 %2411
      %2413 = vrot.lane.b32.xlu0 %v2035, 32
      %v2414 = vpop.permute.xlu0 %2413
      %2415 = vrot.lane.b32.xlu0 %v2036, 32
      %v2416 = vpop.permute.xlu0 %2415
      %2417 = vrot.lane.b32.xlu0 %v2037, 32
      %v2418 = vpop.permute.xlu0 %2417
      %2419 = vrot.lane.b32.xlu0 %v2038, 32
      %v2420 = vpop.permute.xlu0 %2419
      %2421 = vrot.lane.b32.xlu0 %v2039, 32
      %v2422 = vpop.permute.xlu0 %2421
      %2423 = vrot.lane.b32.xlu0 %v2040, 32
      %v2424 = vpop.permute.xlu0 %2423
      %2441 = vrot.lane.b32.xlu0 %v2073, 48
      %v2442 = vpop.permute.xlu0 %2441
      %2443 = vrot.lane.b32.xlu0 %v2074, 48
      %v2444 = vpop.permute.xlu0 %2443
      %2445 = vrot.lane.b32.xlu0 %v2075, 48
      %v2446 = vpop.permute.xlu0 %2445
      %2447 = vrot.lane.b32.xlu0 %v2076, 48
      %v2448 = vpop.permute.xlu0 %2447
      %2449 = vrot.lane.b32.xlu0 %v2077, 48
      %v2450 = vpop.permute.xlu0 %2449
      %2451 = vrot.lane.b32.xlu0 %v2078, 48
      %v2452 = vpop.permute.xlu0 %2451
      %2453 = vrot.lane.b32.xlu0 %v2079, 48
      %v2454 = vpop.permute.xlu0 %2453
      %2455 = vrot.lane.b32.xlu0 %v2080, 48
      %v2456 = vpop.permute.xlu0 %2455
      %2457 = vrot.lane.b32.xlu0 %v2081, 48
      %v2458 = vpop.permute.xlu0 %2457
      %2459 = vrot.lane.b32.xlu0 %v2082, 48
      %v2460 = vpop.permute.xlu0 %2459
      %2461 = vrot.lane.b32.xlu0 %v2083, 48
      %v2462 = vpop.permute.xlu0 %2461
      %2463 = vrot.lane.b32.xlu0 %v2084, 48
      %v2464 = vpop.permute.xlu0 %2463
      %2465 = vrot.lane.b32.xlu0 %v2085, 48
      %v2466 = vpop.permute.xlu0 %2465
      %2467 = vrot.lane.b32.xlu0 %v2086, 48
      %v2468 = vpop.permute.xlu0 %2467
      %2469 = vrot.lane.b32.xlu0 %v2087, 48
      %v2470 = vpop.permute.xlu0 %2469
      %2471 = vrot.lane.b32.xlu0 %v2088, 48
      %v2472 = vpop.permute.xlu0 %2471
      %2489 = vrot.lane.b32.xlu0 %v2121, 64
      %v2490 = vpop.permute.xlu0 %2489
      %2491 = vrot.lane.b32.xlu0 %v2122, 64
      %v2492 = vpop.permute.xlu0 %2491
      %2493 = vrot.lane.b32.xlu0 %v2123, 64
      %v2494 = vpop.permute.xlu0 %2493
      %2495 = vrot.lane.b32.xlu0 %v2124, 64
      %v2496 = vpop.permute.xlu0 %2495
      %2497 = vrot.lane.b32.xlu0 %v2125, 64
      %v2498 = vpop.permute.xlu0 %2497
      %2499 = vrot.lane.b32.xlu0 %v2126, 64
      %v2500 = vpop.permute.xlu0 %2499
      %2501 = vrot.lane.b32.xlu0 %v2127, 64
      %v2502 = vpop.permute.xlu0 %2501
      %2503 = vrot.lane.b32.xlu0 %v2128, 64
      %v2504 = vpop.permute.xlu0 %2503
      %2505 = vrot.lane.b32.xlu0 %v2129, 64
      %v2506 = vpop.permute.xlu0 %2505
      %2507 = vrot.lane.b32.xlu0 %v2130, 64
      %v2508 = vpop.permute.xlu0 %2507
      %2509 = vrot.lane.b32.xlu0 %v2131, 64
      %v2510 = vpop.permute.xlu0 %2509
      %2511 = vrot.lane.b32.xlu0 %v2132, 64
      %v2512 = vpop.permute.xlu0 %2511
      %2513 = vrot.lane.b32.xlu0 %v2133, 64
      %v2514 = vpop.permute.xlu0 %2513
      %2515 = vrot.lane.b32.xlu0 %v2134, 64
      %v2516 = vpop.permute.xlu0 %2515
      %2517 = vrot.lane.b32.xlu0 %v2135, 64
      %v2518 = vpop.permute.xlu0 %2517
      %2519 = vrot.lane.b32.xlu0 %v2136, 64
      %v2520 = vpop.permute.xlu0 %2519
      %2537 = vrot.lane.b32.xlu0 %v2169, 80
      %v2538 = vpop.permute.xlu0 %2537
      %2539 = vrot.lane.b32.xlu0 %v2170, 80
      %v2540 = vpop.permute.xlu0 %2539
      %2541 = vrot.lane.b32.xlu0 %v2171, 80
      %v2542 = vpop.permute.xlu0 %2541
      %2543 = vrot.lane.b32.xlu0 %v2172, 80
      %v2544 = vpop.permute.xlu0 %2543
      %2545 = vrot.lane.b32.xlu0 %v2173, 80
      %v2546 = vpop.permute.xlu0 %2545
      %2547 = vrot.lane.b32.xlu0 %v2174, 80
      %v2548 = vpop.permute.xlu0 %2547
      %2549 = vrot.lane.b32.xlu0 %v2175, 80
      %v2550 = vpop.permute.xlu0 %2549
      %2551 = vrot.lane.b32.xlu0 %v2176, 80
      %v2552 = vpop.permute.xlu0 %2551
      %2553 = vrot.lane.b32.xlu0 %v2177, 80
      %v2554 = vpop.permute.xlu0 %2553
      %2555 = vrot.lane.b32.xlu0 %v2178, 80
      %v2556 = vpop.permute.xlu0 %2555
      %2557 = vrot.lane.b32.xlu0 %v2179, 80
      %v2558 = vpop.permute.xlu0 %2557
      %2559 = vrot.lane.b32.xlu0 %v2180, 80
      %v2560 = vpop.permute.xlu0 %2559
      %2561 = vrot.lane.b32.xlu0 %v2181, 80
      %v2562 = vpop.permute.xlu0 %2561
      %2563 = vrot.lane.b32.xlu0 %v2182, 80
      %v2564 = vpop.permute.xlu0 %2563
      %2565 = vrot.lane.b32.xlu0 %v2183, 80
      %v2566 = vpop.permute.xlu0 %2565
      %2567 = vrot.lane.b32.xlu0 %v2184, 80
      %v2568 = vpop.permute.xlu0 %2567
      %2585 = vrot.lane.b32.xlu0 %v2217, 96
      %v2586 = vpop.permute.xlu0 %2585
      %2587 = vrot.lane.b32.xlu0 %v2218, 96
      %v2588 = vpop.permute.xlu0 %2587
      %2589 = vrot.lane.b32.xlu0 %v2219, 96
      %v2590 = vpop.permute.xlu0 %2589
      %2591 = vrot.lane.b32.xlu0 %v2220, 96
      %v2592 = vpop.permute.xlu0 %2591
      %2593 = vrot.lane.b32.xlu0 %v2221, 96
      %v2594 = vpop.permute.xlu0 %2593
      %2595 = vrot.lane.b32.xlu0 %v2222, 96
      %v2596 = vpop.permute.xlu0 %2595
      %2597 = vrot.lane.b32.xlu0 %v2223, 96
      %v2598 = vpop.permute.xlu0 %2597
      %2599 = vrot.lane.b32.xlu0 %v2224, 96
      %v2600 = vpop.permute.xlu0 %2599
      %2601 = vrot.lane.b32.xlu0 %v2225, 96
      %v2602 = vpop.permute.xlu0 %2601
      %2603 = vrot.lane.b32.xlu0 %v2226, 96
      %v2604 = vpop.permute.xlu0 %2603
      %2605 = vrot.lane.b32.xlu0 %v2227, 96
      %v2606 = vpop.permute.xlu0 %2605
      %2607 = vrot.lane.b32.xlu0 %v2228, 96
      %v2608 = vpop.permute.xlu0 %2607
      %2609 = vrot.lane.b32.xlu0 %v2229, 96
      %v2610 = vpop.permute.xlu0 %2609
      %2611 = vrot.lane.b32.xlu0 %v2230, 96
      %v2612 = vpop.permute.xlu0 %2611
      %2613 = vrot.lane.b32.xlu0 %v2231, 96
      %v2614 = vpop.permute.xlu0 %2613
      %2615 = vrot.lane.b32.xlu0 %v2232, 96
      %v2616 = vpop.permute.xlu0 %2615
      %2633 = vrot.lane.b32.xlu0 %v2265, 112
      %v2634 = vpop.permute.xlu0 %2633
      %2635 = vrot.lane.b32.xlu0 %v2266, 112
      %v2636 = vpop.permute.xlu0 %2635
      %2637 = vrot.lane.b32.xlu0 %v2267, 112
      %v2638 = vpop.permute.xlu0 %2637
      %2639 = vrot.lane.b32.xlu0 %v2268, 112
      %v2640 = vpop.permute.xlu0 %2639
      %2641 = vrot.lane.b32.xlu0 %v2269, 112
      %v2642 = vpop.permute.xlu0 %2641
      %2643 = vrot.lane.b32.xlu0 %v2270, 112
      %v2644 = vpop.permute.xlu0 %2643
      %2645 = vrot.lane.b32.xlu0 %v2271, 112
      %v2646 = vpop.permute.xlu0 %2645
      %2647 = vrot.lane.b32.xlu0 %v2272, 112
      %v2648 = vpop.permute.xlu0 %2647
      %2649 = vrot.lane.b32.xlu0 %v2273, 112
      %v2650 = vpop.permute.xlu0 %2649
      %2651 = vrot.lane.b32.xlu0 %v2274, 112
      %v2652 = vpop.permute.xlu0 %2651
      %2653 = vrot.lane.b32.xlu0 %v2275, 112
      %v2654 = vpop.permute.xlu0 %2653
      %2655 = vrot.lane.b32.xlu0 %v2276, 112
      %v2656 = vpop.permute.xlu0 %2655
      %2657 = vrot.lane.b32.xlu0 %v2277, 112
      %v2658 = vpop.permute.xlu0 %2657
      %2659 = vrot.lane.b32.xlu0 %v2278, 112
      %v2660 = vpop.permute.xlu0 %2659
      %2661 = vrot.lane.b32.xlu0 %v2279, 112
      %v2662 = vpop.permute.xlu0 %2661
      %2663 = vrot.lane.b32.xlu0 %v2280, 112
      %v2664 = vpop.permute.xlu0 %2663
      %v2667 = vsel %vm388, %v1929, %v2346
      %v2670 = vsel %vm388, %v1930, %v2348
      %v2673 = vsel %vm388, %v1931, %v2350
      %v2676 = vsel %vm388, %v1932, %v2352
      %v2679 = vsel %vm388, %v1933, %v2354
      %v2682 = vsel %vm388, %v1934, %v2356
      %v2685 = vsel %vm388, %v1935, %v2358
      %v2688 = vsel %vm388, %v1936, %v2360
      %v2691 = vsel %vm388, %v1937, %v2362
      %v2694 = vsel %vm388, %v1938, %v2364
      %v2697 = vsel %vm388, %v1939, %v2366
      %v2700 = vsel %vm388, %v1940, %v2368
      %v2703 = vsel %vm388, %v1941, %v2370
      %v2706 = vsel %vm388, %v1942, %v2372
      %v2709 = vsel %vm388, %v1943, %v2374
      %v2712 = vsel %vm388, %v1944, %v2376
      %v2714 = vsel %vm1331, %v2667, %v2394
      %v2716 = vsel %vm1331, %v2670, %v2396
      %v2718 = vsel %vm1331, %v2673, %v2398
      %v2720 = vsel %vm1331, %v2676, %v2400
      %v2722 = vsel %vm1331, %v2679, %v2402
      %v2724 = vsel %vm1331, %v2682, %v2404
      %v2726 = vsel %vm1331, %v2685, %v2406
      %v2728 = vsel %vm1331, %v2688, %v2408
      %v2730 = vsel %vm1331, %v2691, %v2410
      %v2732 = vsel %vm1331, %v2694, %v2412
      %v2734 = vsel %vm1331, %v2697, %v2414
      %v2736 = vsel %vm1331, %v2700, %v2416
      %v2738 = vsel %vm1331, %v2703, %v2418
      %v2740 = vsel %vm1331, %v2706, %v2420
      %v2742 = vsel %vm1331, %v2709, %v2422
      %v2744 = vsel %vm1331, %v2712, %v2424
      %v2746 = vsel %vm1364, %v2714, %v2442
      %v2748 = vsel %vm1364, %v2716, %v2444
      %v2750 = vsel %vm1364, %v2718, %v2446
      %v2752 = vsel %vm1364, %v2720, %v2448
      %v2754 = vsel %vm1364, %v2722, %v2450
      %v2756 = vsel %vm1364, %v2724, %v2452
      %v2758 = vsel %vm1364, %v2726, %v2454
      %v2760 = vsel %vm1364, %v2728, %v2456
      %v2762 = vsel %vm1364, %v2730, %v2458
      %v2764 = vsel %vm1364, %v2732, %v2460
      %v2766 = vsel %vm1364, %v2734, %v2462
      %v2768 = vsel %vm1364, %v2736, %v2464
      %v2770 = vsel %vm1364, %v2738, %v2466
      %v2772 = vsel %vm1364, %v2740, %v2468
      %v2774 = vsel %vm1364, %v2742, %v2470
      %v2776 = vsel %vm1364, %v2744, %v2472
      %v2778 = vsel %vm1397, %v2746, %v2490
      %v2780 = vsel %vm1397, %v2748, %v2492
      %v2782 = vsel %vm1397, %v2750, %v2494
      %v2784 = vsel %vm1397, %v2752, %v2496
      %v2786 = vsel %vm1397, %v2754, %v2498
      %v2788 = vsel %vm1397, %v2756, %v2500
      %v2790 = vsel %vm1397, %v2758, %v2502
      %v2792 = vsel %vm1397, %v2760, %v2504
      %v2794 = vsel %vm1397, %v2762, %v2506
      %v2796 = vsel %vm1397, %v2764, %v2508
      %v2798 = vsel %vm1397, %v2766, %v2510
      %v2800 = vsel %vm1397, %v2768, %v2512
      %v2802 = vsel %vm1397, %v2770, %v2514
      %v2804 = vsel %vm1397, %v2772, %v2516
      %v2806 = vsel %vm1397, %v2774, %v2518
      %v2808 = vsel %vm1397, %v2776, %v2520
      %v2810 = vsel %vm1430, %v2778, %v2538
      %v2812 = vsel %vm1430, %v2780, %v2540
      %v2814 = vsel %vm1430, %v2782, %v2542
      %v2816 = vsel %vm1430, %v2784, %v2544
      %v2818 = vsel %vm1430, %v2786, %v2546
      %v2820 = vsel %vm1430, %v2788, %v2548
      %v2822 = vsel %vm1430, %v2790, %v2550
      %v2824 = vsel %vm1430, %v2792, %v2552
      %v2826 = vsel %vm1430, %v2794, %v2554
      %v2828 = vsel %vm1430, %v2796, %v2556
      %v2830 = vsel %vm1430, %v2798, %v2558
      %v2832 = vsel %vm1430, %v2800, %v2560
      %v2834 = vsel %vm1430, %v2802, %v2562
      %v2836 = vsel %vm1430, %v2804, %v2564
      %v2838 = vsel %vm1430, %v2806, %v2566
      %v2840 = vsel %vm1430, %v2808, %v2568
      %v2842 = vsel %vm1463, %v2810, %v2586
      %v2844 = vsel %vm1463, %v2812, %v2588
      %v2846 = vsel %vm1463, %v2814, %v2590
      %v2848 = vsel %vm1463, %v2816, %v2592
      %v2850 = vsel %vm1463, %v2818, %v2594
      %v2852 = vsel %vm1463, %v2820, %v2596
      %v2854 = vsel %vm1463, %v2822, %v2598
      %v2856 = vsel %vm1463, %v2824, %v2600
      %v2858 = vsel %vm1463, %v2826, %v2602
      %v2860 = vsel %vm1463, %v2828, %v2604
      %v2862 = vsel %vm1463, %v2830, %v2606
      %v2864 = vsel %vm1463, %v2832, %v2608
      %v2866 = vsel %vm1463, %v2834, %v2610
      %v2868 = vsel %vm1463, %v2836, %v2612
      %v2870 = vsel %vm1463, %v2838, %v2614
      %v2872 = vsel %vm1463, %v2840, %v2616
      %v2874 = vsel %vm1496, %v2842, %v2634
      %v2877 = vsel %vm1496, %v2844, %v2636
      %v2880 = vsel %vm1496, %v2846, %v2638
      %v2883 = vsel %vm1496, %v2848, %v2640
      %v2886 = vsel %vm1496, %v2850, %v2642
      %v2889 = vsel %vm1496, %v2852, %v2644
      %v2892 = vsel %vm1496, %v2854, %v2646
      %v2895 = vsel %vm1496, %v2856, %v2648
      %v2898 = vsel %vm1496, %v2858, %v2650
      %v2901 = vsel %vm1496, %v2860, %v2652
      %v2904 = vsel %vm1496, %v2862, %v2654
      %v2907 = vsel %vm1496, %v2864, %v2656
      %v2910 = vsel %vm1496, %v2866, %v2658
      %v2913 = vsel %vm1496, %v2868, %v2660
      %v2916 = vsel %vm1496, %v2870, %v2662
      %v2919 = vsel %vm1496, %v2872, %v2664
      %v2922 = vlaneseq
      %v2923 = vshrl.u32 %v2922, 7
      %v2924 = vsub.s32 0, %v2923
      %v2925 = vrot.slane %v1896, %v2924
      %v2945 = vunpack.c.l.b16 %v1878
      %v2946 = vunpack.c.l.b16 %v1879
      %v2947 = vunpack.c.l.b16 %v1880
      %v2948 = vunpack.c.l.b16 %v1881
      %v2949 = vunpack.c.l.b16 %v1882
      %v2950 = vunpack.c.l.b16 %v1883
      %v2951 = vunpack.c.l.b16 %v1884
      %v2952 = vunpack.c.l.b16 %v1885
      %v2953 = vunpack.c.l.b16 %v1886
      %v2954 = vunpack.c.l.b16 %v1887
      %v2955 = vunpack.c.l.b16 %v1888
      %v2956 = vunpack.c.l.b16 %v1889
      %v2957 = vunpack.c.l.b16 %v1890
      %v2958 = vunpack.c.l.b16 %v1891
      %v2959 = vunpack.c.l.b16 %v1892
      %v2960 = vunpack.c.l.b16 %v1893
      %v2961 = vunpack.c.l.b16 %v1894
      %v2962 = vunpack.c.l.b16 %v1895
      %v2963 = vpack.c.b16 %v2946, %v2945
      %v2964 = vpack.c.b16 %v2948, %v2947
      %v2965 = vpack.c.b16 %v2950, %v2949
      %v2966 = vpack.c.b16 %v2952, %v2951
      %v2967 = vpack.c.b16 %v2954, %v2953
      %v2968 = vpack.c.b16 %v2956, %v2955
      %v2969 = vpack.c.b16 %v2958, %v2957
      %v2970 = vpack.c.b16 %v2960, %v2959
      %v2971 = vpack.c.b16 %v2962, %v2961
      %v2982 = vsel %vm388, %v2313, 0
      %v2985 = vsel %vm388, %v2314, 0
      %v2988 = vsel %vm388, %v2315, 0
      %v2991 = vsel %vm388, %v2316, 0
      %v2994 = vsel %vm388, %v2317, 0
      %v2997 = vsel %vm388, %v2318, 0
      %v3000 = vsel %vm388, %v2319, 0
      %v3003 = vsel %vm388, %v2320, 0
      %v3006 = vsel %vm388, %v2321, 0
      %v3009 = vsel %vm388, %v2322, 0
      %v3012 = vsel %vm388, %v2323, 0
      %v3015 = vsel %vm388, %v2324, 0
      %v3018 = vsel %vm388, %v2325, 0
      %v3021 = vsel %vm388, %v2326, 0
      %v3024 = vsel %vm388, %v2327, 0
      %v3027 = vsel %vm388, %v2328, 0
      %3029 = vmatprep.subr.bf16.mxu0 0
      %3030 = vmatpush1.bf16.msra.mxu0 %v2963
      %3031 = vmatprep.subr.bf16.mxu0 0
      %3032 = vmatpush1.bf16.msra.mxu0 %v2964
      %3033 = vmatprep.subr.bf16.mxu0 0
      %3034 = vmatpush1.bf16.msra.mxu0 %v2965
      %3035 = vmatprep.subr.bf16.mxu0 0
      %3036 = vmatpush1.bf16.msra.mxu0 %v2966
      %3037 = vmatprep.subr.bf16.mxu0 0
      %3038 = vmatpush1.bf16.msra.mxu0 %v2967
      %3039 = vmatprep.subr.bf16.mxu0 0
      %3040 = vmatpush1.bf16.msra.mxu0 %v2968
      %3041 = vmatprep.subr.bf16.mxu0 0
      %3042 = vmatpush1.bf16.msra.mxu0 %v2969
      %3043 = vmatprep.subr.bf16.mxu0 0
      %3044 = vmatpush1.bf16.msra.mxu0 %v2970
      %3045 = vmatprep.subr.bf16.mxu0 0
      %3046 = vmatpush1.bf16.msra.mxu0 %v2971
      %3047 = vmatprep.subr.bf16.mxu0 0
      %3048 = vmatpush1.bf16.msra.mxu0 0
      %3049 = vmatprep.subr.bf16.mxu0 0
      %3050 = vmatpush1.bf16.msra.mxu0 0
      %3051 = vmatprep.subr.bf16.mxu0 0
      %3052 = vmatpush1.bf16.msra.mxu0 0
      %3053 = vmatprep.subr.bf16.mxu0 0
      %3054 = vmatpush1.bf16.msra.mxu0 0
      %3055 = vmatprep.subr.bf16.mxu0 0
      %3056 = vmatpush1.bf16.msra.mxu0 0
      %3057 = vmatprep.subr.bf16.mxu0 0
      %3058 = vmatpush1.bf16.msra.mxu0 0
      %3059 = vmatprep.subr.bf16.mxu0 0
      %3060 = vmatpush1.bf16.msra.mxu0 0
      %3061 = vmatprep.mubr.bf16.mxu0 %v2982
      %3062 = vmatmul.mubr.bf16.gmra.mrb[0].mxu0 %v2874
      %v3063 = vpop.f32.mrb[0].mxu0
      %v3064 = vadd.f32 %v2925, %v3063
      %v3065 = vpop.f32.mrb[0].mxu0
      %v3066 = vpop.f32.mrb[0].mxu0
      %v3067 = vadd.f32 %v2925, %v3066
      %v3068 = vpop.f32.mrb[0].mxu0
      %3069 = vmatprep.mubr.bf16.mxu0 %v2985
      %3070 = vmatmul.mubr.bf16.gmra.mrb[0].mxu0 %v2877
      %v3071 = vpop.f32.mrb[0].mxu0
      %v3072 = vadd.f32 %v2925, %v3071
      %v3073 = vpop.f32.mrb[0].mxu0
      %v3074 = vpop.f32.mrb[0].mxu0
      %v3075 = vadd.f32 %v2925, %v3074
      %v3076 = vpop.f32.mrb[0].mxu0
      %3077 = vmatprep.mubr.bf16.mxu0 %v2988
      %3078 = vmatmul.mubr.bf16.gmra.mrb[0].mxu0 %v2880
      %v3079 = vpop.f32.mrb[0].mxu0
      %v3080 = vadd.f32 %v2925, %v3079
      %v3081 = vpop.f32.mrb[0].mxu0
      %v3082 = vpop.f32.mrb[0].mxu0
      %v3083 = vadd.f32 %v2925, %v3082
      %v3084 = vpop.f32.mrb[0].mxu0
      %3085 = vmatprep.mubr.bf16.mxu0 %v2991
      %3086 = vmatmul.mubr.bf16.gmra.mrb[0].mxu0 %v2883
      %v3087 = vpop.f32.mrb[0].mxu0
      %v3088 = vadd.f32 %v2925, %v3087
      %v3089 = vpop.f32.mrb[0].mxu0
      %v3090 = vpop.f32.mrb[0].mxu0
      %v3091 = vadd.f32 %v2925, %v3090
      %v3092 = vpop.f32.mrb[0].mxu0
      %3093 = vmatprep.mubr.bf16.mxu0 %v2994
      %3094 = vmatmul.mubr.bf16.gmra.mrb[0].mxu0 %v2886
      %v3095 = vpop.f32.mrb[0].mxu0
      %v3096 = vadd.f32 %v2925, %v3095
      %v3097 = vpop.f32.mrb[0].mxu0
      %v3098 = vpop.f32.mrb[0].mxu0
      %v3099 = vadd.f32 %v2925, %v3098
      %v3100 = vpop.f32.mrb[0].mxu0
      %3101 = vmatprep.mubr.bf16.mxu0 %v2997
      %3102 = vmatmul.mubr.bf16.gmra.mrb[0].mxu0 %v2889
      %v3103 = vpop.f32.mrb[0].mxu0
      %v3104 = vadd.f32 %v2925, %v3103
      %v3105 = vpop.f32.mrb[0].mxu0
      %v3106 = vpop.f32.mrb[0].mxu0
      %v3107 = vadd.f32 %v2925, %v3106
      %v3108 = vpop.f32.mrb[0].mxu0
      %3109 = vmatprep.mubr.bf16.mxu0 %v3000
      %3110 = vmatmul.mubr.bf16.gmra.mrb[0].mxu0 %v2892
      %v3111 = vpop.f32.mrb[0].mxu0
      %v3112 = vadd.f32 %v2925, %v3111
      %v3113 = vpop.f32.mrb[0].mxu0
      %v3114 = vpop.f32.mrb[0].mxu0
      %v3115 = vadd.f32 %v2925, %v3114
      %v3116 = vpop.f32.mrb[0].mxu0
      %3117 = vmatprep.mubr.bf16.mxu0 %v3003
      %3118 = vmatmul.mubr.bf16.gmra.mrb[0].mxu0 %v2895
      %v3119 = vpop.f32.mrb[0].mxu0
      %v3120 = vadd.f32 %v2925, %v3119
      %v3121 = vpop.f32.mrb[0].mxu0
      %v3122 = vpop.f32.mrb[0].mxu0
      %v3123 = vadd.f32 %v2925, %v3122
      %v3124 = vpop.f32.mrb[0].mxu0
      %3125 = vmatprep.mubr.bf16.mxu0 %v3006
      %3126 = vmatmul.mubr.bf16.gmra.mrb[0].mxu0 %v2898
      %v3127 = vpop.f32.mrb[0].mxu0
      %v3128 = vadd.f32 %v2925, %v3127
      %v3129 = vpop.f32.mrb[0].mxu0
      %v3130 = vpop.f32.mrb[0].mxu0
      %v3131 = vadd.f32 %v2925, %v3130
      %v3132 = vpop.f32.mrb[0].mxu0
      %3133 = vmatprep.mubr.bf16.mxu0 %v3009
      %3134 = vmatmul.mubr.bf16.gmra.mrb[0].mxu0 %v2901
      %v3135 = vpop.f32.mrb[0].mxu0
      %v3136 = vadd.f32 %v2925, %v3135
      %v3137 = vpop.f32.mrb[0].mxu0
      %v3138 = vpop.f32.mrb[0].mxu0
      %v3139 = vadd.f32 %v2925, %v3138
      %v3140 = vpop.f32.mrb[0].mxu0
      %3141 = vmatprep.mubr.bf16.mxu0 %v3012
      %3142 = vmatmul.mubr.bf16.gmra.mrb[0].mxu0 %v2904
      %v3143 = vpop.f32.mrb[0].mxu0
      %v3144 = vadd.f32 %v2925, %v3143
      %v3145 = vpop.f32.mrb[0].mxu0
      %v3146 = vpop.f32.mrb[0].mxu0
      %v3147 = vadd.f32 %v2925, %v3146
      %v3148 = vpop.f32.mrb[0].mxu0
      %3149 = vmatprep.mubr.bf16.mxu0 %v3015
      %3150 = vmatmul.mubr.bf16.gmra.mrb[0].mxu0 %v2907
      %v3151 = vpop.f32.mrb[0].mxu0
      %v3152 = vadd.f32 %v2925, %v3151
      %v3153 = vpop.f32.mrb[0].mxu0
      %v3154 = vpop.f32.mrb[0].mxu0
      %v3155 = vadd.f32 %v2925, %v3154
      %v3156 = vpop.f32.mrb[0].mxu0
      %3157 = vmatprep.mubr.bf16.mxu0 %v3018
      %3158 = vmatmul.mubr.bf16.gmra.mrb[0].mxu0 %v2910
      %v3159 = vpop.f32.mrb[0].mxu0
      %v3160 = vadd.f32 %v2925, %v3159
      %v3161 = vpop.f32.mrb[0].mxu0
      %v3162 = vpop.f32.mrb[0].mxu0
      %v3163 = vadd.f32 %v2925, %v3162
      %v3164 = vpop.f32.mrb[0].mxu0
      %3165 = vmatprep.mubr.bf16.mxu0 %v3021
      %3166 = vmatmul.mubr.bf16.gmra.mrb[0].mxu0 %v2913
      %v3167 = vpop.f32.mrb[0].mxu0
      %v3168 = vadd.f32 %v2925, %v3167
      %v3169 = vpop.f32.mrb[0].mxu0
      %v3170 = vpop.f32.mrb[0].mxu0
      %v3171 = vadd.f32 %v2925, %v3170
      %v3172 = vpop.f32.mrb[0].mxu0
      %3173 = vmatprep.mubr.bf16.mxu0 %v3024
      %3174 = vmatmul.mubr.bf16.gmra.mrb[0].mxu0 %v2916
      %v3175 = vpop.f32.mrb[0].mxu0
      %v3176 = vadd.f32 %v2925, %v3175
      %v3177 = vpop.f32.mrb[0].mxu0
      %v3178 = vpop.f32.mrb[0].mxu0
      %v3179 = vadd.f32 %v2925, %v3178
      %v3180 = vpop.f32.mrb[0].mxu0
      %3181 = vmatprep.mubr.bf16.mxu0 %v3027
      %3182 = vmatmul.mubr.bf16.gmra.mrb[0].mxu0 %v2919
      %v3183 = vpop.f32.mrb[0].mxu0
      %v3184 = vadd.f32 %v2925, %v3183
      %v3185 = vpop.f32.mrb[0].mxu0
      %v3186 = vpop.f32.mrb[0].mxu0
      %v3187 = vadd.f32 %v2925, %v3186
      %v3188 = vpop.f32.mrb[0].mxu0
      %3189 = vdwg.mxu0
      %v3190 = vsel %vm388, %v3064, 0.0
      %v3191 = vsel %vm388, %v3067, 0.0
      %v3192 = vadd.f32 %v3190, %v3191
      %v3193 = vsel %vm388, %v3072, 0.0
      %v3194 = vadd.f32 %v3192, %v3193
      %v3195 = vsel %vm388, %v3075, 0.0
      %v3196 = vadd.f32 %v3194, %v3195
      %v3197 = vsel %vm388, %v3080, 0.0
      %v3198 = vadd.f32 %v3196, %v3197
      %v3199 = vsel %vm388, %v3083, 0.0
      %v3200 = vadd.f32 %v3198, %v3199
      %v3201 = vsel %vm388, %v3088, 0.0
      %v3202 = vadd.f32 %v3200, %v3201
      %v3203 = vsel %vm388, %v3091, 0.0
      %v3204 = vadd.f32 %v3202, %v3203
      %v3205 = vsel %vm388, %v3096, 0.0
      %v3206 = vadd.f32 %v3204, %v3205
      %v3207 = vsel %vm388, %v3099, 0.0
      %v3208 = vadd.f32 %v3206, %v3207
      %v3209 = vsel %vm388, %v3104, 0.0
      %v3210 = vadd.f32 %v3208, %v3209
      %v3211 = vsel %vm388, %v3107, 0.0
      %v3212 = vadd.f32 %v3210, %v3211
      %v3213 = vsel %vm388, %v3112, 0.0
      %v3214 = vadd.f32 %v3212, %v3213
      %v3215 = vsel %vm388, %v3115, 0.0
      %v3216 = vadd.f32 %v3214, %v3215
      %v3217 = vsel %vm388, %v3120, 0.0
      %v3218 = vadd.f32 %v3216, %v3217
      %v3219 = vsel %vm388, %v3123, 0.0
      %v3220 = vadd.f32 %v3218, %v3219
      %v3221 = vsel %vm388, %v3128, 0.0
      %v3222 = vadd.f32 %v3220, %v3221
      %v3223 = vsel %vm388, %v3131, 0.0
      %v3224 = vadd.f32 %v3222, %v3223
      %v3225 = vsel %vm388, %v3136, 0.0
      %v3226 = vadd.f32 %v3224, %v3225
      %v3227 = vsel %vm388, %v3139, 0.0
      %v3228 = vadd.f32 %v3226, %v3227
      %v3229 = vsel %vm388, %v3144, 0.0
      %v3230 = vadd.f32 %v3228, %v3229
      %v3231 = vsel %vm388, %v3147, 0.0
      %v3232 = vadd.f32 %v3230, %v3231
      %v3233 = vsel %vm388, %v3152, 0.0
      %v3234 = vadd.f32 %v3232, %v3233
      %v3235 = vsel %vm388, %v3155, 0.0
      %v3236 = vadd.f32 %v3234, %v3235
      %v3237 = vsel %vm388, %v3160, 0.0
      %v3238 = vadd.f32 %v3236, %v3237
      %v3239 = vsel %vm388, %v3163, 0.0
      %v3240 = vadd.f32 %v3238, %v3239
      %v3241 = vsel %vm388, %v3168, 0.0
      %v3242 = vadd.f32 %v3240, %v3241
      %v3243 = vsel %vm388, %v3171, 0.0
      %v3244 = vadd.f32 %v3242, %v3243
      %v3245 = vsel %vm388, %v3176, 0.0
      %v3246 = vadd.f32 %v3244, %v3245
      %v3247 = vsel %vm388, %v3179, 0.0
      %v3248 = vadd.f32 %v3246, %v3247
      %v3249 = vsel %vm388, %v3184, 0.0
      %v3250 = vadd.f32 %v3248, %v3249
      %v3251 = vsel %vm388, %v3187, 0.0
      %v3252 = vadd.f32 %v3250, %v3251
      %v3253 = vrot.slane %v3252, 4
      %v3254 = vadd.f32 %v3252, %v3253
      %v3255 = vrot.slane %v3254, 2
      %v3256 = vadd.f32 %v3254, %v3255
      %v3257 = vrot.slane %v3256, 1
      %v3258 = vadd.f32 %v3256, %v3257
      %v3259 = vrcp.pop 256.0
      %v3260 = vmul.f32 %v3258, %v3259
      %v3261 = vld [vmem:[%s5] sm:$0xf]
      %v3262 = vmul.f32 %v3261, %v3260
      %vm3263 = vcmask 125952
      %v3264 = vsel %vm3263, %v3262, 0.0
      %3265 = vadd.xlane.f32.xlu0 %v3264
      %v3266 = vpop.xlane.xlu0 %3265
      %v3267 = vld [vmem:[%s6] sm:$0xf]
      %v3268 = vadd.f32 %v3266, %v3267
      %v3269 = vmax.f32 %v3268, 0.0
      %v3270 = vld [vmem:[%s7] sm:$0xf]
      %3272 = vset.pattern.permute.xlu0 0
      %3273 = vperm.xlu0 %3272, %v3269
      %v3274 = vpop.permute.xlu0 %3273
      %v3276 = vmul.f32 %v3270, %v3274
      %v3277 = vsel %vm3263, %v3276, 0.0
      %v3278 = vrot.slane %v3277, 4
      %v3279 = vadd.f32 %v3277, %v3278
      %v3280 = vrot.slane %v3279, 2
      %v3281 = vadd.f32 %v3279, %v3280
      %v3282 = vrot.slane %v3281, 1
      %v3283 = vadd.f32 %v3281, %v3282
      %v3284 = vld [vmem:[%s8] sm:$0x1]
      %v3285 = vadd.f32 %v3283, %v3284
      %v3286 = vsub.f32 0.0, %v3285
      %v3287 = vmul.f32 %v3286, 1.442695
      %v3288 = vpow.pop %v3287
      %v3289 = vadd.f32 %v3288, 1.0
      %v3290 = vrcp.pop %v3289
      %v3291 = vmul.f32 1.0, %v3290
      %v3292 = vlaneseq
      %v3293 = vshrl.u32 %v3292, 7
      %v3294 = vsub.s32 0, %v3293
      %v3295 = vrot.slane %v3291, %v3294
      %v3296 = vmul.f32 %v3064, %v3295
      %v3297 = vmul.f32 %v3067, %v3295
      %v3298 = vmul.f32 %v3072, %v3295
      %v3299 = vmul.f32 %v3075, %v3295
      %v3300 = vmul.f32 %v3080, %v3295
      %v3301 = vmul.f32 %v3083, %v3295
      %v3302 = vmul.f32 %v3088, %v3295
      %v3303 = vmul.f32 %v3091, %v3295
      %v3304 = vmul.f32 %v3096, %v3295
      %v3305 = vmul.f32 %v3099, %v3295
      %v3306 = vmul.f32 %v3104, %v3295
      %v3307 = vmul.f32 %v3107, %v3295
      %v3308 = vmul.f32 %v3112, %v3295
      %v3309 = vmul.f32 %v3115, %v3295
      %v3310 = vmul.f32 %v3120, %v3295
      %v3311 = vmul.f32 %v3123, %v3295
      %v3312 = vmul.f32 %v3128, %v3295
      %v3313 = vmul.f32 %v3131, %v3295
      %v3314 = vmul.f32 %v3136, %v3295
      %v3315 = vmul.f32 %v3139, %v3295
      %v3316 = vmul.f32 %v3144, %v3295
      %v3317 = vmul.f32 %v3147, %v3295
      %v3318 = vmul.f32 %v3152, %v3295
      %v3319 = vmul.f32 %v3155, %v3295
      %v3320 = vmul.f32 %v3160, %v3295
      %v3321 = vmul.f32 %v3163, %v3295
      %v3322 = vmul.f32 %v3168, %v3295
      %v3323 = vmul.f32 %v3171, %v3295
      %v3324 = vmul.f32 %v3176, %v3295
      %v3325 = vmul.f32 %v3179, %v3295
      %v3326 = vmul.f32 %v3184, %v3295
      %v3327 = vmul.f32 %v3187, %v3295
      %v3328 = vadd.f32 %v3296, %v431
      %v3329 = vadd.f32 %v3297, %v432
      %v3330 = vadd.f32 %v3298, %v433
      %v3331 = vadd.f32 %v3299, %v434
      %v3332 = vadd.f32 %v3300, %v435
      %v3333 = vadd.f32 %v3301, %v436
      %v3334 = vadd.f32 %v3302, %v437
      %v3335 = vadd.f32 %v3303, %v438
      %v3336 = vadd.f32 %v3304, %v439
      %v3337 = vadd.f32 %v3305, %v440
      %v3338 = vadd.f32 %v3306, %v441
      %v3339 = vadd.f32 %v3307, %v442
      %v3340 = vadd.f32 %v3308, %v443
      %v3341 = vadd.f32 %v3309, %v444
      %v3342 = vadd.f32 %v3310, %v445
      %v3343 = vadd.f32 %v3311, %v446
      %v3344 = vadd.f32 %v3312, %v447
      %v3345 = vadd.f32 %v3313, %v448
      %v3346 = vadd.f32 %v3314, %v449
      %v3347 = vadd.f32 %v3315, %v450
      %v3348 = vadd.f32 %v3316, %v451
      %v3349 = vadd.f32 %v3317, %v452
      %v3350 = vadd.f32 %v3318, %v453
      %v3351 = vadd.f32 %v3319, %v454
      %v3352 = vadd.f32 %v3320, %v455
      %v3353 = vadd.f32 %v3321, %v456
      %v3354 = vadd.f32 %v3322, %v457
      %v3355 = vadd.f32 %v3323, %v458
      %v3356 = vadd.f32 %v3324, %v459
      %v3357 = vadd.f32 %v3325, %v460
      %v3358 = vadd.f32 %v3326, %v461
      %v3359 = vadd.f32 %v3327, %v462
      %3360 = vst.msk [vmem:[%s398 + $0x8] sm:$0xff] %vm388, %v3328
      %3361 = vst.msk [vmem:[%s398 + $0x10] sm:$0xff] %vm388, %v3329
      %3362 = vst.msk [vmem:[%s398 + $0x28] sm:$0xff] %vm388, %v3330
      %3363 = vst.msk [vmem:[%s398 + $0x30] sm:$0xff] %vm388, %v3331
      %3364 = vst.msk [vmem:[%s398 + $0x48] sm:$0xff] %vm388, %v3332
      %3365 = vst.msk [vmem:[%s398 + $0x50] sm:$0xff] %vm388, %v3333
      %3366 = vst.msk [vmem:[%s398 + $0x68] sm:$0xff] %vm388, %v3334
      %3367 = vst.msk [vmem:[%s398 + $0x70] sm:$0xff] %vm388, %v3335
      %3368 = vst.msk [vmem:[%s398 + $0x88] sm:$0xff] %vm388, %v3336
      %3369 = vst.msk [vmem:[%s398 + $0x90] sm:$0xff] %vm388, %v3337
      %3370 = vst.msk [vmem:[%s398 + $0xa8] sm:$0xff] %vm388, %v3338
      %3371 = vst.msk [vmem:[%s398 + $0xb0] sm:$0xff] %vm388, %v3339
      %3372 = vst.msk [vmem:[%s398 + $0xc8] sm:$0xff] %vm388, %v3340
      %3373 = vst.msk [vmem:[%s398 + $0xd0] sm:$0xff] %vm388, %v3341
      %3374 = vst.msk [vmem:[%s398 + $0xe8] sm:$0xff] %vm388, %v3342
      %3375 = vst.msk [vmem:[%s398 + $0xf0] sm:$0xff] %vm388, %v3343
      %3376 = vst.msk [vmem:[%s398 + $0x108] sm:$0xff] %vm388, %v3344
      %3377 = vst.msk [vmem:[%s398 + $0x110] sm:$0xff] %vm388, %v3345
      %3378 = vst.msk [vmem:[%s398 + $0x128] sm:$0xff] %vm388, %v3346
      %3379 = vst.msk [vmem:[%s398 + $0x130] sm:$0xff] %vm388, %v3347
      %3380 = vst.msk [vmem:[%s398 + $0x148] sm:$0xff] %vm388, %v3348
      %3381 = vst.msk [vmem:[%s398 + $0x150] sm:$0xff] %vm388, %v3349
      %3382 = vst.msk [vmem:[%s398 + $0x168] sm:$0xff] %vm388, %v3350
      %3383 = vst.msk [vmem:[%s398 + $0x170] sm:$0xff] %vm388, %v3351
      %3384 = vst.msk [vmem:[%s398 + $0x188] sm:$0xff] %vm388, %v3352
      %3385 = vst.msk [vmem:[%s398 + $0x190] sm:$0xff] %vm388, %v3353
      %3386 = vst.msk [vmem:[%s398 + $0x1a8] sm:$0xff] %vm388, %v3354
      %3387 = vst.msk [vmem:[%s398 + $0x1b0] sm:$0xff] %vm388, %v3355
      %3388 = vst.msk [vmem:[%s398 + $0x1c8] sm:$0xff] %vm388, %v3356
      %3389 = vst.msk [vmem:[%s398 + $0x1d0] sm:$0xff] %vm388, %v3357
      %3390 = vst.msk [vmem:[%s398 + $0x1e8] sm:$0xff] %vm388, %v3358
      %3391 = vst.msk [vmem:[%s398 + $0x1f0] sm:$0xff] %vm388, %v3359
      %s3392 = scalar_lea.vmem %s1, 72
      %v3393 = vld [vmem:[%s3392] sm:$0xf]
      %v3394 = vld [vmem:[%s3392 + $0x4] sm:$0xf]
      %v3395 = vld [vmem:[%s3392 + $0x8] sm:$0xf]
      %v3396 = vld [vmem:[%s3392 + $0xc] sm:$0xf]
      %v3397 = vld [vmem:[%s3392 + $0x10] sm:$0xf]
      %v3398 = vld [vmem:[%s3392 + $0x14] sm:$0xf]
      %v3399 = vld [vmem:[%s3392 + $0x18] sm:$0xf]
      %v3400 = vld [vmem:[%s3392 + $0x1c] sm:$0xf]
      %v3401 = vld [vmem:[%s3392 + $0x20] sm:$0xf]
      %v3402 = vld [vmem:[%s3392 + $0x24] sm:$0xf]
      %v3403 = vld [vmem:[%s3392 + $0x28] sm:$0xf]
      %v3404 = vld [vmem:[%s3392 + $0x2c] sm:$0xf]
      %v3405 = vld [vmem:[%s3392 + $0x30] sm:$0xf]
      %v3406 = vld [vmem:[%s3392 + $0x34] sm:$0xf]
      %v3407 = vld [vmem:[%s3392 + $0x38] sm:$0xf]
      %v3408 = vld [vmem:[%s3392 + $0x3c] sm:$0xf]
      %v3409 = vld [vmem:[%s3392 + $0x40] sm:$0xf]
      %v3410 = vld [vmem:[%s3392 + $0x44] sm:$0xf]
      %s3411 = scalar_lea.vmem %s2, 1
      %v3412 = vld [vmem:[%s3411] sm:$0x1]
      %v3413 = vld [vmem:[#allocation2 + $0x7] sm:$0xff]
      %v3414 = vld [vmem:[#allocation2 + $0xf] sm:$0xff]
      %v3415 = vld [vmem:[#allocation2 + $0x27] sm:$0xff]
      %v3416 = vld [vmem:[#allocation2 + $0x2f] sm:$0xff]
      %v3417 = vld [vmem:[#allocation2 + $0x47] sm:$0xff]
      %v3418 = vld [vmem:[#allocation2 + $0x4f] sm:$0xff]
      %v3419 = vld [vmem:[#allocation2 + $0x67] sm:$0xff]
      %v3420 = vld [vmem:[#allocation2 + $0x6f] sm:$0xff]
      %v3421 = vld [vmem:[#allocation2 + $0x87] sm:$0xff]
      %v3422 = vld [vmem:[#allocation2 + $0x8f] sm:$0xff]
      %v3423 = vld [vmem:[#allocation2 + $0xa7] sm:$0xff]
      %v3424 = vld [vmem:[#allocation2 + $0xaf] sm:$0xff]
      %v3425 = vld [vmem:[#allocation2 + $0xc7] sm:$0xff]
      %v3426 = vld [vmem:[#allocation2 + $0xcf] sm:$0xff]
      %v3427 = vld [vmem:[#allocation2 + $0xe7] sm:$0xff]
      %v3428 = vld [vmem:[#allocation2 + $0xef] sm:$0xff]
      %v3429 = vld [vmem:[#allocation2 + $0x107] sm:$0xff]
      %v3430 = vld [vmem:[#allocation2 + $0x10f] sm:$0xff]
      %v3431 = vld [vmem:[#allocation2 + $0x127] sm:$0xff]
      %v3432 = vld [vmem:[#allocation2 + $0x12f] sm:$0xff]
      %v3433 = vld [vmem:[#allocation2 + $0x147] sm:$0xff]
      %v3434 = vld [vmem:[#allocation2 + $0x14f] sm:$0xff]
      %v3435 = vld [vmem:[#allocation2 + $0x167] sm:$0xff]
      %v3436 = vld [vmem:[#allocation2 + $0x16f] sm:$0xff]
      %v3437 = vld [vmem:[#allocation2 + $0x187] sm:$0xff]
      %v3438 = vld [vmem:[#allocation2 + $0x18f] sm:$0xff]
      %v3439 = vld [vmem:[#allocation2 + $0x1a7] sm:$0xff]
      %v3440 = vld [vmem:[#allocation2 + $0x1af] sm:$0xff]
      %v3441 = vld [vmem:[#allocation2 + $0x1c7] sm:$0xff]
      %v3442 = vld [vmem:[#allocation2 + $0x1cf] sm:$0xff]
      %v3443 = vld [vmem:[#allocation2 + $0x1e7] sm:$0xff]
      %v3444 = vld [vmem:[#allocation2 + $0x1ef] sm:$0xff]
      %v3445 = vpack.c.bf16 %v3414, %v3413
      %v3446 = vpack.c.bf16 %v3416, %v3415
      %v3447 = vpack.c.bf16 %v3418, %v3417
      %v3448 = vpack.c.bf16 %v3420, %v3419
      %v3449 = vpack.c.bf16 %v3422, %v3421
      %v3450 = vpack.c.bf16 %v3424, %v3423
      %v3451 = vpack.c.bf16 %v3426, %v3425
      %v3452 = vpack.c.bf16 %v3428, %v3427
      %v3453 = vpack.c.bf16 %v3430, %v3429
      %v3454 = vpack.c.bf16 %v3432, %v3431
      %v3455 = vpack.c.bf16 %v3434, %v3433
      %v3456 = vpack.c.bf16 %v3436, %v3435
      %v3457 = vpack.c.bf16 %v3438, %v3437
      %v3458 = vpack.c.bf16 %v3440, %v3439
      %v3459 = vpack.c.bf16 %v3442, %v3441
      %v3460 = vpack.c.bf16 %v3444, %v3443
      %v3461 = vld [vmem:[#allocation2 + $0x8] sm:$0xff]
      %v3462 = vld [vmem:[#allocation2 + $0x10] sm:$0xff]
      %v3463 = vld [vmem:[#allocation2 + $0x28] sm:$0xff]
      %v3464 = vld [vmem:[#allocation2 + $0x30] sm:$0xff]
      %v3465 = vld [vmem:[#allocation2 + $0x48] sm:$0xff]
      %v3466 = vld [vmem:[#allocation2 + $0x50] sm:$0xff]
      %v3467 = vld [vmem:[#allocation2 + $0x68] sm:$0xff]
      %v3468 = vld [vmem:[#allocation2 + $0x70] sm:$0xff]
      %v3469 = vld [vmem:[#allocation2 + $0x88] sm:$0xff]
      %v3470 = vld [vmem:[#allocation2 + $0x90] sm:$0xff]
      %v3471 = vld [vmem:[#allocation2 + $0xa8] sm:$0xff]
      %v3472 = vld [vmem:[#allocation2 + $0xb0] sm:$0xff]
      %v3473 = vld [vmem:[#allocation2 + $0xc8] sm:$0xff]
      %v3474 = vld [vmem:[#allocation2 + $0xd0] sm:$0xff]
      %v3475 = vld [vmem:[#allocation2 + $0xe8] sm:$0xff]
      %v3476 = vld [vmem:[#allocation2 + $0xf0] sm:$0xff]
      %v3477 = vld [vmem:[#allocation2 + $0x108] sm:$0xff]
      %v3478 = vld [vmem:[#allocation2 + $0x110] sm:$0xff]
      %v3479 = vld [vmem:[#allocation2 + $0x128] sm:$0xff]
      %v3480 = vld [vmem:[#allocation2 + $0x130] sm:$0xff]
      %v3481 = vld [vmem:[#allocation2 + $0x148] sm:$0xff]
      %v3482 = vld [vmem:[#allocation2 + $0x150] sm:$0xff]
      %v3483 = vld [vmem:[#allocation2 + $0x168] sm:$0xff]
      %v3484 = vld [vmem:[#allocation2 + $0x170] sm:$0xff]
      %v3485 = vld [vmem:[#allocation2 + $0x188] sm:$0xff]
      %v3486 = vld [vmem:[#allocation2 + $0x190] sm:$0xff]
      %v3487 = vld [vmem:[#allocation2 + $0x1a8] sm:$0xff]
      %v3488 = vld [vmem:[#allocation2 + $0x1b0] sm:$0xff]
      %v3489 = vld [vmem:[#allocation2 + $0x1c8] sm:$0xff]
      %v3490 = vld [vmem:[#allocation2 + $0x1d0] sm:$0xff]
      %v3491 = vld [vmem:[#allocation2 + $0x1e8] sm:$0xff]
      %v3492 = vld [vmem:[#allocation2 + $0x1f0] sm:$0xff]
      %v3493 = vpack.c.bf16 %v3462, %v3461
      %v3494 = vpack.c.bf16 %v3464, %v3463
      %v3495 = vpack.c.bf16 %v3466, %v3465
      %v3496 = vpack.c.bf16 %v3468, %v3467
      %v3497 = vpack.c.bf16 %v3470, %v3469
      %v3498 = vpack.c.bf16 %v3472, %v3471
      %v3499 = vpack.c.bf16 %v3474, %v3473
      %v3500 = vpack.c.bf16 %v3476, %v3475
      %v3501 = vpack.c.bf16 %v3478, %v3477
      %v3502 = vpack.c.bf16 %v3480, %v3479
      %v3503 = vpack.c.bf16 %v3482, %v3481
      %v3504 = vpack.c.bf16 %v3484, %v3483
      %v3505 = vpack.c.bf16 %v3486, %v3485
      %v3506 = vpack.c.bf16 %v3488, %v3487
      %v3507 = vpack.c.bf16 %v3490, %v3489
      %v3508 = vpack.c.bf16 %v3492, %v3491
      %v3509 = vld [vmem:[#allocation2 + $0x9] sm:$0xff]
      %v3510 = vld [vmem:[#allocation2 + $0x11] sm:$0xff]
      %v3511 = vld [vmem:[#allocation2 + $0x29] sm:$0xff]
      %v3512 = vld [vmem:[#allocation2 + $0x31] sm:$0xff]
      %v3513 = vld [vmem:[#allocation2 + $0x49] sm:$0xff]
      %v3514 = vld [vmem:[#allocation2 + $0x51] sm:$0xff]
      %v3515 = vld [vmem:[#allocation2 + $0x69] sm:$0xff]
      %v3516 = vld [vmem:[#allocation2 + $0x71] sm:$0xff]
      %v3517 = vld [vmem:[#allocation2 + $0x89] sm:$0xff]
      %v3518 = vld [vmem:[#allocation2 + $0x91] sm:$0xff]
      %v3519 = vld [vmem:[#allocation2 + $0xa9] sm:$0xff]
      %v3520 = vld [vmem:[#allocation2 + $0xb1] sm:$0xff]
      %v3521 = vld [vmem:[#allocation2 + $0xc9] sm:$0xff]
      %v3522 = vld [vmem:[#allocation2 + $0xd1] sm:$0xff]
      %v3523 = vld [vmem:[#allocation2 + $0xe9] sm:$0xff]
      %v3524 = vld [vmem:[#allocation2 + $0xf1] sm:$0xff]
      %v3525 = vld [vmem:[#allocation2 + $0x109] sm:$0xff]
      %v3526 = vld [vmem:[#allocation2 + $0x111] sm:$0xff]
      %v3527 = vld [vmem:[#allocation2 + $0x129] sm:$0xff]
      %v3528 = vld [vmem:[#allocation2 + $0x131] sm:$0xff]
      %v3529 = vld [vmem:[#allocation2 + $0x149] sm:$0xff]
      %v3530 = vld [vmem:[#allocation2 + $0x151] sm:$0xff]
      %v3531 = vld [vmem:[#allocation2 + $0x169] sm:$0xff]
      %v3532 = vld [vmem:[#allocation2 + $0x171] sm:$0xff]
      %v3533 = vld [vmem:[#allocation2 + $0x189] sm:$0xff]
      %v3534 = vld [vmem:[#allocation2 + $0x191] sm:$0xff]
      %v3535 = vld [vmem:[#allocation2 + $0x1a9] sm:$0xff]
      %v3536 = vld [vmem:[#allocation2 + $0x1b1] sm:$0xff]
      %v3537 = vld [vmem:[#allocation2 + $0x1c9] sm:$0xff]
      %v3538 = vld [vmem:[#allocation2 + $0x1d1] sm:$0xff]
      %v3539 = vld [vmem:[#allocation2 + $0x1e9] sm:$0xff]
      %v3540 = vld [vmem:[#allocation2 + $0x1f1] sm:$0xff]
      %v3541 = vpack.c.bf16 %v3510, %v3509
      %v3542 = vpack.c.bf16 %v3512, %v3511
      %v3543 = vpack.c.bf16 %v3514, %v3513
      %v3544 = vpack.c.bf16 %v3516, %v3515
      %v3545 = vpack.c.bf16 %v3518, %v3517
      %v3546 = vpack.c.bf16 %v3520, %v3519
      %v3547 = vpack.c.bf16 %v3522, %v3521
      %v3548 = vpack.c.bf16 %v3524, %v3523
      %v3549 = vpack.c.bf16 %v3526, %v3525
      %v3550 = vpack.c.bf16 %v3528, %v3527
      %v3551 = vpack.c.bf16 %v3530, %v3529
      %v3552 = vpack.c.bf16 %v3532, %v3531
      %v3553 = vpack.c.bf16 %v3534, %v3533
      %v3554 = vpack.c.bf16 %v3536, %v3535
      %v3555 = vpack.c.bf16 %v3538, %v3537
      %v3556 = vpack.c.bf16 %v3540, %v3539
      %v3557 = vld [vmem:[%s398 + $0x7] sm:$0xff]
      %v3558 = vld [vmem:[%s398 + $0xf] sm:$0xff]
      %v3559 = vld [vmem:[%s398 + $0x27] sm:$0xff]
      %v3560 = vld [vmem:[%s398 + $0x2f] sm:$0xff]
      %v3561 = vld [vmem:[%s398 + $0x47] sm:$0xff]
      %v3562 = vld [vmem:[%s398 + $0x4f] sm:$0xff]
      %v3563 = vld [vmem:[%s398 + $0x67] sm:$0xff]
      %v3564 = vld [vmem:[%s398 + $0x6f] sm:$0xff]
      %v3565 = vld [vmem:[%s398 + $0x87] sm:$0xff]
      %v3566 = vld [vmem:[%s398 + $0x8f] sm:$0xff]
      %v3567 = vld [vmem:[%s398 + $0xa7] sm:$0xff]
      %v3568 = vld [vmem:[%s398 + $0xaf] sm:$0xff]
      %v3569 = vld [vmem:[%s398 + $0xc7] sm:$0xff]
      %v3570 = vld [vmem:[%s398 + $0xcf] sm:$0xff]
      %v3571 = vld [vmem:[%s398 + $0xe7] sm:$0xff]
      %v3572 = vld [vmem:[%s398 + $0xef] sm:$0xff]
      %v3573 = vld [vmem:[%s398 + $0x107] sm:$0xff]
      %v3574 = vld [vmem:[%s398 + $0x10f] sm:$0xff]
      %v3575 = vld [vmem:[%s398 + $0x127] sm:$0xff]
      %v3576 = vld [vmem:[%s398 + $0x12f] sm:$0xff]
      %v3577 = vld [vmem:[%s398 + $0x147] sm:$0xff]
      %v3578 = vld [vmem:[%s398 + $0x14f] sm:$0xff]
      %v3579 = vld [vmem:[%s398 + $0x167] sm:$0xff]
      %v3580 = vld [vmem:[%s398 + $0x16f] sm:$0xff]
      %v3581 = vld [vmem:[%s398 + $0x187] sm:$0xff]
      %v3582 = vld [vmem:[%s398 + $0x18f] sm:$0xff]
      %v3583 = vld [vmem:[%s398 + $0x1a7] sm:$0xff]
      %v3584 = vld [vmem:[%s398 + $0x1af] sm:$0xff]
      %v3585 = vld [vmem:[%s398 + $0x1c7] sm:$0xff]
      %v3586 = vld [vmem:[%s398 + $0x1cf] sm:$0xff]
      %v3587 = vld [vmem:[%s398 + $0x1e7] sm:$0xff]
      %v3588 = vld [vmem:[%s398 + $0x1ef] sm:$0xff]
      %v3589 = vpack.c.bf16 %v3558, %v3557
      %v3590 = vpack.c.bf16 %v3560, %v3559
      %v3591 = vpack.c.bf16 %v3562, %v3561
      %v3592 = vpack.c.bf16 %v3564, %v3563
      %v3593 = vpack.c.bf16 %v3566, %v3565
      %v3594 = vpack.c.bf16 %v3568, %v3567
      %v3595 = vpack.c.bf16 %v3570, %v3569
      %v3596 = vpack.c.bf16 %v3572, %v3571
      %v3597 = vpack.c.bf16 %v3574, %v3573
      %v3598 = vpack.c.bf16 %v3576, %v3575
      %v3599 = vpack.c.bf16 %v3578, %v3577
      %v3600 = vpack.c.bf16 %v3580, %v3579
      %v3601 = vpack.c.bf16 %v3582, %v3581
      %v3602 = vpack.c.bf16 %v3584, %v3583
      %v3603 = vpack.c.bf16 %v3586, %v3585
      %v3604 = vpack.c.bf16 %v3588, %v3587
      %v3605 = vld [vmem:[%s398 + $0x8] sm:$0xff]
      %v3606 = vld [vmem:[%s398 + $0x10] sm:$0xff]
      %v3607 = vld [vmem:[%s398 + $0x28] sm:$0xff]
      %v3608 = vld [vmem:[%s398 + $0x30] sm:$0xff]
      %v3609 = vld [vmem:[%s398 + $0x48] sm:$0xff]
      %v3610 = vld [vmem:[%s398 + $0x50] sm:$0xff]
      %v3611 = vld [vmem:[%s398 + $0x68] sm:$0xff]
      %v3612 = vld [vmem:[%s398 + $0x70] sm:$0xff]
      %v3613 = vld [vmem:[%s398 + $0x88] sm:$0xff]
      %v3614 = vld [vmem:[%s398 + $0x90] sm:$0xff]
      %v3615 = vld [vmem:[%s398 + $0xa8] sm:$0xff]
      %v3616 = vld [vmem:[%s398 + $0xb0] sm:$0xff]
      %v3617 = vld [vmem:[%s398 + $0xc8] sm:$0xff]
      %v3618 = vld [vmem:[%s398 + $0xd0] sm:$0xff]
      %v3619 = vld [vmem:[%s398 + $0xe8] sm:$0xff]
      %v3620 = vld [vmem:[%s398 + $0xf0] sm:$0xff]
      %v3621 = vld [vmem:[%s398 + $0x108] sm:$0xff]
      %v3622 = vld [vmem:[%s398 + $0x110] sm:$0xff]
      %v3623 = vld [vmem:[%s398 + $0x128] sm:$0xff]
      %v3624 = vld [vmem:[%s398 + $0x130] sm:$0xff]
      %v3625 = vld [vmem:[%s398 + $0x148] sm:$0xff]
      %v3626 = vld [vmem:[%s398 + $0x150] sm:$0xff]
      %v3627 = vld [vmem:[%s398 + $0x168] sm:$0xff]
      %v3628 = vld [vmem:[%s398 + $0x170] sm:$0xff]
      %v3629 = vld [vmem:[%s398 + $0x188] sm:$0xff]
      %v3630 = vld [vmem:[%s398 + $0x190] sm:$0xff]
      %v3631 = vld [vmem:[%s398 + $0x1a8] sm:$0xff]
      %v3632 = vld [vmem:[%s398 + $0x1b0] sm:$0xff]
      %v3633 = vld [vmem:[%s398 + $0x1c8] sm:$0xff]
      %v3634 = vld [vmem:[%s398 + $0x1d0] sm:$0xff]
      %v3635 = vld [vmem:[%s398 + $0x1e8] sm:$0xff]
      %v3636 = vld [vmem:[%s398 + $0x1f0] sm:$0xff]
      %v3637 = vpack.c.bf16 %v3606, %v3605
      %v3638 = vpack.c.bf16 %v3608, %v3607
      %v3639 = vpack.c.bf16 %v3610, %v3609
      %v3640 = vpack.c.bf16 %v3612, %v3611
      %v3641 = vpack.c.bf16 %v3614, %v3613
      %v3642 = vpack.c.bf16 %v3616, %v3615
      %v3643 = vpack.c.bf16 %v3618, %v3617
      %v3644 = vpack.c.bf16 %v3620, %v3619
      %v3645 = vpack.c.bf16 %v3622, %v3621
      %v3646 = vpack.c.bf16 %v3624, %v3623
      %v3647 = vpack.c.bf16 %v3626, %v3625
      %v3648 = vpack.c.bf16 %v3628, %v3627
      %v3649 = vpack.c.bf16 %v3630, %v3629
      %v3650 = vpack.c.bf16 %v3632, %v3631
      %v3651 = vpack.c.bf16 %v3634, %v3633
      %v3652 = vpack.c.bf16 %v3636, %v3635
      %v3653 = vld [vmem:[%s398 + $0x9] sm:$0xff]
      %v3654 = vld [vmem:[%s398 + $0x11] sm:$0xff]
      %v3655 = vld [vmem:[%s398 + $0x29] sm:$0xff]
      %v3656 = vld [vmem:[%s398 + $0x31] sm:$0xff]
      %v3657 = vld [vmem:[%s398 + $0x49] sm:$0xff]
      %v3658 = vld [vmem:[%s398 + $0x51] sm:$0xff]
      %v3659 = vld [vmem:[%s398 + $0x69] sm:$0xff]
      %v3660 = vld [vmem:[%s398 + $0x71] sm:$0xff]
      %v3661 = vld [vmem:[%s398 + $0x89] sm:$0xff]
      %v3662 = vld [vmem:[%s398 + $0x91] sm:$0xff]
      %v3663 = vld [vmem:[%s398 + $0xa9] sm:$0xff]
      %v3664 = vld [vmem:[%s398 + $0xb1] sm:$0xff]
      %v3665 = vld [vmem:[%s398 + $0xc9] sm:$0xff]
      %v3666 = vld [vmem:[%s398 + $0xd1] sm:$0xff]
      %v3667 = vld [vmem:[%s398 + $0xe9] sm:$0xff]
      %v3668 = vld [vmem:[%s398 + $0xf1] sm:$0xff]
      %v3669 = vld [vmem:[%s398 + $0x109] sm:$0xff]
      %v3670 = vld [vmem:[%s398 + $0x111] sm:$0xff]
      %v3671 = vld [vmem:[%s398 + $0x129] sm:$0xff]
      %v3672 = vld [vmem:[%s398 + $0x131] sm:$0xff]
      %v3673 = vld [vmem:[%s398 + $0x149] sm:$0xff]
      %v3674 = vld [vmem:[%s398 + $0x151] sm:$0xff]
      %v3675 = vld [vmem:[%s398 + $0x169] sm:$0xff]
      %v3676 = vld [vmem:[%s398 + $0x171] sm:$0xff]
      %v3677 = vld [vmem:[%s398 + $0x189] sm:$0xff]
      %v3678 = vld [vmem:[%s398 + $0x191] sm:$0xff]
      %v3679 = vld [vmem:[%s398 + $0x1a9] sm:$0xff]
      %v3680 = vld [vmem:[%s398 + $0x1b1] sm:$0xff]
      %v3681 = vld [vmem:[%s398 + $0x1c9] sm:$0xff]
      %v3682 = vld [vmem:[%s398 + $0x1d1] sm:$0xff]
      %v3683 = vld [vmem:[%s398 + $0x1e9] sm:$0xff]
      %v3684 = vld [vmem:[%s398 + $0x1f1] sm:$0xff]
      %v3685 = vpack.c.bf16 %v3654, %v3653
      %v3686 = vpack.c.bf16 %v3656, %v3655
      %v3687 = vpack.c.bf16 %v3658, %v3657
      %v3688 = vpack.c.bf16 %v3660, %v3659
      %v3689 = vpack.c.bf16 %v3662, %v3661
      %v3690 = vpack.c.bf16 %v3664, %v3663
      %v3691 = vpack.c.bf16 %v3666, %v3665
      %v3692 = vpack.c.bf16 %v3668, %v3667
      %v3693 = vpack.c.bf16 %v3670, %v3669
      %v3694 = vpack.c.bf16 %v3672, %v3671
      %v3695 = vpack.c.bf16 %v3674, %v3673
      %v3696 = vpack.c.bf16 %v3676, %v3675
      %v3697 = vpack.c.bf16 %v3678, %v3677
      %v3698 = vpack.c.bf16 %v3680, %v3679
      %v3699 = vpack.c.bf16 %v3682, %v3681
      %v3700 = vpack.c.bf16 %v3684, %v3683
      %v3701 = vld [vmem:[%s802 + $0x7] sm:$0xff]
      %v3702 = vld [vmem:[%s802 + $0xf] sm:$0xff]
      %v3703 = vld [vmem:[%s802 + $0x27] sm:$0xff]
      %v3704 = vld [vmem:[%s802 + $0x2f] sm:$0xff]
      %v3705 = vld [vmem:[%s802 + $0x47] sm:$0xff]
      %v3706 = vld [vmem:[%s802 + $0x4f] sm:$0xff]
      %v3707 = vld [vmem:[%s802 + $0x67] sm:$0xff]
      %v3708 = vld [vmem:[%s802 + $0x6f] sm:$0xff]
      %v3709 = vld [vmem:[%s802 + $0x87] sm:$0xff]
      %v3710 = vld [vmem:[%s802 + $0x8f] sm:$0xff]
      %v3711 = vld [vmem:[%s802 + $0xa7] sm:$0xff]
      %v3712 = vld [vmem:[%s802 + $0xaf] sm:$0xff]
      %v3713 = vld [vmem:[%s802 + $0xc7] sm:$0xff]
      %v3714 = vld [vmem:[%s802 + $0xcf] sm:$0xff]
      %v3715 = vld [vmem:[%s802 + $0xe7] sm:$0xff]
      %v3716 = vld [vmem:[%s802 + $0xef] sm:$0xff]
      %v3717 = vld [vmem:[%s802 + $0x107] sm:$0xff]
      %v3718 = vld [vmem:[%s802 + $0x10f] sm:$0xff]
      %v3719 = vld [vmem:[%s802 + $0x127] sm:$0xff]
      %v3720 = vld [vmem:[%s802 + $0x12f] sm:$0xff]
      %v3721 = vld [vmem:[%s802 + $0x147] sm:$0xff]
      %v3722 = vld [vmem:[%s802 + $0x14f] sm:$0xff]
      %v3723 = vld [vmem:[%s802 + $0x167] sm:$0xff]
      %v3724 = vld [vmem:[%s802 + $0x16f] sm:$0xff]
      %v3725 = vld [vmem:[%s802 + $0x187] sm:$0xff]
      %v3726 = vld [vmem:[%s802 + $0x18f] sm:$0xff]
      %v3727 = vld [vmem:[%s802 + $0x1a7] sm:$0xff]
      %v3728 = vld [vmem:[%s802 + $0x1af] sm:$0xff]
      %v3729 = vld [vmem:[%s802 + $0x1c7] sm:$0xff]
      %v3730 = vld [vmem:[%s802 + $0x1cf] sm:$0xff]
      %v3731 = vld [vmem:[%s802 + $0x1e7] sm:$0xff]
      %v3732 = vld [vmem:[%s802 + $0x1ef] sm:$0xff]
      %v3733 = vpack.c.bf16 %v3702, %v3701
      %v3734 = vpack.c.bf16 %v3704, %v3703
      %v3735 = vpack.c.bf16 %v3706, %v3705
      %v3736 = vpack.c.bf16 %v3708, %v3707
      %v3737 = vpack.c.bf16 %v3710, %v3709
      %v3738 = vpack.c.bf16 %v3712, %v3711
      %v3739 = vpack.c.bf16 %v3714, %v3713
      %v3740 = vpack.c.bf16 %v3716, %v3715
      %v3741 = vpack.c.bf16 %v3718, %v3717
      %v3742 = vpack.c.bf16 %v3720, %v3719
      %v3743 = vpack.c.bf16 %v3722, %v3721
      %v3744 = vpack.c.bf16 %v3724, %v3723
      %v3745 = vpack.c.bf16 %v3726, %v3725
      %v3746 = vpack.c.bf16 %v3728, %v3727
      %v3747 = vpack.c.bf16 %v3730, %v3729
      %v3748 = vpack.c.bf16 %v3732, %v3731
      %v3749 = vld [vmem:[%s802 + $0x8] sm:$0xff]
      %v3750 = vld [vmem:[%s802 + $0x10] sm:$0xff]
      %v3751 = vld [vmem:[%s802 + $0x28] sm:$0xff]
      %v3752 = vld [vmem:[%s802 + $0x30] sm:$0xff]
      %v3753 = vld [vmem:[%s802 + $0x48] sm:$0xff]
      %v3754 = vld [vmem:[%s802 + $0x50] sm:$0xff]
      %v3755 = vld [vmem:[%s802 + $0x68] sm:$0xff]
      %v3756 = vld [vmem:[%s802 + $0x70] sm:$0xff]
      %v3757 = vld [vmem:[%s802 + $0x88] sm:$0xff]
      %v3758 = vld [vmem:[%s802 + $0x90] sm:$0xff]
      %v3759 = vld [vmem:[%s802 + $0xa8] sm:$0xff]
      %v3760 = vld [vmem:[%s802 + $0xb0] sm:$0xff]
      %v3761 = vld [vmem:[%s802 + $0xc8] sm:$0xff]
      %v3762 = vld [vmem:[%s802 + $0xd0] sm:$0xff]
      %v3763 = vld [vmem:[%s802 + $0xe8] sm:$0xff]
      %v3764 = vld [vmem:[%s802 + $0xf0] sm:$0xff]
      %v3765 = vld [vmem:[%s802 + $0x108] sm:$0xff]
      %v3766 = vld [vmem:[%s802 + $0x110] sm:$0xff]
      %v3767 = vld [vmem:[%s802 + $0x128] sm:$0xff]
      %v3768 = vld [vmem:[%s802 + $0x130] sm:$0xff]
      %v3769 = vld [vmem:[%s802 + $0x148] sm:$0xff]
      %v3770 = vld [vmem:[%s802 + $0x150] sm:$0xff]
      %v3771 = vld [vmem:[%s802 + $0x168] sm:$0xff]
      %v3772 = vld [vmem:[%s802 + $0x170] sm:$0xff]
      %v3773 = vld [vmem:[%s802 + $0x188] sm:$0xff]
      %v3774 = vld [vmem:[%s802 + $0x190] sm:$0xff]
      %v3775 = vld [vmem:[%s802 + $0x1a8] sm:$0xff]
      %v3776 = vld [vmem:[%s802 + $0x1b0] sm:$0xff]
      %v3777 = vld [vmem:[%s802 + $0x1c8] sm:$0xff]
      %v3778 = vld [vmem:[%s802 + $0x1d0] sm:$0xff]
      %v3779 = vld [vmem:[%s802 + $0x1e8] sm:$0xff]
      %v3780 = vld [vmem:[%s802 + $0x1f0] sm:$0xff]
      %v3781 = vpack.c.bf16 %v3750, %v3749
      %v3782 = vpack.c.bf16 %v3752, %v3751
      %v3783 = vpack.c.bf16 %v3754, %v3753
      %v3784 = vpack.c.bf16 %v3756, %v3755
      %v3785 = vpack.c.bf16 %v3758, %v3757
      %v3786 = vpack.c.bf16 %v3760, %v3759
      %v3787 = vpack.c.bf16 %v3762, %v3761
      %v3788 = vpack.c.bf16 %v3764, %v3763
      %v3789 = vpack.c.bf16 %v3766, %v3765
      %v3790 = vpack.c.bf16 %v3768, %v3767
      %v3791 = vpack.c.bf16 %v3770, %v3769
      %v3792 = vpack.c.bf16 %v3772, %v3771
      %v3793 = vpack.c.bf16 %v3774, %v3773
      %v3794 = vpack.c.bf16 %v3776, %v3775
      %v3795 = vpack.c.bf16 %v3778, %v3777
      %v3796 = vpack.c.bf16 %v3780, %v3779
      %v3797 = vld [vmem:[%s802 + $0x9] sm:$0xff]
      %v3798 = vld [vmem:[%s802 + $0x11] sm:$0xff]
      %v3799 = vld [vmem:[%s802 + $0x29] sm:$0xff]
      %v3800 = vld [vmem:[%s802 + $0x31] sm:$0xff]
      %v3801 = vld [vmem:[%s802 + $0x49] sm:$0xff]
      %v3802 = vld [vmem:[%s802 + $0x51] sm:$0xff]
      %v3803 = vld [vmem:[%s802 + $0x69] sm:$0xff]
      %v3804 = vld [vmem:[%s802 + $0x71] sm:$0xff]
      %v3805 = vld [vmem:[%s802 + $0x89] sm:$0xff]
      %v3806 = vld [vmem:[%s802 + $0x91] sm:$0xff]
      %v3807 = vld [vmem:[%s802 + $0xa9] sm:$0xff]
      %v3808 = vld [vmem:[%s802 + $0xb1] sm:$0xff]
      %v3809 = vld [vmem:[%s802 + $0xc9] sm:$0xff]
      %v3810 = vld [vmem:[%s802 + $0xd1] sm:$0xff]
      %v3811 = vld [vmem:[%s802 + $0xe9] sm:$0xff]
      %v3812 = vld [vmem:[%s802 + $0xf1] sm:$0xff]
      %v3813 = vld [vmem:[%s802 + $0x109] sm:$0xff]
      %v3814 = vld [vmem:[%s802 + $0x111] sm:$0xff]
      %v3815 = vld [vmem:[%s802 + $0x129] sm:$0xff]
      %v3816 = vld [vmem:[%s802 + $0x131] sm:$0xff]
      %v3817 = vld [vmem:[%s802 + $0x149] sm:$0xff]
      %v3818 = vld [vmem:[%s802 + $0x151] sm:$0xff]
      %v3819 = vld [vmem:[%s802 + $0x169] sm:$0xff]
      %v3820 = vld [vmem:[%s802 + $0x171] sm:$0xff]
      %v3821 = vld [vmem:[%s802 + $0x189] sm:$0xff]
      %v3822 = vld [vmem:[%s802 + $0x191] sm:$0xff]
      %v3823 = vld [vmem:[%s802 + $0x1a9] sm:$0xff]
      %v3824 = vld [vmem:[%s802 + $0x1b1] sm:$0xff]
      %v3825 = vld [vmem:[%s802 + $0x1c9] sm:$0xff]
      %v3826 = vld [vmem:[%s802 + $0x1d1] sm:$0xff]
      %v3827 = vld [vmem:[%s802 + $0x1e9] sm:$0xff]
      %v3828 = vld [vmem:[%s802 + $0x1f1] sm:$0xff]
      %v3829 = vpack.c.bf16 %v3798, %v3797
      %v3830 = vpack.c.bf16 %v3800, %v3799
      %v3831 = vpack.c.bf16 %v3802, %v3801
      %v3832 = vpack.c.bf16 %v3804, %v3803
      %v3833 = vpack.c.bf16 %v3806, %v3805
      %v3834 = vpack.c.bf16 %v3808, %v3807
      %v3835 = vpack.c.bf16 %v3810, %v3809
      %v3836 = vpack.c.bf16 %v3812, %v3811
      %v3837 = vpack.c.bf16 %v3814, %v3813
      %v3838 = vpack.c.bf16 %v3816, %v3815
      %v3839 = vpack.c.bf16 %v3818, %v3817
      %v3840 = vpack.c.bf16 %v3820, %v3819
      %v3841 = vpack.c.bf16 %v3822, %v3821
      %v3842 = vpack.c.bf16 %v3824, %v3823
      %v3843 = vpack.c.bf16 %v3826, %v3825
      %v3844 = vpack.c.bf16 %v3828, %v3827
      %3861 = vrot.lane.b32.xlu0 %v3493, 16
      %v3862 = vpop.permute.xlu0 %3861
      %3863 = vrot.lane.b32.xlu0 %v3494, 16
      %v3864 = vpop.permute.xlu0 %3863
      %3865 = vrot.lane.b32.xlu0 %v3495, 16
      %v3866 = vpop.permute.xlu0 %3865
      %3867 = vrot.lane.b32.xlu0 %v3496, 16
      %v3868 = vpop.permute.xlu0 %3867
      %3869 = vrot.lane.b32.xlu0 %v3497, 16
      %v3870 = vpop.permute.xlu0 %3869
      %3871 = vrot.lane.b32.xlu0 %v3498, 16
      %v3872 = vpop.permute.xlu0 %3871
      %3873 = vrot.lane.b32.xlu0 %v3499, 16
      %v3874 = vpop.permute.xlu0 %3873
      %3875 = vrot.lane.b32.xlu0 %v3500, 16
      %v3876 = vpop.permute.xlu0 %3875
      %3877 = vrot.lane.b32.xlu0 %v3501, 16
      %v3878 = vpop.permute.xlu0 %3877
      %3879 = vrot.lane.b32.xlu0 %v3502, 16
      %v3880 = vpop.permute.xlu0 %3879
      %3881 = vrot.lane.b32.xlu0 %v3503, 16
      %v3882 = vpop.permute.xlu0 %3881
      %3883 = vrot.lane.b32.xlu0 %v3504, 16
      %v3884 = vpop.permute.xlu0 %3883
      %3885 = vrot.lane.b32.xlu0 %v3505, 16
      %v3886 = vpop.permute.xlu0 %3885
      %3887 = vrot.lane.b32.xlu0 %v3506, 16
      %v3888 = vpop.permute.xlu0 %3887
      %3889 = vrot.lane.b32.xlu0 %v3507, 16
      %v3890 = vpop.permute.xlu0 %3889
      %3891 = vrot.lane.b32.xlu0 %v3508, 16
      %v3892 = vpop.permute.xlu0 %3891
      %3909 = vrot.lane.b32.xlu0 %v3541, 32
      %v3910 = vpop.permute.xlu0 %3909
      %3911 = vrot.lane.b32.xlu0 %v3542, 32
      %v3912 = vpop.permute.xlu0 %3911
      %3913 = vrot.lane.b32.xlu0 %v3543, 32
      %v3914 = vpop.permute.xlu0 %3913
      %3915 = vrot.lane.b32.xlu0 %v3544, 32
      %v3916 = vpop.permute.xlu0 %3915
      %3917 = vrot.lane.b32.xlu0 %v3545, 32
      %v3918 = vpop.permute.xlu0 %3917
      %3919 = vrot.lane.b32.xlu0 %v3546, 32
      %v3920 = vpop.permute.xlu0 %3919
      %3921 = vrot.lane.b32.xlu0 %v3547, 32
      %v3922 = vpop.permute.xlu0 %3921
      %3923 = vrot.lane.b32.xlu0 %v3548, 32
      %v3924 = vpop.permute.xlu0 %3923
      %3925 = vrot.lane.b32.xlu0 %v3549, 32
      %v3926 = vpop.permute.xlu0 %3925
      %3927 = vrot.lane.b32.xlu0 %v3550, 32
      %v3928 = vpop.permute.xlu0 %3927
      %3929 = vrot.lane.b32.xlu0 %v3551, 32
      %v3930 = vpop.permute.xlu0 %3929
      %3931 = vrot.lane.b32.xlu0 %v3552, 32
      %v3932 = vpop.permute.xlu0 %3931
      %3933 = vrot.lane.b32.xlu0 %v3553, 32
      %v3934 = vpop.permute.xlu0 %3933
      %3935 = vrot.lane.b32.xlu0 %v3554, 32
      %v3936 = vpop.permute.xlu0 %3935
      %3937 = vrot.lane.b32.xlu0 %v3555, 32
      %v3938 = vpop.permute.xlu0 %3937
      %3939 = vrot.lane.b32.xlu0 %v3556, 32
      %v3940 = vpop.permute.xlu0 %3939
      %3957 = vrot.lane.b32.xlu0 %v3589, 48
      %v3958 = vpop.permute.xlu0 %3957
      %3959 = vrot.lane.b32.xlu0 %v3590, 48
      %v3960 = vpop.permute.xlu0 %3959
      %3961 = vrot.lane.b32.xlu0 %v3591, 48
      %v3962 = vpop.permute.xlu0 %3961
      %3963 = vrot.lane.b32.xlu0 %v3592, 48
      %v3964 = vpop.permute.xlu0 %3963
      %3965 = vrot.lane.b32.xlu0 %v3593, 48
      %v3966 = vpop.permute.xlu0 %3965
      %3967 = vrot.lane.b32.xlu0 %v3594, 48
      %v3968 = vpop.permute.xlu0 %3967
      %3969 = vrot.lane.b32.xlu0 %v3595, 48
      %v3970 = vpop.permute.xlu0 %3969
      %3971 = vrot.lane.b32.xlu0 %v3596, 48
      %v3972 = vpop.permute.xlu0 %3971
      %3973 = vrot.lane.b32.xlu0 %v3597, 48
      %v3974 = vpop.permute.xlu0 %3973
      %3975 = vrot.lane.b32.xlu0 %v3598, 48
      %v3976 = vpop.permute.xlu0 %3975
      %3977 = vrot.lane.b32.xlu0 %v3599, 48
      %v3978 = vpop.permute.xlu0 %3977
      %3979 = vrot.lane.b32.xlu0 %v3600, 48
      %v3980 = vpop.permute.xlu0 %3979
      %3981 = vrot.lane.b32.xlu0 %v3601, 48
      %v3982 = vpop.permute.xlu0 %3981
      %3983 = vrot.lane.b32.xlu0 %v3602, 48
      %v3984 = vpop.permute.xlu0 %3983
      %3985 = vrot.lane.b32.xlu0 %v3603, 48
      %v3986 = vpop.permute.xlu0 %3985
      %3987 = vrot.lane.b32.xlu0 %v3604, 48
      %v3988 = vpop.permute.xlu0 %3987
      %4005 = vrot.lane.b32.xlu0 %v3637, 64
      %v4006 = vpop.permute.xlu0 %4005
      %4007 = vrot.lane.b32.xlu0 %v3638, 64
      %v4008 = vpop.permute.xlu0 %4007
      %4009 = vrot.lane.b32.xlu0 %v3639, 64
      %v4010 = vpop.permute.xlu0 %4009
      %4011 = vrot.lane.b32.xlu0 %v3640, 64
      %v4012 = vpop.permute.xlu0 %4011
      %4013 = vrot.lane.b32.xlu0 %v3641, 64
      %v4014 = vpop.permute.xlu0 %4013
      %4015 = vrot.lane.b32.xlu0 %v3642, 64
      %v4016 = vpop.permute.xlu0 %4015
      %4017 = vrot.lane.b32.xlu0 %v3643, 64
      %v4018 = vpop.permute.xlu0 %4017
      %4019 = vrot.lane.b32.xlu0 %v3644, 64
      %v4020 = vpop.permute.xlu0 %4019
      %4021 = vrot.lane.b32.xlu0 %v3645, 64
      %v4022 = vpop.permute.xlu0 %4021
      %4023 = vrot.lane.b32.xlu0 %v3646, 64
      %v4024 = vpop.permute.xlu0 %4023
      %4025 = vrot.lane.b32.xlu0 %v3647, 64
      %v4026 = vpop.permute.xlu0 %4025
      %4027 = vrot.lane.b32.xlu0 %v3648, 64
      %v4028 = vpop.permute.xlu0 %4027
      %4029 = vrot.lane.b32.xlu0 %v3649, 64
      %v4030 = vpop.permute.xlu0 %4029
      %4031 = vrot.lane.b32.xlu0 %v3650, 64
      %v4032 = vpop.permute.xlu0 %4031
      %4033 = vrot.lane.b32.xlu0 %v3651, 64
      %v4034 = vpop.permute.xlu0 %4033
      %4035 = vrot.lane.b32.xlu0 %v3652, 64
      %v4036 = vpop.permute.xlu0 %4035
      %4053 = vrot.lane.b32.xlu0 %v3685, 80
      %v4054 = vpop.permute.xlu0 %4053
      %4055 = vrot.lane.b32.xlu0 %v3686, 80
      %v4056 = vpop.permute.xlu0 %4055
      %4057 = vrot.lane.b32.xlu0 %v3687, 80
      %v4058 = vpop.permute.xlu0 %4057
      %4059 = vrot.lane.b32.xlu0 %v3688, 80
      %v4060 = vpop.permute.xlu0 %4059
      %4061 = vrot.lane.b32.xlu0 %v3689, 80
      %v4062 = vpop.permute.xlu0 %4061
      %4063 = vrot.lane.b32.xlu0 %v3690, 80
      %v4064 = vpop.permute.xlu0 %4063
      %4065 = vrot.lane.b32.xlu0 %v3691, 80
      %v4066 = vpop.permute.xlu0 %4065
      %4067 = vrot.lane.b32.xlu0 %v3692, 80
      %v4068 = vpop.permute.xlu0 %4067
      %4069 = vrot.lane.b32.xlu0 %v3693, 80
      %v4070 = vpop.permute.xlu0 %4069
      %4071 = vrot.lane.b32.xlu0 %v3694, 80
      %v4072 = vpop.permute.xlu0 %4071
      %4073 = vrot.lane.b32.xlu0 %v3695, 80
      %v4074 = vpop.permute.xlu0 %4073
      %4075 = vrot.lane.b32.xlu0 %v3696, 80
      %v4076 = vpop.permute.xlu0 %4075
      %4077 = vrot.lane.b32.xlu0 %v3697, 80
      %v4078 = vpop.permute.xlu0 %4077
      %4079 = vrot.lane.b32.xlu0 %v3698, 80
      %v4080 = vpop.permute.xlu0 %4079
      %4081 = vrot.lane.b32.xlu0 %v3699, 80
      %v4082 = vpop.permute.xlu0 %4081
      %4083 = vrot.lane.b32.xlu0 %v3700, 80
      %v4084 = vpop.permute.xlu0 %4083
      %4101 = vrot.lane.b32.xlu0 %v3733, 96
      %v4102 = vpop.permute.xlu0 %4101
      %4103 = vrot.lane.b32.xlu0 %v3734, 96
      %v4104 = vpop.permute.xlu0 %4103
      %4105 = vrot.lane.b32.xlu0 %v3735, 96
      %v4106 = vpop.permute.xlu0 %4105
      %4107 = vrot.lane.b32.xlu0 %v3736, 96
      %v4108 = vpop.permute.xlu0 %4107
      %4109 = vrot.lane.b32.xlu0 %v3737, 96
      %v4110 = vpop.permute.xlu0 %4109
      %4111 = vrot.lane.b32.xlu0 %v3738, 96
      %v4112 = vpop.permute.xlu0 %4111
      %4113 = vrot.lane.b32.xlu0 %v3739, 96
      %v4114 = vpop.permute.xlu0 %4113
      %4115 = vrot.lane.b32.xlu0 %v3740, 96
      %v4116 = vpop.permute.xlu0 %4115
      %4117 = vrot.lane.b32.xlu0 %v3741, 96
      %v4118 = vpop.permute.xlu0 %4117
      %4119 = vrot.lane.b32.xlu0 %v3742, 96
      %v4120 = vpop.permute.xlu0 %4119
      %4121 = vrot.lane.b32.xlu0 %v3743, 96
      %v4122 = vpop.permute.xlu0 %4121
      %4123 = vrot.lane.b32.xlu0 %v3744, 96
      %v4124 = vpop.permute.xlu0 %4123
      %4125 = vrot.lane.b32.xlu0 %v3745, 96
      %v4126 = vpop.permute.xlu0 %4125
      %4127 = vrot.lane.b32.xlu0 %v3746, 96
      %v4128 = vpop.permute.xlu0 %4127
      %4129 = vrot.lane.b32.xlu0 %v3747, 96
      %v4130 = vpop.permute.xlu0 %4129
      %4131 = vrot.lane.b32.xlu0 %v3748, 96
      %v4132 = vpop.permute.xlu0 %4131
      %4149 = vrot.lane.b32.xlu0 %v3781, 112
      %v4150 = vpop.permute.xlu0 %4149
      %4151 = vrot.lane.b32.xlu0 %v3782, 112
      %v4152 = vpop.permute.xlu0 %4151
      %4153 = vrot.lane.b32.xlu0 %v3783, 112
      %v4154 = vpop.permute.xlu0 %4153
      %4155 = vrot.lane.b32.xlu0 %v3784, 112
      %v4156 = vpop.permute.xlu0 %4155
      %4157 = vrot.lane.b32.xlu0 %v3785, 112
      %v4158 = vpop.permute.xlu0 %4157
      %4159 = vrot.lane.b32.xlu0 %v3786, 112
      %v4160 = vpop.permute.xlu0 %4159
      %4161 = vrot.lane.b32.xlu0 %v3787, 112
      %v4162 = vpop.permute.xlu0 %4161
      %4163 = vrot.lane.b32.xlu0 %v3788, 112
      %v4164 = vpop.permute.xlu0 %4163
      %4165 = vrot.lane.b32.xlu0 %v3789, 112
      %v4166 = vpop.permute.xlu0 %4165
      %4167 = vrot.lane.b32.xlu0 %v3790, 112
      %v4168 = vpop.permute.xlu0 %4167
      %4169 = vrot.lane.b32.xlu0 %v3791, 112
      %v4170 = vpop.permute.xlu0 %4169
      %4171 = vrot.lane.b32.xlu0 %v3792, 112
      %v4172 = vpop.permute.xlu0 %4171
      %4173 = vrot.lane.b32.xlu0 %v3793, 112
      %v4174 = vpop.permute.xlu0 %4173
      %4175 = vrot.lane.b32.xlu0 %v3794, 112
      %v4176 = vpop.permute.xlu0 %4175
      %4177 = vrot.lane.b32.xlu0 %v3795, 112
      %v4178 = vpop.permute.xlu0 %4177
      %4179 = vrot.lane.b32.xlu0 %v3796, 112
      %v4180 = vpop.permute.xlu0 %4179
      %v4183 = vsel %vm388, %v3445, %v3862
      %v4186 = vsel %vm388, %v3446, %v3864
      %v4189 = vsel %vm388, %v3447, %v3866
      %v4192 = vsel %vm388, %v3448, %v3868
      %v4195 = vsel %vm388, %v3449, %v3870
      %v4198 = vsel %vm388, %v3450, %v3872
      %v4201 = vsel %vm388, %v3451, %v3874
      %v4204 = vsel %vm388, %v3452, %v3876
      %v4207 = vsel %vm388, %v3453, %v3878
      %v4210 = vsel %vm388, %v3454, %v3880
      %v4213 = vsel %vm388, %v3455, %v3882
      %v4216 = vsel %vm388, %v3456, %v3884
      %v4219 = vsel %vm388, %v3457, %v3886
      %v4222 = vsel %vm388, %v3458, %v3888
      %v4225 = vsel %vm388, %v3459, %v3890
      %v4228 = vsel %vm388, %v3460, %v3892
      %v4230 = vsel %vm1331, %v4183, %v3910
      %v4232 = vsel %vm1331, %v4186, %v3912
      %v4234 = vsel %vm1331, %v4189, %v3914
      %v4236 = vsel %vm1331, %v4192, %v3916
      %v4238 = vsel %vm1331, %v4195, %v3918
      %v4240 = vsel %vm1331, %v4198, %v3920
      %v4242 = vsel %vm1331, %v4201, %v3922
      %v4244 = vsel %vm1331, %v4204, %v3924
      %v4246 = vsel %vm1331, %v4207, %v3926
      %v4248 = vsel %vm1331, %v4210, %v3928
      %v4250 = vsel %vm1331, %v4213, %v3930
      %v4252 = vsel %vm1331, %v4216, %v3932
      %v4254 = vsel %vm1331, %v4219, %v3934
      %v4256 = vsel %vm1331, %v4222, %v3936
      %v4258 = vsel %vm1331, %v4225, %v3938
      %v4260 = vsel %vm1331, %v4228, %v3940
      %v4262 = vsel %vm1364, %v4230, %v3958
      %v4264 = vsel %vm1364, %v4232, %v3960
      %v4266 = vsel %vm1364, %v4234, %v3962
      %v4268 = vsel %vm1364, %v4236, %v3964
      %v4270 = vsel %vm1364, %v4238, %v3966
      %v4272 = vsel %vm1364, %v4240, %v3968
      %v4274 = vsel %vm1364, %v4242, %v3970
      %v4276 = vsel %vm1364, %v4244, %v3972
      %v4278 = vsel %vm1364, %v4246, %v3974
      %v4280 = vsel %vm1364, %v4248, %v3976
      %v4282 = vsel %vm1364, %v4250, %v3978
      %v4284 = vsel %vm1364, %v4252, %v3980
      %v4286 = vsel %vm1364, %v4254, %v3982
      %v4288 = vsel %vm1364, %v4256, %v3984
      %v4290 = vsel %vm1364, %v4258, %v3986
      %v4292 = vsel %vm1364, %v4260, %v3988
      %v4294 = vsel %vm1397, %v4262, %v4006
      %v4296 = vsel %vm1397, %v4264, %v4008
      %v4298 = vsel %vm1397, %v4266, %v4010
      %v4300 = vsel %vm1397, %v4268, %v4012
      %v4302 = vsel %vm1397, %v4270, %v4014
      %v4304 = vsel %vm1397, %v4272, %v4016
      %v4306 = vsel %vm1397, %v4274, %v4018
      %v4308 = vsel %vm1397, %v4276, %v4020
      %v4310 = vsel %vm1397, %v4278, %v4022
      %v4312 = vsel %vm1397, %v4280, %v4024
      %v4314 = vsel %vm1397, %v4282, %v4026
      %v4316 = vsel %vm1397, %v4284, %v4028
      %v4318 = vsel %vm1397, %v4286, %v4030
      %v4320 = vsel %vm1397, %v4288, %v4032
      %v4322 = vsel %vm1397, %v4290, %v4034
      %v4324 = vsel %vm1397, %v4292, %v4036
      %v4326 = vsel %vm1430, %v4294, %v4054
      %v4328 = vsel %vm1430, %v4296, %v4056
      %v4330 = vsel %vm1430, %v4298, %v4058
      %v4332 = vsel %vm1430, %v4300, %v4060
      %v4334 = vsel %vm1430, %v4302, %v4062
      %v4336 = vsel %vm1430, %v4304, %v4064
      %v4338 = vsel %vm1430, %v4306, %v4066
      %v4340 = vsel %vm1430, %v4308, %v4068
      %v4342 = vsel %vm1430, %v4310, %v4070
      %v4344 = vsel %vm1430, %v4312, %v4072
      %v4346 = vsel %vm1430, %v4314, %v4074
      %v4348 = vsel %vm1430, %v4316, %v4076
      %v4350 = vsel %vm1430, %v4318, %v4078
      %v4352 = vsel %vm1430, %v4320, %v4080
      %v4354 = vsel %vm1430, %v4322, %v4082
      %v4356 = vsel %vm1430, %v4324, %v4084
      %v4358 = vsel %vm1463, %v4326, %v4102
      %v4360 = vsel %vm1463, %v4328, %v4104
      %v4362 = vsel %vm1463, %v4330, %v4106
      %v4364 = vsel %vm1463, %v4332, %v4108
      %v4366 = vsel %vm1463, %v4334, %v4110
      %v4368 = vsel %vm1463, %v4336, %v4112
      %v4370 = vsel %vm1463, %v4338, %v4114
      %v4372 = vsel %vm1463, %v4340, %v4116
      %v4374 = vsel %vm1463, %v4342, %v4118
      %v4376 = vsel %vm1463, %v4344, %v4120
      %v4378 = vsel %vm1463, %v4346, %v4122
      %v4380 = vsel %vm1463, %v4348, %v4124
      %v4382 = vsel %vm1463, %v4350, %v4126
      %v4384 = vsel %vm1463, %v4352, %v4128
      %v4386 = vsel %vm1463, %v4354, %v4130
      %v4388 = vsel %vm1463, %v4356, %v4132
      %v4390 = vsel %vm1496, %v4358, %v4150
      %v4393 = vsel %vm1496, %v4360, %v4152
      %v4396 = vsel %vm1496, %v4362, %v4154
      %v4399 = vsel %vm1496, %v4364, %v4156
      %v4402 = vsel %vm1496, %v4366, %v4158
      %v4405 = vsel %vm1496, %v4368, %v4160
      %v4408 = vsel %vm1496, %v4370, %v4162
      %v4411 = vsel %vm1496, %v4372, %v4164
      %v4414 = vsel %vm1496, %v4374, %v4166
      %v4417 = vsel %vm1496, %v4376, %v4168
      %v4420 = vsel %vm1496, %v4378, %v4170
      %v4423 = vsel %vm1496, %v4380, %v4172
      %v4426 = vsel %vm1496, %v4382, %v4174
      %v4429 = vsel %vm1496, %v4384, %v4176
      %v4432 = vsel %vm1496, %v4386, %v4178
      %v4435 = vsel %vm1496, %v4388, %v4180
      %v4438 = vlaneseq
      %v4439 = vshrl.u32 %v4438, 7
      %v4440 = vsub.s32 0, %v4439
      %v4441 = vrot.slane %v3412, %v4440
      %v4461 = vunpack.c.l.b16 %v3393
      %v4462 = vunpack.c.l.b16 %v3394
      %v4463 = vunpack.c.l.b16 %v3395
      %v4464 = vunpack.c.l.b16 %v3396
      %v4465 = vunpack.c.l.b16 %v3397
      %v4466 = vunpack.c.l.b16 %v3398
      %v4467 = vunpack.c.l.b16 %v3399
      %v4468 = vunpack.c.l.b16 %v3400
      %v4469 = vunpack.c.l.b16 %v3401
      %v4470 = vunpack.c.l.b16 %v3402
      %v4471 = vunpack.c.l.b16 %v3403
      %v4472 = vunpack.c.l.b16 %v3404
      %v4473 = vunpack.c.l.b16 %v3405
      %v4474 = vunpack.c.l.b16 %v3406
      %v4475 = vunpack.c.l.b16 %v3407
      %v4476 = vunpack.c.l.b16 %v3408
      %v4477 = vunpack.c.l.b16 %v3409
      %v4478 = vunpack.c.l.b16 %v3410
      %v4479 = vpack.c.b16 %v4462, %v4461
      %v4480 = vpack.c.b16 %v4464, %v4463
      %v4481 = vpack.c.b16 %v4466, %v4465
      %v4482 = vpack.c.b16 %v4468, %v4467
      %v4483 = vpack.c.b16 %v4470, %v4469
      %v4484 = vpack.c.b16 %v4472, %v4471
      %v4485 = vpack.c.b16 %v4474, %v4473
      %v4486 = vpack.c.b16 %v4476, %v4475
      %v4487 = vpack.c.b16 %v4478, %v4477
      %v4498 = vsel %vm388, %v3829, 0
      %v4501 = vsel %vm388, %v3830, 0
      %v4504 = vsel %vm388, %v3831, 0
      %v4507 = vsel %vm388, %v3832, 0
      %v4510 = vsel %vm388, %v3833, 0
      %v4513 = vsel %vm388, %v3834, 0
      %v4516 = vsel %vm388, %v3835, 0
      %v4519 = vsel %vm388, %v3836, 0
      %v4522 = vsel %vm388, %v3837, 0
      %v4525 = vsel %vm388, %v3838, 0
      %v4528 = vsel %vm388, %v3839, 0
      %v4531 = vsel %vm388, %v3840, 0
      %v4534 = vsel %vm388, %v3841, 0
      %v4537 = vsel %vm388, %v3842, 0
      %v4540 = vsel %vm388, %v3843, 0
      %v4543 = vsel %vm388, %v3844, 0
      %4545 = vmatprep.subr.bf16.mxu0 0
      %4546 = vmatpush1.bf16.msra.mxu0 %v4479
      %4547 = vmatprep.subr.bf16.mxu0 0
      %4548 = vmatpush1.bf16.msra.mxu0 %v4480
      %4549 = vmatprep.subr.bf16.mxu0 0
      %4550 = vmatpush1.bf16.msra.mxu0 %v4481
      %4551 = vmatprep.subr.bf16.mxu0 0
      %4552 = vmatpush1.bf16.msra.mxu0 %v4482
      %4553 = vmatprep.subr.bf16.mxu0 0
      %4554 = vmatpush1.bf16.msra.mxu0 %v4483
      %4555 = vmatprep.subr.bf16.mxu0 0
      %4556 = vmatpush1.bf16.msra.mxu0 %v4484
      %4557 = vmatprep.subr.bf16.mxu0 0
      %4558 = vmatpush1.bf16.msra.mxu0 %v4485
      %4559 = vmatprep.subr.bf16.mxu0 0
      %4560 = vmatpush1.bf16.msra.mxu0 %v4486
      %4561 = vmatprep.subr.bf16.mxu0 0
      %4562 = vmatpush1.bf16.msra.mxu0 %v4487
      %4563 = vmatprep.subr.bf16.mxu0 0
      %4564 = vmatpush1.bf16.msra.mxu0 0
      %4565 = vmatprep.subr.bf16.mxu0 0
      %4566 = vmatpush1.bf16.msra.mxu0 0
      %4567 = vmatprep.subr.bf16.mxu0 0
      %4568 = vmatpush1.bf16.msra.mxu0 0
      %4569 = vmatprep.subr.bf16.mxu0 0
      %4570 = vmatpush1.bf16.msra.mxu0 0
      %4571 = vmatprep.subr.bf16.mxu0 0
      %4572 = vmatpush1.bf16.msra.mxu0 0
      %4573 = vmatprep.subr.bf16.mxu0 0
      %4574 = vmatpush1.bf16.msra.mxu0 0
      %4575 = vmatprep.subr.bf16.mxu0 0
      %4576 = vmatpush1.bf16.msra.mxu0 0
      %4577 = vmatprep.mubr.bf16.mxu0 %v4498
      %4578 = vmatmul.mubr.bf16.gmra.mrb[0].mxu0 %v4390
      %v4579 = vpop.f32.mrb[0].mxu0
      %v4580 = vadd.f32 %v4441, %v4579
      %v4581 = vpop.f32.mrb[0].mxu0
      %v4582 = vpop.f32.mrb[0].mxu0
      %v4583 = vadd.f32 %v4441, %v4582
      %v4584 = vpop.f32.mrb[0].mxu0
      %4585 = vmatprep.mubr.bf16.mxu0 %v4501
      %4586 = vmatmul.mubr.bf16.gmra.mrb[0].mxu0 %v4393
      %v4587 = vpop.f32.mrb[0].mxu0
      %v4588 = vadd.f32 %v4441, %v4587
      %v4589 = vpop.f32.mrb[0].mxu0
      %v4590 = vpop.f32.mrb[0].mxu0
      %v4591 = vadd.f32 %v4441, %v4590
      %v4592 = vpop.f32.mrb[0].mxu0
      %4593 = vmatprep.mubr.bf16.mxu0 %v4504
      %4594 = vmatmul.mubr.bf16.gmra.mrb[0].mxu0 %v4396
      %v4595 = vpop.f32.mrb[0].mxu0
      %v4596 = vadd.f32 %v4441, %v4595
      %v4597 = vpop.f32.mrb[0].mxu0
      %v4598 = vpop.f32.mrb[0].mxu0
      %v4599 = vadd.f32 %v4441, %v4598
      %v4600 = vpop.f32.mrb[0].mxu0
      %4601 = vmatprep.mubr.bf16.mxu0 %v4507
      %4602 = vmatmul.mubr.bf16.gmra.mrb[0].mxu0 %v4399
      %v4603 = vpop.f32.mrb[0].mxu0
      %v4604 = vadd.f32 %v4441, %v4603
      %v4605 = vpop.f32.mrb[0].mxu0
      %v4606 = vpop.f32.mrb[0].mxu0
      %v4607 = vadd.f32 %v4441, %v4606
      %v4608 = vpop.f32.mrb[0].mxu0
      %4609 = vmatprep.mubr.bf16.mxu0 %v4510
      %4610 = vmatmul.mubr.bf16.gmra.mrb[0].mxu0 %v4402
      %v4611 = vpop.f32.mrb[0].mxu0
      %v4612 = vadd.f32 %v4441, %v4611
      %v4613 = vpop.f32.mrb[0].mxu0
      %v4614 = vpop.f32.mrb[0].mxu0
      %v4615 = vadd.f32 %v4441, %v4614
      %v4616 = vpop.f32.mrb[0].mxu0
      %4617 = vmatprep.mubr.bf16.mxu0 %v4513
      %4618 = vmatmul.mubr.bf16.gmra.mrb[0].mxu0 %v4405
      %v4619 = vpop.f32.mrb[0].mxu0
      %v4620 = vadd.f32 %v4441, %v4619
      %v4621 = vpop.f32.mrb[0].mxu0
      %v4622 = vpop.f32.mrb[0].mxu0
      %v4623 = vadd.f32 %v4441, %v4622
      %v4624 = vpop.f32.mrb[0].mxu0
      %4625 = vmatprep.mubr.bf16.mxu0 %v4516
      %4626 = vmatmul.mubr.bf16.gmra.mrb[0].mxu0 %v4408
      %v4627 = vpop.f32.mrb[0].mxu0
      %v4628 = vadd.f32 %v4441, %v4627
      %v4629 = vpop.f32.mrb[0].mxu0
      %v4630 = vpop.f32.mrb[0].mxu0
      %v4631 = vadd.f32 %v4441, %v4630
      %v4632 = vpop.f32.mrb[0].mxu0
      %4633 = vmatprep.mubr.bf16.mxu0 %v4519
      %4634 = vmatmul.mubr.bf16.gmra.mrb[0].mxu0 %v4411
      %v4635 = vpop.f32.mrb[0].mxu0
      %v4636 = vadd.f32 %v4441, %v4635
      %v4637 = vpop.f32.mrb[0].mxu0
      %v4638 = vpop.f32.mrb[0].mxu0
      %v4639 = vadd.f32 %v4441, %v4638
      %v4640 = vpop.f32.mrb[0].mxu0
      %4641 = vmatprep.mubr.bf16.mxu0 %v4522
      %4642 = vmatmul.mubr.bf16.gmra.mrb[0].mxu0 %v4414
      %v4643 = vpop.f32.mrb[0].mxu0
      %v4644 = vadd.f32 %v4441, %v4643
      %v4645 = vpop.f32.mrb[0].mxu0
      %v4646 = vpop.f32.mrb[0].mxu0
      %v4647 = vadd.f32 %v4441, %v4646
      %v4648 = vpop.f32.mrb[0].mxu0
      %4649 = vmatprep.mubr.bf16.mxu0 %v4525
      %4650 = vmatmul.mubr.bf16.gmra.mrb[0].mxu0 %v4417
      %v4651 = vpop.f32.mrb[0].mxu0
      %v4652 = vadd.f32 %v4441, %v4651
      %v4653 = vpop.f32.mrb[0].mxu0
      %v4654 = vpop.f32.mrb[0].mxu0
      %v4655 = vadd.f32 %v4441, %v4654
      %v4656 = vpop.f32.mrb[0].mxu0
      %4657 = vmatprep.mubr.bf16.mxu0 %v4528
      %4658 = vmatmul.mubr.bf16.gmra.mrb[0].mxu0 %v4420
      %v4659 = vpop.f32.mrb[0].mxu0
      %v4660 = vadd.f32 %v4441, %v4659
      %v4661 = vpop.f32.mrb[0].mxu0
      %v4662 = vpop.f32.mrb[0].mxu0
      %v4663 = vadd.f32 %v4441, %v4662
      %v4664 = vpop.f32.mrb[0].mxu0
      %4665 = vmatprep.mubr.bf16.mxu0 %v4531
      %4666 = vmatmul.mubr.bf16.gmra.mrb[0].mxu0 %v4423
      %v4667 = vpop.f32.mrb[0].mxu0
      %v4668 = vadd.f32 %v4441, %v4667
      %v4669 = vpop.f32.mrb[0].mxu0
      %v4670 = vpop.f32.mrb[0].mxu0
      %v4671 = vadd.f32 %v4441, %v4670
      %v4672 = vpop.f32.mrb[0].mxu0
      %4673 = vmatprep.mubr.bf16.mxu0 %v4534
      %4674 = vmatmul.mubr.bf16.gmra.mrb[0].mxu0 %v4426
      %v4675 = vpop.f32.mrb[0].mxu0
      %v4676 = vadd.f32 %v4441, %v4675
      %v4677 = vpop.f32.mrb[0].mxu0
      %v4678 = vpop.f32.mrb[0].mxu0
      %v4679 = vadd.f32 %v4441, %v4678
      %v4680 = vpop.f32.mrb[0].mxu0
      %4681 = vmatprep.mubr.bf16.mxu0 %v4537
      %4682 = vmatmul.mubr.bf16.gmra.mrb[0].mxu0 %v4429
      %v4683 = vpop.f32.mrb[0].mxu0
      %v4684 = vadd.f32 %v4441, %v4683
      %v4685 = vpop.f32.mrb[0].mxu0
      %v4686 = vpop.f32.mrb[0].mxu0
      %v4687 = vadd.f32 %v4441, %v4686
      %v4688 = vpop.f32.mrb[0].mxu0
      %4689 = vmatprep.mubr.bf16.mxu0 %v4540
      %4690 = vmatmul.mubr.bf16.gmra.mrb[0].mxu0 %v4432
      %v4691 = vpop.f32.mrb[0].mxu0
      %v4692 = vadd.f32 %v4441, %v4691
      %v4693 = vpop.f32.mrb[0].mxu0
      %v4694 = vpop.f32.mrb[0].mxu0
      %v4695 = vadd.f32 %v4441, %v4694
      %v4696 = vpop.f32.mrb[0].mxu0
      %4697 = vmatprep.mubr.bf16.mxu0 %v4543
      %4698 = vmatmul.mubr.bf16.gmra.mrb[0].mxu0 %v4435
      %v4699 = vpop.f32.mrb[0].mxu0
      %v4700 = vadd.f32 %v4441, %v4699
      %v4701 = vpop.f32.mrb[0].mxu0
      %v4702 = vpop.f32.mrb[0].mxu0
      %v4703 = vadd.f32 %v4441, %v4702
      %v4704 = vpop.f32.mrb[0].mxu0
      %4705 = vdwg.mxu0
      %v4706 = vmax.f32 %v4580, 0.0
      %v4707 = vmax.f32 %v4583, 0.0
      %v4708 = vmax.f32 %v4588, 0.0
      %v4709 = vmax.f32 %v4591, 0.0
      %v4710 = vmax.f32 %v4596, 0.0
      %v4711 = vmax.f32 %v4599, 0.0
      %v4712 = vmax.f32 %v4604, 0.0
      %v4713 = vmax.f32 %v4607, 0.0
      %v4714 = vmax.f32 %v4612, 0.0
      %v4715 = vmax.f32 %v4615, 0.0
      %v4716 = vmax.f32 %v4620, 0.0
      %v4717 = vmax.f32 %v4623, 0.0
      %v4718 = vmax.f32 %v4628, 0.0
      %v4719 = vmax.f32 %v4631, 0.0
      %v4720 = vmax.f32 %v4636, 0.0
      %v4721 = vmax.f32 %v4639, 0.0
      %v4722 = vmax.f32 %v4644, 0.0
      %v4723 = vmax.f32 %v4647, 0.0
      %v4724 = vmax.f32 %v4652, 0.0
      %v4725 = vmax.f32 %v4655, 0.0
      %v4726 = vmax.f32 %v4660, 0.0
      %v4727 = vmax.f32 %v4663, 0.0
      %v4728 = vmax.f32 %v4668, 0.0
      %v4729 = vmax.f32 %v4671, 0.0
      %v4730 = vmax.f32 %v4676, 0.0
      %v4731 = vmax.f32 %v4679, 0.0
      %v4732 = vmax.f32 %v4684, 0.0
      %v4733 = vmax.f32 %v4687, 0.0
      %v4734 = vmax.f32 %v4692, 0.0
      %v4735 = vmax.f32 %v4695, 0.0
      %v4736 = vmax.f32 %v4700, 0.0
      %v4737 = vmax.f32 %v4703, 0.0
      %4738 = vst.msk [vmem:[%s398 + $0x8] sm:$0xff] %vm388, %v4706
      %4739 = vst.msk [vmem:[%s398 + $0x10] sm:$0xff] %vm388, %v4707
      %4740 = vst.msk [vmem:[%s398 + $0x28] sm:$0xff] %vm388, %v4708
      %4741 = vst.msk [vmem:[%s398 + $0x30] sm:$0xff] %vm388, %v4709
      %4742 = vst.msk [vmem:[%s398 + $0x48] sm:$0xff] %vm388, %v4710
      %4743 = vst.msk [vmem:[%s398 + $0x50] sm:$0xff] %vm388, %v4711
      %4744 = vst.msk [vmem:[%s398 + $0x68] sm:$0xff] %vm388, %v4712
      %4745 = vst.msk [vmem:[%s398 + $0x70] sm:$0xff] %vm388, %v4713
      %4746 = vst.msk [vmem:[%s398 + $0x88] sm:$0xff] %vm388, %v4714
      %4747 = vst.msk [vmem:[%s398 + $0x90] sm:$0xff] %vm388, %v4715
      %4748 = vst.msk [vmem:[%s398 + $0xa8] sm:$0xff] %vm388, %v4716
      %4749 = vst.msk [vmem:[%s398 + $0xb0] sm:$0xff] %vm388, %v4717
      %4750 = vst.msk [vmem:[%s398 + $0xc8] sm:$0xff] %vm388, %v4718
      %4751 = vst.msk [vmem:[%s398 + $0xd0] sm:$0xff] %vm388, %v4719
      %4752 = vst.msk [vmem:[%s398 + $0xe8] sm:$0xff] %vm388, %v4720
      %4753 = vst.msk [vmem:[%s398 + $0xf0] sm:$0xff] %vm388, %v4721
      %4754 = vst.msk [vmem:[%s398 + $0x108] sm:$0xff] %vm388, %v4722
      %4755 = vst.msk [vmem:[%s398 + $0x110] sm:$0xff] %vm388, %v4723
      %4756 = vst.msk [vmem:[%s398 + $0x128] sm:$0xff] %vm388, %v4724
      %4757 = vst.msk [vmem:[%s398 + $0x130] sm:$0xff] %vm388, %v4725
      %4758 = vst.msk [vmem:[%s398 + $0x148] sm:$0xff] %vm388, %v4726
      %4759 = vst.msk [vmem:[%s398 + $0x150] sm:$0xff] %vm388, %v4727
      %4760 = vst.msk [vmem:[%s398 + $0x168] sm:$0xff] %vm388, %v4728
      %4761 = vst.msk [vmem:[%s398 + $0x170] sm:$0xff] %vm388, %v4729
      %4762 = vst.msk [vmem:[%s398 + $0x188] sm:$0xff] %vm388, %v4730
      %4763 = vst.msk [vmem:[%s398 + $0x190] sm:$0xff] %vm388, %v4731
      %4764 = vst.msk [vmem:[%s398 + $0x1a8] sm:$0xff] %vm388, %v4732
      %4765 = vst.msk [vmem:[%s398 + $0x1b0] sm:$0xff] %vm388, %v4733
      %4766 = vst.msk [vmem:[%s398 + $0x1c8] sm:$0xff] %vm388, %v4734
      %4767 = vst.msk [vmem:[%s398 + $0x1d0] sm:$0xff] %vm388, %v4735
      %4768 = vst.msk [vmem:[%s398 + $0x1e8] sm:$0xff] %vm388, %v4736
      %4769 = vst.msk [vmem:[%s398 + $0x1f0] sm:$0xff] %vm388, %v4737
      %s4770 = scalar_lea.vmem %s3, 72
      %v4771 = vld [vmem:[%s4770] sm:$0xf]
      %v4772 = vld [vmem:[%s4770 + $0x4] sm:$0xf]
      %v4773 = vld [vmem:[%s4770 + $0x8] sm:$0xf]
      %v4774 = vld [vmem:[%s4770 + $0xc] sm:$0xf]
      %v4775 = vld [vmem:[%s4770 + $0x10] sm:$0xf]
      %v4776 = vld [vmem:[%s4770 + $0x14] sm:$0xf]
      %v4777 = vld [vmem:[%s4770 + $0x18] sm:$0xf]
      %v4778 = vld [vmem:[%s4770 + $0x1c] sm:$0xf]
      %v4779 = vld [vmem:[%s4770 + $0x20] sm:$0xf]
      %v4780 = vld [vmem:[%s4770 + $0x24] sm:$0xf]
      %v4781 = vld [vmem:[%s4770 + $0x28] sm:$0xf]
      %v4782 = vld [vmem:[%s4770 + $0x2c] sm:$0xf]
      %v4783 = vld [vmem:[%s4770 + $0x30] sm:$0xf]
      %v4784 = vld [vmem:[%s4770 + $0x34] sm:$0xf]
      %v4785 = vld [vmem:[%s4770 + $0x38] sm:$0xf]
      %v4786 = vld [vmem:[%s4770 + $0x3c] sm:$0xf]
      %v4787 = vld [vmem:[%s4770 + $0x40] sm:$0xf]
      %v4788 = vld [vmem:[%s4770 + $0x44] sm:$0xf]
      %s4789 = scalar_lea.vmem %s4, 1
      %v4790 = vld [vmem:[%s4789] sm:$0x1]
      %v4791 = vld [vmem:[#allocation2 + $0x7] sm:$0xff]
      %v4792 = vld [vmem:[#allocation2 + $0xf] sm:$0xff]
      %v4793 = vld [vmem:[#allocation2 + $0x27] sm:$0xff]
      %v4794 = vld [vmem:[#allocation2 + $0x2f] sm:$0xff]
      %v4795 = vld [vmem:[#allocation2 + $0x47] sm:$0xff]
      %v4796 = vld [vmem:[#allocation2 + $0x4f] sm:$0xff]
      %v4797 = vld [vmem:[#allocation2 + $0x67] sm:$0xff]
      %v4798 = vld [vmem:[#allocation2 + $0x6f] sm:$0xff]
      %v4799 = vld [vmem:[#allocation2 + $0x87] sm:$0xff]
      %v4800 = vld [vmem:[#allocation2 + $0x8f] sm:$0xff]
      %v4801 = vld [vmem:[#allocation2 + $0xa7] sm:$0xff]
      %v4802 = vld [vmem:[#allocation2 + $0xaf] sm:$0xff]
      %v4803 = vld [vmem:[#allocation2 + $0xc7] sm:$0xff]
      %v4804 = vld [vmem:[#allocation2 + $0xcf] sm:$0xff]
      %v4805 = vld [vmem:[#allocation2 + $0xe7] sm:$0xff]
      %v4806 = vld [vmem:[#allocation2 + $0xef] sm:$0xff]
      %v4807 = vld [vmem:[#allocation2 + $0x107] sm:$0xff]
      %v4808 = vld [vmem:[#allocation2 + $0x10f] sm:$0xff]
      %v4809 = vld [vmem:[#allocation2 + $0x127] sm:$0xff]
      %v4810 = vld [vmem:[#allocation2 + $0x12f] sm:$0xff]
      %v4811 = vld [vmem:[#allocation2 + $0x147] sm:$0xff]
      %v4812 = vld [vmem:[#allocation2 + $0x14f] sm:$0xff]
      %v4813 = vld [vmem:[#allocation2 + $0x167] sm:$0xff]
      %v4814 = vld [vmem:[#allocation2 + $0x16f] sm:$0xff]
      %v4815 = vld [vmem:[#allocation2 + $0x187] sm:$0xff]
      %v4816 = vld [vmem:[#allocation2 + $0x18f] sm:$0xff]
      %v4817 = vld [vmem:[#allocation2 + $0x1a7] sm:$0xff]
      %v4818 = vld [vmem:[#allocation2 + $0x1af] sm:$0xff]
      %v4819 = vld [vmem:[#allocation2 + $0x1c7] sm:$0xff]
      %v4820 = vld [vmem:[#allocation2 + $0x1cf] sm:$0xff]
      %v4821 = vld [vmem:[#allocation2 + $0x1e7] sm:$0xff]
      %v4822 = vld [vmem:[#allocation2 + $0x1ef] sm:$0xff]
      %v4823 = vpack.c.bf16 %v4792, %v4791
      %v4824 = vpack.c.bf16 %v4794, %v4793
      %v4825 = vpack.c.bf16 %v4796, %v4795
      %v4826 = vpack.c.bf16 %v4798, %v4797
      %v4827 = vpack.c.bf16 %v4800, %v4799
      %v4828 = vpack.c.bf16 %v4802, %v4801
      %v4829 = vpack.c.bf16 %v4804, %v4803
      %v4830 = vpack.c.bf16 %v4806, %v4805
      %v4831 = vpack.c.bf16 %v4808, %v4807
      %v4832 = vpack.c.bf16 %v4810, %v4809
      %v4833 = vpack.c.bf16 %v4812, %v4811
      %v4834 = vpack.c.bf16 %v4814, %v4813
      %v4835 = vpack.c.bf16 %v4816, %v4815
      %v4836 = vpack.c.bf16 %v4818, %v4817
      %v4837 = vpack.c.bf16 %v4820, %v4819
      %v4838 = vpack.c.bf16 %v4822, %v4821
      %v4839 = vld [vmem:[#allocation2 + $0x8] sm:$0xff]
      %v4840 = vld [vmem:[#allocation2 + $0x10] sm:$0xff]
      %v4841 = vld [vmem:[#allocation2 + $0x28] sm:$0xff]
      %v4842 = vld [vmem:[#allocation2 + $0x30] sm:$0xff]
      %v4843 = vld [vmem:[#allocation2 + $0x48] sm:$0xff]
      %v4844 = vld [vmem:[#allocation2 + $0x50] sm:$0xff]
      %v4845 = vld [vmem:[#allocation2 + $0x68] sm:$0xff]
      %v4846 = vld [vmem:[#allocation2 + $0x70] sm:$0xff]
      %v4847 = vld [vmem:[#allocation2 + $0x88] sm:$0xff]
      %v4848 = vld [vmem:[#allocation2 + $0x90] sm:$0xff]
      %v4849 = vld [vmem:[#allocation2 + $0xa8] sm:$0xff]
      %v4850 = vld [vmem:[#allocation2 + $0xb0] sm:$0xff]
      %v4851 = vld [vmem:[#allocation2 + $0xc8] sm:$0xff]
      %v4852 = vld [vmem:[#allocation2 + $0xd0] sm:$0xff]
      %v4853 = vld [vmem:[#allocation2 + $0xe8] sm:$0xff]
      %v4854 = vld [vmem:[#allocation2 + $0xf0] sm:$0xff]
      %v4855 = vld [vmem:[#allocation2 + $0x108] sm:$0xff]
      %v4856 = vld [vmem:[#allocation2 + $0x110] sm:$0xff]
      %v4857 = vld [vmem:[#allocation2 + $0x128] sm:$0xff]
      %v4858 = vld [vmem:[#allocation2 + $0x130] sm:$0xff]
      %v4859 = vld [vmem:[#allocation2 + $0x148] sm:$0xff]
      %v4860 = vld [vmem:[#allocation2 + $0x150] sm:$0xff]
      %v4861 = vld [vmem:[#allocation2 + $0x168] sm:$0xff]
      %v4862 = vld [vmem:[#allocation2 + $0x170] sm:$0xff]
      %v4863 = vld [vmem:[#allocation2 + $0x188] sm:$0xff]
      %v4864 = vld [vmem:[#allocation2 + $0x190] sm:$0xff]
      %v4865 = vld [vmem:[#allocation2 + $0x1a8] sm:$0xff]
      %v4866 = vld [vmem:[#allocation2 + $0x1b0] sm:$0xff]
      %v4867 = vld [vmem:[#allocation2 + $0x1c8] sm:$0xff]
      %v4868 = vld [vmem:[#allocation2 + $0x1d0] sm:$0xff]
      %v4869 = vld [vmem:[#allocation2 + $0x1e8] sm:$0xff]
      %v4870 = vld [vmem:[#allocation2 + $0x1f0] sm:$0xff]
      %v4871 = vpack.c.bf16 %v4840, %v4839
      %v4872 = vpack.c.bf16 %v4842, %v4841
      %v4873 = vpack.c.bf16 %v4844, %v4843
      %v4874 = vpack.c.bf16 %v4846, %v4845
      %v4875 = vpack.c.bf16 %v4848, %v4847
      %v4876 = vpack.c.bf16 %v4850, %v4849
      %v4877 = vpack.c.bf16 %v4852, %v4851
      %v4878 = vpack.c.bf16 %v4854, %v4853
      %v4879 = vpack.c.bf16 %v4856, %v4855
      %v4880 = vpack.c.bf16 %v4858, %v4857
      %v4881 = vpack.c.bf16 %v4860, %v4859
      %v4882 = vpack.c.bf16 %v4862, %v4861
      %v4883 = vpack.c.bf16 %v4864, %v4863
      %v4884 = vpack.c.bf16 %v4866, %v4865
      %v4885 = vpack.c.bf16 %v4868, %v4867
      %v4886 = vpack.c.bf16 %v4870, %v4869
      %v4887 = vld [vmem:[#allocation2 + $0x9] sm:$0xff]
      %v4888 = vld [vmem:[#allocation2 + $0x11] sm:$0xff]
      %v4889 = vld [vmem:[#allocation2 + $0x29] sm:$0xff]
      %v4890 = vld [vmem:[#allocation2 + $0x31] sm:$0xff]
      %v4891 = vld [vmem:[#allocation2 + $0x49] sm:$0xff]
      %v4892 = vld [vmem:[#allocation2 + $0x51] sm:$0xff]
      %v4893 = vld [vmem:[#allocation2 + $0x69] sm:$0xff]
      %v4894 = vld [vmem:[#allocation2 + $0x71] sm:$0xff]
      %v4895 = vld [vmem:[#allocation2 + $0x89] sm:$0xff]
      %v4896 = vld [vmem:[#allocation2 + $0x91] sm:$0xff]
      %v4897 = vld [vmem:[#allocation2 + $0xa9] sm:$0xff]
      %v4898 = vld [vmem:[#allocation2 + $0xb1] sm:$0xff]
      %v4899 = vld [vmem:[#allocation2 + $0xc9] sm:$0xff]
      %v4900 = vld [vmem:[#allocation2 + $0xd1] sm:$0xff]
      %v4901 = vld [vmem:[#allocation2 + $0xe9] sm:$0xff]
      %v4902 = vld [vmem:[#allocation2 + $0xf1] sm:$0xff]
      %v4903 = vld [vmem:[#allocation2 + $0x109] sm:$0xff]
      %v4904 = vld [vmem:[#allocation2 + $0x111] sm:$0xff]
      %v4905 = vld [vmem:[#allocation2 + $0x129] sm:$0xff]
      %v4906 = vld [vmem:[#allocation2 + $0x131] sm:$0xff]
      %v4907 = vld [vmem:[#allocation2 + $0x149] sm:$0xff]
      %v4908 = vld [vmem:[#allocation2 + $0x151] sm:$0xff]
      %v4909 = vld [vmem:[#allocation2 + $0x169] sm:$0xff]
      %v4910 = vld [vmem:[#allocation2 + $0x171] sm:$0xff]
      %v4911 = vld [vmem:[#allocation2 + $0x189] sm:$0xff]
      %v4912 = vld [vmem:[#allocation2 + $0x191] sm:$0xff]
      %v4913 = vld [vmem:[#allocation2 + $0x1a9] sm:$0xff]
      %v4914 = vld [vmem:[#allocation2 + $0x1b1] sm:$0xff]
      %v4915 = vld [vmem:[#allocation2 + $0x1c9] sm:$0xff]
      %v4916 = vld [vmem:[#allocation2 + $0x1d1] sm:$0xff]
      %v4917 = vld [vmem:[#allocation2 + $0x1e9] sm:$0xff]
      %v4918 = vld [vmem:[#allocation2 + $0x1f1] sm:$0xff]
      %v4919 = vpack.c.bf16 %v4888, %v4887
      %v4920 = vpack.c.bf16 %v4890, %v4889
      %v4921 = vpack.c.bf16 %v4892, %v4891
      %v4922 = vpack.c.bf16 %v4894, %v4893
      %v4923 = vpack.c.bf16 %v4896, %v4895
      %v4924 = vpack.c.bf16 %v4898, %v4897
      %v4925 = vpack.c.bf16 %v4900, %v4899
      %v4926 = vpack.c.bf16 %v4902, %v4901
      %v4927 = vpack.c.bf16 %v4904, %v4903
      %v4928 = vpack.c.bf16 %v4906, %v4905
      %v4929 = vpack.c.bf16 %v4908, %v4907
      %v4930 = vpack.c.bf16 %v4910, %v4909
      %v4931 = vpack.c.bf16 %v4912, %v4911
      %v4932 = vpack.c.bf16 %v4914, %v4913
      %v4933 = vpack.c.bf16 %v4916, %v4915
      %v4934 = vpack.c.bf16 %v4918, %v4917
      %v4935 = vld [vmem:[%s398 + $0x7] sm:$0xff]
      %v4936 = vld [vmem:[%s398 + $0xf] sm:$0xff]
      %v4937 = vld [vmem:[%s398 + $0x27] sm:$0xff]
      %v4938 = vld [vmem:[%s398 + $0x2f] sm:$0xff]
      %v4939 = vld [vmem:[%s398 + $0x47] sm:$0xff]
      %v4940 = vld [vmem:[%s398 + $0x4f] sm:$0xff]
      %v4941 = vld [vmem:[%s398 + $0x67] sm:$0xff]
      %v4942 = vld [vmem:[%s398 + $0x6f] sm:$0xff]
      %v4943 = vld [vmem:[%s398 + $0x87] sm:$0xff]
      %v4944 = vld [vmem:[%s398 + $0x8f] sm:$0xff]
      %v4945 = vld [vmem:[%s398 + $0xa7] sm:$0xff]
      %v4946 = vld [vmem:[%s398 + $0xaf] sm:$0xff]
      %v4947 = vld [vmem:[%s398 + $0xc7] sm:$0xff]
      %v4948 = vld [vmem:[%s398 + $0xcf] sm:$0xff]
      %v4949 = vld [vmem:[%s398 + $0xe7] sm:$0xff]
      %v4950 = vld [vmem:[%s398 + $0xef] sm:$0xff]
      %v4951 = vld [vmem:[%s398 + $0x107] sm:$0xff]
      %v4952 = vld [vmem:[%s398 + $0x10f] sm:$0xff]
      %v4953 = vld [vmem:[%s398 + $0x127] sm:$0xff]
      %v4954 = vld [vmem:[%s398 + $0x12f] sm:$0xff]
      %v4955 = vld [vmem:[%s398 + $0x147] sm:$0xff]
      %v4956 = vld [vmem:[%s398 + $0x14f] sm:$0xff]
      %v4957 = vld [vmem:[%s398 + $0x167] sm:$0xff]
      %v4958 = vld [vmem:[%s398 + $0x16f] sm:$0xff]
      %v4959 = vld [vmem:[%s398 + $0x187] sm:$0xff]
      %v4960 = vld [vmem:[%s398 + $0x18f] sm:$0xff]
      %v4961 = vld [vmem:[%s398 + $0x1a7] sm:$0xff]
      %v4962 = vld [vmem:[%s398 + $0x1af] sm:$0xff]
      %v4963 = vld [vmem:[%s398 + $0x1c7] sm:$0xff]
      %v4964 = vld [vmem:[%s398 + $0x1cf] sm:$0xff]
      %v4965 = vld [vmem:[%s398 + $0x1e7] sm:$0xff]
      %v4966 = vld [vmem:[%s398 + $0x1ef] sm:$0xff]
      %v4967 = vpack.c.bf16 %v4936, %v4935
      %v4968 = vpack.c.bf16 %v4938, %v4937
      %v4969 = vpack.c.bf16 %v4940, %v4939
      %v4970 = vpack.c.bf16 %v4942, %v4941
      %v4971 = vpack.c.bf16 %v4944, %v4943
      %v4972 = vpack.c.bf16 %v4946, %v4945
      %v4973 = vpack.c.bf16 %v4948, %v4947
      %v4974 = vpack.c.bf16 %v4950, %v4949
      %v4975 = vpack.c.bf16 %v4952, %v4951
      %v4976 = vpack.c.bf16 %v4954, %v4953
      %v4977 = vpack.c.bf16 %v4956, %v4955
      %v4978 = vpack.c.bf16 %v4958, %v4957
      %v4979 = vpack.c.bf16 %v4960, %v4959
      %v4980 = vpack.c.bf16 %v4962, %v4961
      %v4981 = vpack.c.bf16 %v4964, %v4963
      %v4982 = vpack.c.bf16 %v4966, %v4965
      %v4983 = vld [vmem:[%s398 + $0x8] sm:$0xff]
      %v4984 = vld [vmem:[%s398 + $0x10] sm:$0xff]
      %v4985 = vld [vmem:[%s398 + $0x28] sm:$0xff]
      %v4986 = vld [vmem:[%s398 + $0x30] sm:$0xff]
      %v4987 = vld [vmem:[%s398 + $0x48] sm:$0xff]
      %v4988 = vld [vmem:[%s398 + $0x50] sm:$0xff]
      %v4989 = vld [vmem:[%s398 + $0x68] sm:$0xff]
      %v4990 = vld [vmem:[%s398 + $0x70] sm:$0xff]
      %v4991 = vld [vmem:[%s398 + $0x88] sm:$0xff]
      %v4992 = vld [vmem:[%s398 + $0x90] sm:$0xff]
      %v4993 = vld [vmem:[%s398 + $0xa8] sm:$0xff]
      %v4994 = vld [vmem:[%s398 + $0xb0] sm:$0xff]
      %v4995 = vld [vmem:[%s398 + $0xc8] sm:$0xff]
      %v4996 = vld [vmem:[%s398 + $0xd0] sm:$0xff]
      %v4997 = vld [vmem:[%s398 + $0xe8] sm:$0xff]
      %v4998 = vld [vmem:[%s398 + $0xf0] sm:$0xff]
      %v4999 = vld [vmem:[%s398 + $0x108] sm:$0xff]
      %v5000 = vld [vmem:[%s398 + $0x110] sm:$0xff]
      %v5001 = vld [vmem:[%s398 + $0x128] sm:$0xff]
      %v5002 = vld [vmem:[%s398 + $0x130] sm:$0xff]
      %v5003 = vld [vmem:[%s398 + $0x148] sm:$0xff]
      %v5004 = vld [vmem:[%s398 + $0x150] sm:$0xff]
      %v5005 = vld [vmem:[%s398 + $0x168] sm:$0xff]
      %v5006 = vld [vmem:[%s398 + $0x170] sm:$0xff]
      %v5007 = vld [vmem:[%s398 + $0x188] sm:$0xff]
      %v5008 = vld [vmem:[%s398 + $0x190] sm:$0xff]
      %v5009 = vld [vmem:[%s398 + $0x1a8] sm:$0xff]
      %v5010 = vld [vmem:[%s398 + $0x1b0] sm:$0xff]
      %v5011 = vld [vmem:[%s398 + $0x1c8] sm:$0xff]
      %v5012 = vld [vmem:[%s398 + $0x1d0] sm:$0xff]
      %v5013 = vld [vmem:[%s398 + $0x1e8] sm:$0xff]
      %v5014 = vld [vmem:[%s398 + $0x1f0] sm:$0xff]
      %v5015 = vpack.c.bf16 %v4984, %v4983
      %v5016 = vpack.c.bf16 %v4986, %v4985
      %v5017 = vpack.c.bf16 %v4988, %v4987
      %v5018 = vpack.c.bf16 %v4990, %v4989
      %v5019 = vpack.c.bf16 %v4992, %v4991
      %v5020 = vpack.c.bf16 %v4994, %v4993
      %v5021 = vpack.c.bf16 %v4996, %v4995
      %v5022 = vpack.c.bf16 %v4998, %v4997
      %v5023 = vpack.c.bf16 %v5000, %v4999
      %v5024 = vpack.c.bf16 %v5002, %v5001
      %v5025 = vpack.c.bf16 %v5004, %v5003
      %v5026 = vpack.c.bf16 %v5006, %v5005
      %v5027 = vpack.c.bf16 %v5008, %v5007
      %v5028 = vpack.c.bf16 %v5010, %v5009
      %v5029 = vpack.c.bf16 %v5012, %v5011
      %v5030 = vpack.c.bf16 %v5014, %v5013
      %v5031 = vld [vmem:[%s398 + $0x9] sm:$0xff]
      %v5032 = vld [vmem:[%s398 + $0x11] sm:$0xff]
      %v5033 = vld [vmem:[%s398 + $0x29] sm:$0xff]
      %v5034 = vld [vmem:[%s398 + $0x31] sm:$0xff]
      %v5035 = vld [vmem:[%s398 + $0x49] sm:$0xff]
      %v5036 = vld [vmem:[%s398 + $0x51] sm:$0xff]
      %v5037 = vld [vmem:[%s398 + $0x69] sm:$0xff]
      %v5038 = vld [vmem:[%s398 + $0x71] sm:$0xff]
      %v5039 = vld [vmem:[%s398 + $0x89] sm:$0xff]
      %v5040 = vld [vmem:[%s398 + $0x91] sm:$0xff]
      %v5041 = vld [vmem:[%s398 + $0xa9] sm:$0xff]
      %v5042 = vld [vmem:[%s398 + $0xb1] sm:$0xff]
      %v5043 = vld [vmem:[%s398 + $0xc9] sm:$0xff]
      %v5044 = vld [vmem:[%s398 + $0xd1] sm:$0xff]
      %v5045 = vld [vmem:[%s398 + $0xe9] sm:$0xff]
      %v5046 = vld [vmem:[%s398 + $0xf1] sm:$0xff]
      %v5047 = vld [vmem:[%s398 + $0x109] sm:$0xff]
      %v5048 = vld [vmem:[%s398 + $0x111] sm:$0xff]
      %v5049 = vld [vmem:[%s398 + $0x129] sm:$0xff]
      %v5050 = vld [vmem:[%s398 + $0x131] sm:$0xff]
      %v5051 = vld [vmem:[%s398 + $0x149] sm:$0xff]
      %v5052 = vld [vmem:[%s398 + $0x151] sm:$0xff]
      %v5053 = vld [vmem:[%s398 + $0x169] sm:$0xff]
      %v5054 = vld [vmem:[%s398 + $0x171] sm:$0xff]
      %v5055 = vld [vmem:[%s398 + $0x189] sm:$0xff]
      %v5056 = vld [vmem:[%s398 + $0x191] sm:$0xff]
      %v5057 = vld [vmem:[%s398 + $0x1a9] sm:$0xff]
      %v5058 = vld [vmem:[%s398 + $0x1b1] sm:$0xff]
      %v5059 = vld [vmem:[%s398 + $0x1c9] sm:$0xff]
      %v5060 = vld [vmem:[%s398 + $0x1d1] sm:$0xff]
      %v5061 = vld [vmem:[%s398 + $0x1e9] sm:$0xff]
      %v5062 = vld [vmem:[%s398 + $0x1f1] sm:$0xff]
      %v5063 = vpack.c.bf16 %v5032, %v5031
      %v5064 = vpack.c.bf16 %v5034, %v5033
      %v5065 = vpack.c.bf16 %v5036, %v5035
      %v5066 = vpack.c.bf16 %v5038, %v5037
      %v5067 = vpack.c.bf16 %v5040, %v5039
      %v5068 = vpack.c.bf16 %v5042, %v5041
      %v5069 = vpack.c.bf16 %v5044, %v5043
      %v5070 = vpack.c.bf16 %v5046, %v5045
      %v5071 = vpack.c.bf16 %v5048, %v5047
      %v5072 = vpack.c.bf16 %v5050, %v5049
      %v5073 = vpack.c.bf16 %v5052, %v5051
      %v5074 = vpack.c.bf16 %v5054, %v5053
      %v5075 = vpack.c.bf16 %v5056, %v5055
      %v5076 = vpack.c.bf16 %v5058, %v5057
      %v5077 = vpack.c.bf16 %v5060, %v5059
      %v5078 = vpack.c.bf16 %v5062, %v5061
      %v5079 = vld [vmem:[%s802 + $0x7] sm:$0xff]
      %v5080 = vld [vmem:[%s802 + $0xf] sm:$0xff]
      %v5081 = vld [vmem:[%s802 + $0x27] sm:$0xff]
      %v5082 = vld [vmem:[%s802 + $0x2f] sm:$0xff]
      %v5083 = vld [vmem:[%s802 + $0x47] sm:$0xff]
      %v5084 = vld [vmem:[%s802 + $0x4f] sm:$0xff]
      %v5085 = vld [vmem:[%s802 + $0x67] sm:$0xff]
      %v5086 = vld [vmem:[%s802 + $0x6f] sm:$0xff]
      %v5087 = vld [vmem:[%s802 + $0x87] sm:$0xff]
      %v5088 = vld [vmem:[%s802 + $0x8f] sm:$0xff]
      %v5089 = vld [vmem:[%s802 + $0xa7] sm:$0xff]
      %v5090 = vld [vmem:[%s802 + $0xaf] sm:$0xff]
      %v5091 = vld [vmem:[%s802 + $0xc7] sm:$0xff]
      %v5092 = vld [vmem:[%s802 + $0xcf] sm:$0xff]
      %v5093 = vld [vmem:[%s802 + $0xe7] sm:$0xff]
      %v5094 = vld [vmem:[%s802 + $0xef] sm:$0xff]
      %v5095 = vld [vmem:[%s802 + $0x107] sm:$0xff]
      %v5096 = vld [vmem:[%s802 + $0x10f] sm:$0xff]
      %v5097 = vld [vmem:[%s802 + $0x127] sm:$0xff]
      %v5098 = vld [vmem:[%s802 + $0x12f] sm:$0xff]
      %v5099 = vld [vmem:[%s802 + $0x147] sm:$0xff]
      %v5100 = vld [vmem:[%s802 + $0x14f] sm:$0xff]
      %v5101 = vld [vmem:[%s802 + $0x167] sm:$0xff]
      %v5102 = vld [vmem:[%s802 + $0x16f] sm:$0xff]
      %v5103 = vld [vmem:[%s802 + $0x187] sm:$0xff]
      %v5104 = vld [vmem:[%s802 + $0x18f] sm:$0xff]
      %v5105 = vld [vmem:[%s802 + $0x1a7] sm:$0xff]
      %v5106 = vld [vmem:[%s802 + $0x1af] sm:$0xff]
      %v5107 = vld [vmem:[%s802 + $0x1c7] sm:$0xff]
      %v5108 = vld [vmem:[%s802 + $0x1cf] sm:$0xff]
      %v5109 = vld [vmem:[%s802 + $0x1e7] sm:$0xff]
      %v5110 = vld [vmem:[%s802 + $0x1ef] sm:$0xff]
      %v5111 = vpack.c.bf16 %v5080, %v5079
      %v5112 = vpack.c.bf16 %v5082, %v5081
      %v5113 = vpack.c.bf16 %v5084, %v5083
      %v5114 = vpack.c.bf16 %v5086, %v5085
      %v5115 = vpack.c.bf16 %v5088, %v5087
      %v5116 = vpack.c.bf16 %v5090, %v5089
      %v5117 = vpack.c.bf16 %v5092, %v5091
      %v5118 = vpack.c.bf16 %v5094, %v5093
      %v5119 = vpack.c.bf16 %v5096, %v5095
      %v5120 = vpack.c.bf16 %v5098, %v5097
      %v5121 = vpack.c.bf16 %v5100, %v5099
      %v5122 = vpack.c.bf16 %v5102, %v5101
      %v5123 = vpack.c.bf16 %v5104, %v5103
      %v5124 = vpack.c.bf16 %v5106, %v5105
      %v5125 = vpack.c.bf16 %v5108, %v5107
      %v5126 = vpack.c.bf16 %v5110, %v5109
      %v5127 = vld [vmem:[%s802 + $0x8] sm:$0xff]
      %v5128 = vld [vmem:[%s802 + $0x10] sm:$0xff]
      %v5129 = vld [vmem:[%s802 + $0x28] sm:$0xff]
      %v5130 = vld [vmem:[%s802 + $0x30] sm:$0xff]
      %v5131 = vld [vmem:[%s802 + $0x48] sm:$0xff]
      %v5132 = vld [vmem:[%s802 + $0x50] sm:$0xff]
      %v5133 = vld [vmem:[%s802 + $0x68] sm:$0xff]
      %v5134 = vld [vmem:[%s802 + $0x70] sm:$0xff]
      %v5135 = vld [vmem:[%s802 + $0x88] sm:$0xff]
      %v5136 = vld [vmem:[%s802 + $0x90] sm:$0xff]
      %v5137 = vld [vmem:[%s802 + $0xa8] sm:$0xff]
      %v5138 = vld [vmem:[%s802 + $0xb0] sm:$0xff]
      %v5139 = vld [vmem:[%s802 + $0xc8] sm:$0xff]
      %v5140 = vld [vmem:[%s802 + $0xd0] sm:$0xff]
      %v5141 = vld [vmem:[%s802 + $0xe8] sm:$0xff]
      %v5142 = vld [vmem:[%s802 + $0xf0] sm:$0xff]
      %v5143 = vld [vmem:[%s802 + $0x108] sm:$0xff]
      %v5144 = vld [vmem:[%s802 + $0x110] sm:$0xff]
      %v5145 = vld [vmem:[%s802 + $0x128] sm:$0xff]
      %v5146 = vld [vmem:[%s802 + $0x130] sm:$0xff]
      %v5147 = vld [vmem:[%s802 + $0x148] sm:$0xff]
      %v5148 = vld [vmem:[%s802 + $0x150] sm:$0xff]
      %v5149 = vld [vmem:[%s802 + $0x168] sm:$0xff]
      %v5150 = vld [vmem:[%s802 + $0x170] sm:$0xff]
      %v5151 = vld [vmem:[%s802 + $0x188] sm:$0xff]
      %v5152 = vld [vmem:[%s802 + $0x190] sm:$0xff]
      %v5153 = vld [vmem:[%s802 + $0x1a8] sm:$0xff]
      %v5154 = vld [vmem:[%s802 + $0x1b0] sm:$0xff]
      %v5155 = vld [vmem:[%s802 + $0x1c8] sm:$0xff]
      %v5156 = vld [vmem:[%s802 + $0x1d0] sm:$0xff]
      %v5157 = vld [vmem:[%s802 + $0x1e8] sm:$0xff]
      %v5158 = vld [vmem:[%s802 + $0x1f0] sm:$0xff]
      %v5159 = vpack.c.bf16 %v5128, %v5127
      %v5160 = vpack.c.bf16 %v5130, %v5129
      %v5161 = vpack.c.bf16 %v5132, %v5131
      %v5162 = vpack.c.bf16 %v5134, %v5133
      %v5163 = vpack.c.bf16 %v5136, %v5135
      %v5164 = vpack.c.bf16 %v5138, %v5137
      %v5165 = vpack.c.bf16 %v5140, %v5139
      %v5166 = vpack.c.bf16 %v5142, %v5141
      %v5167 = vpack.c.bf16 %v5144, %v5143
      %v5168 = vpack.c.bf16 %v5146, %v5145
      %v5169 = vpack.c.bf16 %v5148, %v5147
      %v5170 = vpack.c.bf16 %v5150, %v5149
      %v5171 = vpack.c.bf16 %v5152, %v5151
      %v5172 = vpack.c.bf16 %v5154, %v5153
      %v5173 = vpack.c.bf16 %v5156, %v5155
      %v5174 = vpack.c.bf16 %v5158, %v5157
      %v5175 = vld [vmem:[%s802 + $0x9] sm:$0xff]
      %v5176 = vld [vmem:[%s802 + $0x11] sm:$0xff]
      %v5177 = vld [vmem:[%s802 + $0x29] sm:$0xff]
      %v5178 = vld [vmem:[%s802 + $0x31] sm:$0xff]
      %v5179 = vld [vmem:[%s802 + $0x49] sm:$0xff]
      %v5180 = vld [vmem:[%s802 + $0x51] sm:$0xff]
      %v5181 = vld [vmem:[%s802 + $0x69] sm:$0xff]
      %v5182 = vld [vmem:[%s802 + $0x71] sm:$0xff]
      %v5183 = vld [vmem:[%s802 + $0x89] sm:$0xff]
      %v5184 = vld [vmem:[%s802 + $0x91] sm:$0xff]
      %v5185 = vld [vmem:[%s802 + $0xa9] sm:$0xff]
      %v5186 = vld [vmem:[%s802 + $0xb1] sm:$0xff]
      %v5187 = vld [vmem:[%s802 + $0xc9] sm:$0xff]
      %v5188 = vld [vmem:[%s802 + $0xd1] sm:$0xff]
      %v5189 = vld [vmem:[%s802 + $0xe9] sm:$0xff]
      %v5190 = vld [vmem:[%s802 + $0xf1] sm:$0xff]
      %v5191 = vld [vmem:[%s802 + $0x109] sm:$0xff]
      %v5192 = vld [vmem:[%s802 + $0x111] sm:$0xff]
      %v5193 = vld [vmem:[%s802 + $0x129] sm:$0xff]
      %v5194 = vld [vmem:[%s802 + $0x131] sm:$0xff]
      %v5195 = vld [vmem:[%s802 + $0x149] sm:$0xff]
      %v5196 = vld [vmem:[%s802 + $0x151] sm:$0xff]
      %v5197 = vld [vmem:[%s802 + $0x169] sm:$0xff]
      %v5198 = vld [vmem:[%s802 + $0x171] sm:$0xff]
      %v5199 = vld [vmem:[%s802 + $0x189] sm:$0xff]
      %v5200 = vld [vmem:[%s802 + $0x191] sm:$0xff]
      %v5201 = vld [vmem:[%s802 + $0x1a9] sm:$0xff]
      %v5202 = vld [vmem:[%s802 + $0x1b1] sm:$0xff]
      %v5203 = vld [vmem:[%s802 + $0x1c9] sm:$0xff]
      %v5204 = vld [vmem:[%s802 + $0x1d1] sm:$0xff]
      %v5205 = vld [vmem:[%s802 + $0x1e9] sm:$0xff]
      %v5206 = vld [vmem:[%s802 + $0x1f1] sm:$0xff]
      %v5207 = vpack.c.bf16 %v5176, %v5175
      %v5208 = vpack.c.bf16 %v5178, %v5177
      %v5209 = vpack.c.bf16 %v5180, %v5179
      %v5210 = vpack.c.bf16 %v5182, %v5181
      %v5211 = vpack.c.bf16 %v5184, %v5183
      %v5212 = vpack.c.bf16 %v5186, %v5185
      %v5213 = vpack.c.bf16 %v5188, %v5187
      %v5214 = vpack.c.bf16 %v5190, %v5189
      %v5215 = vpack.c.bf16 %v5192, %v5191
      %v5216 = vpack.c.bf16 %v5194, %v5193
      %v5217 = vpack.c.bf16 %v5196, %v5195
      %v5218 = vpack.c.bf16 %v5198, %v5197
      %v5219 = vpack.c.bf16 %v5200, %v5199
      %v5220 = vpack.c.bf16 %v5202, %v5201
      %v5221 = vpack.c.bf16 %v5204, %v5203
      %v5222 = vpack.c.bf16 %v5206, %v5205
      %5239 = vrot.lane.b32.xlu0 %v4871, 16
      %v5240 = vpop.permute.xlu0 %5239
      %5241 = vrot.lane.b32.xlu0 %v4872, 16
      %v5242 = vpop.permute.xlu0 %5241
      %5243 = vrot.lane.b32.xlu0 %v4873, 16
      %v5244 = vpop.permute.xlu0 %5243
      %5245 = vrot.lane.b32.xlu0 %v4874, 16
      %v5246 = vpop.permute.xlu0 %5245
      %5247 = vrot.lane.b32.xlu0 %v4875, 16
      %v5248 = vpop.permute.xlu0 %5247
      %5249 = vrot.lane.b32.xlu0 %v4876, 16
      %v5250 = vpop.permute.xlu0 %5249
      %5251 = vrot.lane.b32.xlu0 %v4877, 16
      %v5252 = vpop.permute.xlu0 %5251
      %5253 = vrot.lane.b32.xlu0 %v4878, 16
      %v5254 = vpop.permute.xlu0 %5253
      %5255 = vrot.lane.b32.xlu0 %v4879, 16
      %v5256 = vpop.permute.xlu0 %5255
      %5257 = vrot.lane.b32.xlu0 %v4880, 16
      %v5258 = vpop.permute.xlu0 %5257
      %5259 = vrot.lane.b32.xlu0 %v4881, 16
      %v5260 = vpop.permute.xlu0 %5259
      %5261 = vrot.lane.b32.xlu0 %v4882, 16
      %v5262 = vpop.permute.xlu0 %5261
      %5263 = vrot.lane.b32.xlu0 %v4883, 16
      %v5264 = vpop.permute.xlu0 %5263
      %5265 = vrot.lane.b32.xlu0 %v4884, 16
      %v5266 = vpop.permute.xlu0 %5265
      %5267 = vrot.lane.b32.xlu0 %v4885, 16
      %v5268 = vpop.permute.xlu0 %5267
      %5269 = vrot.lane.b32.xlu0 %v4886, 16
      %v5270 = vpop.permute.xlu0 %5269
      %5287 = vrot.lane.b32.xlu0 %v4919, 32
      %v5288 = vpop.permute.xlu0 %5287
      %5289 = vrot.lane.b32.xlu0 %v4920, 32
      %v5290 = vpop.permute.xlu0 %5289
      %5291 = vrot.lane.b32.xlu0 %v4921, 32
      %v5292 = vpop.permute.xlu0 %5291
      %5293 = vrot.lane.b32.xlu0 %v4922, 32
      %v5294 = vpop.permute.xlu0 %5293
      %5295 = vrot.lane.b32.xlu0 %v4923, 32
      %v5296 = vpop.permute.xlu0 %5295
      %5297 = vrot.lane.b32.xlu0 %v4924, 32
      %v5298 = vpop.permute.xlu0 %5297
      %5299 = vrot.lane.b32.xlu0 %v4925, 32
      %v5300 = vpop.permute.xlu0 %5299
      %5301 = vrot.lane.b32.xlu0 %v4926, 32
      %v5302 = vpop.permute.xlu0 %5301
      %5303 = vrot.lane.b32.xlu0 %v4927, 32
      %v5304 = vpop.permute.xlu0 %5303
      %5305 = vrot.lane.b32.xlu0 %v4928, 32
      %v5306 = vpop.permute.xlu0 %5305
      %5307 = vrot.lane.b32.xlu0 %v4929, 32
      %v5308 = vpop.permute.xlu0 %5307
      %5309 = vrot.lane.b32.xlu0 %v4930, 32
      %v5310 = vpop.permute.xlu0 %5309
      %5311 = vrot.lane.b32.xlu0 %v4931, 32
      %v5312 = vpop.permute.xlu0 %5311
      %5313 = vrot.lane.b32.xlu0 %v4932, 32
      %v5314 = vpop.permute.xlu0 %5313
      %5315 = vrot.lane.b32.xlu0 %v4933, 32
      %v5316 = vpop.permute.xlu0 %5315
      %5317 = vrot.lane.b32.xlu0 %v4934, 32
      %v5318 = vpop.permute.xlu0 %5317
      %5335 = vrot.lane.b32.xlu0 %v4967, 48
      %v5336 = vpop.permute.xlu0 %5335
      %5337 = vrot.lane.b32.xlu0 %v4968, 48
      %v5338 = vpop.permute.xlu0 %5337
      %5339 = vrot.lane.b32.xlu0 %v4969, 48
      %v5340 = vpop.permute.xlu0 %5339
      %5341 = vrot.lane.b32.xlu0 %v4970, 48
      %v5342 = vpop.permute.xlu0 %5341
      %5343 = vrot.lane.b32.xlu0 %v4971, 48
      %v5344 = vpop.permute.xlu0 %5343
      %5345 = vrot.lane.b32.xlu0 %v4972, 48
      %v5346 = vpop.permute.xlu0 %5345
      %5347 = vrot.lane.b32.xlu0 %v4973, 48
      %v5348 = vpop.permute.xlu0 %5347
      %5349 = vrot.lane.b32.xlu0 %v4974, 48
      %v5350 = vpop.permute.xlu0 %5349
      %5351 = vrot.lane.b32.xlu0 %v4975, 48
      %v5352 = vpop.permute.xlu0 %5351
      %5353 = vrot.lane.b32.xlu0 %v4976, 48
      %v5354 = vpop.permute.xlu0 %5353
      %5355 = vrot.lane.b32.xlu0 %v4977, 48
      %v5356 = vpop.permute.xlu0 %5355
      %5357 = vrot.lane.b32.xlu0 %v4978, 48
      %v5358 = vpop.permute.xlu0 %5357
      %5359 = vrot.lane.b32.xlu0 %v4979, 48
      %v5360 = vpop.permute.xlu0 %5359
      %5361 = vrot.lane.b32.xlu0 %v4980, 48
      %v5362 = vpop.permute.xlu0 %5361
      %5363 = vrot.lane.b32.xlu0 %v4981, 48
      %v5364 = vpop.permute.xlu0 %5363
      %5365 = vrot.lane.b32.xlu0 %v4982, 48
      %v5366 = vpop.permute.xlu0 %5365
      %5383 = vrot.lane.b32.xlu0 %v5015, 64
      %v5384 = vpop.permute.xlu0 %5383
      %5385 = vrot.lane.b32.xlu0 %v5016, 64
      %v5386 = vpop.permute.xlu0 %5385
      %5387 = vrot.lane.b32.xlu0 %v5017, 64
      %v5388 = vpop.permute.xlu0 %5387
      %5389 = vrot.lane.b32.xlu0 %v5018, 64
      %v5390 = vpop.permute.xlu0 %5389
      %5391 = vrot.lane.b32.xlu0 %v5019, 64
      %v5392 = vpop.permute.xlu0 %5391
      %5393 = vrot.lane.b32.xlu0 %v5020, 64
      %v5394 = vpop.permute.xlu0 %5393
      %5395 = vrot.lane.b32.xlu0 %v5021, 64
      %v5396 = vpop.permute.xlu0 %5395
      %5397 = vrot.lane.b32.xlu0 %v5022, 64
      %v5398 = vpop.permute.xlu0 %5397
      %5399 = vrot.lane.b32.xlu0 %v5023, 64
      %v5400 = vpop.permute.xlu0 %5399
      %5401 = vrot.lane.b32.xlu0 %v5024, 64
      %v5402 = vpop.permute.xlu0 %5401
      %5403 = vrot.lane.b32.xlu0 %v5025, 64
      %v5404 = vpop.permute.xlu0 %5403
      %5405 = vrot.lane.b32.xlu0 %v5026, 64
      %v5406 = vpop.permute.xlu0 %5405
      %5407 = vrot.lane.b32.xlu0 %v5027, 64
      %v5408 = vpop.permute.xlu0 %5407
      %5409 = vrot.lane.b32.xlu0 %v5028, 64
      %v5410 = vpop.permute.xlu0 %5409
      %5411 = vrot.lane.b32.xlu0 %v5029, 64
      %v5412 = vpop.permute.xlu0 %5411
      %5413 = vrot.lane.b32.xlu0 %v5030, 64
      %v5414 = vpop.permute.xlu0 %5413
      %5431 = vrot.lane.b32.xlu0 %v5063, 80
      %v5432 = vpop.permute.xlu0 %5431
      %5433 = vrot.lane.b32.xlu0 %v5064, 80
      %v5434 = vpop.permute.xlu0 %5433
      %5435 = vrot.lane.b32.xlu0 %v5065, 80
      %v5436 = vpop.permute.xlu0 %5435
      %5437 = vrot.lane.b32.xlu0 %v5066, 80
      %v5438 = vpop.permute.xlu0 %5437
      %5439 = vrot.lane.b32.xlu0 %v5067, 80
      %v5440 = vpop.permute.xlu0 %5439
      %5441 = vrot.lane.b32.xlu0 %v5068, 80
      %v5442 = vpop.permute.xlu0 %5441
      %5443 = vrot.lane.b32.xlu0 %v5069, 80
      %v5444 = vpop.permute.xlu0 %5443
      %5445 = vrot.lane.b32.xlu0 %v5070, 80
      %v5446 = vpop.permute.xlu0 %5445
      %5447 = vrot.lane.b32.xlu0 %v5071, 80
      %v5448 = vpop.permute.xlu0 %5447
      %5449 = vrot.lane.b32.xlu0 %v5072, 80
      %v5450 = vpop.permute.xlu0 %5449
      %5451 = vrot.lane.b32.xlu0 %v5073, 80
      %v5452 = vpop.permute.xlu0 %5451
      %5453 = vrot.lane.b32.xlu0 %v5074, 80
      %v5454 = vpop.permute.xlu0 %5453
      %5455 = vrot.lane.b32.xlu0 %v5075, 80
      %v5456 = vpop.permute.xlu0 %5455
      %5457 = vrot.lane.b32.xlu0 %v5076, 80
      %v5458 = vpop.permute.xlu0 %5457
      %5459 = vrot.lane.b32.xlu0 %v5077, 80
      %v5460 = vpop.permute.xlu0 %5459
      %5461 = vrot.lane.b32.xlu0 %v5078, 80
      %v5462 = vpop.permute.xlu0 %5461
      %5479 = vrot.lane.b32.xlu0 %v5111, 96
      %v5480 = vpop.permute.xlu0 %5479
      %5481 = vrot.lane.b32.xlu0 %v5112, 96
      %v5482 = vpop.permute.xlu0 %5481
      %5483 = vrot.lane.b32.xlu0 %v5113, 96
      %v5484 = vpop.permute.xlu0 %5483
      %5485 = vrot.lane.b32.xlu0 %v5114, 96
      %v5486 = vpop.permute.xlu0 %5485
      %5487 = vrot.lane.b32.xlu0 %v5115, 96
      %v5488 = vpop.permute.xlu0 %5487
      %5489 = vrot.lane.b32.xlu0 %v5116, 96
      %v5490 = vpop.permute.xlu0 %5489
      %5491 = vrot.lane.b32.xlu0 %v5117, 96
      %v5492 = vpop.permute.xlu0 %5491
      %5493 = vrot.lane.b32.xlu0 %v5118, 96
      %v5494 = vpop.permute.xlu0 %5493
      %5495 = vrot.lane.b32.xlu0 %v5119, 96
      %v5496 = vpop.permute.xlu0 %5495
      %5497 = vrot.lane.b32.xlu0 %v5120, 96
      %v5498 = vpop.permute.xlu0 %5497
      %5499 = vrot.lane.b32.xlu0 %v5121, 96
      %v5500 = vpop.permute.xlu0 %5499
      %5501 = vrot.lane.b32.xlu0 %v5122, 96
      %v5502 = vpop.permute.xlu0 %5501
      %5503 = vrot.lane.b32.xlu0 %v5123, 96
      %v5504 = vpop.permute.xlu0 %5503
      %5505 = vrot.lane.b32.xlu0 %v5124, 96
      %v5506 = vpop.permute.xlu0 %5505
      %5507 = vrot.lane.b32.xlu0 %v5125, 96
      %v5508 = vpop.permute.xlu0 %5507
      %5509 = vrot.lane.b32.xlu0 %v5126, 96
      %v5510 = vpop.permute.xlu0 %5509
      %5527 = vrot.lane.b32.xlu0 %v5159, 112
      %v5528 = vpop.permute.xlu0 %5527
      %5529 = vrot.lane.b32.xlu0 %v5160, 112
      %v5530 = vpop.permute.xlu0 %5529
      %5531 = vrot.lane.b32.xlu0 %v5161, 112
      %v5532 = vpop.permute.xlu0 %5531
      %5533 = vrot.lane.b32.xlu0 %v5162, 112
      %v5534 = vpop.permute.xlu0 %5533
      %5535 = vrot.lane.b32.xlu0 %v5163, 112
      %v5536 = vpop.permute.xlu0 %5535
      %5537 = vrot.lane.b32.xlu0 %v5164, 112
      %v5538 = vpop.permute.xlu0 %5537
      %5539 = vrot.lane.b32.xlu0 %v5165, 112
      %v5540 = vpop.permute.xlu0 %5539
      %5541 = vrot.lane.b32.xlu0 %v5166, 112
      %v5542 = vpop.permute.xlu0 %5541
      %5543 = vrot.lane.b32.xlu0 %v5167, 112
      %v5544 = vpop.permute.xlu0 %5543
      %5545 = vrot.lane.b32.xlu0 %v5168, 112
      %v5546 = vpop.permute.xlu0 %5545
      %5547 = vrot.lane.b32.xlu0 %v5169, 112
      %v5548 = vpop.permute.xlu0 %5547
      %5549 = vrot.lane.b32.xlu0 %v5170, 112
      %v5550 = vpop.permute.xlu0 %5549
      %5551 = vrot.lane.b32.xlu0 %v5171, 112
      %v5552 = vpop.permute.xlu0 %5551
      %5553 = vrot.lane.b32.xlu0 %v5172, 112
      %v5554 = vpop.permute.xlu0 %5553
      %5555 = vrot.lane.b32.xlu0 %v5173, 112
      %v5556 = vpop.permute.xlu0 %5555
      %5557 = vrot.lane.b32.xlu0 %v5174, 112
      %v5558 = vpop.permute.xlu0 %5557
      %v5561 = vsel %vm388, %v4823, %v5240
      %v5564 = vsel %vm388, %v4824, %v5242
      %v5567 = vsel %vm388, %v4825, %v5244
      %v5570 = vsel %vm388, %v4826, %v5246
      %v5573 = vsel %vm388, %v4827, %v5248
      %v5576 = vsel %vm388, %v4828, %v5250
      %v5579 = vsel %vm388, %v4829, %v5252
      %v5582 = vsel %vm388, %v4830, %v5254
      %v5585 = vsel %vm388, %v4831, %v5256
      %v5588 = vsel %vm388, %v4832, %v5258
      %v5591 = vsel %vm388, %v4833, %v5260
      %v5594 = vsel %vm388, %v4834, %v5262
      %v5597 = vsel %vm388, %v4835, %v5264
      %v5600 = vsel %vm388, %v4836, %v5266
      %v5603 = vsel %vm388, %v4837, %v5268
      %v5606 = vsel %vm388, %v4838, %v5270
      %v5608 = vsel %vm1331, %v5561, %v5288
      %v5610 = vsel %vm1331, %v5564, %v5290
      %v5612 = vsel %vm1331, %v5567, %v5292
      %v5614 = vsel %vm1331, %v5570, %v5294
      %v5616 = vsel %vm1331, %v5573, %v5296
      %v5618 = vsel %vm1331, %v5576, %v5298
      %v5620 = vsel %vm1331, %v5579, %v5300
      %v5622 = vsel %vm1331, %v5582, %v5302
      %v5624 = vsel %vm1331, %v5585, %v5304
      %v5626 = vsel %vm1331, %v5588, %v5306
      %v5628 = vsel %vm1331, %v5591, %v5308
      %v5630 = vsel %vm1331, %v5594, %v5310
      %v5632 = vsel %vm1331, %v5597, %v5312
      %v5634 = vsel %vm1331, %v5600, %v5314
      %v5636 = vsel %vm1331, %v5603, %v5316
      %v5638 = vsel %vm1331, %v5606, %v5318
      %v5640 = vsel %vm1364, %v5608, %v5336
      %v5642 = vsel %vm1364, %v5610, %v5338
      %v5644 = vsel %vm1364, %v5612, %v5340
      %v5646 = vsel %vm1364, %v5614, %v5342
      %v5648 = vsel %vm1364, %v5616, %v5344
      %v5650 = vsel %vm1364, %v5618, %v5346
      %v5652 = vsel %vm1364, %v5620, %v5348
      %v5654 = vsel %vm1364, %v5622, %v5350
      %v5656 = vsel %vm1364, %v5624, %v5352
      %v5658 = vsel %vm1364, %v5626, %v5354
      %v5660 = vsel %vm1364, %v5628, %v5356
      %v5662 = vsel %vm1364, %v5630, %v5358
      %v5664 = vsel %vm1364, %v5632, %v5360
      %v5666 = vsel %vm1364, %v5634, %v5362
      %v5668 = vsel %vm1364, %v5636, %v5364
      %v5670 = vsel %vm1364, %v5638, %v5366
      %v5672 = vsel %vm1397, %v5640, %v5384
      %v5674 = vsel %vm1397, %v5642, %v5386
      %v5676 = vsel %vm1397, %v5644, %v5388
      %v5678 = vsel %vm1397, %v5646, %v5390
      %v5680 = vsel %vm1397, %v5648, %v5392
      %v5682 = vsel %vm1397, %v5650, %v5394
      %v5684 = vsel %vm1397, %v5652, %v5396
      %v5686 = vsel %vm1397, %v5654, %v5398
      %v5688 = vsel %vm1397, %v5656, %v5400
      %v5690 = vsel %vm1397, %v5658, %v5402
      %v5692 = vsel %vm1397, %v5660, %v5404
      %v5694 = vsel %vm1397, %v5662, %v5406
      %v5696 = vsel %vm1397, %v5664, %v5408
      %v5698 = vsel %vm1397, %v5666, %v5410
      %v5700 = vsel %vm1397, %v5668, %v5412
      %v5702 = vsel %vm1397, %v5670, %v5414
      %v5704 = vsel %vm1430, %v5672, %v5432
      %v5706 = vsel %vm1430, %v5674, %v5434
      %v5708 = vsel %vm1430, %v5676, %v5436
      %v5710 = vsel %vm1430, %v5678, %v5438
      %v5712 = vsel %vm1430, %v5680, %v5440
      %v5714 = vsel %vm1430, %v5682, %v5442
      %v5716 = vsel %vm1430, %v5684, %v5444
      %v5718 = vsel %vm1430, %v5686, %v5446
      %v5720 = vsel %vm1430, %v5688, %v5448
      %v5722 = vsel %vm1430, %v5690, %v5450
      %v5724 = vsel %vm1430, %v5692, %v5452
      %v5726 = vsel %vm1430, %v5694, %v5454
      %v5728 = vsel %vm1430, %v5696, %v5456
      %v5730 = vsel %vm1430, %v5698, %v5458
      %v5732 = vsel %vm1430, %v5700, %v5460
      %v5734 = vsel %vm1430, %v5702, %v5462
      %v5736 = vsel %vm1463, %v5704, %v5480
      %v5738 = vsel %vm1463, %v5706, %v5482
      %v5740 = vsel %vm1463, %v5708, %v5484
      %v5742 = vsel %vm1463, %v5710, %v5486
      %v5744 = vsel %vm1463, %v5712, %v5488
      %v5746 = vsel %vm1463, %v5714, %v5490
      %v5748 = vsel %vm1463, %v5716, %v5492
      %v5750 = vsel %vm1463, %v5718, %v5494
      %v5752 = vsel %vm1463, %v5720, %v5496
      %v5754 = vsel %vm1463, %v5722, %v5498
      %v5756 = vsel %vm1463, %v5724, %v5500
      %v5758 = vsel %vm1463, %v5726, %v5502
      %v5760 = vsel %vm1463, %v5728, %v5504
      %v5762 = vsel %vm1463, %v5730, %v5506
      %v5764 = vsel %vm1463, %v5732, %v5508
      %v5766 = vsel %vm1463, %v5734, %v5510
      %v5768 = vsel %vm1496, %v5736, %v5528
      %v5771 = vsel %vm1496, %v5738, %v5530
      %v5774 = vsel %vm1496, %v5740, %v5532
      %v5777 = vsel %vm1496, %v5742, %v5534
      %v5780 = vsel %vm1496, %v5744, %v5536
      %v5783 = vsel %vm1496, %v5746, %v5538
      %v5786 = vsel %vm1496, %v5748, %v5540
      %v5789 = vsel %vm1496, %v5750, %v5542
      %v5792 = vsel %vm1496, %v5752, %v5544
      %v5795 = vsel %vm1496, %v5754, %v5546
      %v5798 = vsel %vm1496, %v5756, %v5548
      %v5801 = vsel %vm1496, %v5758, %v5550
      %v5804 = vsel %vm1496, %v5760, %v5552
      %v5807 = vsel %vm1496, %v5762, %v5554
      %v5810 = vsel %vm1496, %v5764, %v5556
      %v5813 = vsel %vm1496, %v5766, %v5558
      %v5816 = vlaneseq
      %v5817 = vshrl.u32 %v5816, 7
      %v5818 = vsub.s32 0, %v5817
      %v5819 = vrot.slane %v4790, %v5818
      %v5839 = vunpack.c.l.b16 %v4771
      %v5840 = vunpack.c.l.b16 %v4772
      %v5841 = vunpack.c.l.b16 %v4773
      %v5842 = vunpack.c.l.b16 %v4774
      %v5843 = vunpack.c.l.b16 %v4775
      %v5844 = vunpack.c.l.b16 %v4776
      %v5845 = vunpack.c.l.b16 %v4777
      %v5846 = vunpack.c.l.b16 %v4778
      %v5847 = vunpack.c.l.b16 %v4779
      %v5848 = vunpack.c.l.b16 %v4780
      %v5849 = vunpack.c.l.b16 %v4781
      %v5850 = vunpack.c.l.b16 %v4782
      %v5851 = vunpack.c.l.b16 %v4783
      %v5852 = vunpack.c.l.b16 %v4784
      %v5853 = vunpack.c.l.b16 %v4785
      %v5854 = vunpack.c.l.b16 %v4786
      %v5855 = vunpack.c.l.b16 %v4787
      %v5856 = vunpack.c.l.b16 %v4788
      %v5857 = vpack.c.b16 %v5840, %v5839
      %v5858 = vpack.c.b16 %v5842, %v5841
      %v5859 = vpack.c.b16 %v5844, %v5843
      %v5860 = vpack.c.b16 %v5846, %v5845
      %v5861 = vpack.c.b16 %v5848, %v5847
      %v5862 = vpack.c.b16 %v5850, %v5849
      %v5863 = vpack.c.b16 %v5852, %v5851
      %v5864 = vpack.c.b16 %v5854, %v5853
      %v5865 = vpack.c.b16 %v5856, %v5855
      %v5876 = vsel %vm388, %v5207, 0
      %v5879 = vsel %vm388, %v5208, 0
      %v5882 = vsel %vm388, %v5209, 0
      %v5885 = vsel %vm388, %v5210, 0
      %v5888 = vsel %vm388, %v5211, 0
      %v5891 = vsel %vm388, %v5212, 0
      %v5894 = vsel %vm388, %v5213, 0
      %v5897 = vsel %vm388, %v5214, 0
      %v5900 = vsel %vm388, %v5215, 0
      %v5903 = vsel %vm388, %v5216, 0
      %v5906 = vsel %vm388, %v5217, 0
      %v5909 = vsel %vm388, %v5218, 0
      %v5912 = vsel %vm388, %v5219, 0
      %v5915 = vsel %vm388, %v5220, 0
      %v5918 = vsel %vm388, %v5221, 0
      %v5921 = vsel %vm388, %v5222, 0
      %5923 = vmatprep.subr.bf16.mxu0 0
      %5924 = vmatpush1.bf16.msra.mxu0 %v5857
      %5925 = vmatprep.subr.bf16.mxu0 0
      %5926 = vmatpush1.bf16.msra.mxu0 %v5858
      %5927 = vmatprep.subr.bf16.mxu0 0
      %5928 = vmatpush1.bf16.msra.mxu0 %v5859
      %5929 = vmatprep.subr.bf16.mxu0 0
      %5930 = vmatpush1.bf16.msra.mxu0 %v5860
      %5931 = vmatprep.subr.bf16.mxu0 0
      %5932 = vmatpush1.bf16.msra.mxu0 %v5861
      %5933 = vmatprep.subr.bf16.mxu0 0
      %5934 = vmatpush1.bf16.msra.mxu0 %v5862
      %5935 = vmatprep.subr.bf16.mxu0 0
      %5936 = vmatpush1.bf16.msra.mxu0 %v5863
      %5937 = vmatprep.subr.bf16.mxu0 0
      %5938 = vmatpush1.bf16.msra.mxu0 %v5864
      %5939 = vmatprep.subr.bf16.mxu0 0
      %5940 = vmatpush1.bf16.msra.mxu0 %v5865
      %5941 = vmatprep.subr.bf16.mxu0 0
      %5942 = vmatpush1.bf16.msra.mxu0 0
      %5943 = vmatprep.subr.bf16.mxu0 0
      %5944 = vmatpush1.bf16.msra.mxu0 0
      %5945 = vmatprep.subr.bf16.mxu0 0
      %5946 = vmatpush1.bf16.msra.mxu0 0
      %5947 = vmatprep.subr.bf16.mxu0 0
      %5948 = vmatpush1.bf16.msra.mxu0 0
      %5949 = vmatprep.subr.bf16.mxu0 0
      %5950 = vmatpush1.bf16.msra.mxu0 0
      %5951 = vmatprep.subr.bf16.mxu0 0
      %5952 = vmatpush1.bf16.msra.mxu0 0
      %5953 = vmatprep.subr.bf16.mxu0 0
      %5954 = vmatpush1.bf16.msra.mxu0 0
      %5955 = vmatprep.mubr.bf16.mxu0 %v5876
      %5956 = vmatmul.mubr.bf16.gmra.mrb[0].mxu0 %v5768
      %v5957 = vpop.f32.mrb[0].mxu0
      %v5958 = vadd.f32 %v5819, %v5957
      %v5959 = vpop.f32.mrb[0].mxu0
      %v5960 = vpop.f32.mrb[0].mxu0
      %v5961 = vadd.f32 %v5819, %v5960
      %v5962 = vpop.f32.mrb[0].mxu0
      %5963 = vmatprep.mubr.bf16.mxu0 %v5879
      %5964 = vmatmul.mubr.bf16.gmra.mrb[0].mxu0 %v5771
      %v5965 = vpop.f32.mrb[0].mxu0
      %v5966 = vadd.f32 %v5819, %v5965
      %v5967 = vpop.f32.mrb[0].mxu0
      %v5968 = vpop.f32.mrb[0].mxu0
      %v5969 = vadd.f32 %v5819, %v5968
      %v5970 = vpop.f32.mrb[0].mxu0
      %5971 = vmatprep.mubr.bf16.mxu0 %v5882
      %5972 = vmatmul.mubr.bf16.gmra.mrb[0].mxu0 %v5774
      %v5973 = vpop.f32.mrb[0].mxu0
      %v5974 = vadd.f32 %v5819, %v5973
      %v5975 = vpop.f32.mrb[0].mxu0
      %v5976 = vpop.f32.mrb[0].mxu0
      %v5977 = vadd.f32 %v5819, %v5976
      %v5978 = vpop.f32.mrb[0].mxu0
      %5979 = vmatprep.mubr.bf16.mxu0 %v5885
      %5980 = vmatmul.mubr.bf16.gmra.mrb[0].mxu0 %v5777
      %v5981 = vpop.f32.mrb[0].mxu0
      %v5982 = vadd.f32 %v5819, %v5981
      %v5983 = vpop.f32.mrb[0].mxu0
      %v5984 = vpop.f32.mrb[0].mxu0
      %v5985 = vadd.f32 %v5819, %v5984
      %v5986 = vpop.f32.mrb[0].mxu0
      %5987 = vmatprep.mubr.bf16.mxu0 %v5888
      %5988 = vmatmul.mubr.bf16.gmra.mrb[0].mxu0 %v5780
      %v5989 = vpop.f32.mrb[0].mxu0
      %v5990 = vadd.f32 %v5819, %v5989
      %v5991 = vpop.f32.mrb[0].mxu0
      %v5992 = vpop.f32.mrb[0].mxu0
      %v5993 = vadd.f32 %v5819, %v5992
      %v5994 = vpop.f32.mrb[0].mxu0
      %5995 = vmatprep.mubr.bf16.mxu0 %v5891
      %5996 = vmatmul.mubr.bf16.gmra.mrb[0].mxu0 %v5783
      %v5997 = vpop.f32.mrb[0].mxu0
      %v5998 = vadd.f32 %v5819, %v5997
      %v5999 = vpop.f32.mrb[0].mxu0
      %v6000 = vpop.f32.mrb[0].mxu0
      %v6001 = vadd.f32 %v5819, %v6000
      %v6002 = vpop.f32.mrb[0].mxu0
      %6003 = vmatprep.mubr.bf16.mxu0 %v5894
      %6004 = vmatmul.mubr.bf16.gmra.mrb[0].mxu0 %v5786
      %v6005 = vpop.f32.mrb[0].mxu0
      %v6006 = vadd.f32 %v5819, %v6005
      %v6007 = vpop.f32.mrb[0].mxu0
      %v6008 = vpop.f32.mrb[0].mxu0
      %v6009 = vadd.f32 %v5819, %v6008
      %v6010 = vpop.f32.mrb[0].mxu0
      %6011 = vmatprep.mubr.bf16.mxu0 %v5897
      %6012 = vmatmul.mubr.bf16.gmra.mrb[0].mxu0 %v5789
      %v6013 = vpop.f32.mrb[0].mxu0
      %v6014 = vadd.f32 %v5819, %v6013
      %v6015 = vpop.f32.mrb[0].mxu0
      %v6016 = vpop.f32.mrb[0].mxu0
      %v6017 = vadd.f32 %v5819, %v6016
      %v6018 = vpop.f32.mrb[0].mxu0
      %6019 = vmatprep.mubr.bf16.mxu0 %v5900
      %6020 = vmatmul.mubr.bf16.gmra.mrb[0].mxu0 %v5792
      %v6021 = vpop.f32.mrb[0].mxu0
      %v6022 = vadd.f32 %v5819, %v6021
      %v6023 = vpop.f32.mrb[0].mxu0
      %v6024 = vpop.f32.mrb[0].mxu0
      %v6025 = vadd.f32 %v5819, %v6024
      %v6026 = vpop.f32.mrb[0].mxu0
      %6027 = vmatprep.mubr.bf16.mxu0 %v5903
      %6028 = vmatmul.mubr.bf16.gmra.mrb[0].mxu0 %v5795
      %v6029 = vpop.f32.mrb[0].mxu0
      %v6030 = vadd.f32 %v5819, %v6029
      %v6031 = vpop.f32.mrb[0].mxu0
      %v6032 = vpop.f32.mrb[0].mxu0
      %v6033 = vadd.f32 %v5819, %v6032
      %v6034 = vpop.f32.mrb[0].mxu0
      %6035 = vmatprep.mubr.bf16.mxu0 %v5906
      %6036 = vmatmul.mubr.bf16.gmra.mrb[0].mxu0 %v5798
      %v6037 = vpop.f32.mrb[0].mxu0
      %v6038 = vadd.f32 %v5819, %v6037
      %v6039 = vpop.f32.mrb[0].mxu0
      %v6040 = vpop.f32.mrb[0].mxu0
      %v6041 = vadd.f32 %v5819, %v6040
      %v6042 = vpop.f32.mrb[0].mxu0
      %6043 = vmatprep.mubr.bf16.mxu0 %v5909
      %6044 = vmatmul.mubr.bf16.gmra.mrb[0].mxu0 %v5801
      %v6045 = vpop.f32.mrb[0].mxu0
      %v6046 = vadd.f32 %v5819, %v6045
      %v6047 = vpop.f32.mrb[0].mxu0
      %v6048 = vpop.f32.mrb[0].mxu0
      %v6049 = vadd.f32 %v5819, %v6048
      %v6050 = vpop.f32.mrb[0].mxu0
      %6051 = vmatprep.mubr.bf16.mxu0 %v5912
      %6052 = vmatmul.mubr.bf16.gmra.mrb[0].mxu0 %v5804
      %v6053 = vpop.f32.mrb[0].mxu0
      %v6054 = vadd.f32 %v5819, %v6053
      %v6055 = vpop.f32.mrb[0].mxu0
      %v6056 = vpop.f32.mrb[0].mxu0
      %v6057 = vadd.f32 %v5819, %v6056
      %v6058 = vpop.f32.mrb[0].mxu0
      %6059 = vmatprep.mubr.bf16.mxu0 %v5915
      %6060 = vmatmul.mubr.bf16.gmra.mrb[0].mxu0 %v5807
      %v6061 = vpop.f32.mrb[0].mxu0
      %v6062 = vadd.f32 %v5819, %v6061
      %v6063 = vpop.f32.mrb[0].mxu0
      %v6064 = vpop.f32.mrb[0].mxu0
      %v6065 = vadd.f32 %v5819, %v6064
      %v6066 = vpop.f32.mrb[0].mxu0
      %6067 = vmatprep.mubr.bf16.mxu0 %v5918
      %6068 = vmatmul.mubr.bf16.gmra.mrb[0].mxu0 %v5810
      %v6069 = vpop.f32.mrb[0].mxu0
      %v6070 = vadd.f32 %v5819, %v6069
      %v6071 = vpop.f32.mrb[0].mxu0
      %v6072 = vpop.f32.mrb[0].mxu0
      %v6073 = vadd.f32 %v5819, %v6072
      %v6074 = vpop.f32.mrb[0].mxu0
      %6075 = vmatprep.mubr.bf16.mxu0 %v5921
      %6076 = vmatmul.mubr.bf16.gmra.mrb[0].mxu0 %v5813
      %v6077 = vpop.f32.mrb[0].mxu0
      %v6078 = vadd.f32 %v5819, %v6077
      %v6079 = vpop.f32.mrb[0].mxu0
      %v6080 = vpop.f32.mrb[0].mxu0
      %v6081 = vadd.f32 %v5819, %v6080
      %v6082 = vpop.f32.mrb[0].mxu0
      %6083 = vdwg.mxu0
      %v6084 = vsel %vm388, %v5958, 0.0
      %v6085 = vsel %vm388, %v5961, 0.0
      %v6086 = vadd.f32 %v6084, %v6085
      %v6087 = vsel %vm388, %v5966, 0.0
      %v6088 = vadd.f32 %v6086, %v6087
      %v6089 = vsel %vm388, %v5969, 0.0
      %v6090 = vadd.f32 %v6088, %v6089
      %v6091 = vsel %vm388, %v5974, 0.0
      %v6092 = vadd.f32 %v6090, %v6091
      %v6093 = vsel %vm388, %v5977, 0.0
      %v6094 = vadd.f32 %v6092, %v6093
      %v6095 = vsel %vm388, %v5982, 0.0
      %v6096 = vadd.f32 %v6094, %v6095
      %v6097 = vsel %vm388, %v5985, 0.0
      %v6098 = vadd.f32 %v6096, %v6097
      %v6099 = vsel %vm388, %v5990, 0.0
      %v6100 = vadd.f32 %v6098, %v6099
      %v6101 = vsel %vm388, %v5993, 0.0
      %v6102 = vadd.f32 %v6100, %v6101
      %v6103 = vsel %vm388, %v5998, 0.0
      %v6104 = vadd.f32 %v6102, %v6103
      %v6105 = vsel %vm388, %v6001, 0.0
      %v6106 = vadd.f32 %v6104, %v6105
      %v6107 = vsel %vm388, %v6006, 0.0
      %v6108 = vadd.f32 %v6106, %v6107
      %v6109 = vsel %vm388, %v6009, 0.0
      %v6110 = vadd.f32 %v6108, %v6109
      %v6111 = vsel %vm388, %v6014, 0.0
      %v6112 = vadd.f32 %v6110, %v6111
      %v6113 = vsel %vm388, %v6017, 0.0
      %v6114 = vadd.f32 %v6112, %v6113
      %v6115 = vsel %vm388, %v6022, 0.0
      %v6116 = vadd.f32 %v6114, %v6115
      %v6117 = vsel %vm388, %v6025, 0.0
      %v6118 = vadd.f32 %v6116, %v6117
      %v6119 = vsel %vm388, %v6030, 0.0
      %v6120 = vadd.f32 %v6118, %v6119
      %v6121 = vsel %vm388, %v6033, 0.0
      %v6122 = vadd.f32 %v6120, %v6121
      %v6123 = vsel %vm388, %v6038, 0.0
      %v6124 = vadd.f32 %v6122, %v6123
      %v6125 = vsel %vm388, %v6041, 0.0
      %v6126 = vadd.f32 %v6124, %v6125
      %v6127 = vsel %vm388, %v6046, 0.0
      %v6128 = vadd.f32 %v6126, %v6127
      %v6129 = vsel %vm388, %v6049, 0.0
      %v6130 = vadd.f32 %v6128, %v6129
      %v6131 = vsel %vm388, %v6054, 0.0
      %v6132 = vadd.f32 %v6130, %v6131
      %v6133 = vsel %vm388, %v6057, 0.0
      %v6134 = vadd.f32 %v6132, %v6133
      %v6135 = vsel %vm388, %v6062, 0.0
      %v6136 = vadd.f32 %v6134, %v6135
      %v6137 = vsel %vm388, %v6065, 0.0
      %v6138 = vadd.f32 %v6136, %v6137
      %v6139 = vsel %vm388, %v6070, 0.0
      %v6140 = vadd.f32 %v6138, %v6139
      %v6141 = vsel %vm388, %v6073, 0.0
      %v6142 = vadd.f32 %v6140, %v6141
      %v6143 = vsel %vm388, %v6078, 0.0
      %v6144 = vadd.f32 %v6142, %v6143
      %v6145 = vsel %vm388, %v6081, 0.0
      %v6146 = vadd.f32 %v6144, %v6145
      %v6147 = vrot.slane %v6146, 4
      %v6148 = vadd.f32 %v6146, %v6147
      %v6149 = vrot.slane %v6148, 2
      %v6150 = vadd.f32 %v6148, %v6149
      %v6151 = vrot.slane %v6150, 1
      %v6152 = vadd.f32 %v6150, %v6151
      %v6153 = vmul.f32 %v6152, %v3259
      %s6154 = scalar_lea.vmem %s5, 4
      %v6155 = vld [vmem:[%s6154] sm:$0xf]
      %v6156 = vmul.f32 %v6155, %v6153
      %v6157 = vsel %vm3263, %v6156, 0.0
      %6158 = vadd.xlane.f32.xlu0 %v6157
      %v6159 = vpop.xlane.xlu0 %6158
      %s6160 = scalar_lea.vmem %s6, 4
      %v6161 = vld [vmem:[%s6160] sm:$0xf]
      %v6162 = vadd.f32 %v6159, %v6161
      %v6163 = vmax.f32 %v6162, 0.0
      %s6164 = scalar_lea.vmem %s7, 4
      %v6165 = vld [vmem:[%s6164] sm:$0xf]
      %6167 = vset.pattern.permute.xlu0 0
      %6168 = vperm.xlu0 %6167, %v6163
      %v6169 = vpop.permute.xlu0 %6168
      %v6171 = vmul.f32 %v6165, %v6169
      %v6172 = vsel %vm3263, %v6171, 0.0
      %v6173 = vrot.slane %v6172, 4
      %v6174 = vadd.f32 %v6172, %v6173
      %v6175 = vrot.slane %v6174, 2
      %v6176 = vadd.f32 %v6174, %v6175
      %v6177 = vrot.slane %v6176, 1
      %v6178 = vadd.f32 %v6176, %v6177
      %s6179 = scalar_lea.vmem %s8, 1
      %v6180 = vld [vmem:[%s6179] sm:$0x1]
      %v6181 = vadd.f32 %v6178, %v6180
      %v6182 = vsub.f32 0.0, %v6181
      %v6183 = vmul.f32 %v6182, 1.442695
      %v6184 = vpow.pop %v6183
      %v6185 = vadd.f32 %v6184, 1.0
      %v6186 = vrcp.pop %v6185
      %v6187 = vmul.f32 1.0, %v6186
      %v6188 = vlaneseq
      %v6189 = vshrl.u32 %v6188, 7
      %v6190 = vsub.s32 0, %v6189
      %v6191 = vrot.slane %v6187, %v6190
      %v6192 = vmul.f32 %v5958, %v6191
      %v6193 = vmul.f32 %v5961, %v6191
      %v6194 = vmul.f32 %v5966, %v6191
      %v6195 = vmul.f32 %v5969, %v6191
      %v6196 = vmul.f32 %v5974, %v6191
      %v6197 = vmul.f32 %v5977, %v6191
      %v6198 = vmul.f32 %v5982, %v6191
      %v6199 = vmul.f32 %v5985, %v6191
      %v6200 = vmul.f32 %v5990, %v6191
      %v6201 = vmul.f32 %v5993, %v6191
      %v6202 = vmul.f32 %v5998, %v6191
      %v6203 = vmul.f32 %v6001, %v6191
      %v6204 = vmul.f32 %v6006, %v6191
      %v6205 = vmul.f32 %v6009, %v6191
      %v6206 = vmul.f32 %v6014, %v6191
      %v6207 = vmul.f32 %v6017, %v6191
      %v6208 = vmul.f32 %v6022, %v6191
      %v6209 = vmul.f32 %v6025, %v6191
      %v6210 = vmul.f32 %v6030, %v6191
      %v6211 = vmul.f32 %v6033, %v6191
      %v6212 = vmul.f32 %v6038, %v6191
      %v6213 = vmul.f32 %v6041, %v6191
      %v6214 = vmul.f32 %v6046, %v6191
      %v6215 = vmul.f32 %v6049, %v6191
      %v6216 = vmul.f32 %v6054, %v6191
      %v6217 = vmul.f32 %v6057, %v6191
      %v6218 = vmul.f32 %v6062, %v6191
      %v6219 = vmul.f32 %v6065, %v6191
      %v6220 = vmul.f32 %v6070, %v6191
      %v6221 = vmul.f32 %v6073, %v6191
      %v6222 = vmul.f32 %v6078, %v6191
      %v6223 = vmul.f32 %v6081, %v6191
      %v6224 = vadd.f32 %v6192, %v3328
      %v6225 = vadd.f32 %v6193, %v3329
      %v6226 = vadd.f32 %v6194, %v3330
      %v6227 = vadd.f32 %v6195, %v3331
      %v6228 = vadd.f32 %v6196, %v3332
      %v6229 = vadd.f32 %v6197, %v3333
      %v6230 = vadd.f32 %v6198, %v3334
      %v6231 = vadd.f32 %v6199, %v3335
      %v6232 = vadd.f32 %v6200, %v3336
      %v6233 = vadd.f32 %v6201, %v3337
      %v6234 = vadd.f32 %v6202, %v3338
      %v6235 = vadd.f32 %v6203, %v3339
      %v6236 = vadd.f32 %v6204, %v3340
      %v6237 = vadd.f32 %v6205, %v3341
      %v6238 = vadd.f32 %v6206, %v3342
      %v6239 = vadd.f32 %v6207, %v3343
      %v6240 = vadd.f32 %v6208, %v3344
      %v6241 = vadd.f32 %v6209, %v3345
      %v6242 = vadd.f32 %v6210, %v3346
      %v6243 = vadd.f32 %v6211, %v3347
      %v6244 = vadd.f32 %v6212, %v3348
      %v6245 = vadd.f32 %v6213, %v3349
      %v6246 = vadd.f32 %v6214, %v3350
      %v6247 = vadd.f32 %v6215, %v3351
      %v6248 = vadd.f32 %v6216, %v3352
      %v6249 = vadd.f32 %v6217, %v3353
      %v6250 = vadd.f32 %v6218, %v3354
      %v6251 = vadd.f32 %v6219, %v3355
      %v6252 = vadd.f32 %v6220, %v3356
      %v6253 = vadd.f32 %v6221, %v3357
      %v6254 = vadd.f32 %v6222, %v3358
      %v6255 = vadd.f32 %v6223, %v3359
      %6256 = vst.msk [vmem:[%s398 + $0x8] sm:$0xff] %vm388, %v6224
      %6257 = vst.msk [vmem:[%s398 + $0x10] sm:$0xff] %vm388, %v6225
      %6258 = vst.msk [vmem:[%s398 + $0x28] sm:$0xff] %vm388, %v6226
      %6259 = vst.msk [vmem:[%s398 + $0x30] sm:$0xff] %vm388, %v6227
      %6260 = vst.msk [vmem:[%s398 + $0x48] sm:$0xff] %vm388, %v6228
      %6261 = vst.msk [vmem:[%s398 + $0x50] sm:$0xff] %vm388, %v6229
      %6262 = vst.msk [vmem:[%s398 + $0x68] sm:$0xff] %vm388, %v6230
      %6263 = vst.msk [vmem:[%s398 + $0x70] sm:$0xff] %vm388, %v6231
      %6264 = vst.msk [vmem:[%s398 + $0x88] sm:$0xff] %vm388, %v6232
      %6265 = vst.msk [vmem:[%s398 + $0x90] sm:$0xff] %vm388, %v6233
      %6266 = vst.msk [vmem:[%s398 + $0xa8] sm:$0xff] %vm388, %v6234
      %6267 = vst.msk [vmem:[%s398 + $0xb0] sm:$0xff] %vm388, %v6235
      %6268 = vst.msk [vmem:[%s398 + $0xc8] sm:$0xff] %vm388, %v6236
      %6269 = vst.msk [vmem:[%s398 + $0xd0] sm:$0xff] %vm388, %v6237
      %6270 = vst.msk [vmem:[%s398 + $0xe8] sm:$0xff] %vm388, %v6238
      %6271 = vst.msk [vmem:[%s398 + $0xf0] sm:$0xff] %vm388, %v6239
      %6272 = vst.msk [vmem:[%s398 + $0x108] sm:$0xff] %vm388, %v6240
      %6273 = vst.msk [vmem:[%s398 + $0x110] sm:$0xff] %vm388, %v6241
      %6274 = vst.msk [vmem:[%s398 + $0x128] sm:$0xff] %vm388, %v6242
      %6275 = vst.msk [vmem:[%s398 + $0x130] sm:$0xff] %vm388, %v6243
      %6276 = vst.msk [vmem:[%s398 + $0x148] sm:$0xff] %vm388, %v6244
      %6277 = vst.msk [vmem:[%s398 + $0x150] sm:$0xff] %vm388, %v6245
      %6278 = vst.msk [vmem:[%s398 + $0x168] sm:$0xff] %vm388, %v6246
      %6279 = vst.msk [vmem:[%s398 + $0x170] sm:$0xff] %vm388, %v6247
      %6280 = vst.msk [vmem:[%s398 + $0x188] sm:$0xff] %vm388, %v6248
      %6281 = vst.msk [vmem:[%s398 + $0x190] sm:$0xff] %vm388, %v6249
      %6282 = vst.msk [vmem:[%s398 + $0x1a8] sm:$0xff] %vm388, %v6250
      %6283 = vst.msk [vmem:[%s398 + $0x1b0] sm:$0xff] %vm388, %v6251
      %6284 = vst.msk [vmem:[%s398 + $0x1c8] sm:$0xff] %vm388, %v6252
      %6285 = vst.msk [vmem:[%s398 + $0x1d0] sm:$0xff] %vm388, %v6253
      %6286 = vst.msk [vmem:[%s398 + $0x1e8] sm:$0xff] %vm388, %v6254
      %6287 = vst.msk [vmem:[%s398 + $0x1f0] sm:$0xff] %vm388, %v6255
      %v6288 = vld [vmem:[%s9] sm:$0xf]
      %v6289 = vld [vmem:[%s9 + $0x4] sm:$0xf]
      %v6290 = vld [vmem:[%s9 + $0x8] sm:$0xf]
      %v6291 = vld [vmem:[%s9 + $0xc] sm:$0xf]
      %v6292 = vld [vmem:[%s9 + $0x10] sm:$0xf]
      %v6293 = vld [vmem:[%s9 + $0x14] sm:$0xf]
      %v6294 = vld [vmem:[%s9 + $0x18] sm:$0xf]
      %v6295 = vld [vmem:[%s9 + $0x1c] sm:$0xf]
      %v6296 = vld [vmem:[%s9 + $0x20] sm:$0xf]
      %v6297 = vld [vmem:[%s9 + $0x24] sm:$0xf]
      %v6298 = vld [vmem:[%s9 + $0x28] sm:$0xf]
      %v6299 = vld [vmem:[%s9 + $0x2c] sm:$0xf]
      %v6300 = vld [vmem:[%s9 + $0x30] sm:$0xf]
      %v6301 = vld [vmem:[%s9 + $0x34] sm:$0xf]
      %v6302 = vld [vmem:[%s9 + $0x38] sm:$0xf]
      %v6303 = vld [vmem:[%s9 + $0x3c] sm:$0xf]
      %v6304 = vld [vmem:[%s9 + $0x40] sm:$0xf]
      %v6305 = vld [vmem:[%s9 + $0x44] sm:$0xf]
      %v6306 = vld [vmem:[%s10] sm:$0x1]
      %v6307 = vld [vmem:[#allocation2 + $0x7] sm:$0xff]
      %v6308 = vld [vmem:[#allocation2 + $0xf] sm:$0xff]
      %v6309 = vld [vmem:[#allocation2 + $0x27] sm:$0xff]
      %v6310 = vld [vmem:[#allocation2 + $0x2f] sm:$0xff]
      %v6311 = vld [vmem:[#allocation2 + $0x47] sm:$0xff]
      %v6312 = vld [vmem:[#allocation2 + $0x4f] sm:$0xff]
      %v6313 = vld [vmem:[#allocation2 + $0x67] sm:$0xff]
      %v6314 = vld [vmem:[#allocation2 + $0x6f] sm:$0xff]
      %v6315 = vld [vmem:[#allocation2 + $0x87] sm:$0xff]
      %v6316 = vld [vmem:[#allocation2 + $0x8f] sm:$0xff]
      %v6317 = vld [vmem:[#allocation2 + $0xa7] sm:$0xff]
      %v6318 = vld [vmem:[#allocation2 + $0xaf] sm:$0xff]
      %v6319 = vld [vmem:[#allocation2 + $0xc7] sm:$0xff]
      %v6320 = vld [vmem:[#allocation2 + $0xcf] sm:$0xff]
      %v6321 = vld [vmem:[#allocation2 + $0xe7] sm:$0xff]
      %v6322 = vld [vmem:[#allocation2 + $0xef] sm:$0xff]
      %v6323 = vld [vmem:[#allocation2 + $0x107] sm:$0xff]
      %v6324 = vld [vmem:[#allocation2 + $0x10f] sm:$0xff]
      %v6325 = vld [vmem:[#allocation2 + $0x127] sm:$0xff]
      %v6326 = vld [vmem:[#allocation2 + $0x12f] sm:$0xff]
      %v6327 = vld [vmem:[#allocation2 + $0x147] sm:$0xff]
      %v6328 = vld [vmem:[#allocation2 + $0x14f] sm:$0xff]
      %v6329 = vld [vmem:[#allocation2 + $0x167] sm:$0xff]
      %v6330 = vld [vmem:[#allocation2 + $0x16f] sm:$0xff]
      %v6331 = vld [vmem:[#allocation2 + $0x187] sm:$0xff]
      %v6332 = vld [vmem:[#allocation2 + $0x18f] sm:$0xff]
      %v6333 = vld [vmem:[#allocation2 + $0x1a7] sm:$0xff]
      %v6334 = vld [vmem:[#allocation2 + $0x1af] sm:$0xff]
      %v6335 = vld [vmem:[#allocation2 + $0x1c7] sm:$0xff]
      %v6336 = vld [vmem:[#allocation2 + $0x1cf] sm:$0xff]
      %v6337 = vld [vmem:[#allocation2 + $0x1e7] sm:$0xff]
      %v6338 = vld [vmem:[#allocation2 + $0x1ef] sm:$0xff]
      %v6339 = vpack.c.bf16 %v6308, %v6307
      %v6340 = vpack.c.bf16 %v6310, %v6309
      %v6341 = vpack.c.bf16 %v6312, %v6311
      %v6342 = vpack.c.bf16 %v6314, %v6313
      %v6343 = vpack.c.bf16 %v6316, %v6315
      %v6344 = vpack.c.bf16 %v6318, %v6317
      %v6345 = vpack.c.bf16 %v6320, %v6319
      %v6346 = vpack.c.bf16 %v6322, %v6321
      %v6347 = vpack.c.bf16 %v6324, %v6323
      %v6348 = vpack.c.bf16 %v6326, %v6325
      %v6349 = vpack.c.bf16 %v6328, %v6327
      %v6350 = vpack.c.bf16 %v6330, %v6329
      %v6351 = vpack.c.bf16 %v6332, %v6331
      %v6352 = vpack.c.bf16 %v6334, %v6333
      %v6353 = vpack.c.bf16 %v6336, %v6335
      %v6354 = vpack.c.bf16 %v6338, %v6337
      %v6355 = vld [vmem:[#allocation2 + $0x8] sm:$0xff]
      %v6356 = vld [vmem:[#allocation2 + $0x10] sm:$0xff]
      %v6357 = vld [vmem:[#allocation2 + $0x28] sm:$0xff]
      %v6358 = vld [vmem:[#allocation2 + $0x30] sm:$0xff]
      %v6359 = vld [vmem:[#allocation2 + $0x48] sm:$0xff]
      %v6360 = vld [vmem:[#allocation2 + $0x50] sm:$0xff]
      %v6361 = vld [vmem:[#allocation2 + $0x68] sm:$0xff]
      %v6362 = vld [vmem:[#allocation2 + $0x70] sm:$0xff]
      %v6363 = vld [vmem:[#allocation2 + $0x88] sm:$0xff]
      %v6364 = vld [vmem:[#allocation2 + $0x90] sm:$0xff]
      %v6365 = vld [vmem:[#allocation2 + $0xa8] sm:$0xff]
      %v6366 = vld [vmem:[#allocation2 + $0xb0] sm:$0xff]
      %v6367 = vld [vmem:[#allocation2 + $0xc8] sm:$0xff]
      %v6368 = vld [vmem:[#allocation2 + $0xd0] sm:$0xff]
      %v6369 = vld [vmem:[#allocation2 + $0xe8] sm:$0xff]
      %v6370 = vld [vmem:[#allocation2 + $0xf0] sm:$0xff]
      %v6371 = vld [vmem:[#allocation2 + $0x108] sm:$0xff]
      %v6372 = vld [vmem:[#allocation2 + $0x110] sm:$0xff]
      %v6373 = vld [vmem:[#allocation2 + $0x128] sm:$0xff]
      %v6374 = vld [vmem:[#allocation2 + $0x130] sm:$0xff]
      %v6375 = vld [vmem:[#allocation2 + $0x148] sm:$0xff]
      %v6376 = vld [vmem:[#allocation2 + $0x150] sm:$0xff]
      %v6377 = vld [vmem:[#allocation2 + $0x168] sm:$0xff]
      %v6378 = vld [vmem:[#allocation2 + $0x170] sm:$0xff]
      %v6379 = vld [vmem:[#allocation2 + $0x188] sm:$0xff]
      %v6380 = vld [vmem:[#allocation2 + $0x190] sm:$0xff]
      %v6381 = vld [vmem:[#allocation2 + $0x1a8] sm:$0xff]
      %v6382 = vld [vmem:[#allocation2 + $0x1b0] sm:$0xff]
      %v6383 = vld [vmem:[#allocation2 + $0x1c8] sm:$0xff]
      %v6384 = vld [vmem:[#allocation2 + $0x1d0] sm:$0xff]
      %v6385 = vld [vmem:[#allocation2 + $0x1e8] sm:$0xff]
      %v6386 = vld [vmem:[#allocation2 + $0x1f0] sm:$0xff]
      %v6387 = vpack.c.bf16 %v6356, %v6355
      %v6388 = vpack.c.bf16 %v6358, %v6357
      %v6389 = vpack.c.bf16 %v6360, %v6359
      %v6390 = vpack.c.bf16 %v6362, %v6361
      %v6391 = vpack.c.bf16 %v6364, %v6363
      %v6392 = vpack.c.bf16 %v6366, %v6365
      %v6393 = vpack.c.bf16 %v6368, %v6367
      %v6394 = vpack.c.bf16 %v6370, %v6369
      %v6395 = vpack.c.bf16 %v6372, %v6371
      %v6396 = vpack.c.bf16 %v6374, %v6373
      %v6397 = vpack.c.bf16 %v6376, %v6375
      %v6398 = vpack.c.bf16 %v6378, %v6377
      %v6399 = vpack.c.bf16 %v6380, %v6379
      %v6400 = vpack.c.bf16 %v6382, %v6381
      %v6401 = vpack.c.bf16 %v6384, %v6383
      %v6402 = vpack.c.bf16 %v6386, %v6385
      %v6403 = vld [vmem:[#allocation2 + $0x9] sm:$0xff]
      %v6404 = vld [vmem:[#allocation2 + $0x11] sm:$0xff]
      %v6405 = vld [vmem:[#allocation2 + $0x29] sm:$0xff]
      %v6406 = vld [vmem:[#allocation2 + $0x31] sm:$0xff]
      %v6407 = vld [vmem:[#allocation2 + $0x49] sm:$0xff]
      %v6408 = vld [vmem:[#allocation2 + $0x51] sm:$0xff]
      %v6409 = vld [vmem:[#allocation2 + $0x69] sm:$0xff]
      %v6410 = vld [vmem:[#allocation2 + $0x71] sm:$0xff]
      %v6411 = vld [vmem:[#allocation2 + $0x89] sm:$0xff]
      %v6412 = vld [vmem:[#allocation2 + $0x91] sm:$0xff]
      %v6413 = vld [vmem:[#allocation2 + $0xa9] sm:$0xff]
      %v6414 = vld [vmem:[#allocation2 + $0xb1] sm:$0xff]
      %v6415 = vld [vmem:[#allocation2 + $0xc9] sm:$0xff]
      %v6416 = vld [vmem:[#allocation2 + $0xd1] sm:$0xff]
      %v6417 = vld [vmem:[#allocation2 + $0xe9] sm:$0xff]
      %v6418 = vld [vmem:[#allocation2 + $0xf1] sm:$0xff]
      %v6419 = vld [vmem:[#allocation2 + $0x109] sm:$0xff]
      %v6420 = vld [vmem:[#allocation2 + $0x111] sm:$0xff]
      %v6421 = vld [vmem:[#allocation2 + $0x129] sm:$0xff]
      %v6422 = vld [vmem:[#allocation2 + $0x131] sm:$0xff]
      %v6423 = vld [vmem:[#allocation2 + $0x149] sm:$0xff]
      %v6424 = vld [vmem:[#allocation2 + $0x151] sm:$0xff]
      %v6425 = vld [vmem:[#allocation2 + $0x169] sm:$0xff]
      %v6426 = vld [vmem:[#allocation2 + $0x171] sm:$0xff]
      %v6427 = vld [vmem:[#allocation2 + $0x189] sm:$0xff]
      %v6428 = vld [vmem:[#allocation2 + $0x191] sm:$0xff]
      %v6429 = vld [vmem:[#allocation2 + $0x1a9] sm:$0xff]
      %v6430 = vld [vmem:[#allocation2 + $0x1b1] sm:$0xff]
      %v6431 = vld [vmem:[#allocation2 + $0x1c9] sm:$0xff]
      %v6432 = vld [vmem:[#allocation2 + $0x1d1] sm:$0xff]
      %v6433 = vld [vmem:[#allocation2 + $0x1e9] sm:$0xff]
      %v6434 = vld [vmem:[#allocation2 + $0x1f1] sm:$0xff]
      %v6435 = vpack.c.bf16 %v6404, %v6403
      %v6436 = vpack.c.bf16 %v6406, %v6405
      %v6437 = vpack.c.bf16 %v6408, %v6407
      %v6438 = vpack.c.bf16 %v6410, %v6409
      %v6439 = vpack.c.bf16 %v6412, %v6411
      %v6440 = vpack.c.bf16 %v6414, %v6413
      %v6441 = vpack.c.bf16 %v6416, %v6415
      %v6442 = vpack.c.bf16 %v6418, %v6417
      %v6443 = vpack.c.bf16 %v6420, %v6419
      %v6444 = vpack.c.bf16 %v6422, %v6421
      %v6445 = vpack.c.bf16 %v6424, %v6423
      %v6446 = vpack.c.bf16 %v6426, %v6425
      %v6447 = vpack.c.bf16 %v6428, %v6427
      %v6448 = vpack.c.bf16 %v6430, %v6429
      %v6449 = vpack.c.bf16 %v6432, %v6431
      %v6450 = vpack.c.bf16 %v6434, %v6433
      %v6451 = vld [vmem:[%s398 + $0x7] sm:$0xff]
      %v6452 = vld [vmem:[%s398 + $0xf] sm:$0xff]
      %v6453 = vld [vmem:[%s398 + $0x27] sm:$0xff]
      %v6454 = vld [vmem:[%s398 + $0x2f] sm:$0xff]
      %v6455 = vld [vmem:[%s398 + $0x47] sm:$0xff]
      %v6456 = vld [vmem:[%s398 + $0x4f] sm:$0xff]
      %v6457 = vld [vmem:[%s398 + $0x67] sm:$0xff]
      %v6458 = vld [vmem:[%s398 + $0x6f] sm:$0xff]
      %v6459 = vld [vmem:[%s398 + $0x87] sm:$0xff]
      %v6460 = vld [vmem:[%s398 + $0x8f] sm:$0xff]
      %v6461 = vld [vmem:[%s398 + $0xa7] sm:$0xff]
      %v6462 = vld [vmem:[%s398 + $0xaf] sm:$0xff]
      %v6463 = vld [vmem:[%s398 + $0xc7] sm:$0xff]
      %v6464 = vld [vmem:[%s398 + $0xcf] sm:$0xff]
      %v6465 = vld [vmem:[%s398 + $0xe7] sm:$0xff]
      %v6466 = vld [vmem:[%s398 + $0xef] sm:$0xff]
      %v6467 = vld [vmem:[%s398 + $0x107] sm:$0xff]
      %v6468 = vld [vmem:[%s398 + $0x10f] sm:$0xff]
      %v6469 = vld [vmem:[%s398 + $0x127] sm:$0xff]
      %v6470 = vld [vmem:[%s398 + $0x12f] sm:$0xff]
      %v6471 = vld [vmem:[%s398 + $0x147] sm:$0xff]
      %v6472 = vld [vmem:[%s398 + $0x14f] sm:$0xff]
      %v6473 = vld [vmem:[%s398 + $0x167] sm:$0xff]
      %v6474 = vld [vmem:[%s398 + $0x16f] sm:$0xff]
      %v6475 = vld [vmem:[%s398 + $0x187] sm:$0xff]
      %v6476 = vld [vmem:[%s398 + $0x18f] sm:$0xff]
      %v6477 = vld [vmem:[%s398 + $0x1a7] sm:$0xff]
      %v6478 = vld [vmem:[%s398 + $0x1af] sm:$0xff]
      %v6479 = vld [vmem:[%s398 + $0x1c7] sm:$0xff]
      %v6480 = vld [vmem:[%s398 + $0x1cf] sm:$0xff]
      %v6481 = vld [vmem:[%s398 + $0x1e7] sm:$0xff]
      %v6482 = vld [vmem:[%s398 + $0x1ef] sm:$0xff]
      %v6483 = vpack.c.bf16 %v6452, %v6451
      %v6484 = vpack.c.bf16 %v6454, %v6453
      %v6485 = vpack.c.bf16 %v6456, %v6455
      %v6486 = vpack.c.bf16 %v6458, %v6457
      %v6487 = vpack.c.bf16 %v6460, %v6459
      %v6488 = vpack.c.bf16 %v6462, %v6461
      %v6489 = vpack.c.bf16 %v6464, %v6463
      %v6490 = vpack.c.bf16 %v6466, %v6465
      %v6491 = vpack.c.bf16 %v6468, %v6467
      %v6492 = vpack.c.bf16 %v6470, %v6469
      %v6493 = vpack.c.bf16 %v6472, %v6471
      %v6494 = vpack.c.bf16 %v6474, %v6473
      %v6495 = vpack.c.bf16 %v6476, %v6475
      %v6496 = vpack.c.bf16 %v6478, %v6477
      %v6497 = vpack.c.bf16 %v6480, %v6479
      %v6498 = vpack.c.bf16 %v6482, %v6481
      %v6499 = vld [vmem:[%s398 + $0x8] sm:$0xff]
      %v6500 = vld [vmem:[%s398 + $0x10] sm:$0xff]
      %v6501 = vld [vmem:[%s398 + $0x28] sm:$0xff]
      %v6502 = vld [vmem:[%s398 + $0x30] sm:$0xff]
      %v6503 = vld [vmem:[%s398 + $0x48] sm:$0xff]
      %v6504 = vld [vmem:[%s398 + $0x50] sm:$0xff]
      %v6505 = vld [vmem:[%s398 + $0x68] sm:$0xff]
      %v6506 = vld [vmem:[%s398 + $0x70] sm:$0xff]
      %v6507 = vld [vmem:[%s398 + $0x88] sm:$0xff]
      %v6508 = vld [vmem:[%s398 + $0x90] sm:$0xff]
      %v6509 = vld [vmem:[%s398 + $0xa8] sm:$0xff]
      %v6510 = vld [vmem:[%s398 + $0xb0] sm:$0xff]
      %v6511 = vld [vmem:[%s398 + $0xc8] sm:$0xff]
      %v6512 = vld [vmem:[%s398 + $0xd0] sm:$0xff]
      %v6513 = vld [vmem:[%s398 + $0xe8] sm:$0xff]
      %v6514 = vld [vmem:[%s398 + $0xf0] sm:$0xff]
      %v6515 = vld [vmem:[%s398 + $0x108] sm:$0xff]
      %v6516 = vld [vmem:[%s398 + $0x110] sm:$0xff]
      %v6517 = vld [vmem:[%s398 + $0x128] sm:$0xff]
      %v6518 = vld [vmem:[%s398 + $0x130] sm:$0xff]
      %v6519 = vld [vmem:[%s398 + $0x148] sm:$0xff]
      %v6520 = vld [vmem:[%s398 + $0x150] sm:$0xff]
      %v6521 = vld [vmem:[%s398 + $0x168] sm:$0xff]
      %v6522 = vld [vmem:[%s398 + $0x170] sm:$0xff]
      %v6523 = vld [vmem:[%s398 + $0x188] sm:$0xff]
      %v6524 = vld [vmem:[%s398 + $0x190] sm:$0xff]
      %v6525 = vld [vmem:[%s398 + $0x1a8] sm:$0xff]
      %v6526 = vld [vmem:[%s398 + $0x1b0] sm:$0xff]
      %v6527 = vld [vmem:[%s398 + $0x1c8] sm:$0xff]
      %v6528 = vld [vmem:[%s398 + $0x1d0] sm:$0xff]
      %v6529 = vld [vmem:[%s398 + $0x1e8] sm:$0xff]
      %v6530 = vld [vmem:[%s398 + $0x1f0] sm:$0xff]
      %v6531 = vpack.c.bf16 %v6500, %v6499
      %v6532 = vpack.c.bf16 %v6502, %v6501
      %v6533 = vpack.c.bf16 %v6504, %v6503
      %v6534 = vpack.c.bf16 %v6506, %v6505
      %v6535 = vpack.c.bf16 %v6508, %v6507
      %v6536 = vpack.c.bf16 %v6510, %v6509
      %v6537 = vpack.c.bf16 %v6512, %v6511
      %v6538 = vpack.c.bf16 %v6514, %v6513
      %v6539 = vpack.c.bf16 %v6516, %v6515
      %v6540 = vpack.c.bf16 %v6518, %v6517
      %v6541 = vpack.c.bf16 %v6520, %v6519
      %v6542 = vpack.c.bf16 %v6522, %v6521
      %v6543 = vpack.c.bf16 %v6524, %v6523
      %v6544 = vpack.c.bf16 %v6526, %v6525
      %v6545 = vpack.c.bf16 %v6528, %v6527
      %v6546 = vpack.c.bf16 %v6530, %v6529
      %v6547 = vld [vmem:[%s398 + $0x9] sm:$0xff]
      %v6548 = vld [vmem:[%s398 + $0x11] sm:$0xff]
      %v6549 = vld [vmem:[%s398 + $0x29] sm:$0xff]
      %v6550 = vld [vmem:[%s398 + $0x31] sm:$0xff]
      %v6551 = vld [vmem:[%s398 + $0x49] sm:$0xff]
      %v6552 = vld [vmem:[%s398 + $0x51] sm:$0xff]
      %v6553 = vld [vmem:[%s398 + $0x69] sm:$0xff]
      %v6554 = vld [vmem:[%s398 + $0x71] sm:$0xff]
      %v6555 = vld [vmem:[%s398 + $0x89] sm:$0xff]
      %v6556 = vld [vmem:[%s398 + $0x91] sm:$0xff]
      %v6557 = vld [vmem:[%s398 + $0xa9] sm:$0xff]
      %v6558 = vld [vmem:[%s398 + $0xb1] sm:$0xff]
      %v6559 = vld [vmem:[%s398 + $0xc9] sm:$0xff]
      %v6560 = vld [vmem:[%s398 + $0xd1] sm:$0xff]
      %v6561 = vld [vmem:[%s398 + $0xe9] sm:$0xff]
      %v6562 = vld [vmem:[%s398 + $0xf1] sm:$0xff]
      %v6563 = vld [vmem:[%s398 + $0x109] sm:$0xff]
      %v6564 = vld [vmem:[%s398 + $0x111] sm:$0xff]
      %v6565 = vld [vmem:[%s398 + $0x129] sm:$0xff]
      %v6566 = vld [vmem:[%s398 + $0x131] sm:$0xff]
      %v6567 = vld [vmem:[%s398 + $0x149] sm:$0xff]
      %v6568 = vld [vmem:[%s398 + $0x151] sm:$0xff]
      %v6569 = vld [vmem:[%s398 + $0x169] sm:$0xff]
      %v6570 = vld [vmem:[%s398 + $0x171] sm:$0xff]
      %v6571 = vld [vmem:[%s398 + $0x189] sm:$0xff]
      %v6572 = vld [vmem:[%s398 + $0x191] sm:$0xff]
      %v6573 = vld [vmem:[%s398 + $0x1a9] sm:$0xff]
      %v6574 = vld [vmem:[%s398 + $0x1b1] sm:$0xff]
      %v6575 = vld [vmem:[%s398 + $0x1c9] sm:$0xff]
      %v6576 = vld [vmem:[%s398 + $0x1d1] sm:$0xff]
      %v6577 = vld [vmem:[%s398 + $0x1e9] sm:$0xff]
      %v6578 = vld [vmem:[%s398 + $0x1f1] sm:$0xff]
      %v6579 = vpack.c.bf16 %v6548, %v6547
      %v6580 = vpack.c.bf16 %v6550, %v6549
      %v6581 = vpack.c.bf16 %v6552, %v6551
      %v6582 = vpack.c.bf16 %v6554, %v6553
      %v6583 = vpack.c.bf16 %v6556, %v6555
      %v6584 = vpack.c.bf16 %v6558, %v6557
      %v6585 = vpack.c.bf16 %v6560, %v6559
      %v6586 = vpack.c.bf16 %v6562, %v6561
      %v6587 = vpack.c.bf16 %v6564, %v6563
      %v6588 = vpack.c.bf16 %v6566, %v6565
      %v6589 = vpack.c.bf16 %v6568, %v6567
      %v6590 = vpack.c.bf16 %v6570, %v6569
      %v6591 = vpack.c.bf16 %v6572, %v6571
      %v6592 = vpack.c.bf16 %v6574, %v6573
      %v6593 = vpack.c.bf16 %v6576, %v6575
      %v6594 = vpack.c.bf16 %v6578, %v6577
      %v6595 = vld [vmem:[%s802 + $0x7] sm:$0xff]
      %v6596 = vld [vmem:[%s802 + $0xf] sm:$0xff]
      %v6597 = vld [vmem:[%s802 + $0x27] sm:$0xff]
      %v6598 = vld [vmem:[%s802 + $0x2f] sm:$0xff]
      %v6599 = vld [vmem:[%s802 + $0x47] sm:$0xff]
      %v6600 = vld [vmem:[%s802 + $0x4f] sm:$0xff]
      %v6601 = vld [vmem:[%s802 + $0x67] sm:$0xff]
      %v6602 = vld [vmem:[%s802 + $0x6f] sm:$0xff]
      %v6603 = vld [vmem:[%s802 + $0x87] sm:$0xff]
      %v6604 = vld [vmem:[%s802 + $0x8f] sm:$0xff]
      %v6605 = vld [vmem:[%s802 + $0xa7] sm:$0xff]
      %v6606 = vld [vmem:[%s802 + $0xaf] sm:$0xff]
      %v6607 = vld [vmem:[%s802 + $0xc7] sm:$0xff]
      %v6608 = vld [vmem:[%s802 + $0xcf] sm:$0xff]
      %v6609 = vld [vmem:[%s802 + $0xe7] sm:$0xff]
      %v6610 = vld [vmem:[%s802 + $0xef] sm:$0xff]
      %v6611 = vld [vmem:[%s802 + $0x107] sm:$0xff]
      %v6612 = vld [vmem:[%s802 + $0x10f] sm:$0xff]
      %v6613 = vld [vmem:[%s802 + $0x127] sm:$0xff]
      %v6614 = vld [vmem:[%s802 + $0x12f] sm:$0xff]
      %v6615 = vld [vmem:[%s802 + $0x147] sm:$0xff]
      %v6616 = vld [vmem:[%s802 + $0x14f] sm:$0xff]
      %v6617 = vld [vmem:[%s802 + $0x167] sm:$0xff]
      %v6618 = vld [vmem:[%s802 + $0x16f] sm:$0xff]
      %v6619 = vld [vmem:[%s802 + $0x187] sm:$0xff]
      %v6620 = vld [vmem:[%s802 + $0x18f] sm:$0xff]
      %v6621 = vld [vmem:[%s802 + $0x1a7] sm:$0xff]
      %v6622 = vld [vmem:[%s802 + $0x1af] sm:$0xff]
      %v6623 = vld [vmem:[%s802 + $0x1c7] sm:$0xff]
      %v6624 = vld [vmem:[%s802 + $0x1cf] sm:$0xff]
      %v6625 = vld [vmem:[%s802 + $0x1e7] sm:$0xff]
      %v6626 = vld [vmem:[%s802 + $0x1ef] sm:$0xff]
      %v6627 = vpack.c.bf16 %v6596, %v6595
      %v6628 = vpack.c.bf16 %v6598, %v6597
      %v6629 = vpack.c.bf16 %v6600, %v6599
      %v6630 = vpack.c.bf16 %v6602, %v6601
      %v6631 = vpack.c.bf16 %v6604, %v6603
      %v6632 = vpack.c.bf16 %v6606, %v6605
      %v6633 = vpack.c.bf16 %v6608, %v6607
      %v6634 = vpack.c.bf16 %v6610, %v6609
      %v6635 = vpack.c.bf16 %v6612, %v6611
      %v6636 = vpack.c.bf16 %v6614, %v6613
      %v6637 = vpack.c.bf16 %v6616, %v6615
      %v6638 = vpack.c.bf16 %v6618, %v6617
      %v6639 = vpack.c.bf16 %v6620, %v6619
      %v6640 = vpack.c.bf16 %v6622, %v6621
      %v6641 = vpack.c.bf16 %v6624, %v6623
      %v6642 = vpack.c.bf16 %v6626, %v6625
      %v6643 = vld [vmem:[%s802 + $0x8] sm:$0xff]
      %v6644 = vld [vmem:[%s802 + $0x10] sm:$0xff]
      %v6645 = vld [vmem:[%s802 + $0x28] sm:$0xff]
      %v6646 = vld [vmem:[%s802 + $0x30] sm:$0xff]
      %v6647 = vld [vmem:[%s802 + $0x48] sm:$0xff]
      %v6648 = vld [vmem:[%s802 + $0x50] sm:$0xff]
      %v6649 = vld [vmem:[%s802 + $0x68] sm:$0xff]
      %v6650 = vld [vmem:[%s802 + $0x70] sm:$0xff]
      %v6651 = vld [vmem:[%s802 + $0x88] sm:$0xff]
      %v6652 = vld [vmem:[%s802 + $0x90] sm:$0xff]
      %v6653 = vld [vmem:[%s802 + $0xa8] sm:$0xff]
      %v6654 = vld [vmem:[%s802 + $0xb0] sm:$0xff]
      %v6655 = vld [vmem:[%s802 + $0xc8] sm:$0xff]
      %v6656 = vld [vmem:[%s802 + $0xd0] sm:$0xff]
      %v6657 = vld [vmem:[%s802 + $0xe8] sm:$0xff]
      %v6658 = vld [vmem:[%s802 + $0xf0] sm:$0xff]
      %v6659 = vld [vmem:[%s802 + $0x108] sm:$0xff]
      %v6660 = vld [vmem:[%s802 + $0x110] sm:$0xff]
      %v6661 = vld [vmem:[%s802 + $0x128] sm:$0xff]
      %v6662 = vld [vmem:[%s802 + $0x130] sm:$0xff]
      %v6663 = vld [vmem:[%s802 + $0x148] sm:$0xff]
      %v6664 = vld [vmem:[%s802 + $0x150] sm:$0xff]
      %v6665 = vld [vmem:[%s802 + $0x168] sm:$0xff]
      %v6666 = vld [vmem:[%s802 + $0x170] sm:$0xff]
      %v6667 = vld [vmem:[%s802 + $0x188] sm:$0xff]
      %v6668 = vld [vmem:[%s802 + $0x190] sm:$0xff]
      %v6669 = vld [vmem:[%s802 + $0x1a8] sm:$0xff]
      %v6670 = vld [vmem:[%s802 + $0x1b0] sm:$0xff]
      %v6671 = vld [vmem:[%s802 + $0x1c8] sm:$0xff]
      %v6672 = vld [vmem:[%s802 + $0x1d0] sm:$0xff]
      %v6673 = vld [vmem:[%s802 + $0x1e8] sm:$0xff]
      %v6674 = vld [vmem:[%s802 + $0x1f0] sm:$0xff]
      %v6675 = vpack.c.bf16 %v6644, %v6643
      %v6676 = vpack.c.bf16 %v6646, %v6645
      %v6677 = vpack.c.bf16 %v6648, %v6647
      %v6678 = vpack.c.bf16 %v6650, %v6649
      %v6679 = vpack.c.bf16 %v6652, %v6651
      %v6680 = vpack.c.bf16 %v6654, %v6653
      %v6681 = vpack.c.bf16 %v6656, %v6655
      %v6682 = vpack.c.bf16 %v6658, %v6657
      %v6683 = vpack.c.bf16 %v6660, %v6659
      %v6684 = vpack.c.bf16 %v6662, %v6661
      %v6685 = vpack.c.bf16 %v6664, %v6663
      %v6686 = vpack.c.bf16 %v6666, %v6665
      %v6687 = vpack.c.bf16 %v6668, %v6667
      %v6688 = vpack.c.bf16 %v6670, %v6669
      %v6689 = vpack.c.bf16 %v6672, %v6671
      %v6690 = vpack.c.bf16 %v6674, %v6673
      %v6691 = vld [vmem:[%s802 + $0x9] sm:$0xff]
      %v6692 = vld [vmem:[%s802 + $0x11] sm:$0xff]
      %v6693 = vld [vmem:[%s802 + $0x29] sm:$0xff]
      %v6694 = vld [vmem:[%s802 + $0x31] sm:$0xff]
      %v6695 = vld [vmem:[%s802 + $0x49] sm:$0xff]
      %v6696 = vld [vmem:[%s802 + $0x51] sm:$0xff]
      %v6697 = vld [vmem:[%s802 + $0x69] sm:$0xff]
      %v6698 = vld [vmem:[%s802 + $0x71] sm:$0xff]
      %v6699 = vld [vmem:[%s802 + $0x89] sm:$0xff]
      %v6700 = vld [vmem:[%s802 + $0x91] sm:$0xff]
      %v6701 = vld [vmem:[%s802 + $0xa9] sm:$0xff]
      %v6702 = vld [vmem:[%s802 + $0xb1] sm:$0xff]
      %v6703 = vld [vmem:[%s802 + $0xc9] sm:$0xff]
      %v6704 = vld [vmem:[%s802 + $0xd1] sm:$0xff]
      %v6705 = vld [vmem:[%s802 + $0xe9] sm:$0xff]
      %v6706 = vld [vmem:[%s802 + $0xf1] sm:$0xff]
      %v6707 = vld [vmem:[%s802 + $0x109] sm:$0xff]
      %v6708 = vld [vmem:[%s802 + $0x111] sm:$0xff]
      %v6709 = vld [vmem:[%s802 + $0x129] sm:$0xff]
      %v6710 = vld [vmem:[%s802 + $0x131] sm:$0xff]
      %v6711 = vld [vmem:[%s802 + $0x149] sm:$0xff]
      %v6712 = vld [vmem:[%s802 + $0x151] sm:$0xff]
      %v6713 = vld [vmem:[%s802 + $0x169] sm:$0xff]
      %v6714 = vld [vmem:[%s802 + $0x171] sm:$0xff]
      %v6715 = vld [vmem:[%s802 + $0x189] sm:$0xff]
      %v6716 = vld [vmem:[%s802 + $0x191] sm:$0xff]
      %v6717 = vld [vmem:[%s802 + $0x1a9] sm:$0xff]
      %v6718 = vld [vmem:[%s802 + $0x1b1] sm:$0xff]
      %v6719 = vld [vmem:[%s802 + $0x1c9] sm:$0xff]
      %v6720 = vld [vmem:[%s802 + $0x1d1] sm:$0xff]
      %v6721 = vld [vmem:[%s802 + $0x1e9] sm:$0xff]
      %v6722 = vld [vmem:[%s802 + $0x1f1] sm:$0xff]
      %v6723 = vpack.c.bf16 %v6692, %v6691
      %v6724 = vpack.c.bf16 %v6694, %v6693
      %v6725 = vpack.c.bf16 %v6696, %v6695
      %v6726 = vpack.c.bf16 %v6698, %v6697
      %v6727 = vpack.c.bf16 %v6700, %v6699
      %v6728 = vpack.c.bf16 %v6702, %v6701
      %v6729 = vpack.c.bf16 %v6704, %v6703
      %v6730 = vpack.c.bf16 %v6706, %v6705
      %v6731 = vpack.c.bf16 %v6708, %v6707
      %v6732 = vpack.c.bf16 %v6710, %v6709
      %v6733 = vpack.c.bf16 %v6712, %v6711
      %v6734 = vpack.c.bf16 %v6714, %v6713
      %v6735 = vpack.c.bf16 %v6716, %v6715
      %v6736 = vpack.c.bf16 %v6718, %v6717
      %v6737 = vpack.c.bf16 %v6720, %v6719
      %v6738 = vpack.c.bf16 %v6722, %v6721
      %6755 = vrot.lane.b32.xlu0 %v6387, 16
      %v6756 = vpop.permute.xlu0 %6755
      %6757 = vrot.lane.b32.xlu0 %v6388, 16
      %v6758 = vpop.permute.xlu0 %6757
      %6759 = vrot.lane.b32.xlu0 %v6389, 16
      %v6760 = vpop.permute.xlu0 %6759
      %6761 = vrot.lane.b32.xlu0 %v6390, 16
      %v6762 = vpop.permute.xlu0 %6761
      %6763 = vrot.lane.b32.xlu0 %v6391, 16
      %v6764 = vpop.permute.xlu0 %6763
      %6765 = vrot.lane.b32.xlu0 %v6392, 16
      %v6766 = vpop.permute.xlu0 %6765
      %6767 = vrot.lane.b32.xlu0 %v6393, 16
      %v6768 = vpop.permute.xlu0 %6767
      %6769 = vrot.lane.b32.xlu0 %v6394, 16
      %v6770 = vpop.permute.xlu0 %6769
      %6771 = vrot.lane.b32.xlu0 %v6395, 16
      %v6772 = vpop.permute.xlu0 %6771
      %6773 = vrot.lane.b32.xlu0 %v6396, 16
      %v6774 = vpop.permute.xlu0 %6773
      %6775 = vrot.lane.b32.xlu0 %v6397, 16
      %v6776 = vpop.permute.xlu0 %6775
      %6777 = vrot.lane.b32.xlu0 %v6398, 16
      %v6778 = vpop.permute.xlu0 %6777
      %6779 = vrot.lane.b32.xlu0 %v6399, 16
      %v6780 = vpop.permute.xlu0 %6779
      %6781 = vrot.lane.b32.xlu0 %v6400, 16
      %v6782 = vpop.permute.xlu0 %6781
      %6783 = vrot.lane.b32.xlu0 %v6401, 16
      %v6784 = vpop.permute.xlu0 %6783
      %6785 = vrot.lane.b32.xlu0 %v6402, 16
      %v6786 = vpop.permute.xlu0 %6785
      %6803 = vrot.lane.b32.xlu0 %v6435, 32
      %v6804 = vpop.permute.xlu0 %6803
      %6805 = vrot.lane.b32.xlu0 %v6436, 32
      %v6806 = vpop.permute.xlu0 %6805
      %6807 = vrot.lane.b32.xlu0 %v6437, 32
      %v6808 = vpop.permute.xlu0 %6807
      %6809 = vrot.lane.b32.xlu0 %v6438, 32
      %v6810 = vpop.permute.xlu0 %6809
      %6811 = vrot.lane.b32.xlu0 %v6439, 32
      %v6812 = vpop.permute.xlu0 %6811
      %6813 = vrot.lane.b32.xlu0 %v6440, 32
      %v6814 = vpop.permute.xlu0 %6813
      %6815 = vrot.lane.b32.xlu0 %v6441, 32
      %v6816 = vpop.permute.xlu0 %6815
      %6817 = vrot.lane.b32.xlu0 %v6442, 32
      %v6818 = vpop.permute.xlu0 %6817
      %6819 = vrot.lane.b32.xlu0 %v6443, 32
      %v6820 = vpop.permute.xlu0 %6819
      %6821 = vrot.lane.b32.xlu0 %v6444, 32
      %v6822 = vpop.permute.xlu0 %6821
      %6823 = vrot.lane.b32.xlu0 %v6445, 32
      %v6824 = vpop.permute.xlu0 %6823
      %6825 = vrot.lane.b32.xlu0 %v6446, 32
      %v6826 = vpop.permute.xlu0 %6825
      %6827 = vrot.lane.b32.xlu0 %v6447, 32
      %v6828 = vpop.permute.xlu0 %6827
      %6829 = vrot.lane.b32.xlu0 %v6448, 32
      %v6830 = vpop.permute.xlu0 %6829
      %6831 = vrot.lane.b32.xlu0 %v6449, 32
      %v6832 = vpop.permute.xlu0 %6831
      %6833 = vrot.lane.b32.xlu0 %v6450, 32
      %v6834 = vpop.permute.xlu0 %6833
      %6851 = vrot.lane.b32.xlu0 %v6483, 48
      %v6852 = vpop.permute.xlu0 %6851
      %6853 = vrot.lane.b32.xlu0 %v6484, 48
      %v6854 = vpop.permute.xlu0 %6853
      %6855 = vrot.lane.b32.xlu0 %v6485, 48
      %v6856 = vpop.permute.xlu0 %6855
      %6857 = vrot.lane.b32.xlu0 %v6486, 48
      %v6858 = vpop.permute.xlu0 %6857
      %6859 = vrot.lane.b32.xlu0 %v6487, 48
      %v6860 = vpop.permute.xlu0 %6859
      %6861 = vrot.lane.b32.xlu0 %v6488, 48
      %v6862 = vpop.permute.xlu0 %6861
      %6863 = vrot.lane.b32.xlu0 %v6489, 48
      %v6864 = vpop.permute.xlu0 %6863
      %6865 = vrot.lane.b32.xlu0 %v6490, 48
      %v6866 = vpop.permute.xlu0 %6865
      %6867 = vrot.lane.b32.xlu0 %v6491, 48
      %v6868 = vpop.permute.xlu0 %6867
      %6869 = vrot.lane.b32.xlu0 %v6492, 48
      %v6870 = vpop.permute.xlu0 %6869
      %6871 = vrot.lane.b32.xlu0 %v6493, 48
      %v6872 = vpop.permute.xlu0 %6871
      %6873 = vrot.lane.b32.xlu0 %v6494, 48
      %v6874 = vpop.permute.xlu0 %6873
      %6875 = vrot.lane.b32.xlu0 %v6495, 48
      %v6876 = vpop.permute.xlu0 %6875
      %6877 = vrot.lane.b32.xlu0 %v6496, 48
      %v6878 = vpop.permute.xlu0 %6877
      %6879 = vrot.lane.b32.xlu0 %v6497, 48
      %v6880 = vpop.permute.xlu0 %6879
      %6881 = vrot.lane.b32.xlu0 %v6498, 48
      %v6882 = vpop.permute.xlu0 %6881
      %6899 = vrot.lane.b32.xlu0 %v6531, 64
      %v6900 = vpop.permute.xlu0 %6899
      %6901 = vrot.lane.b32.xlu0 %v6532, 64
      %v6902 = vpop.permute.xlu0 %6901
      %6903 = vrot.lane.b32.xlu0 %v6533, 64
      %v6904 = vpop.permute.xlu0 %6903
      %6905 = vrot.lane.b32.xlu0 %v6534, 64
      %v6906 = vpop.permute.xlu0 %6905
      %6907 = vrot.lane.b32.xlu0 %v6535, 64
      %v6908 = vpop.permute.xlu0 %6907
      %6909 = vrot.lane.b32.xlu0 %v6536, 64
      %v6910 = vpop.permute.xlu0 %6909
      %6911 = vrot.lane.b32.xlu0 %v6537, 64
      %v6912 = vpop.permute.xlu0 %6911
      %6913 = vrot.lane.b32.xlu0 %v6538, 64
      %v6914 = vpop.permute.xlu0 %6913
      %6915 = vrot.lane.b32.xlu0 %v6539, 64
      %v6916 = vpop.permute.xlu0 %6915
      %6917 = vrot.lane.b32.xlu0 %v6540, 64
      %v6918 = vpop.permute.xlu0 %6917
      %6919 = vrot.lane.b32.xlu0 %v6541, 64
      %v6920 = vpop.permute.xlu0 %6919
      %6921 = vrot.lane.b32.xlu0 %v6542, 64
      %v6922 = vpop.permute.xlu0 %6921
      %6923 = vrot.lane.b32.xlu0 %v6543, 64
      %v6924 = vpop.permute.xlu0 %6923
      %6925 = vrot.lane.b32.xlu0 %v6544, 64
      %v6926 = vpop.permute.xlu0 %6925
      %6927 = vrot.lane.b32.xlu0 %v6545, 64
      %v6928 = vpop.permute.xlu0 %6927
      %6929 = vrot.lane.b32.xlu0 %v6546, 64
      %v6930 = vpop.permute.xlu0 %6929
      %6947 = vrot.lane.b32.xlu0 %v6579, 80
      %v6948 = vpop.permute.xlu0 %6947
      %6949 = vrot.lane.b32.xlu0 %v6580, 80
      %v6950 = vpop.permute.xlu0 %6949
      %6951 = vrot.lane.b32.xlu0 %v6581, 80
      %v6952 = vpop.permute.xlu0 %6951
      %6953 = vrot.lane.b32.xlu0 %v6582, 80
      %v6954 = vpop.permute.xlu0 %6953
      %6955 = vrot.lane.b32.xlu0 %v6583, 80
      %v6956 = vpop.permute.xlu0 %6955
      %6957 = vrot.lane.b32.xlu0 %v6584, 80
      %v6958 = vpop.permute.xlu0 %6957
      %6959 = vrot.lane.b32.xlu0 %v6585, 80
      %v6960 = vpop.permute.xlu0 %6959
      %6961 = vrot.lane.b32.xlu0 %v6586, 80
      %v6962 = vpop.permute.xlu0 %6961
      %6963 = vrot.lane.b32.xlu0 %v6587, 80
      %v6964 = vpop.permute.xlu0 %6963
      %6965 = vrot.lane.b32.xlu0 %v6588, 80
      %v6966 = vpop.permute.xlu0 %6965
      %6967 = vrot.lane.b32.xlu0 %v6589, 80
      %v6968 = vpop.permute.xlu0 %6967
      %6969 = vrot.lane.b32.xlu0 %v6590, 80
      %v6970 = vpop.permute.xlu0 %6969
      %6971 = vrot.lane.b32.xlu0 %v6591, 80
      %v6972 = vpop.permute.xlu0 %6971
      %6973 = vrot.lane.b32.xlu0 %v6592, 80
      %v6974 = vpop.permute.xlu0 %6973
      %6975 = vrot.lane.b32.xlu0 %v6593, 80
      %v6976 = vpop.permute.xlu0 %6975
      %6977 = vrot.lane.b32.xlu0 %v6594, 80
      %v6978 = vpop.permute.xlu0 %6977
      %6995 = vrot.lane.b32.xlu0 %v6627, 96
      %v6996 = vpop.permute.xlu0 %6995
      %6997 = vrot.lane.b32.xlu0 %v6628, 96
      %v6998 = vpop.permute.xlu0 %6997
      %6999 = vrot.lane.b32.xlu0 %v6629, 96
      %v7000 = vpop.permute.xlu0 %6999
      %7001 = vrot.lane.b32.xlu0 %v6630, 96
      %v7002 = vpop.permute.xlu0 %7001
      %7003 = vrot.lane.b32.xlu0 %v6631, 96
      %v7004 = vpop.permute.xlu0 %7003
      %7005 = vrot.lane.b32.xlu0 %v6632, 96
      %v7006 = vpop.permute.xlu0 %7005
      %7007 = vrot.lane.b32.xlu0 %v6633, 96
      %v7008 = vpop.permute.xlu0 %7007
      %7009 = vrot.lane.b32.xlu0 %v6634, 96
      %v7010 = vpop.permute.xlu0 %7009
      %7011 = vrot.lane.b32.xlu0 %v6635, 96
      %v7012 = vpop.permute.xlu0 %7011
      %7013 = vrot.lane.b32.xlu0 %v6636, 96
      %v7014 = vpop.permute.xlu0 %7013
      %7015 = vrot.lane.b32.xlu0 %v6637, 96
      %v7016 = vpop.permute.xlu0 %7015
      %7017 = vrot.lane.b32.xlu0 %v6638, 96
      %v7018 = vpop.permute.xlu0 %7017
      %7019 = vrot.lane.b32.xlu0 %v6639, 96
      %v7020 = vpop.permute.xlu0 %7019
      %7021 = vrot.lane.b32.xlu0 %v6640, 96
      %v7022 = vpop.permute.xlu0 %7021
      %7023 = vrot.lane.b32.xlu0 %v6641, 96
      %v7024 = vpop.permute.xlu0 %7023
      %7025 = vrot.lane.b32.xlu0 %v6642, 96
      %v7026 = vpop.permute.xlu0 %7025
      %7043 = vrot.lane.b32.xlu0 %v6675, 112
      %v7044 = vpop.permute.xlu0 %7043
      %7045 = vrot.lane.b32.xlu0 %v6676, 112
      %v7046 = vpop.permute.xlu0 %7045
      %7047 = vrot.lane.b32.xlu0 %v6677, 112
      %v7048 = vpop.permute.xlu0 %7047
      %7049 = vrot.lane.b32.xlu0 %v6678, 112
      %v7050 = vpop.permute.xlu0 %7049
      %7051 = vrot.lane.b32.xlu0 %v6679, 112
      %v7052 = vpop.permute.xlu0 %7051
      %7053 = vrot.lane.b32.xlu0 %v6680, 112
      %v7054 = vpop.permute.xlu0 %7053
      %7055 = vrot.lane.b32.xlu0 %v6681, 112
      %v7056 = vpop.permute.xlu0 %7055
      %7057 = vrot.lane.b32.xlu0 %v6682, 112
      %v7058 = vpop.permute.xlu0 %7057
      %7059 = vrot.lane.b32.xlu0 %v6683, 112
      %v7060 = vpop.permute.xlu0 %7059
      %7061 = vrot.lane.b32.xlu0 %v6684, 112
      %v7062 = vpop.permute.xlu0 %7061
      %7063 = vrot.lane.b32.xlu0 %v6685, 112
      %v7064 = vpop.permute.xlu0 %7063
      %7065 = vrot.lane.b32.xlu0 %v6686, 112
      %v7066 = vpop.permute.xlu0 %7065
      %7067 = vrot.lane.b32.xlu0 %v6687, 112
      %v7068 = vpop.permute.xlu0 %7067
      %7069 = vrot.lane.b32.xlu0 %v6688, 112
      %v7070 = vpop.permute.xlu0 %7069
      %7071 = vrot.lane.b32.xlu0 %v6689, 112
      %v7072 = vpop.permute.xlu0 %7071
      %7073 = vrot.lane.b32.xlu0 %v6690, 112
      %v7074 = vpop.permute.xlu0 %7073
      %v7077 = vsel %vm388, %v6339, %v6756
      %v7080 = vsel %vm388, %v6340, %v6758
      %v7083 = vsel %vm388, %v6341, %v6760
      %v7086 = vsel %vm388, %v6342, %v6762
      %v7089 = vsel %vm388, %v6343, %v6764
      %v7092 = vsel %vm388, %v6344, %v6766
      %v7095 = vsel %vm388, %v6345, %v6768
      %v7098 = vsel %vm388, %v6346, %v6770
      %v7101 = vsel %vm388, %v6347, %v6772
      %v7104 = vsel %vm388, %v6348, %v6774
      %v7107 = vsel %vm388, %v6349, %v6776
      %v7110 = vsel %vm388, %v6350, %v6778
      %v7113 = vsel %vm388, %v6351, %v6780
      %v7116 = vsel %vm388, %v6352, %v6782
      %v7119 = vsel %vm388, %v6353, %v6784
      %v7122 = vsel %vm388, %v6354, %v6786
      %v7124 = vsel %vm1331, %v7077, %v6804
      %v7126 = vsel %vm1331, %v7080, %v6806
      %v7128 = vsel %vm1331, %v7083, %v6808
      %v7130 = vsel %vm1331, %v7086, %v6810
      %v7132 = vsel %vm1331, %v7089, %v6812
      %v7134 = vsel %vm1331, %v7092, %v6814
      %v7136 = vsel %vm1331, %v7095, %v6816
      %v7138 = vsel %vm1331, %v7098, %v6818
      %v7140 = vsel %vm1331, %v7101, %v6820
      %v7142 = vsel %vm1331, %v7104, %v6822
      %v7144 = vsel %vm1331, %v7107, %v6824
      %v7146 = vsel %vm1331, %v7110, %v6826
      %v7148 = vsel %vm1331, %v7113, %v6828
      %v7150 = vsel %vm1331, %v7116, %v6830
      %v7152 = vsel %vm1331, %v7119, %v6832
      %v7154 = vsel %vm1331, %v7122, %v6834
      %v7156 = vsel %vm1364, %v7124, %v6852
      %v7158 = vsel %vm1364, %v7126, %v6854
      %v7160 = vsel %vm1364, %v7128, %v6856
      %v7162 = vsel %vm1364, %v7130, %v6858
      %v7164 = vsel %vm1364, %v7132, %v6860
      %v7166 = vsel %vm1364, %v7134, %v6862
      %v7168 = vsel %vm1364, %v7136, %v6864
      %v7170 = vsel %vm1364, %v7138, %v6866
      %v7172 = vsel %vm1364, %v7140, %v6868
      %v7174 = vsel %vm1364, %v7142, %v6870
      %v7176 = vsel %vm1364, %v7144, %v6872
      %v7178 = vsel %vm1364, %v7146, %v6874
      %v7180 = vsel %vm1364, %v7148, %v6876
      %v7182 = vsel %vm1364, %v7150, %v6878
      %v7184 = vsel %vm1364, %v7152, %v6880
      %v7186 = vsel %vm1364, %v7154, %v6882
      %v7188 = vsel %vm1397, %v7156, %v6900
      %v7190 = vsel %vm1397, %v7158, %v6902
      %v7192 = vsel %vm1397, %v7160, %v6904
      %v7194 = vsel %vm1397, %v7162, %v6906
      %v7196 = vsel %vm1397, %v7164, %v6908
      %v7198 = vsel %vm1397, %v7166, %v6910
      %v7200 = vsel %vm1397, %v7168, %v6912
      %v7202 = vsel %vm1397, %v7170, %v6914
      %v7204 = vsel %vm1397, %v7172, %v6916
      %v7206 = vsel %vm1397, %v7174, %v6918
      %v7208 = vsel %vm1397, %v7176, %v6920
      %v7210 = vsel %vm1397, %v7178, %v6922
      %v7212 = vsel %vm1397, %v7180, %v6924
      %v7214 = vsel %vm1397, %v7182, %v6926
      %v7216 = vsel %vm1397, %v7184, %v6928
      %v7218 = vsel %vm1397, %v7186, %v6930
      %v7220 = vsel %vm1430, %v7188, %v6948
      %v7222 = vsel %vm1430, %v7190, %v6950
      %v7224 = vsel %vm1430, %v7192, %v6952
      %v7226 = vsel %vm1430, %v7194, %v6954
      %v7228 = vsel %vm1430, %v7196, %v6956
      %v7230 = vsel %vm1430, %v7198, %v6958
      %v7232 = vsel %vm1430, %v7200, %v6960
      %v7234 = vsel %vm1430, %v7202, %v6962
      %v7236 = vsel %vm1430, %v7204, %v6964
      %v7238 = vsel %vm1430, %v7206, %v6966
      %v7240 = vsel %vm1430, %v7208, %v6968
      %v7242 = vsel %vm1430, %v7210, %v6970
      %v7244 = vsel %vm1430, %v7212, %v6972
      %v7246 = vsel %vm1430, %v7214, %v6974
      %v7248 = vsel %vm1430, %v7216, %v6976
      %v7250 = vsel %vm1430, %v7218, %v6978
      %v7252 = vsel %vm1463, %v7220, %v6996
      %v7254 = vsel %vm1463, %v7222, %v6998
      %v7256 = vsel %vm1463, %v7224, %v7000
      %v7258 = vsel %vm1463, %v7226, %v7002
      %v7260 = vsel %vm1463, %v7228, %v7004
      %v7262 = vsel %vm1463, %v7230, %v7006
      %v7264 = vsel %vm1463, %v7232, %v7008
      %v7266 = vsel %vm1463, %v7234, %v7010
      %v7268 = vsel %vm1463, %v7236, %v7012
      %v7270 = vsel %vm1463, %v7238, %v7014
      %v7272 = vsel %vm1463, %v7240, %v7016
      %v7274 = vsel %vm1463, %v7242, %v7018
      %v7276 = vsel %vm1463, %v7244, %v7020
      %v7278 = vsel %vm1463, %v7246, %v7022
      %v7280 = vsel %vm1463, %v7248, %v7024
      %v7282 = vsel %vm1463, %v7250, %v7026
      %v7284 = vsel %vm1496, %v7252, %v7044
      %v7287 = vsel %vm1496, %v7254, %v7046
      %v7290 = vsel %vm1496, %v7256, %v7048
      %v7293 = vsel %vm1496, %v7258, %v7050
      %v7296 = vsel %vm1496, %v7260, %v7052
      %v7299 = vsel %vm1496, %v7262, %v7054
      %v7302 = vsel %vm1496, %v7264, %v7056
      %v7305 = vsel %vm1496, %v7266, %v7058
      %v7308 = vsel %vm1496, %v7268, %v7060
      %v7311 = vsel %vm1496, %v7270, %v7062
      %v7314 = vsel %vm1496, %v7272, %v7064
      %v7317 = vsel %vm1496, %v7274, %v7066
      %v7320 = vsel %vm1496, %v7276, %v7068
      %v7323 = vsel %vm1496, %v7278, %v7070
      %v7326 = vsel %vm1496, %v7280, %v7072
      %v7329 = vsel %vm1496, %v7282, %v7074
      %v7332 = vlaneseq
      %v7333 = vshrl.u32 %v7332, 7
      %v7334 = vsub.s32 0, %v7333
      %v7335 = vrot.slane %v6306, %v7334
      %v7355 = vunpack.c.l.b16 %v6288
      %v7356 = vunpack.c.l.b16 %v6289
      %v7357 = vunpack.c.l.b16 %v6290
      %v7358 = vunpack.c.l.b16 %v6291
      %v7359 = vunpack.c.l.b16 %v6292
      %v7360 = vunpack.c.l.b16 %v6293
      %v7361 = vunpack.c.l.b16 %v6294
      %v7362 = vunpack.c.l.b16 %v6295
      %v7363 = vunpack.c.l.b16 %v6296
      %v7364 = vunpack.c.l.b16 %v6297
      %v7365 = vunpack.c.l.b16 %v6298
      %v7366 = vunpack.c.l.b16 %v6299
      %v7367 = vunpack.c.l.b16 %v6300
      %v7368 = vunpack.c.l.b16 %v6301
      %v7369 = vunpack.c.l.b16 %v6302
      %v7370 = vunpack.c.l.b16 %v6303
      %v7371 = vunpack.c.l.b16 %v6304
      %v7372 = vunpack.c.l.b16 %v6305
      %v7373 = vpack.c.b16 %v7356, %v7355
      %v7374 = vpack.c.b16 %v7358, %v7357
      %v7375 = vpack.c.b16 %v7360, %v7359
      %v7376 = vpack.c.b16 %v7362, %v7361
      %v7377 = vpack.c.b16 %v7364, %v7363
      %v7378 = vpack.c.b16 %v7366, %v7365
      %v7379 = vpack.c.b16 %v7368, %v7367
      %v7380 = vpack.c.b16 %v7370, %v7369
      %v7381 = vpack.c.b16 %v7372, %v7371
      %v7392 = vsel %vm388, %v6723, 0
      %v7395 = vsel %vm388, %v6724, 0
      %v7398 = vsel %vm388, %v6725, 0
      %v7401 = vsel %vm388, %v6726, 0
      %v7404 = vsel %vm388, %v6727, 0
      %v7407 = vsel %vm388, %v6728, 0
      %v7410 = vsel %vm388, %v6729, 0
      %v7413 = vsel %vm388, %v6730, 0
      %v7416 = vsel %vm388, %v6731, 0
      %v7419 = vsel %vm388, %v6732, 0
      %v7422 = vsel %vm388, %v6733, 0
      %v7425 = vsel %vm388, %v6734, 0
      %v7428 = vsel %vm388, %v6735, 0
      %v7431 = vsel %vm388, %v6736, 0
      %v7434 = vsel %vm388, %v6737, 0
      %v7437 = vsel %vm388, %v6738, 0
      %7439 = vmatprep.subr.bf16.mxu0 0
      %7440 = vmatpush1.bf16.msra.mxu0 %v7373
      %7441 = vmatprep.subr.bf16.mxu0 0
      %7442 = vmatpush1.bf16.msra.mxu0 %v7374
      %7443 = vmatprep.subr.bf16.mxu0 0
      %7444 = vmatpush1.bf16.msra.mxu0 %v7375
      %7445 = vmatprep.subr.bf16.mxu0 0
      %7446 = vmatpush1.bf16.msra.mxu0 %v7376
      %7447 = vmatprep.subr.bf16.mxu0 0
      %7448 = vmatpush1.bf16.msra.mxu0 %v7377
      %7449 = vmatprep.subr.bf16.mxu0 0
      %7450 = vmatpush1.bf16.msra.mxu0 %v7378
      %7451 = vmatprep.subr.bf16.mxu0 0
      %7452 = vmatpush1.bf16.msra.mxu0 %v7379
      %7453 = vmatprep.subr.bf16.mxu0 0
      %7454 = vmatpush1.bf16.msra.mxu0 %v7380
      %7455 = vmatprep.subr.bf16.mxu0 0
      %7456 = vmatpush1.bf16.msra.mxu0 %v7381
      %7457 = vmatprep.subr.bf16.mxu0 0
      %7458 = vmatpush1.bf16.msra.mxu0 0
      %7459 = vmatprep.subr.bf16.mxu0 0
      %7460 = vmatpush1.bf16.msra.mxu0 0
      %7461 = vmatprep.subr.bf16.mxu0 0
      %7462 = vmatpush1.bf16.msra.mxu0 0
      %7463 = vmatprep.subr.bf16.mxu0 0
      %7464 = vmatpush1.bf16.msra.mxu0 0
      %7465 = vmatprep.subr.bf16.mxu0 0
      %7466 = vmatpush1.bf16.msra.mxu0 0
      %7467 = vmatprep.subr.bf16.mxu0 0
      %7468 = vmatpush1.bf16.msra.mxu0 0
      %7469 = vmatprep.subr.bf16.mxu0 0
      %7470 = vmatpush1.bf16.msra.mxu0 0
      %7471 = vmatprep.mubr.bf16.mxu0 %v7392
      %7472 = vmatmul.mubr.bf16.gmra.mrb[0].mxu0 %v7284
      %v7473 = vpop.f32.mrb[0].mxu0
      %v7474 = vadd.f32 %v7335, %v7473
      %v7475 = vpop.f32.mrb[0].mxu0
      %v7476 = vpop.f32.mrb[0].mxu0
      %v7477 = vadd.f32 %v7335, %v7476
      %v7478 = vpop.f32.mrb[0].mxu0
      %7479 = vmatprep.mubr.bf16.mxu0 %v7395
      %7480 = vmatmul.mubr.bf16.gmra.mrb[0].mxu0 %v7287
      %v7481 = vpop.f32.mrb[0].mxu0
      %v7482 = vadd.f32 %v7335, %v7481
      %v7483 = vpop.f32.mrb[0].mxu0
      %v7484 = vpop.f32.mrb[0].mxu0
      %v7485 = vadd.f32 %v7335, %v7484
      %v7486 = vpop.f32.mrb[0].mxu0
      %7487 = vmatprep.mubr.bf16.mxu0 %v7398
      %7488 = vmatmul.mubr.bf16.gmra.mrb[0].mxu0 %v7290
      %v7489 = vpop.f32.mrb[0].mxu0
      %v7490 = vadd.f32 %v7335, %v7489
      %v7491 = vpop.f32.mrb[0].mxu0
      %v7492 = vpop.f32.mrb[0].mxu0
      %v7493 = vadd.f32 %v7335, %v7492
      %v7494 = vpop.f32.mrb[0].mxu0
      %7495 = vmatprep.mubr.bf16.mxu0 %v7401
      %7496 = vmatmul.mubr.bf16.gmra.mrb[0].mxu0 %v7293
      %v7497 = vpop.f32.mrb[0].mxu0
      %v7498 = vadd.f32 %v7335, %v7497
      %v7499 = vpop.f32.mrb[0].mxu0
      %v7500 = vpop.f32.mrb[0].mxu0
      %v7501 = vadd.f32 %v7335, %v7500
      %v7502 = vpop.f32.mrb[0].mxu0
      %7503 = vmatprep.mubr.bf16.mxu0 %v7404
      %7504 = vmatmul.mubr.bf16.gmra.mrb[0].mxu0 %v7296
      %v7505 = vpop.f32.mrb[0].mxu0
      %v7506 = vadd.f32 %v7335, %v7505
      %v7507 = vpop.f32.mrb[0].mxu0
      %v7508 = vpop.f32.mrb[0].mxu0
      %v7509 = vadd.f32 %v7335, %v7508
      %v7510 = vpop.f32.mrb[0].mxu0
      %7511 = vmatprep.mubr.bf16.mxu0 %v7407
      %7512 = vmatmul.mubr.bf16.gmra.mrb[0].mxu0 %v7299
      %v7513 = vpop.f32.mrb[0].mxu0
      %v7514 = vadd.f32 %v7335, %v7513
      %v7515 = vpop.f32.mrb[0].mxu0
      %v7516 = vpop.f32.mrb[0].mxu0
      %v7517 = vadd.f32 %v7335, %v7516
      %v7518 = vpop.f32.mrb[0].mxu0
      %7519 = vmatprep.mubr.bf16.mxu0 %v7410
      %7520 = vmatmul.mubr.bf16.gmra.mrb[0].mxu0 %v7302
      %v7521 = vpop.f32.mrb[0].mxu0
      %v7522 = vadd.f32 %v7335, %v7521
      %v7523 = vpop.f32.mrb[0].mxu0
      %v7524 = vpop.f32.mrb[0].mxu0
      %v7525 = vadd.f32 %v7335, %v7524
      %v7526 = vpop.f32.mrb[0].mxu0
      %7527 = vmatprep.mubr.bf16.mxu0 %v7413
      %7528 = vmatmul.mubr.bf16.gmra.mrb[0].mxu0 %v7305
      %v7529 = vpop.f32.mrb[0].mxu0
      %v7530 = vadd.f32 %v7335, %v7529
      %v7531 = vpop.f32.mrb[0].mxu0
      %v7532 = vpop.f32.mrb[0].mxu0
      %v7533 = vadd.f32 %v7335, %v7532
      %v7534 = vpop.f32.mrb[0].mxu0
      %7535 = vmatprep.mubr.bf16.mxu0 %v7416
      %7536 = vmatmul.mubr.bf16.gmra.mrb[0].mxu0 %v7308
      %v7537 = vpop.f32.mrb[0].mxu0
      %v7538 = vadd.f32 %v7335, %v7537
      %v7539 = vpop.f32.mrb[0].mxu0
      %v7540 = vpop.f32.mrb[0].mxu0
      %v7541 = vadd.f32 %v7335, %v7540
      %v7542 = vpop.f32.mrb[0].mxu0
      %7543 = vmatprep.mubr.bf16.mxu0 %v7419
      %7544 = vmatmul.mubr.bf16.gmra.mrb[0].mxu0 %v7311
      %v7545 = vpop.f32.mrb[0].mxu0
      %v7546 = vadd.f32 %v7335, %v7545
      %v7547 = vpop.f32.mrb[0].mxu0
      %v7548 = vpop.f32.mrb[0].mxu0
      %v7549 = vadd.f32 %v7335, %v7548
      %v7550 = vpop.f32.mrb[0].mxu0
      %7551 = vmatprep.mubr.bf16.mxu0 %v7422
      %7552 = vmatmul.mubr.bf16.gmra.mrb[0].mxu0 %v7314
      %v7553 = vpop.f32.mrb[0].mxu0
      %v7554 = vadd.f32 %v7335, %v7553
      %v7555 = vpop.f32.mrb[0].mxu0
      %v7556 = vpop.f32.mrb[0].mxu0
      %v7557 = vadd.f32 %v7335, %v7556
      %v7558 = vpop.f32.mrb[0].mxu0
      %7559 = vmatprep.mubr.bf16.mxu0 %v7425
      %7560 = vmatmul.mubr.bf16.gmra.mrb[0].mxu0 %v7317
      %v7561 = vpop.f32.mrb[0].mxu0
      %v7562 = vadd.f32 %v7335, %v7561
      %v7563 = vpop.f32.mrb[0].mxu0
      %v7564 = vpop.f32.mrb[0].mxu0
      %v7565 = vadd.f32 %v7335, %v7564
      %v7566 = vpop.f32.mrb[0].mxu0
      %7567 = vmatprep.mubr.bf16.mxu0 %v7428
      %7568 = vmatmul.mubr.bf16.gmra.mrb[0].mxu0 %v7320
      %v7569 = vpop.f32.mrb[0].mxu0
      %v7570 = vadd.f32 %v7335, %v7569
      %v7571 = vpop.f32.mrb[0].mxu0
      %v7572 = vpop.f32.mrb[0].mxu0
      %v7573 = vadd.f32 %v7335, %v7572
      %v7574 = vpop.f32.mrb[0].mxu0
      %7575 = vmatprep.mubr.bf16.mxu0 %v7431
      %7576 = vmatmul.mubr.bf16.gmra.mrb[0].mxu0 %v7323
      %v7577 = vpop.f32.mrb[0].mxu0
      %v7578 = vadd.f32 %v7335, %v7577
      %v7579 = vpop.f32.mrb[0].mxu0
      %v7580 = vpop.f32.mrb[0].mxu0
      %v7581 = vadd.f32 %v7335, %v7580
      %v7582 = vpop.f32.mrb[0].mxu0
      %7583 = vmatprep.mubr.bf16.mxu0 %v7434
      %7584 = vmatmul.mubr.bf16.gmra.mrb[0].mxu0 %v7326
      %v7585 = vpop.f32.mrb[0].mxu0
      %v7586 = vadd.f32 %v7335, %v7585
      %v7587 = vpop.f32.mrb[0].mxu0
      %v7588 = vpop.f32.mrb[0].mxu0
      %v7589 = vadd.f32 %v7335, %v7588
      %v7590 = vpop.f32.mrb[0].mxu0
      %7591 = vmatprep.mubr.bf16.mxu0 %v7437
      %7592 = vmatmul.mubr.bf16.gmra.mrb[0].mxu0 %v7329
      %v7593 = vpop.f32.mrb[0].mxu0
      %v7594 = vadd.f32 %v7335, %v7593
      %v7595 = vpop.f32.mrb[0].mxu0
      %v7596 = vpop.f32.mrb[0].mxu0
      %v7597 = vadd.f32 %v7335, %v7596
      %v7598 = vpop.f32.mrb[0].mxu0
      %7599 = vdwg.mxu0
      %v7600 = vadd.f32 %v7474, %v431
      %v7601 = vadd.f32 %v7477, %v432
      %v7602 = vadd.f32 %v7482, %v433
      %v7603 = vadd.f32 %v7485, %v434
      %v7604 = vadd.f32 %v7490, %v435
      %v7605 = vadd.f32 %v7493, %v436
      %v7606 = vadd.f32 %v7498, %v437
      %v7607 = vadd.f32 %v7501, %v438
      %v7608 = vadd.f32 %v7506, %v439
      %v7609 = vadd.f32 %v7509, %v440
      %v7610 = vadd.f32 %v7514, %v441
      %v7611 = vadd.f32 %v7517, %v442
      %v7612 = vadd.f32 %v7522, %v443
      %v7613 = vadd.f32 %v7525, %v444
      %v7614 = vadd.f32 %v7530, %v445
      %v7615 = vadd.f32 %v7533, %v446
      %v7616 = vadd.f32 %v7538, %v447
      %v7617 = vadd.f32 %v7541, %v448
      %v7618 = vadd.f32 %v7546, %v449
      %v7619 = vadd.f32 %v7549, %v450
      %v7620 = vadd.f32 %v7554, %v451
      %v7621 = vadd.f32 %v7557, %v452
      %v7622 = vadd.f32 %v7562, %v453
      %v7623 = vadd.f32 %v7565, %v454
      %v7624 = vadd.f32 %v7570, %v455
      %v7625 = vadd.f32 %v7573, %v456
      %v7626 = vadd.f32 %v7578, %v457
      %v7627 = vadd.f32 %v7581, %v458
      %v7628 = vadd.f32 %v7586, %v459
      %v7629 = vadd.f32 %v7589, %v460
      %v7630 = vadd.f32 %v7594, %v461
      %v7631 = vadd.f32 %v7597, %v462
      %7632 = vst.msk [vmem:[%s386] sm:$0xff] %vm388, %v7600
      %7633 = vst.msk [vmem:[%s386 + $0x8] sm:$0xff] %vm388, %v7601
      %7634 = vst.msk [vmem:[%s386 + $0x10] sm:$0xff] %vm388, %v7602
      %7635 = vst.msk [vmem:[%s386 + $0x18] sm:$0xff] %vm388, %v7603
      %7636 = vst.msk [vmem:[%s386 + $0x20] sm:$0xff] %vm388, %v7604
      %7637 = vst.msk [vmem:[%s386 + $0x28] sm:$0xff] %vm388, %v7605
      %7638 = vst.msk [vmem:[%s386 + $0x30] sm:$0xff] %vm388, %v7606
      %7639 = vst.msk [vmem:[%s386 + $0x38] sm:$0xff] %vm388, %v7607
      %7640 = vst.msk [vmem:[%s386 + $0x40] sm:$0xff] %vm388, %v7608
      %7641 = vst.msk [vmem:[%s386 + $0x48] sm:$0xff] %vm388, %v7609
      %7642 = vst.msk [vmem:[%s386 + $0x50] sm:$0xff] %vm388, %v7610
      %7643 = vst.msk [vmem:[%s386 + $0x58] sm:$0xff] %vm388, %v7611
      %7644 = vst.msk [vmem:[%s386 + $0x60] sm:$0xff] %vm388, %v7612
      %7645 = vst.msk [vmem:[%s386 + $0x68] sm:$0xff] %vm388, %v7613
      %7646 = vst.msk [vmem:[%s386 + $0x70] sm:$0xff] %vm388, %v7614
      %7647 = vst.msk [vmem:[%s386 + $0x78] sm:$0xff] %vm388, %v7615
      %7648 = vst.msk [vmem:[%s386 + $0x80] sm:$0xff] %vm388, %v7616
      %7649 = vst.msk [vmem:[%s386 + $0x88] sm:$0xff] %vm388, %v7617
      %7650 = vst.msk [vmem:[%s386 + $0x90] sm:$0xff] %vm388, %v7618
      %7651 = vst.msk [vmem:[%s386 + $0x98] sm:$0xff] %vm388, %v7619
      %7652 = vst.msk [vmem:[%s386 + $0xa0] sm:$0xff] %vm388, %v7620
      %7653 = vst.msk [vmem:[%s386 + $0xa8] sm:$0xff] %vm388, %v7621
      %7654 = vst.msk [vmem:[%s386 + $0xb0] sm:$0xff] %vm388, %v7622
      %7655 = vst.msk [vmem:[%s386 + $0xb8] sm:$0xff] %vm388, %v7623
      %7656 = vst.msk [vmem:[%s386 + $0xc0] sm:$0xff] %vm388, %v7624
      %7657 = vst.msk [vmem:[%s386 + $0xc8] sm:$0xff] %vm388, %v7625
      %7658 = vst.msk [vmem:[%s386 + $0xd0] sm:$0xff] %vm388, %v7626
      %7659 = vst.msk [vmem:[%s386 + $0xd8] sm:$0xff] %vm388, %v7627
      %7660 = vst.msk [vmem:[%s386 + $0xe0] sm:$0xff] %vm388, %v7628
      %7661 = vst.msk [vmem:[%s386 + $0xe8] sm:$0xff] %vm388, %v7629
      %7662 = vst.msk [vmem:[%s386 + $0xf0] sm:$0xff] %vm388, %v7630
      %7663 = vst.msk [vmem:[%s386 + $0xf8] sm:$0xff] %vm388, %v7631
      %p7664 = scmp.lt.s32.totalorder %s22, 1
      %s7665 = scalar_select %p7664, %s22, 1
      %s7666 = smul.addr %s7665, 32
      %s7667 = smul.addr %s7666, 8
      %s7668 = scalar_lea.vmem %s11, %s7667
      // Predicated region
      $region65: #{residual_group_forward.1} parent=63 // pred_check
        %p7669 = pneg %p276
      $region66: #{residual_group_forward.1} parent=63 // pred_check_branch
        %7671 = sbr.rel (%p7669) target = $region68
      $region67: #{residual_group_forward.1} parent=63 // pred_region
        _
      $region68: #{residual_group_forward.1} parent=63 // pred_fallthru
        _
    $region64: #{residual_group_forward.1} parent=5 // pred_fallthru
      _
    %p7672 = scmp.le.s32.totalorder 2, %s17
    // Predicated region
    $region69: #{residual_group_forward.1} parent=5 // pred_check
      %p7673 = pneg %p7672
    $region70: #{residual_group_forward.1} parent=5 // pred_check_branch
      %7675 = sbr.rel (%p7673) target = $region72
    $region71: #{residual_group_forward.1} parent=5 // pred_region
      %s7676 = ssub.s32 %s17, 2
      // Predicated region
      $region73: #{residual_group_forward.1} parent=71 // pred_check
        %p7677 = pneg %p282
      $region74: #{residual_group_forward.1} parent=71 // pred_check_branch
        %7679 = sbr.rel (%p7677) target = $region76
      $region75: #{residual_group_forward.1} parent=71 // pred_region
        %p7680 = scmp.lt.s32.totalorder %s23, 1
        %s7681 = scalar_select %p7680, %s23, 1
        %s7682 = smul.addr %s7681, 32
        %s7683 = smul.addr %s7682, 8
        %s7684 = scalar_lea.vmem %s11, %s7683
      $region76: #{residual_group_forward.1} parent=71 // pred_fallthru
        _
    $region72: #{residual_group_forward.1} parent=5 // pred_fallthru
      _
  $region6: #{residual_group_forward.1} parent=0 // loop_footer
    %s21 = sadd.s32 1, %s17
  $region7: #{residual_group_forward.1} parent=0 // loop_footer_branch
    %16 = sbr.rel target = $region3
  $region8: #{residual_group_forward.1} parent=0 // loop_exit
    _

</llo_original>
